<compile_context>
chip_gen: v5e
topology: v5e:2x2
jax: 0.10.0
libtpu: 0.0.40
codegen_flags: <defaults>
</compile_context>

<pallas_src>
import jax
import jax.numpy as jnp
from jax import lax
from jax.experimental import pallas as pl
from jax.experimental.pallas import tpu as pltpu

HIGH = lax.Precision.HIGHEST  # only used by the pure-JAX reference


def _round_up(x, m):
    return (x + m - 1) // m * m


# --------------------------------------------------------------------------
# Pallas kernels
# --------------------------------------------------------------------------
def _conv_pool_relu_kernel(p_ref, w_ref, b_ref, o_ref):
    """conv (im2col matmul) + 2x2 max-pool + bias + ReLU for one M-tile.

    p_ref : (4*mt, K)  bf16  4 pool-window positions stacked group-major in rows
    w_ref : (K, Cout)  bf16  VMEM-resident across the grid
    b_ref : (1, Cout)  f32
    o_ref : (mt, Cout) f32
    maxpool(conv + b) == max(conv) + b since bias is per-channel & ReLU monotone.
    """
    mt = o_ref.shape[0]
    y = jnp.dot(p_ref[...], w_ref[...], preferred_element_type=jnp.float32)
    y = jnp.maximum(jnp.maximum(y[0 * mt:1 * mt], y[1 * mt:2 * mt]),
                    jnp.maximum(y[2 * mt:3 * mt], y[3 * mt:4 * mt]))
    o_ref[...] = jnp.maximum(y + b_ref[...], 0.0)


def _mlp_kernel(x_ref, w1_ref, b1_ref, w2_ref, b2_ref, w3_ref, b3_ref, o_ref):
    """Fused 3-layer MLP: relu(x@W1+b1) -> relu(.@W2+b2) -> .@W3+b3 (bf16 in, f32 acc)."""
    h = jnp.dot(x_ref[...], w1_ref[...], preferred_element_type=jnp.float32) + b1_ref[...]
    h = jnp.maximum(h, 0.0).astype(jnp.bfloat16)
    h = jnp.dot(h, w2_ref[...], preferred_element_type=jnp.float32) + b2_ref[...]
    h = jnp.maximum(h, 0.0).astype(jnp.bfloat16)
    o_ref[...] = jnp.dot(h, w3_ref[...], preferred_element_type=jnp.float32) + b3_ref[...]


_COMPILER_PARAMS = pltpu.CompilerParams(
    dimension_semantics=("parallel",),
    vmem_limit_bytes=32 * 1024 * 1024,
)


# --------------------------------------------------------------------------
# Wrappers (im2col / layout glue in plain JAX, hot path in Pallas)
# --------------------------------------------------------------------------
def _pick_m_tile(m, k, budget_bytes=4 << 20):
    """Rows per grid step so the (4*mt, K) bf16 patch block stays <= budget."""
    mt = (budget_bytes // (4 * k * 2)) // 8 * 8
    mt = max(8, min(512, mt))
    return min(mt, _round_up(m, 8))


def conv_pool_relu(x_nhwc, w_kc, b_1c, ksize=5):
    B, H, W, Cin = x_nhwc.shape
    K, Cout = w_kc.shape
    assert K == Cin * ksize * ksize
    Ho, Wo = H - ksize + 1, W - ksize + 1
    Hp, Wp = Ho // 2, Wo // 2          # note: assumes even Ho/Wo (true for 32x32 input)
    M = B * Hp * Wp

    # im2col in NHWC; feature ordering (cin, kh, kw) matches torch weight.reshape(Cout,-1)
    patches = jnp.stack([x_nhwc[:, i:i + Ho, j:j + Wo, :]
                         for i in range(ksize) for j in range(ksize)], axis=-1)
    patches = patches.reshape(B, Ho, Wo, K)          # (B,Ho,Wo,Cin,k*k) -> (B,Ho,Wo,K)

    # 4 members of each 2x2 pooling window, as (4, M, K), bf16 to halve HBM traffic
    p4 = jnp.stack([patches[:, dy::2, dx::2, :] for dy in (0, 1) for dx in (0, 1)],
                   axis=0).reshape(4, M, K).astype(jnp.bfloat16)

    mt = _pick_m_tile(M, K)
    Mpad = _round_up(M, mt)
    nt = Mpad // mt
    p4 = jnp.pad(p4, ((0, 0), (0, Mpad - M), (0, 0)))
    # interleave the 4 groups per M-tile so each grid block is a contiguous (4*mt, K)
    pstack = p4.reshape(4, nt, mt, K).transpose(1, 0, 2, 3).reshape(nt * 4 * mt, K)

    flops = 2 * (nt * 4 * mt) * K * Cout
    bytes_accessed = pstack.size * 2 + K * Cout * 2 + Mpad * Cout * 4

    out = pl.pallas_call(
        _conv_pool_relu_kernel,
        out_shape=jax.ShapeDtypeStruct((Mpad, Cout), jnp.float32),
        grid=(nt,),
        in_specs=[
            pl.BlockSpec((4 * mt, K), lambda i: (i, 0)),
            pl.BlockSpec((K, Cout), lambda i: (0, 0)),   # weights stay VMEM-resident
            pl.BlockSpec((1, Cout), lambda i: (0, 0)),
        ],
        out_specs=pl.BlockSpec((mt, Cout), lambda i: (i, 0)),
        compiler_params=_COMPILER_PARAMS,
        cost_estimate=pl.CostEstimate(flops=flops, transcendentals=0,
                                      bytes_accessed=bytes_accessed),
    )(pstack, w_kc, b_1c)

    return out[:M].reshape(B, Hp, Wp, Cout)          # stay NHWC, no transpose


def mlp(x_flat, w1, b1, w2, b2, w3, b3):
    B, Din = x_flat.shape
    Dout = w3.shape[1]
    bt = min(256, _round_up(B, 16))
    Bpad = _round_up(B, bt)
    nt = Bpad // bt
    xp = jnp.pad(x_flat, ((0, Bpad - B), (0, 0))).astype(jnp.bfloat16)

    flops = 2 * Bpad * (w1.shape[0] * w1.shape[1] + w2.shape[0] * w2.shape[1]
                        + w3.shape[0] * w3.shape[1])
    bytes_accessed = (xp.size * 2 + (w1.size + w2.size + w3.size) * 2 + Bpad * Dout * 4)

    out = pl.pallas_call(
        _mlp_kernel,
        out_shape=jax.ShapeDtypeStruct((Bpad, Dout), jnp.float32),
        grid=(nt,),
        in_specs=[
            pl.BlockSpec((bt, Din), lambda i: (i, 0)),
            pl.BlockSpec(w1.shape, lambda i: (0, 0)),
            pl.BlockSpec(b1.shape, lambda i: (0, 0)),
            pl.BlockSpec(w2.shape, lambda i: (0, 0)),
            pl.BlockSpec(b2.shape, lambda i: (0, 0)),
            pl.BlockSpec(w3.shape, lambda i: (0, 0)),
            pl.BlockSpec(b3.shape, lambda i: (0, 0)),
        ],
        out_specs=pl.BlockSpec((bt, Dout), lambda i: (i, 0)),
        compiler_params=_COMPILER_PARAMS,
        cost_estimate=pl.CostEstimate(flops=flops, transcendentals=0,
                                      bytes_accessed=bytes_accessed),
    )(xp, w1, b1, w2, b2, w3, b3)
    return out[:B]


def prepare_params(p):
    """Torch-convention params -> kernel-ready (bf16, transposed, NHWC-permuted w1)."""
    c1, c2 = p["c1w"], p["c2w"]
    n_fc1 = p["w1"].shape[0]
    # w1 columns are ordered for an NCHW flatten (c,h,w); permute to NHWC (h,w,c)
    w1 = p["w1"].reshape(n_fc1, c2.shape[0], 5, 5).transpose(0, 2, 3, 1).reshape(n_fc1, -1)
    return dict(
        c1w=c1.reshape(c1.shape[0], -1).T.astype(jnp.bfloat16),
        c1b=p["c1b"].reshape(1, -1).astype(jnp.float32),
        c2w=c2.reshape(c2.shape[0], -1).T.astype(jnp.bfloat16),
        c2b=p["c2b"].reshape(1, -1).astype(jnp.float32),
        w1=w1.T.astype(jnp.bfloat16),
        b1=p["b1"].reshape(1, -1).astype(jnp.float32),
        w2=p["w2"].T.astype(jnp.bfloat16),
        b2=p["b2"].reshape(1, -1).astype(jnp.float32),
        w3=p["w3"].T.astype(jnp.bfloat16),
        b3=p["b3"].reshape(1, -1).astype(jnp.float32),
    )


@jax.jit
def cnn_forward(x_nchw, params):
    kp = prepare_params(params)
    x = x_nchw.transpose(0, 2, 3, 1)                  # NHWC end-to-end from here on
    h = conv_pool_relu(x, kp["c1w"], kp["c1b"])       # (B, 14, 14, 64)
    h = conv_pool_relu(h, kp["c2w"], kp["c2b"])       # (B,  5,  5, 64)
    flat = h.reshape(x.shape[0], -1)                  # NHWC flatten; w1 pre-permuted
    return mlp(flat, kp["w1"], kp["b1"], kp["w2"], kp["b2"], kp["w3"], kp["b3"])


# --------------------------------------------------------------------------
# Pure-JAX reference (f32, HIGHEST precision, NCHW — mirrors PyTorch exactly)
# --------------------------------------------------------------------------
def cnn_forward_ref(x, p):
    def conv(x, w, b):
        y = lax.conv_general_dilated(x, w, (1, 1), "VALID",
                                     dimension_numbers=("NCHW", "OIHW", "NCHW"),
                                     precision=HIGH)
        return y + b.reshape(1, -1, 1, 1)

    def pool(x):
        return lax.reduce_window(x, -jnp.inf, lax.max, (1, 1, 2, 2), (1, 1, 2, 2),
                                 "VALID")

    h = jax.nn.relu(pool(conv(x, p["c1w"], p["c1b"])))
    h = jax.nn.relu(pool(conv(h, p["c2w"], p["c2b"])))
    h = h.reshape(x.shape[0], -1)
    h = jax.nn.relu(jnp.dot(h, p["w1"].T, precision=HIGH) + p["b1"])
    h = jax.nn.relu(jnp.dot(h, p["w2"].T, precision=HIGH) + p["b2"])
    return jnp.dot(h, p["w3"].T, precision=HIGH) + p["b3"]


# --------------------------------------------------------------------------
def init_params(key):
    ks = jax.random.split(key, 10)
    s = 0.05
    return {
        "c1w": jax.random.normal(ks[0], (64, 3, 5, 5), jnp.float32) * s,
        "c1b": jax.random.normal(ks[1], (64,), jnp.float32) * s,
        "c2w": jax.random.normal(ks[2], (64, 64, 5, 5), jnp.float32) * s,
        "c2b": jax.random.normal(ks[3], (64,), jnp.float32) * s,
        "w1": jax.random.normal(ks[4], (384, 1600), jnp.float32) * s,
        "b1": jax.random.normal(ks[5], (384,), jnp.float32) * s,
        "w2": jax.random.normal(ks[6], (192, 384), jnp.float32) * s,
        "b2": jax.random.normal(ks[7], (192,), jnp.float32) * s,
        "w3": jax.random.normal(ks[8], (100, 192), jnp.float32) * s,
        "b3": jax.random.normal(ks[9], (100,), jnp.float32) * s,
    }


if __name__ == "__main__":
    key = jax.random.PRNGKey(0)
    kx, kp = jax.random.split(key)
    # MLP expects 1600 = 64*5*5 features, which pins the spatial input to 3x32x32.
    B = 4
    x = jax.random.normal(kx, (B, 3, 32, 32), jnp.float32)
    params = init_params(kp)

    out = jax.block_until_ready(cnn_forward(x, params))
    ref = jax.block_until_ready(cnn_forward_ref(x, params))

    assert out.shape == (B, 100), out.shape
    assert bool(jnp.all(jnp.isfinite(out)))
    # bf16-in / f32-acc matmuls vs. the fp32-HIGHEST reference: ~1e-2 scale deltas.
    assert jnp.allclose(out, ref, rtol=2e-2, atol=2e-2), float(jnp.max(jnp.abs(out - ref)))
    print("KERNEL_OK")
</pallas_src>

<mosaic_0001>
module attributes {stable_mosaic.version = 11 : i64} {
  func.func @_conv_pool_relu_kernel(%arg0: i32, %arg1: memref<2048x75xbf16, #tpu.memory_space<vmem>>, %arg2: memref<75x64xbf16, #tpu.memory_space<vmem>>, %arg3: memref<1x64xf32, #tpu.memory_space<vmem>>, %arg4: memref<512x64xf32, #tpu.memory_space<vmem>>) attributes {dimension_semantics = [#tpu.dimension_semantics<parallel>], iteration_bounds = array<i64: 2>, scalar_prefetch = 0 : i64, scratch_operands = 0 : i64, tpu.core_type = #tpu.core_type<tc>, window_params = [{transform_indices = @transform_0, window_bounds = array<i64: 2048, 75>}, {pipeline_mode = #tpu.pipeline_mode<synchronous>, transform_indices = @transform_1, window_bounds = array<i64: 75, 64>}, {pipeline_mode = #tpu.pipeline_mode<synchronous>, transform_indices = @transform_2, window_bounds = array<i64: 1, 64>}, {transform_indices = @transform_3, window_bounds = array<i64: 512, 64>}]} {
    %c0 = arith.constant 0 : index
    %c0_0 = arith.constant 0 : index
    %0 = vector.load %arg1[%c0, %c0_0] : memref<2048x75xbf16, #tpu.memory_space<vmem>>, vector<2048x75xbf16>
    %c0_1 = arith.constant 0 : index
    %c0_2 = arith.constant 0 : index
    %1 = vector.load %arg2[%c0_1, %c0_2] : memref<75x64xbf16, #tpu.memory_space<vmem>>, vector<75x64xbf16>
    %cst = arith.constant dense<0.000000e+00> : vector<2048x64xf32>
    %2 = tpu.matmul %0, %1, %cst {dimension_numbers = #tpu.dot_dimension_numbers<[1], [0], [0], [1], [0, 0, 1, 1], [], []>} : vector<2048x75xbf16>, vector<75x64xbf16>, vector<2048x64xf32> -> vector<2048x64xf32>
    %3 = vector.extract_strided_slice %2 {offsets = [0, 0], sizes = [512, 64], strides = [1, 1]} : vector<2048x64xf32> to vector<512x64xf32>
    %4 = vector.extract_strided_slice %2 {offsets = [512, 0], sizes = [512, 64], strides = [1, 1]} : vector<2048x64xf32> to vector<512x64xf32>
    %5 = arith.maximumf %3, %4 : vector<512x64xf32>
    %6 = vector.extract_strided_slice %2 {offsets = [1024, 0], sizes = [512, 64], strides = [1, 1]} : vector<2048x64xf32> to vector<512x64xf32>
    %7 = vector.extract_strided_slice %2 {offsets = [1536, 0], sizes = [512, 64], strides = [1, 1]} : vector<2048x64xf32> to vector<512x64xf32>
    %8 = arith.maximumf %6, %7 : vector<512x64xf32>
    %9 = arith.maximumf %5, %8 : vector<512x64xf32>
    %c0_3 = arith.constant 0 : index
    %c0_4 = arith.constant 0 : index
    %10 = vector.load %arg3[%c0_3, %c0_4] : memref<1x64xf32, #tpu.memory_space<vmem>>, vector<1x64xf32>
    %11 = vector.broadcast %10 : vector<1x64xf32> to vector<512x64xf32>
    %12 = arith.addf %9, %11 : vector<512x64xf32>
    %cst_5 = arith.constant 0.000000e+00 : f32
    %13 = vector.broadcast %cst_5 : f32 to vector<512x64xf32>
    %14 = arith.maximumf %12, %13 : vector<512x64xf32>
    %c0_6 = arith.constant 0 : index
    %c0_7 = arith.constant 0 : index
    %15 = vector.load %arg4[%c0_6, %c0_7] : memref<512x64xf32, #tpu.memory_space<vmem>>, vector<512x64xf32>
    tpu.vector_store %arg4[%c0_6, %c0_7], %14 {strides = array<i32>} : memref<512x64xf32, #tpu.memory_space<vmem>>, vector<512x64xf32>,
    return
  }
  func.func @transform_0(%arg0: i32) -> (i32, i32) {
    %c0_i32 = arith.constant 0 : i32
    %c0_i32_0 = arith.constant 0 : i32
    return %arg0, %c0_i32 : i32, i32
  }
  func.func @transform_1(%arg0: i32) -> (i32, i32) {
    %c0_i32 = arith.constant 0 : i32
    %c0_i32_0 = arith.constant 0 : i32
    %c0_i32_1 = arith.constant 0 : i32
    return %c0_i32, %c0_i32_0 : i32, i32
  }
  func.func @transform_2(%arg0: i32) -> (i32, i32) {
    %c0_i32 = arith.constant 0 : i32
    %c0_i32_0 = arith.constant 0 : i32
    %c0_i32_1 = arith.constant 0 : i32
    return %c0_i32, %c0_i32_0 : i32, i32
  }
  func.func @transform_3(%arg0: i32) -> (i32, i32) {
    %c0_i32 = arith.constant 0 : i32
    %c0_i32_0 = arith.constant 0 : i32
    return %arg0, %c0_i32 : i32, i32
  }
}

module attributes {stable_mosaic.version = 11 : i64} {
  func.func @_conv_pool_relu_kernel(%arg0: i32, %arg1: memref<416x1600xbf16, #tpu.memory_space<vmem>>, %arg2: memref<1600x64xbf16, #tpu.memory_space<vmem>>, %arg3: memref<1x64xf32, #tpu.memory_space<vmem>>, %arg4: memref<104x64xf32, #tpu.memory_space<vmem>>) attributes {dimension_semantics = [#tpu.dimension_semantics<parallel>], iteration_bounds = array<i64: 1>, scalar_prefetch = 0 : i64, scratch_operands = 0 : i64, tpu.core_type = #tpu.core_type<tc>, window_params = [{transform_indices = @transform_0, window_bounds = array<i64: 416, 1600>}, {pipeline_mode = #tpu.pipeline_mode<synchronous>, transform_indices = @transform_1, window_bounds = array<i64: 1600, 64>}, {pipeline_mode = #tpu.pipeline_mode<synchronous>, transform_indices = @transform_2, window_bounds = array<i64: 1, 64>}, {transform_indices = @transform_3, window_bounds = array<i64: 104, 64>}]} {
    %c0 = arith.constant 0 : index
    %c0_0 = arith.constant 0 : index
    %0 = vector.load %arg1[%c0, %c0_0] : memref<416x1600xbf16, #tpu.memory_space<vmem>>, vector<416x1600xbf16>
    %c0_1 = arith.constant 0 : index
    %c0_2 = arith.constant 0 : index
    %1 = vector.load %arg2[%c0_1, %c0_2] : memref<1600x64xbf16, #tpu.memory_space<vmem>>, vector<1600x64xbf16>
    %cst = arith.constant dense<0.000000e+00> : vector<416x64xf32>
    %2 = tpu.matmul %0, %1, %cst {dimension_numbers = #tpu.dot_dimension_numbers<[1], [0], [0], [1], [0, 0, 1, 1], [], []>} : vector<416x1600xbf16>, vector<1600x64xbf16>, vector<416x64xf32> -> vector<416x64xf32>
    %3 = vector.extract_strided_slice %2 {offsets = [0, 0], sizes = [104, 64], strides = [1, 1]} : vector<416x64xf32> to vector<104x64xf32>
    %4 = vector.extract_strided_slice %2 {offsets = [104, 0], sizes = [104, 64], strides = [1, 1]} : vector<416x64xf32> to vector<104x64xf32>
    %5 = arith.maximumf %3, %4 : vector<104x64xf32>
    %6 = vector.extract_strided_slice %2 {offsets = [208, 0], sizes = [104, 64], strides = [1, 1]} : vector<416x64xf32> to vector<104x64xf32>
    %7 = vector.extract_strided_slice %2 {offsets = [312, 0], sizes = [104, 64], strides = [1, 1]} : vector<416x64xf32> to vector<104x64xf32>
    %8 = arith.maximumf %6, %7 : vector<104x64xf32>
    %9 = arith.maximumf %5, %8 : vector<104x64xf32>
    %c0_3 = arith.constant 0 : index
    %c0_4 = arith.constant 0 : index
    %10 = vector.load %arg3[%c0_3, %c0_4] : memref<1x64xf32, #tpu.memory_space<vmem>>, vector<1x64xf32>
    %11 = vector.broadcast %10 : vector<1x64xf32> to vector<104x64xf32>
    %12 = arith.addf %9, %11 : vector<104x64xf32>
    %cst_5 = arith.constant 0.000000e+00 : f32
    %13 = vector.broadcast %cst_5 : f32 to vector<104x64xf32>
    %14 = arith.maximumf %12, %13 : vector<104x64xf32>
    %c0_6 = arith.constant 0 : index
    %c0_7 = arith.constant 0 : index
    %15 = vector.load %arg4[%c0_6, %c0_7] : memref<104x64xf32, #tpu.memory_space<vmem>>, vector<104x64xf32>
    tpu.vector_store %arg4[%c0_6, %c0_7], %14 {strides = array<i32>} : memref<104x64xf32, #tpu.memory_space<vmem>>, vector<104x64xf32>,
    return
  }
  func.func @transform_0(%arg0: i32) -> (i32, i32) {
    %c0_i32 = arith.constant 0 : i32
    %c0_i32_0 = arith.constant 0 : i32
    return %arg0, %c0_i32 : i32, i32
  }
  func.func @transform_1(%arg0: i32) -> (i32, i32) {
    %c0_i32 = arith.constant 0 : i32
    %c0_i32_0 = arith.constant 0 : i32
    %c0_i32_1 = arith.constant 0 : i32
    return %c0_i32, %c0_i32_0 : i32, i32
  }
  func.func @transform_2(%arg0: i32) -> (i32, i32) {
    %c0_i32 = arith.constant 0 : i32
    %c0_i32_0 = arith.constant 0 : i32
    %c0_i32_1 = arith.constant 0 : i32
    return %c0_i32, %c0_i32_0 : i32, i32
  }
  func.func @transform_3(%arg0: i32) -> (i32, i32) {
    %c0_i32 = arith.constant 0 : i32
    %c0_i32_0 = arith.constant 0 : i32
    return %arg0, %c0_i32 : i32, i32
  }
}

module attributes {stable_mosaic.version = 11 : i64} {
  func.func @_mlp_kernel(%arg0: i32, %arg1: memref<16x1600xbf16, #tpu.memory_space<vmem>>, %arg2: memref<1600x384xbf16, #tpu.memory_space<vmem>>, %arg3: memref<1x384xf32, #tpu.memory_space<vmem>>, %arg4: memref<384x192xbf16, #tpu.memory_space<vmem>>, %arg5: memref<1x192xf32, #tpu.memory_space<vmem>>, %arg6: memref<192x100xbf16, #tpu.memory_space<vmem>>, %arg7: memref<1x100xf32, #tpu.memory_space<vmem>>, %arg8: memref<16x100xf32, #tpu.memory_space<vmem>>) attributes {dimension_semantics = [#tpu.dimension_semantics<parallel>], iteration_bounds = array<i64: 1>, scalar_prefetch = 0 : i64, scratch_operands = 0 : i64, tpu.core_type = #tpu.core_type<tc>, window_params = [{transform_indices = @transform_0, window_bounds = array<i64: 16, 1600>}, {pipeline_mode = #tpu.pipeline_mode<synchronous>, transform_indices = @transform_1, window_bounds = array<i64: 1600, 384>}, {pipeline_mode = #tpu.pipeline_mode<synchronous>, transform_indices = @transform_2, window_bounds = array<i64: 1, 384>}, {pipeline_mode = #tpu.pipeline_mode<synchronous>, transform_indices = @transform_3, window_bounds = array<i64: 384, 192>}, {pipeline_mode = #tpu.pipeline_mode<synchronous>, transform_indices = @transform_4, window_bounds = array<i64: 1, 192>}, {pipeline_mode = #tpu.pipeline_mode<synchronous>, transform_indices = @transform_5, window_bounds = array<i64: 192, 100>}, {pipeline_mode = #tpu.pipeline_mode<synchronous>, transform_indices = @transform_6, window_bounds = array<i64: 1, 100>}, {transform_indices = @transform_7, window_bounds = array<i64: 16, 100>}]} {
    %c0 = arith.constant 0 : index
    %c0_0 = arith.constant 0 : index
    %0 = vector.load %arg1[%c0, %c0_0] : memref<16x1600xbf16, #tpu.memory_space<vmem>>, vector<16x1600xbf16>
    %c0_1 = arith.constant 0 : index
    %c0_2 = arith.constant 0 : index
    %1 = vector.load %arg2[%c0_1, %c0_2] : memref<1600x384xbf16, #tpu.memory_space<vmem>>, vector<1600x384xbf16>
    %cst = arith.constant dense<0.000000e+00> : vector<16x384xf32>
    %2 = tpu.matmul %0, %1, %cst {dimension_numbers = #tpu.dot_dimension_numbers<[1], [0], [0], [1], [0, 0, 1, 1], [], []>} : vector<16x1600xbf16>, vector<1600x384xbf16>, vector<16x384xf32> -> vector<16x384xf32>
    %c0_3 = arith.constant 0 : index
    %c0_4 = arith.constant 0 : index
    %3 = vector.load %arg3[%c0_3, %c0_4] : memref<1x384xf32, #tpu.memory_space<vmem>>, vector<1x384xf32>
    %4 = vector.broadcast %3 : vector<1x384xf32> to vector<16x384xf32>
    %5 = arith.addf %2, %4 : vector<16x384xf32>
    %cst_5 = arith.constant 0.000000e+00 : f32
    %6 = vector.broadcast %cst_5 : f32 to vector<16x384xf32>
    %7 = arith.maximumf %5, %6 : vector<16x384xf32>
    %8 = arith.truncf %7 : vector<16x384xf32> to vector<16x384xbf16>
    %c0_6 = arith.constant 0 : index
    %c0_7 = arith.constant 0 : index
    %9 = vector.load %arg4[%c0_6, %c0_7] : memref<384x192xbf16, #tpu.memory_space<vmem>>, vector<384x192xbf16>
    %cst_8 = arith.constant dense<0.000000e+00> : vector<16x192xf32>
    %10 = tpu.matmul %8, %9, %cst_8 {dimension_numbers = #tpu.dot_dimension_numbers<[1], [0], [0], [1], [0, 0, 1, 1], [], []>} : vector<16x384xbf16>, vector<384x192xbf16>, vector<16x192xf32> -> vector<16x192xf32>
    %c0_9 = arith.constant 0 : index
    %c0_10 = arith.constant 0 : index
    %11 = vector.load %arg5[%c0_9, %c0_10] : memref<1x192xf32, #tpu.memory_space<vmem>>, vector<1x192xf32>
    %12 = vector.broadcast %11 : vector<1x192xf32> to vector<16x192xf32>
    %13 = arith.addf %10, %12 : vector<16x192xf32>
    %cst_11 = arith.constant 0.000000e+00 : f32
    %14 = vector.broadcast %cst_11 : f32 to vector<16x192xf32>
    %15 = arith.maximumf %13, %14 : vector<16x192xf32>
    %16 = arith.truncf %15 : vector<16x192xf32> to vector<16x192xbf16>
    %c0_12 = arith.constant 0 : index
    %c0_13 = arith.constant 0 : index
    %17 = vector.load %arg6[%c0_12, %c0_13] : memref<192x100xbf16, #tpu.memory_space<vmem>>, vector<192x100xbf16>
    %cst_14 = arith.constant dense<0.000000e+00> : vector<16x100xf32>
    %18 = tpu.matmul %16, %17, %cst_14 {dimension_numbers = #tpu.dot_dimension_numbers<[1], [0], [0], [1], [0, 0, 1, 1], [], []>} : vector<16x192xbf16>, vector<192x100xbf16>, vector<16x100xf32> -> vector<16x100xf32>
    %c0_15 = arith.constant 0 : index
    %c0_16 = arith.constant 0 : index
    %19 = vector.load %arg7[%c0_15, %c0_16] : memref<1x100xf32, #tpu.memory_space<vmem>>, vector<1x100xf32>
    %20 = vector.broadcast %19 : vector<1x100xf32> to vector<16x100xf32>
    %21 = arith.addf %18, %20 : vector<16x100xf32>
    %c0_17 = arith.constant 0 : index
    %c0_18 = arith.constant 0 : index
    %22 = vector.load %arg8[%c0_17, %c0_18] : memref<16x100xf32, #tpu.memory_space<vmem>>, vector<16x100xf32>
    tpu.vector_store %arg8[%c0_17, %c0_18], %21 {strides = array<i32>} : memref<16x100xf32, #tpu.memory_space<vmem>>, vector<16x100xf32>,
    return
  }
  func.func @transform_0(%arg0: i32) -> (i32, i32) {
    %c0_i32 = arith.constant 0 : i32
    %c0_i32_0 = arith.constant 0 : i32
    return %arg0, %c0_i32 : i32, i32
  }
  func.func @transform_1(%arg0: i32) -> (i32, i32) {
    %c0_i32 = arith.constant 0 : i32
    %c0_i32_0 = arith.constant 0 : i32
    %c0_i32_1 = arith.constant 0 : i32
    return %c0_i32, %c0_i32_0 : i32, i32
  }
  func.func @transform_2(%arg0: i32) -> (i32, i32) {
    %c0_i32 = arith.constant 0 : i32
    %c0_i32_0 = arith.constant 0 : i32
    %c0_i32_1 = arith.constant 0 : i32
    return %c0_i32, %c0_i32_0 : i32, i32
  }
  func.func @transform_3(%arg0: i32) -> (i32, i32) {
    %c0_i32 = arith.constant 0 : i32
    %c0_i32_0 = arith.constant 0 : i32
    %c0_i32_1 = arith.constant 0 : i32
    return %c0_i32, %c0_i32_0 : i32, i32
  }
  func.func @transform_4(%arg0: i32) -> (i32, i32) {
    %c0_i32 = arith.constant 0 : i32
    %c0_i32_0 = arith.constant 0 : i32
    %c0_i32_1 = arith.constant 0 : i32
    return %c0_i32, %c0_i32_0 : i32, i32
  }
  func.func @transform_5(%arg0: i32) -> (i32, i32) {
    %c0_i32 = arith.constant 0 : i32
    %c0_i32_0 = arith.constant 0 : i32
    %c0_i32_1 = arith.constant 0 : i32
    return %c0_i32, %c0_i32_0 : i32, i32
  }
  func.func @transform_6(%arg0: i32) -> (i32, i32) {
    %c0_i32 = arith.constant 0 : i32
    %c0_i32_0 = arith.constant 0 : i32
    %c0_i32_1 = arith.constant 0 : i32
    return %c0_i32, %c0_i32_0 : i32, i32
  }
  func.func @transform_7(%arg0: i32) -> (i32, i32) {
    %c0_i32 = arith.constant 0 : i32
    %c0_i32_0 = arith.constant 0 : i32
    return %arg0, %c0_i32 : i32, i32
  }
}

</mosaic_0001>

<llo_original>
// kernel: cnn_forward.3
$region0: #{cnn_forward.3}
  #allocation0 [shape = 'u32[]', space=smem, size = 0x4, offset = 0x4, fixed_abs, tag = 'smem constant byte address 0x4 - core index']
  #allocation1 [shape = 'u32[72,128]{1,0:T(1,128)}', space=vmem, size = 0x9000, scoped, tag = 'internal scratch']
  %s0 = inlined_call_operand.vmem [shape: bf16[4096,75], index: 0, kind: input, shape index: {}]
  %s1 = inlined_call_operand.vmem [shape: bf16[75,64], index: 1, kind: input, shape index: {}]
  %s2 = inlined_call_operand.vmem [shape: f32[1,64], index: 2, kind: input, shape index: {}]
  %s3 = inlined_call_operand.vmem [shape: f32[1024,64], index: 3, kind: output, shape index: {}]
  %s4 = sld [smem:[#allocation0]]
  $region45: #{cnn_forward.3} parent=0
    _
  %s6 = ssub.s32 1, %s4
  %s7 = scalar_select 0, %s6, %s4
  loop: start=0, step=1, limit=4
  $region2: #{cnn_forward.3} parent=0 // loop_pre_header
    _
  $region3: #{cnn_forward.3} parent=0 // loop_header
    %s9 = sphi 0, %s13
    %p10 = scmp.ge.s32.totalorder %s9, 4
    %s19 = sphi 0, %s21
    %s22 = sphi 0, %s19
    %s23 = sphi 0, %s22
    %s39 = sphi 0, %s23
    %s43 = sphi 0, %s43
    %s45 = sphi 0, %s43
    %s46 = sphi 0, %s45
    %s60 = sphi 0, %s46
    %s64 = sphi 0, %s64
    %s66 = sphi 0, %s64
    %s67 = sphi 0, %s66
    %s81 = sphi 0, %s67
    %s87 = sphi 0, %s89
    %s90 = sphi 0, %s87
    %s91 = sphi 0, %s90
    %s107 = sphi 0, %s91
  $region4: #{cnn_forward.3} parent=0 // loop_header_branch
    %12 = sbr.rel (%p10) target = $region8
  $region5: #{cnn_forward.3} parent=0 // loop_body
    %s14 = ssub.s32 %s9, 1
    %s15 = ssub.s32 %s9, 2
    %s16 = sadd.s32 %s9, 1
    %s17 = ssub.s32 %s9, %s16
    %p18 = scmp.eq.s32.totalorder %s17, 0
    %s20 = sadd.s32 %s19, 1
    %s21 = scalar_select %p18, %s19, %s20
    %p24 = pneg %p18
    %p25 = scmp.eq.s32.totalorder %s9, 1
    %p26 = por %p24, %p25
    %p27 = scmp.ne.s32.totalorder %s19, %s22
    %p28 = scmp.eq.s32.totalorder %s9, 0
    %p29 = por %p27, %p28
    %p30 = scmp.ne.s32.totalorder %s19, %s22
    %p31 = scmp.eq.s32.totalorder %s14, 1
    %p32 = por %p30, %p31
    %p33 = scmp.ne.s32.totalorder %s22, %s23
    %p34 = scmp.eq.s32.totalorder %s14, 0
    %p35 = por %p33, %p34
    %p36 = scmp.ne.s32.totalorder %s22, %s23
    %p37 = scmp.eq.s32.totalorder %s15, 1
    %p38 = por %p36, %p37
    %p40 = scmp.ne.s32.totalorder %s23, %s39
    %p41 = scmp.eq.s32.totalorder %s15, 0
    %p42 = por %p40, %p41
    %s44 = sadd.s32 %s43, 1
    %p47 = scmp.eq.s32.totalorder %s9, 1
    %p48 = scmp.ne.s32.totalorder %s43, %s45
    %p49 = scmp.eq.s32.totalorder %s9, 0
    %p50 = por %p48, %p49
    %p51 = scmp.ne.s32.totalorder %s43, %s45
    %p52 = scmp.eq.s32.totalorder %s14, 1
    %p53 = por %p51, %p52
    %p54 = scmp.ne.s32.totalorder %s45, %s46
    %p55 = scmp.eq.s32.totalorder %s14, 0
    %p56 = por %p54, %p55
    %p57 = scmp.ne.s32.totalorder %s45, %s46
    %p58 = scmp.eq.s32.totalorder %s15, 1
    %p59 = por %p57, %p58
    %p61 = scmp.ne.s32.totalorder %s46, %s60
    %p62 = scmp.eq.s32.totalorder %s15, 0
    %p63 = por %p61, %p62
    %s65 = sadd.s32 %s64, 1
    %p68 = scmp.eq.s32.totalorder %s9, 1
    %p69 = scmp.ne.s32.totalorder %s64, %s66
    %p70 = scmp.eq.s32.totalorder %s9, 0
    %p71 = por %p69, %p70
    %p72 = scmp.ne.s32.totalorder %s64, %s66
    %p73 = scmp.eq.s32.totalorder %s14, 1
    %p74 = por %p72, %p73
    %p75 = scmp.ne.s32.totalorder %s66, %s67
    %p76 = scmp.eq.s32.totalorder %s14, 0
    %p77 = por %p75, %p76
    %p78 = scmp.ne.s32.totalorder %s66, %s67
    %p79 = scmp.eq.s32.totalorder %s15, 1
    %p80 = por %p78, %p79
    %p82 = scmp.ne.s32.totalorder %s67, %s81
    %p83 = scmp.eq.s32.totalorder %s15, 0
    %p84 = por %p82, %p83
    %s85 = ssub.s32 %s9, %s16
    %p86 = scmp.eq.s32.totalorder %s85, 0
    %s88 = sadd.s32 %s87, 1
    %s89 = scalar_select %p86, %s87, %s88
    %p92 = pneg %p86
    %p93 = scmp.eq.s32.totalorder %s9, 1
    %p94 = por %p92, %p93
    %p95 = scmp.ne.s32.totalorder %s87, %s90
    %p96 = scmp.eq.s32.totalorder %s9, 0
    %p97 = por %p95, %p96
    %p98 = scmp.ne.s32.totalorder %s87, %s90
    %p99 = scmp.eq.s32.totalorder %s14, 1
    %p100 = por %p98, %p99
    %p101 = scmp.ne.s32.totalorder %s90, %s91
    %p102 = scmp.eq.s32.totalorder %s14, 0
    %p103 = por %p101, %p102
    %p104 = scmp.ne.s32.totalorder %s90, %s91
    %p105 = scmp.eq.s32.totalorder %s15, 1
    %p106 = por %p104, %p105
    %p108 = scmp.ne.s32.totalorder %s91, %s107
    %p109 = scmp.eq.s32.totalorder %s15, 0
    %p110 = por %p108, %p109
    %p111 = scmp.le.s32.totalorder 1, %s9
    %p112 = scmp.lt.s32.totalorder %s9, 3
    %p113 = pnand %p111, %p112
    %p114 = pneg %p113
    // Predicated region
    $region9: #{cnn_forward.3} parent=5 // pred_check
      _
    $region10: #{cnn_forward.3} parent=5 // pred_check_branch
      %116 = sbr.rel (%p113) target = $region12
    $region11: #{cnn_forward.3} parent=5 // pred_region
      %s117 = ssub.s32 %s9, 1
      // Predicated region
      $region13: #{cnn_forward.3} parent=11 // pred_check
        %p118 = pneg %p56
      $region14: #{cnn_forward.3} parent=11 // pred_check_branch
        %120 = sbr.rel (%p118) target = $region16
      $region15: #{cnn_forward.3} parent=11 // pred_region
        _
      $region16: #{cnn_forward.3} parent=11 // pred_fallthru
        _
      // Predicated region
      $region17: #{cnn_forward.3} parent=11 // pred_check
        %p121 = pneg %p77
      $region18: #{cnn_forward.3} parent=11 // pred_check_branch
        %123 = sbr.rel (%p121) target = $region20
      $region19: #{cnn_forward.3} parent=11 // pred_region
        _
      $region20: #{cnn_forward.3} parent=11 // pred_fallthru
        _
    $region12: #{cnn_forward.3} parent=5 // pred_fallthru
      _
    %p124 = scmp.lt.s32.totalorder %s9, 2
    // Predicated region
    $region21: #{cnn_forward.3} parent=5 // pred_check
      %p125 = pneg %p124
    $region22: #{cnn_forward.3} parent=5 // pred_check_branch
      %127 = sbr.rel (%p125) target = $region24
    $region23: #{cnn_forward.3} parent=5 // pred_region
      // Predicated region
      $region25: #{cnn_forward.3} parent=23 // pred_check
        %p128 = pneg %p29
      $region26: #{cnn_forward.3} parent=23 // pred_check_branch
        %130 = sbr.rel (%p128) target = $region28
      $region27: #{cnn_forward.3} parent=23 // pred_region
        %s131 = smul.u32 256, %s9
        %p132 = scmp.lt.s32.totalorder %s131, 511
        %s133 = scalar_select %p132, %s131, 511
        %s134 = smul.addr %s133, 4
        %s135 = scalar_lea.vmem %s0, %s134
        %s136 = smul.u32 256, %s9
      $region28: #{cnn_forward.3} parent=23 // pred_fallthru
        _
    $region24: #{cnn_forward.3} parent=5 // pred_fallthru
      _
    %p137 = scmp.le.s32.totalorder 1, %s9
    %p138 = scmp.lt.s32.totalorder %s9, 3
    %p139 = pnand %p137, %p138
    %p140 = pneg %p139
    // Predicated region
    $region29: #{cnn_forward.3} parent=5 // pred_check
      _
    $region30: #{cnn_forward.3} parent=5 // pred_check_branch
      %142 = sbr.rel (%p139) target = $region32
    $region31: #{cnn_forward.3} parent=5 // pred_region
      %s143 = ssub.s32 %s9, 1
      %s144 = smul.u32 256, %s14
      %p145 = scmp.lt.s32.totalorder %s144, 511
      %s146 = scalar_select %p145, %s144, 511
      %s147 = smul.addr %s146, 4
      %s148 = scalar_lea.vmem %s0, %s147
      %p149 = pneg %p35
      %p150 = pneg %p32
      %p151 = pneg %p56
      %p152 = pneg %p53
      %p153 = pneg %p77
      %p154 = pneg %p74
      %p155 = pneg %p103
      %p156 = pneg %p100
      %s157 = smul.u32 64, %s14
      %p158 = scmp.lt.s32.totalorder %s157, 127
      %s159 = scalar_select %p158, %s157, 127
      %s160 = smul.addr %s159, 8
      %s161 = scalar_lea.vmem %s3, %s160
      %s162 = smul.u32 256, %s14
      %p163 = scmp.lt.s32.totalorder %s162, 511
      %s164 = scalar_select %p163, %s162, 511
      %s165 = smul.addr %s164, 4
      %s166 = scalar_lea.vmem %s0, %s165
      %s167 = smul.u32 256, %s14
      %s168 = smul.u32 64, %s14
      %p169 = scmp.lt.s32.totalorder %s168, 127
      %s170 = scalar_select %p169, %s168, 127
      %s171 = smul.addr %s170, 8
      %s172 = scalar_lea.vmem %s3, %s171
      %s173 = smul.u32 64, %s14
      %v175 = vld [vmem:[%s166] sm:$0xf]
      %v176 = vld [vmem:[%s166 + $0x4] sm:$0xf]
      %v177 = vld [vmem:[%s166 + $0x8] sm:$0xf]
      %v178 = vld [vmem:[%s166 + $0xc] sm:$0xf]
      %v179 = vld [vmem:[%s166 + $0x10] sm:$0xf]
      %v180 = vld [vmem:[%s166 + $0x14] sm:$0xf]
      %v181 = vld [vmem:[%s166 + $0x18] sm:$0xf]
      %v182 = vld [vmem:[%s166 + $0x1c] sm:$0xf]
      %v183 = vld [vmem:[%s166 + $0x20] sm:$0xf]
      %v184 = vld [vmem:[%s166 + $0x24] sm:$0xf]
      %v185 = vld [vmem:[%s166 + $0x28] sm:$0xf]
      %v186 = vld [vmem:[%s166 + $0x2c] sm:$0xf]
      %v187 = vld [vmem:[%s166 + $0x30] sm:$0xf]
      %v188 = vld [vmem:[%s166 + $0x34] sm:$0xf]
      %v189 = vld [vmem:[%s166 + $0x38] sm:$0xf]
      %v190 = vld [vmem:[%s166 + $0x3c] sm:$0xf]
      %v191 = vld [vmem:[%s166 + $0x40] sm:$0xf]
      %v192 = vld [vmem:[%s166 + $0x44] sm:$0xf]
      %v193 = vld [vmem:[%s166 + $0x48] sm:$0xf]
      %v194 = vld [vmem:[%s166 + $0x4c] sm:$0xf]
      %v195 = vld [vmem:[%s166 + $0x50] sm:$0xf]
      %v196 = vld [vmem:[%s166 + $0x54] sm:$0xf]
      %v197 = vld [vmem:[%s166 + $0x58] sm:$0xf]
      %v198 = vld [vmem:[%s166 + $0x5c] sm:$0xf]
      %v199 = vld [vmem:[%s166 + $0x60] sm:$0xf]
      %v200 = vld [vmem:[%s166 + $0x64] sm:$0xf]
      %v201 = vld [vmem:[%s166 + $0x68] sm:$0xf]
      %v202 = vld [vmem:[%s166 + $0x6c] sm:$0xf]
      %v203 = vld [vmem:[%s166 + $0x70] sm:$0xf]
      %v204 = vld [vmem:[%s166 + $0x74] sm:$0xf]
      %v205 = vld [vmem:[%s166 + $0x78] sm:$0xf]
      %v206 = vld [vmem:[%s166 + $0x7c] sm:$0xf]
      %v207 = vld [vmem:[%s166 + $0x80] sm:$0xf]
      %v208 = vld [vmem:[%s166 + $0x84] sm:$0xf]
      %v209 = vld [vmem:[%s166 + $0x88] sm:$0xf]
      %v210 = vld [vmem:[%s166 + $0x8c] sm:$0xf]
      %v211 = vld [vmem:[%s166 + $0x90] sm:$0xf]
      %v212 = vld [vmem:[%s166 + $0x94] sm:$0xf]
      %v213 = vld [vmem:[%s166 + $0x98] sm:$0xf]
      %v214 = vld [vmem:[%s166 + $0x9c] sm:$0xf]
      %v215 = vld [vmem:[%s166 + $0xa0] sm:$0xf]
      %v216 = vld [vmem:[%s166 + $0xa4] sm:$0xf]
      %v217 = vld [vmem:[%s166 + $0xa8] sm:$0xf]
      %v218 = vld [vmem:[%s166 + $0xac] sm:$0xf]
      %v219 = vld [vmem:[%s166 + $0xb0] sm:$0xf]
      %v220 = vld [vmem:[%s166 + $0xb4] sm:$0xf]
      %v221 = vld [vmem:[%s166 + $0xb8] sm:$0xf]
      %v222 = vld [vmem:[%s166 + $0xbc] sm:$0xf]
      %v223 = vld [vmem:[%s166 + $0xc0] sm:$0xf]
      %v224 = vld [vmem:[%s166 + $0xc4] sm:$0xf]
      %v225 = vld [vmem:[%s166 + $0xc8] sm:$0xf]
      %v226 = vld [vmem:[%s166 + $0xcc] sm:$0xf]
      %v227 = vld [vmem:[%s166 + $0xd0] sm:$0xf]
      %v228 = vld [vmem:[%s166 + $0xd4] sm:$0xf]
      %v229 = vld [vmem:[%s166 + $0xd8] sm:$0xf]
      %v230 = vld [vmem:[%s166 + $0xdc] sm:$0xf]
      %v231 = vld [vmem:[%s166 + $0xe0] sm:$0xf]
      %v232 = vld [vmem:[%s166 + $0xe4] sm:$0xf]
      %v233 = vld [vmem:[%s166 + $0xe8] sm:$0xf]
      %v234 = vld [vmem:[%s166 + $0xec] sm:$0xf]
      %v235 = vld [vmem:[%s166 + $0xf0] sm:$0xf]
      %v236 = vld [vmem:[%s166 + $0xf4] sm:$0xf]
      %v237 = vld [vmem:[%s166 + $0xf8] sm:$0xf]
      %v238 = vld [vmem:[%s166 + $0xfc] sm:$0xf]
      %v239 = vld [vmem:[%s166 + $0x100] sm:$0xf]
      %v240 = vld [vmem:[%s166 + $0x104] sm:$0xf]
      %v241 = vld [vmem:[%s166 + $0x108] sm:$0xf]
      %v242 = vld [vmem:[%s166 + $0x10c] sm:$0xf]
      %v243 = vld [vmem:[%s166 + $0x110] sm:$0xf]
      %v244 = vld [vmem:[%s166 + $0x114] sm:$0xf]
      %v245 = vld [vmem:[%s166 + $0x118] sm:$0xf]
      %v246 = vld [vmem:[%s166 + $0x11c] sm:$0xf]
      %v247 = vld [vmem:[%s166 + $0x120] sm:$0xf]
      %v248 = vld [vmem:[%s166 + $0x124] sm:$0xf]
      %v249 = vld [vmem:[%s166 + $0x128] sm:$0xf]
      %v250 = vld [vmem:[%s166 + $0x12c] sm:$0xf]
      %v251 = vld [vmem:[%s166 + $0x130] sm:$0xf]
      %v252 = vld [vmem:[%s166 + $0x134] sm:$0xf]
      %v253 = vld [vmem:[%s166 + $0x138] sm:$0xf]
      %v254 = vld [vmem:[%s166 + $0x13c] sm:$0xf]
      %v255 = vld [vmem:[%s166 + $0x140] sm:$0xf]
      %v256 = vld [vmem:[%s166 + $0x144] sm:$0xf]
      %v257 = vld [vmem:[%s166 + $0x148] sm:$0xf]
      %v258 = vld [vmem:[%s166 + $0x14c] sm:$0xf]
      %v259 = vld [vmem:[%s166 + $0x150] sm:$0xf]
      %v260 = vld [vmem:[%s166 + $0x154] sm:$0xf]
      %v261 = vld [vmem:[%s166 + $0x158] sm:$0xf]
      %v262 = vld [vmem:[%s166 + $0x15c] sm:$0xf]
      %v263 = vld [vmem:[%s166 + $0x160] sm:$0xf]
      %v264 = vld [vmem:[%s166 + $0x164] sm:$0xf]
      %v265 = vld [vmem:[%s166 + $0x168] sm:$0xf]
      %v266 = vld [vmem:[%s166 + $0x16c] sm:$0xf]
      %v267 = vld [vmem:[%s166 + $0x170] sm:$0xf]
      %v268 = vld [vmem:[%s166 + $0x174] sm:$0xf]
      %v269 = vld [vmem:[%s166 + $0x178] sm:$0xf]
      %v270 = vld [vmem:[%s166 + $0x17c] sm:$0xf]
      %v271 = vld [vmem:[%s166 + $0x180] sm:$0xf]
      %v272 = vld [vmem:[%s166 + $0x184] sm:$0xf]
      %v273 = vld [vmem:[%s166 + $0x188] sm:$0xf]
      %v274 = vld [vmem:[%s166 + $0x18c] sm:$0xf]
      %v275 = vld [vmem:[%s166 + $0x190] sm:$0xf]
      %v276 = vld [vmem:[%s166 + $0x194] sm:$0xf]
      %v277 = vld [vmem:[%s166 + $0x198] sm:$0xf]
      %v278 = vld [vmem:[%s166 + $0x19c] sm:$0xf]
      %v279 = vld [vmem:[%s166 + $0x1a0] sm:$0xf]
      %v280 = vld [vmem:[%s166 + $0x1a4] sm:$0xf]
      %v281 = vld [vmem:[%s166 + $0x1a8] sm:$0xf]
      %v282 = vld [vmem:[%s166 + $0x1ac] sm:$0xf]
      %v283 = vld [vmem:[%s166 + $0x1b0] sm:$0xf]
      %v284 = vld [vmem:[%s166 + $0x1b4] sm:$0xf]
      %v285 = vld [vmem:[%s166 + $0x1b8] sm:$0xf]
      %v286 = vld [vmem:[%s166 + $0x1bc] sm:$0xf]
      %v287 = vld [vmem:[%s166 + $0x1c0] sm:$0xf]
      %v288 = vld [vmem:[%s166 + $0x1c4] sm:$0xf]
      %v289 = vld [vmem:[%s166 + $0x1c8] sm:$0xf]
      %v290 = vld [vmem:[%s166 + $0x1cc] sm:$0xf]
      %v291 = vld [vmem:[%s166 + $0x1d0] sm:$0xf]
      %v292 = vld [vmem:[%s166 + $0x1d4] sm:$0xf]
      %v293 = vld [vmem:[%s166 + $0x1d8] sm:$0xf]
      %v294 = vld [vmem:[%s166 + $0x1dc] sm:$0xf]
      %v295 = vld [vmem:[%s166 + $0x1e0] sm:$0xf]
      %v296 = vld [vmem:[%s166 + $0x1e4] sm:$0xf]
      %v297 = vld [vmem:[%s166 + $0x1e8] sm:$0xf]
      %v298 = vld [vmem:[%s166 + $0x1ec] sm:$0xf]
      %v299 = vld [vmem:[%s166 + $0x1f0] sm:$0xf]
      %v300 = vld [vmem:[%s166 + $0x1f4] sm:$0xf]
      %v301 = vld [vmem:[%s166 + $0x1f8] sm:$0xf]
      %v302 = vld [vmem:[%s166 + $0x1fc] sm:$0xf]
      %v303 = vld [vmem:[%s166 + $0x200] sm:$0xf]
      %v304 = vld [vmem:[%s166 + $0x204] sm:$0xf]
      %v305 = vld [vmem:[%s166 + $0x208] sm:$0xf]
      %v306 = vld [vmem:[%s166 + $0x20c] sm:$0xf]
      %v307 = vld [vmem:[%s166 + $0x210] sm:$0xf]
      %v308 = vld [vmem:[%s166 + $0x214] sm:$0xf]
      %v309 = vld [vmem:[%s166 + $0x218] sm:$0xf]
      %v310 = vld [vmem:[%s166 + $0x21c] sm:$0xf]
      %v311 = vld [vmem:[%s166 + $0x220] sm:$0xf]
      %v312 = vld [vmem:[%s166 + $0x224] sm:$0xf]
      %v313 = vld [vmem:[%s166 + $0x228] sm:$0xf]
      %v314 = vld [vmem:[%s166 + $0x22c] sm:$0xf]
      %v315 = vld [vmem:[%s166 + $0x230] sm:$0xf]
      %v316 = vld [vmem:[%s166 + $0x234] sm:$0xf]
      %v317 = vld [vmem:[%s166 + $0x238] sm:$0xf]
      %v318 = vld [vmem:[%s166 + $0x23c] sm:$0xf]
      %v319 = vld [vmem:[%s166 + $0x240] sm:$0xf]
      %v320 = vld [vmem:[%s166 + $0x244] sm:$0xf]
      %v321 = vld [vmem:[%s166 + $0x248] sm:$0xf]
      %v322 = vld [vmem:[%s166 + $0x24c] sm:$0xf]
      %v323 = vld [vmem:[%s166 + $0x250] sm:$0xf]
      %v324 = vld [vmem:[%s166 + $0x254] sm:$0xf]
      %v325 = vld [vmem:[%s166 + $0x258] sm:$0xf]
      %v326 = vld [vmem:[%s166 + $0x25c] sm:$0xf]
      %v327 = vld [vmem:[%s166 + $0x260] sm:$0xf]
      %v328 = vld [vmem:[%s166 + $0x264] sm:$0xf]
      %v329 = vld [vmem:[%s166 + $0x268] sm:$0xf]
      %v330 = vld [vmem:[%s166 + $0x26c] sm:$0xf]
      %v331 = vld [vmem:[%s166 + $0x270] sm:$0xf]
      %v332 = vld [vmem:[%s166 + $0x274] sm:$0xf]
      %v333 = vld [vmem:[%s166 + $0x278] sm:$0xf]
      %v334 = vld [vmem:[%s166 + $0x27c] sm:$0xf]
      %v335 = vld [vmem:[%s166 + $0x280] sm:$0xf]
      %v336 = vld [vmem:[%s166 + $0x284] sm:$0xf]
      %v337 = vld [vmem:[%s166 + $0x288] sm:$0xf]
      %v338 = vld [vmem:[%s166 + $0x28c] sm:$0xf]
      %v339 = vld [vmem:[%s166 + $0x290] sm:$0xf]
      %v340 = vld [vmem:[%s166 + $0x294] sm:$0xf]
      %v341 = vld [vmem:[%s166 + $0x298] sm:$0xf]
      %v342 = vld [vmem:[%s166 + $0x29c] sm:$0xf]
      %v343 = vld [vmem:[%s166 + $0x2a0] sm:$0xf]
      %v344 = vld [vmem:[%s166 + $0x2a4] sm:$0xf]
      %v345 = vld [vmem:[%s166 + $0x2a8] sm:$0xf]
      %v346 = vld [vmem:[%s166 + $0x2ac] sm:$0xf]
      %v347 = vld [vmem:[%s166 + $0x2b0] sm:$0xf]
      %v348 = vld [vmem:[%s166 + $0x2b4] sm:$0xf]
      %v349 = vld [vmem:[%s166 + $0x2b8] sm:$0xf]
      %v350 = vld [vmem:[%s166 + $0x2bc] sm:$0xf]
      %v351 = vld [vmem:[%s166 + $0x2c0] sm:$0xf]
      %v352 = vld [vmem:[%s166 + $0x2c4] sm:$0xf]
      %v353 = vld [vmem:[%s166 + $0x2c8] sm:$0xf]
      %v354 = vld [vmem:[%s166 + $0x2cc] sm:$0xf]
      %v355 = vld [vmem:[%s166 + $0x2d0] sm:$0xf]
      %v356 = vld [vmem:[%s166 + $0x2d4] sm:$0xf]
      %v357 = vld [vmem:[%s166 + $0x2d8] sm:$0xf]
      %v358 = vld [vmem:[%s166 + $0x2dc] sm:$0xf]
      %v359 = vld [vmem:[%s166 + $0x2e0] sm:$0xf]
      %v360 = vld [vmem:[%s166 + $0x2e4] sm:$0xf]
      %v361 = vld [vmem:[%s166 + $0x2e8] sm:$0xf]
      %v362 = vld [vmem:[%s166 + $0x2ec] sm:$0xf]
      %v363 = vld [vmem:[%s166 + $0x2f0] sm:$0xf]
      %v364 = vld [vmem:[%s166 + $0x2f4] sm:$0xf]
      %v365 = vld [vmem:[%s166 + $0x2f8] sm:$0xf]
      %v366 = vld [vmem:[%s166 + $0x2fc] sm:$0xf]
      %v367 = vld [vmem:[%s166 + $0x300] sm:$0xf]
      %v368 = vld [vmem:[%s166 + $0x304] sm:$0xf]
      %v369 = vld [vmem:[%s166 + $0x308] sm:$0xf]
      %v370 = vld [vmem:[%s166 + $0x30c] sm:$0xf]
      %v371 = vld [vmem:[%s166 + $0x310] sm:$0xf]
      %v372 = vld [vmem:[%s166 + $0x314] sm:$0xf]
      %v373 = vld [vmem:[%s166 + $0x318] sm:$0xf]
      %v374 = vld [vmem:[%s166 + $0x31c] sm:$0xf]
      %v375 = vld [vmem:[%s166 + $0x320] sm:$0xf]
      %v376 = vld [vmem:[%s166 + $0x324] sm:$0xf]
      %v377 = vld [vmem:[%s166 + $0x328] sm:$0xf]
      %v378 = vld [vmem:[%s166 + $0x32c] sm:$0xf]
      %v379 = vld [vmem:[%s166 + $0x330] sm:$0xf]
      %v380 = vld [vmem:[%s166 + $0x334] sm:$0xf]
      %v381 = vld [vmem:[%s166 + $0x338] sm:$0xf]
      %v382 = vld [vmem:[%s166 + $0x33c] sm:$0xf]
      %v383 = vld [vmem:[%s166 + $0x340] sm:$0xf]
      %v384 = vld [vmem:[%s166 + $0x344] sm:$0xf]
      %v385 = vld [vmem:[%s166 + $0x348] sm:$0xf]
      %v386 = vld [vmem:[%s166 + $0x34c] sm:$0xf]
      %v387 = vld [vmem:[%s166 + $0x350] sm:$0xf]
      %v388 = vld [vmem:[%s166 + $0x354] sm:$0xf]
      %v389 = vld [vmem:[%s166 + $0x358] sm:$0xf]
      %v390 = vld [vmem:[%s166 + $0x35c] sm:$0xf]
      %v391 = vld [vmem:[%s166 + $0x360] sm:$0xf]
      %v392 = vld [vmem:[%s166 + $0x364] sm:$0xf]
      %v393 = vld [vmem:[%s166 + $0x368] sm:$0xf]
      %v394 = vld [vmem:[%s166 + $0x36c] sm:$0xf]
      %v395 = vld [vmem:[%s166 + $0x370] sm:$0xf]
      %v396 = vld [vmem:[%s166 + $0x374] sm:$0xf]
      %v397 = vld [vmem:[%s166 + $0x378] sm:$0xf]
      %v398 = vld [vmem:[%s166 + $0x37c] sm:$0xf]
      %v399 = vld [vmem:[%s166 + $0x380] sm:$0xf]
      %v400 = vld [vmem:[%s166 + $0x384] sm:$0xf]
      %v401 = vld [vmem:[%s166 + $0x388] sm:$0xf]
      %v402 = vld [vmem:[%s166 + $0x38c] sm:$0xf]
      %v403 = vld [vmem:[%s166 + $0x390] sm:$0xf]
      %v404 = vld [vmem:[%s166 + $0x394] sm:$0xf]
      %v405 = vld [vmem:[%s166 + $0x398] sm:$0xf]
      %v406 = vld [vmem:[%s166 + $0x39c] sm:$0xf]
      %v407 = vld [vmem:[%s166 + $0x3a0] sm:$0xf]
      %v408 = vld [vmem:[%s166 + $0x3a4] sm:$0xf]
      %v409 = vld [vmem:[%s166 + $0x3a8] sm:$0xf]
      %v410 = vld [vmem:[%s166 + $0x3ac] sm:$0xf]
      %v411 = vld [vmem:[%s166 + $0x3b0] sm:$0xf]
      %v412 = vld [vmem:[%s166 + $0x3b4] sm:$0xf]
      %v413 = vld [vmem:[%s166 + $0x3b8] sm:$0xf]
      %v414 = vld [vmem:[%s166 + $0x3bc] sm:$0xf]
      %v415 = vld [vmem:[%s166 + $0x3c0] sm:$0xf]
      %v416 = vld [vmem:[%s166 + $0x3c4] sm:$0xf]
      %v417 = vld [vmem:[%s166 + $0x3c8] sm:$0xf]
      %v418 = vld [vmem:[%s166 + $0x3cc] sm:$0xf]
      %v419 = vld [vmem:[%s166 + $0x3d0] sm:$0xf]
      %v420 = vld [vmem:[%s166 + $0x3d4] sm:$0xf]
      %v421 = vld [vmem:[%s166 + $0x3d8] sm:$0xf]
      %v422 = vld [vmem:[%s166 + $0x3dc] sm:$0xf]
      %v423 = vld [vmem:[%s166 + $0x3e0] sm:$0xf]
      %v424 = vld [vmem:[%s166 + $0x3e4] sm:$0xf]
      %v425 = vld [vmem:[%s166 + $0x3e8] sm:$0xf]
      %v426 = vld [vmem:[%s166 + $0x3ec] sm:$0xf]
      %v427 = vld [vmem:[%s166 + $0x3f0] sm:$0xf]
      %v428 = vld [vmem:[%s166 + $0x3f4] sm:$0xf]
      %v429 = vld [vmem:[%s166 + $0x3f8] sm:$0xf]
      %v430 = vld [vmem:[%s166 + $0x3fc] sm:$0xf]
      %v431 = vld [vmem:[%s1] sm:$0xf]
      %v432 = vld [vmem:[%s1 + $0x4] sm:$0xf]
      %v433 = vld [vmem:[%s1 + $0x8] sm:$0xf]
      %v434 = vld [vmem:[%s1 + $0xc] sm:$0xf]
      %v435 = vld [vmem:[%s1 + $0x10] sm:$0xf]
      %v436 = vld [vmem:[%s1 + $0x14] sm:$0xf]
      %v437 = vld [vmem:[%s1 + $0x18] sm:$0xf]
      %v438 = vld [vmem:[%s1 + $0x1c] sm:$0xf]
      %v439 = vld [vmem:[%s1 + $0x20] sm:$0xf]
      %v440 = vld [vmem:[%s1 + $0x24] sm:$0x3]
      %v697 = vunpack.c.l.b16 %v175
      %v698 = vunpack.c.l.b16 %v176
      %v699 = vunpack.c.l.b16 %v177
      %v700 = vunpack.c.l.b16 %v178
      %v701 = vunpack.c.l.b16 %v179
      %v702 = vunpack.c.l.b16 %v180
      %v703 = vunpack.c.l.b16 %v181
      %v704 = vunpack.c.l.b16 %v182
      %v705 = vunpack.c.l.b16 %v183
      %v706 = vunpack.c.l.b16 %v184
      %v707 = vunpack.c.l.b16 %v185
      %v708 = vunpack.c.l.b16 %v186
      %v709 = vunpack.c.l.b16 %v187
      %v710 = vunpack.c.l.b16 %v188
      %v711 = vunpack.c.l.b16 %v189
      %v712 = vunpack.c.l.b16 %v190
      %v713 = vunpack.c.l.b16 %v191
      %v714 = vunpack.c.l.b16 %v192
      %v715 = vunpack.c.l.b16 %v193
      %v716 = vunpack.c.l.b16 %v194
      %v717 = vunpack.c.l.b16 %v195
      %v718 = vunpack.c.l.b16 %v196
      %v719 = vunpack.c.l.b16 %v197
      %v720 = vunpack.c.l.b16 %v198
      %v721 = vunpack.c.l.b16 %v199
      %v722 = vunpack.c.l.b16 %v200
      %v723 = vunpack.c.l.b16 %v201
      %v724 = vunpack.c.l.b16 %v202
      %v725 = vunpack.c.l.b16 %v203
      %v726 = vunpack.c.l.b16 %v204
      %v727 = vunpack.c.l.b16 %v205
      %v728 = vunpack.c.l.b16 %v206
      %v729 = vunpack.c.l.b16 %v207
      %v730 = vunpack.c.l.b16 %v208
      %v731 = vunpack.c.l.b16 %v209
      %v732 = vunpack.c.l.b16 %v210
      %v733 = vunpack.c.l.b16 %v211
      %v734 = vunpack.c.l.b16 %v212
      %v735 = vunpack.c.l.b16 %v213
      %v736 = vunpack.c.l.b16 %v214
      %v737 = vunpack.c.l.b16 %v215
      %v738 = vunpack.c.l.b16 %v216
      %v739 = vunpack.c.l.b16 %v217
      %v740 = vunpack.c.l.b16 %v218
      %v741 = vunpack.c.l.b16 %v219
      %v742 = vunpack.c.l.b16 %v220
      %v743 = vunpack.c.l.b16 %v221
      %v744 = vunpack.c.l.b16 %v222
      %v745 = vunpack.c.l.b16 %v223
      %v746 = vunpack.c.l.b16 %v224
      %v747 = vunpack.c.l.b16 %v225
      %v748 = vunpack.c.l.b16 %v226
      %v749 = vunpack.c.l.b16 %v227
      %v750 = vunpack.c.l.b16 %v228
      %v751 = vunpack.c.l.b16 %v229
      %v752 = vunpack.c.l.b16 %v230
      %v753 = vunpack.c.l.b16 %v231
      %v754 = vunpack.c.l.b16 %v232
      %v755 = vunpack.c.l.b16 %v233
      %v756 = vunpack.c.l.b16 %v234
      %v757 = vunpack.c.l.b16 %v235
      %v758 = vunpack.c.l.b16 %v236
      %v759 = vunpack.c.l.b16 %v237
      %v760 = vunpack.c.l.b16 %v238
      %v761 = vunpack.c.l.b16 %v239
      %v762 = vunpack.c.l.b16 %v240
      %v763 = vunpack.c.l.b16 %v241
      %v764 = vunpack.c.l.b16 %v242
      %v765 = vunpack.c.l.b16 %v243
      %v766 = vunpack.c.l.b16 %v244
      %v767 = vunpack.c.l.b16 %v245
      %v768 = vunpack.c.l.b16 %v246
      %v769 = vunpack.c.l.b16 %v247
      %v770 = vunpack.c.l.b16 %v248
      %v771 = vunpack.c.l.b16 %v249
      %v772 = vunpack.c.l.b16 %v250
      %v773 = vunpack.c.l.b16 %v251
      %v774 = vunpack.c.l.b16 %v252
      %v775 = vunpack.c.l.b16 %v253
      %v776 = vunpack.c.l.b16 %v254
      %v777 = vunpack.c.l.b16 %v255
      %v778 = vunpack.c.l.b16 %v256
      %v779 = vunpack.c.l.b16 %v257
      %v780 = vunpack.c.l.b16 %v258
      %v781 = vunpack.c.l.b16 %v259
      %v782 = vunpack.c.l.b16 %v260
      %v783 = vunpack.c.l.b16 %v261
      %v784 = vunpack.c.l.b16 %v262
      %v785 = vunpack.c.l.b16 %v263
      %v786 = vunpack.c.l.b16 %v264
      %v787 = vunpack.c.l.b16 %v265
      %v788 = vunpack.c.l.b16 %v266
      %v789 = vunpack.c.l.b16 %v267
      %v790 = vunpack.c.l.b16 %v268
      %v791 = vunpack.c.l.b16 %v269
      %v792 = vunpack.c.l.b16 %v270
      %v793 = vunpack.c.l.b16 %v271
      %v794 = vunpack.c.l.b16 %v272
      %v795 = vunpack.c.l.b16 %v273
      %v796 = vunpack.c.l.b16 %v274
      %v797 = vunpack.c.l.b16 %v275
      %v798 = vunpack.c.l.b16 %v276
      %v799 = vunpack.c.l.b16 %v277
      %v800 = vunpack.c.l.b16 %v278
      %v801 = vunpack.c.l.b16 %v279
      %v802 = vunpack.c.l.b16 %v280
      %v803 = vunpack.c.l.b16 %v281
      %v804 = vunpack.c.l.b16 %v282
      %v805 = vunpack.c.l.b16 %v283
      %v806 = vunpack.c.l.b16 %v284
      %v807 = vunpack.c.l.b16 %v285
      %v808 = vunpack.c.l.b16 %v286
      %v809 = vunpack.c.l.b16 %v287
      %v810 = vunpack.c.l.b16 %v288
      %v811 = vunpack.c.l.b16 %v289
      %v812 = vunpack.c.l.b16 %v290
      %v813 = vunpack.c.l.b16 %v291
      %v814 = vunpack.c.l.b16 %v292
      %v815 = vunpack.c.l.b16 %v293
      %v816 = vunpack.c.l.b16 %v294
      %v817 = vunpack.c.l.b16 %v295
      %v818 = vunpack.c.l.b16 %v296
      %v819 = vunpack.c.l.b16 %v297
      %v820 = vunpack.c.l.b16 %v298
      %v821 = vunpack.c.l.b16 %v299
      %v822 = vunpack.c.l.b16 %v300
      %v823 = vunpack.c.l.b16 %v301
      %v824 = vunpack.c.l.b16 %v302
      %v825 = vunpack.c.l.b16 %v303
      %v826 = vunpack.c.l.b16 %v304
      %v827 = vunpack.c.l.b16 %v305
      %v828 = vunpack.c.l.b16 %v306
      %v829 = vunpack.c.l.b16 %v307
      %v830 = vunpack.c.l.b16 %v308
      %v831 = vunpack.c.l.b16 %v309
      %v832 = vunpack.c.l.b16 %v310
      %v833 = vunpack.c.l.b16 %v311
      %v834 = vunpack.c.l.b16 %v312
      %v835 = vunpack.c.l.b16 %v313
      %v836 = vunpack.c.l.b16 %v314
      %v837 = vunpack.c.l.b16 %v315
      %v838 = vunpack.c.l.b16 %v316
      %v839 = vunpack.c.l.b16 %v317
      %v840 = vunpack.c.l.b16 %v318
      %v841 = vunpack.c.l.b16 %v319
      %v842 = vunpack.c.l.b16 %v320
      %v843 = vunpack.c.l.b16 %v321
      %v844 = vunpack.c.l.b16 %v322
      %v845 = vunpack.c.l.b16 %v323
      %v846 = vunpack.c.l.b16 %v324
      %v847 = vunpack.c.l.b16 %v325
      %v848 = vunpack.c.l.b16 %v326
      %v849 = vunpack.c.l.b16 %v327
      %v850 = vunpack.c.l.b16 %v328
      %v851 = vunpack.c.l.b16 %v329
      %v852 = vunpack.c.l.b16 %v330
      %v853 = vunpack.c.l.b16 %v331
      %v854 = vunpack.c.l.b16 %v332
      %v855 = vunpack.c.l.b16 %v333
      %v856 = vunpack.c.l.b16 %v334
      %v857 = vunpack.c.l.b16 %v335
      %v858 = vunpack.c.l.b16 %v336
      %v859 = vunpack.c.l.b16 %v337
      %v860 = vunpack.c.l.b16 %v338
      %v861 = vunpack.c.l.b16 %v339
      %v862 = vunpack.c.l.b16 %v340
      %v863 = vunpack.c.l.b16 %v341
      %v864 = vunpack.c.l.b16 %v342
      %v865 = vunpack.c.l.b16 %v343
      %v866 = vunpack.c.l.b16 %v344
      %v867 = vunpack.c.l.b16 %v345
      %v868 = vunpack.c.l.b16 %v346
      %v869 = vunpack.c.l.b16 %v347
      %v870 = vunpack.c.l.b16 %v348
      %v871 = vunpack.c.l.b16 %v349
      %v872 = vunpack.c.l.b16 %v350
      %v873 = vunpack.c.l.b16 %v351
      %v874 = vunpack.c.l.b16 %v352
      %v875 = vunpack.c.l.b16 %v353
      %v876 = vunpack.c.l.b16 %v354
      %v877 = vunpack.c.l.b16 %v355
      %v878 = vunpack.c.l.b16 %v356
      %v879 = vunpack.c.l.b16 %v357
      %v880 = vunpack.c.l.b16 %v358
      %v881 = vunpack.c.l.b16 %v359
      %v882 = vunpack.c.l.b16 %v360
      %v883 = vunpack.c.l.b16 %v361
      %v884 = vunpack.c.l.b16 %v362
      %v885 = vunpack.c.l.b16 %v363
      %v886 = vunpack.c.l.b16 %v364
      %v887 = vunpack.c.l.b16 %v365
      %v888 = vunpack.c.l.b16 %v366
      %v889 = vunpack.c.l.b16 %v367
      %v890 = vunpack.c.l.b16 %v368
      %v891 = vunpack.c.l.b16 %v369
      %v892 = vunpack.c.l.b16 %v370
      %v893 = vunpack.c.l.b16 %v371
      %v894 = vunpack.c.l.b16 %v372
      %v895 = vunpack.c.l.b16 %v373
      %v896 = vunpack.c.l.b16 %v374
      %v897 = vunpack.c.l.b16 %v375
      %v898 = vunpack.c.l.b16 %v376
      %v899 = vunpack.c.l.b16 %v377
      %v900 = vunpack.c.l.b16 %v378
      %v901 = vunpack.c.l.b16 %v379
      %v902 = vunpack.c.l.b16 %v380
      %v903 = vunpack.c.l.b16 %v381
      %v904 = vunpack.c.l.b16 %v382
      %v905 = vunpack.c.l.b16 %v383
      %v906 = vunpack.c.l.b16 %v384
      %v907 = vunpack.c.l.b16 %v385
      %v908 = vunpack.c.l.b16 %v386
      %v909 = vunpack.c.l.b16 %v387
      %v910 = vunpack.c.l.b16 %v388
      %v911 = vunpack.c.l.b16 %v389
      %v912 = vunpack.c.l.b16 %v390
      %v913 = vunpack.c.l.b16 %v391
      %v914 = vunpack.c.l.b16 %v392
      %v915 = vunpack.c.l.b16 %v393
      %v916 = vunpack.c.l.b16 %v394
      %v917 = vunpack.c.l.b16 %v395
      %v918 = vunpack.c.l.b16 %v396
      %v919 = vunpack.c.l.b16 %v397
      %v920 = vunpack.c.l.b16 %v398
      %v921 = vunpack.c.l.b16 %v399
      %v922 = vunpack.c.l.b16 %v400
      %v923 = vunpack.c.l.b16 %v401
      %v924 = vunpack.c.l.b16 %v402
      %v925 = vunpack.c.l.b16 %v403
      %v926 = vunpack.c.l.b16 %v404
      %v927 = vunpack.c.l.b16 %v405
      %v928 = vunpack.c.l.b16 %v406
      %v929 = vunpack.c.l.b16 %v407
      %v930 = vunpack.c.l.b16 %v408
      %v931 = vunpack.c.l.b16 %v409
      %v932 = vunpack.c.l.b16 %v410
      %v933 = vunpack.c.l.b16 %v411
      %v934 = vunpack.c.l.b16 %v412
      %v935 = vunpack.c.l.b16 %v413
      %v936 = vunpack.c.l.b16 %v414
      %v937 = vunpack.c.l.b16 %v415
      %v938 = vunpack.c.l.b16 %v416
      %v939 = vunpack.c.l.b16 %v417
      %v940 = vunpack.c.l.b16 %v418
      %v941 = vunpack.c.l.b16 %v419
      %v942 = vunpack.c.l.b16 %v420
      %v943 = vunpack.c.l.b16 %v421
      %v944 = vunpack.c.l.b16 %v422
      %v945 = vunpack.c.l.b16 %v423
      %v946 = vunpack.c.l.b16 %v424
      %v947 = vunpack.c.l.b16 %v425
      %v948 = vunpack.c.l.b16 %v426
      %v949 = vunpack.c.l.b16 %v427
      %v950 = vunpack.c.l.b16 %v428
      %v951 = vunpack.c.l.b16 %v429
      %v952 = vunpack.c.l.b16 %v430
      %v953 = vpack.c.b16 %v698, %v697
      %v954 = vpack.c.b16 %v700, %v699
      %v955 = vpack.c.b16 %v702, %v701
      %v956 = vpack.c.b16 %v704, %v703
      %v957 = vpack.c.b16 %v706, %v705
      %v958 = vpack.c.b16 %v708, %v707
      %v959 = vpack.c.b16 %v710, %v709
      %v960 = vpack.c.b16 %v712, %v711
      %v961 = vpack.c.b16 %v714, %v713
      %v962 = vpack.c.b16 %v716, %v715
      %v963 = vpack.c.b16 %v718, %v717
      %v964 = vpack.c.b16 %v720, %v719
      %v965 = vpack.c.b16 %v722, %v721
      %v966 = vpack.c.b16 %v724, %v723
      %v967 = vpack.c.b16 %v726, %v725
      %v968 = vpack.c.b16 %v728, %v727
      %v969 = vpack.c.b16 %v730, %v729
      %v970 = vpack.c.b16 %v732, %v731
      %v971 = vpack.c.b16 %v734, %v733
      %v972 = vpack.c.b16 %v736, %v735
      %v973 = vpack.c.b16 %v738, %v737
      %v974 = vpack.c.b16 %v740, %v739
      %v975 = vpack.c.b16 %v742, %v741
      %v976 = vpack.c.b16 %v744, %v743
      %v977 = vpack.c.b16 %v746, %v745
      %v978 = vpack.c.b16 %v748, %v747
      %v979 = vpack.c.b16 %v750, %v749
      %v980 = vpack.c.b16 %v752, %v751
      %v981 = vpack.c.b16 %v754, %v753
      %v982 = vpack.c.b16 %v756, %v755
      %v983 = vpack.c.b16 %v758, %v757
      %v984 = vpack.c.b16 %v760, %v759
      %v985 = vpack.c.b16 %v762, %v761
      %v986 = vpack.c.b16 %v764, %v763
      %v987 = vpack.c.b16 %v766, %v765
      %v988 = vpack.c.b16 %v768, %v767
      %v989 = vpack.c.b16 %v770, %v769
      %v990 = vpack.c.b16 %v772, %v771
      %v991 = vpack.c.b16 %v774, %v773
      %v992 = vpack.c.b16 %v776, %v775
      %v993 = vpack.c.b16 %v778, %v777
      %v994 = vpack.c.b16 %v780, %v779
      %v995 = vpack.c.b16 %v782, %v781
      %v996 = vpack.c.b16 %v784, %v783
      %v997 = vpack.c.b16 %v786, %v785
      %v998 = vpack.c.b16 %v788, %v787
      %v999 = vpack.c.b16 %v790, %v789
      %v1000 = vpack.c.b16 %v792, %v791
      %v1001 = vpack.c.b16 %v794, %v793
      %v1002 = vpack.c.b16 %v796, %v795
      %v1003 = vpack.c.b16 %v798, %v797
      %v1004 = vpack.c.b16 %v800, %v799
      %v1005 = vpack.c.b16 %v802, %v801
      %v1006 = vpack.c.b16 %v804, %v803
      %v1007 = vpack.c.b16 %v806, %v805
      %v1008 = vpack.c.b16 %v808, %v807
      %v1009 = vpack.c.b16 %v810, %v809
      %v1010 = vpack.c.b16 %v812, %v811
      %v1011 = vpack.c.b16 %v814, %v813
      %v1012 = vpack.c.b16 %v816, %v815
      %v1013 = vpack.c.b16 %v818, %v817
      %v1014 = vpack.c.b16 %v820, %v819
      %v1015 = vpack.c.b16 %v822, %v821
      %v1016 = vpack.c.b16 %v824, %v823
      %v1017 = vpack.c.b16 %v826, %v825
      %v1018 = vpack.c.b16 %v828, %v827
      %v1019 = vpack.c.b16 %v830, %v829
      %v1020 = vpack.c.b16 %v832, %v831
      %v1021 = vpack.c.b16 %v834, %v833
      %v1022 = vpack.c.b16 %v836, %v835
      %v1023 = vpack.c.b16 %v838, %v837
      %v1024 = vpack.c.b16 %v840, %v839
      %v1025 = vpack.c.b16 %v842, %v841
      %v1026 = vpack.c.b16 %v844, %v843
      %v1027 = vpack.c.b16 %v846, %v845
      %v1028 = vpack.c.b16 %v848, %v847
      %v1029 = vpack.c.b16 %v850, %v849
      %v1030 = vpack.c.b16 %v852, %v851
      %v1031 = vpack.c.b16 %v854, %v853
      %v1032 = vpack.c.b16 %v856, %v855
      %v1033 = vpack.c.b16 %v858, %v857
      %v1034 = vpack.c.b16 %v860, %v859
      %v1035 = vpack.c.b16 %v862, %v861
      %v1036 = vpack.c.b16 %v864, %v863
      %v1037 = vpack.c.b16 %v866, %v865
      %v1038 = vpack.c.b16 %v868, %v867
      %v1039 = vpack.c.b16 %v870, %v869
      %v1040 = vpack.c.b16 %v872, %v871
      %v1041 = vpack.c.b16 %v874, %v873
      %v1042 = vpack.c.b16 %v876, %v875
      %v1043 = vpack.c.b16 %v878, %v877
      %v1044 = vpack.c.b16 %v880, %v879
      %v1045 = vpack.c.b16 %v882, %v881
      %v1046 = vpack.c.b16 %v884, %v883
      %v1047 = vpack.c.b16 %v886, %v885
      %v1048 = vpack.c.b16 %v888, %v887
      %v1049 = vpack.c.b16 %v890, %v889
      %v1050 = vpack.c.b16 %v892, %v891
      %v1051 = vpack.c.b16 %v894, %v893
      %v1052 = vpack.c.b16 %v896, %v895
      %v1053 = vpack.c.b16 %v898, %v897
      %v1054 = vpack.c.b16 %v900, %v899
      %v1055 = vpack.c.b16 %v902, %v901
      %v1056 = vpack.c.b16 %v904, %v903
      %v1057 = vpack.c.b16 %v906, %v905
      %v1058 = vpack.c.b16 %v908, %v907
      %v1059 = vpack.c.b16 %v910, %v909
      %v1060 = vpack.c.b16 %v912, %v911
      %v1061 = vpack.c.b16 %v914, %v913
      %v1062 = vpack.c.b16 %v916, %v915
      %v1063 = vpack.c.b16 %v918, %v917
      %v1064 = vpack.c.b16 %v920, %v919
      %v1065 = vpack.c.b16 %v922, %v921
      %v1066 = vpack.c.b16 %v924, %v923
      %v1067 = vpack.c.b16 %v926, %v925
      %v1068 = vpack.c.b16 %v928, %v927
      %v1069 = vpack.c.b16 %v930, %v929
      %v1070 = vpack.c.b16 %v932, %v931
      %v1071 = vpack.c.b16 %v934, %v933
      %v1072 = vpack.c.b16 %v936, %v935
      %v1073 = vpack.c.b16 %v938, %v937
      %v1074 = vpack.c.b16 %v940, %v939
      %v1075 = vpack.c.b16 %v942, %v941
      %v1076 = vpack.c.b16 %v944, %v943
      %v1077 = vpack.c.b16 %v946, %v945
      %v1078 = vpack.c.b16 %v948, %v947
      %v1079 = vpack.c.b16 %v950, %v949
      %v1080 = vpack.c.b16 %v952, %v951
      %v1091 = vunpack.c.l.b16 %v431
      %v1092 = vunpack.c.l.b16 %v432
      %v1093 = vunpack.c.l.b16 %v433
      %v1094 = vunpack.c.l.b16 %v434
      %v1095 = vunpack.c.l.b16 %v435
      %v1096 = vunpack.c.l.b16 %v436
      %v1097 = vunpack.c.l.b16 %v437
      %v1098 = vunpack.c.l.b16 %v438
      %v1099 = vunpack.c.l.b16 %v439
      %v1100 = vunpack.c.l.b16 %v440
      %v1101 = vpack.c.b16 %v1092, %v1091
      %v1102 = vpack.c.b16 %v1094, %v1093
      %v1103 = vpack.c.b16 %v1096, %v1095
      %v1104 = vpack.c.b16 %v1098, %v1097
      %v1105 = vpack.c.b16 %v1100, %v1099
      %vm1110 = vcmask 613376
      %v1112 = vsel %vm1110, %v953, 0
      %v1115 = vsel %vm1110, %v954, 0
      %v1118 = vsel %vm1110, %v955, 0
      %v1121 = vsel %vm1110, %v956, 0
      %v1124 = vsel %vm1110, %v957, 0
      %v1127 = vsel %vm1110, %v958, 0
      %v1130 = vsel %vm1110, %v959, 0
      %v1133 = vsel %vm1110, %v960, 0
      %v1136 = vsel %vm1110, %v961, 0
      %v1139 = vsel %vm1110, %v962, 0
      %v1142 = vsel %vm1110, %v963, 0
      %v1145 = vsel %vm1110, %v964, 0
      %v1148 = vsel %vm1110, %v965, 0
      %v1151 = vsel %vm1110, %v966, 0
      %v1154 = vsel %vm1110, %v967, 0
      %v1157 = vsel %vm1110, %v968, 0
      %v1160 = vsel %vm1110, %v969, 0
      %v1163 = vsel %vm1110, %v970, 0
      %v1166 = vsel %vm1110, %v971, 0
      %v1169 = vsel %vm1110, %v972, 0
      %v1172 = vsel %vm1110, %v973, 0
      %v1175 = vsel %vm1110, %v974, 0
      %v1178 = vsel %vm1110, %v975, 0
      %v1181 = vsel %vm1110, %v976, 0
      %v1184 = vsel %vm1110, %v977, 0
      %v1187 = vsel %vm1110, %v978, 0
      %v1190 = vsel %vm1110, %v979, 0
      %v1193 = vsel %vm1110, %v980, 0
      %v1196 = vsel %vm1110, %v981, 0
      %v1199 = vsel %vm1110, %v982, 0
      %v1202 = vsel %vm1110, %v983, 0
      %v1205 = vsel %vm1110, %v984, 0
      %v1208 = vsel %vm1110, %v985, 0
      %v1211 = vsel %vm1110, %v986, 0
      %v1214 = vsel %vm1110, %v987, 0
      %v1217 = vsel %vm1110, %v988, 0
      %v1220 = vsel %vm1110, %v989, 0
      %v1223 = vsel %vm1110, %v990, 0
      %v1226 = vsel %vm1110, %v991, 0
      %v1229 = vsel %vm1110, %v992, 0
      %v1232 = vsel %vm1110, %v993, 0
      %v1235 = vsel %vm1110, %v994, 0
      %v1238 = vsel %vm1110, %v995, 0
      %v1241 = vsel %vm1110, %v996, 0
      %v1244 = vsel %vm1110, %v997, 0
      %v1247 = vsel %vm1110, %v998, 0
      %v1250 = vsel %vm1110, %v999, 0
      %v1253 = vsel %vm1110, %v1000, 0
      %v1256 = vsel %vm1110, %v1001, 0
      %v1259 = vsel %vm1110, %v1002, 0
      %v1262 = vsel %vm1110, %v1003, 0
      %v1265 = vsel %vm1110, %v1004, 0
      %v1268 = vsel %vm1110, %v1005, 0
      %v1271 = vsel %vm1110, %v1006, 0
      %v1274 = vsel %vm1110, %v1007, 0
      %v1277 = vsel %vm1110, %v1008, 0
      %v1280 = vsel %vm1110, %v1009, 0
      %v1283 = vsel %vm1110, %v1010, 0
      %v1286 = vsel %vm1110, %v1011, 0
      %v1289 = vsel %vm1110, %v1012, 0
      %v1292 = vsel %vm1110, %v1013, 0
      %v1295 = vsel %vm1110, %v1014, 0
      %v1298 = vsel %vm1110, %v1015, 0
      %v1301 = vsel %vm1110, %v1016, 0
      %v1304 = vsel %vm1110, %v1017, 0
      %v1307 = vsel %vm1110, %v1018, 0
      %v1310 = vsel %vm1110, %v1019, 0
      %v1313 = vsel %vm1110, %v1020, 0
      %v1316 = vsel %vm1110, %v1021, 0
      %v1319 = vsel %vm1110, %v1022, 0
      %v1322 = vsel %vm1110, %v1023, 0
      %v1325 = vsel %vm1110, %v1024, 0
      %v1328 = vsel %vm1110, %v1025, 0
      %v1331 = vsel %vm1110, %v1026, 0
      %v1334 = vsel %vm1110, %v1027, 0
      %v1337 = vsel %vm1110, %v1028, 0
      %v1340 = vsel %vm1110, %v1029, 0
      %v1343 = vsel %vm1110, %v1030, 0
      %v1346 = vsel %vm1110, %v1031, 0
      %v1349 = vsel %vm1110, %v1032, 0
      %v1352 = vsel %vm1110, %v1033, 0
      %v1355 = vsel %vm1110, %v1034, 0
      %v1358 = vsel %vm1110, %v1035, 0
      %v1361 = vsel %vm1110, %v1036, 0
      %v1364 = vsel %vm1110, %v1037, 0
      %v1367 = vsel %vm1110, %v1038, 0
      %v1370 = vsel %vm1110, %v1039, 0
      %v1373 = vsel %vm1110, %v1040, 0
      %v1376 = vsel %vm1110, %v1041, 0
      %v1379 = vsel %vm1110, %v1042, 0
      %v1382 = vsel %vm1110, %v1043, 0
      %v1385 = vsel %vm1110, %v1044, 0
      %v1388 = vsel %vm1110, %v1045, 0
      %v1391 = vsel %vm1110, %v1046, 0
      %v1394 = vsel %vm1110, %v1047, 0
      %v1397 = vsel %vm1110, %v1048, 0
      %v1400 = vsel %vm1110, %v1049, 0
      %v1403 = vsel %vm1110, %v1050, 0
      %v1406 = vsel %vm1110, %v1051, 0
      %v1409 = vsel %vm1110, %v1052, 0
      %v1412 = vsel %vm1110, %v1053, 0
      %v1415 = vsel %vm1110, %v1054, 0
      %v1418 = vsel %vm1110, %v1055, 0
      %v1421 = vsel %vm1110, %v1056, 0
      %v1424 = vsel %vm1110, %v1057, 0
      %v1427 = vsel %vm1110, %v1058, 0
      %v1430 = vsel %vm1110, %v1059, 0
      %v1433 = vsel %vm1110, %v1060, 0
      %v1436 = vsel %vm1110, %v1061, 0
      %v1439 = vsel %vm1110, %v1062, 0
      %v1442 = vsel %vm1110, %v1063, 0
      %v1445 = vsel %vm1110, %v1064, 0
      %v1448 = vsel %vm1110, %v1065, 0
      %v1451 = vsel %vm1110, %v1066, 0
      %v1454 = vsel %vm1110, %v1067, 0
      %v1457 = vsel %vm1110, %v1068, 0
      %v1460 = vsel %vm1110, %v1069, 0
      %v1463 = vsel %vm1110, %v1070, 0
      %v1466 = vsel %vm1110, %v1071, 0
      %v1469 = vsel %vm1110, %v1072, 0
      %v1472 = vsel %vm1110, %v1073, 0
      %v1475 = vsel %vm1110, %v1074, 0
      %v1478 = vsel %vm1110, %v1075, 0
      %v1481 = vsel %vm1110, %v1076, 0
      %v1484 = vsel %vm1110, %v1077, 0
      %v1487 = vsel %vm1110, %v1078, 0
      %v1490 = vsel %vm1110, %v1079, 0
      %v1493 = vsel %vm1110, %v1080, 0
      %vm1495 = vcmask 1044480
      %vm1496 = vcmask 1045504
      %v1497 = vsel %vm1495, 4294967295, 65535
      %v1498 = vsel %vm1496, %v1497, 0
      %v1500 = vand.u32 %v1105, %v1498
      %1502 = vmatpush.bf16.msra.mxu0 0
      %1503 = vmatpush.bf16.msra.mxu0 0
      %1504 = vmatpush.bf16.msra.mxu0 0
      %1505 = vmatpush.bf16.msra.mxu0 %v1500
      %1506 = vmatpush.bf16.msra.mxu0 %v1104
      %1507 = vmatpush.bf16.msra.mxu0 %v1103
      %1508 = vmatpush.bf16.msra.mxu0 %v1102
      %1509 = vmatpush.bf16.msra.mxu0 %v1101
      %1510 = vmatmul.bf16.gmra.mxu0 %v1112
      %v1511 = vpop.f32.mrf.mxu0
      %v1512 = vadd.f32 0.0, %v1511
      %v1513 = vpop.f32.mrf.mxu0
      %v1514 = vadd.f32 0.0, %v1513
      %1515 = vmatmul.bf16.gmra.mxu0 %v1115
      %v1516 = vpop.f32.mrf.mxu0
      %v1517 = vadd.f32 0.0, %v1516
      %v1518 = vpop.f32.mrf.mxu0
      %v1519 = vadd.f32 0.0, %v1518
      %1520 = vmatmul.bf16.gmra.mxu0 %v1118
      %v1521 = vpop.f32.mrf.mxu0
      %v1522 = vadd.f32 0.0, %v1521
      %v1523 = vpop.f32.mrf.mxu0
      %v1524 = vadd.f32 0.0, %v1523
      %1525 = vmatmul.bf16.gmra.mxu0 %v1121
      %v1526 = vpop.f32.mrf.mxu0
      %v1527 = vadd.f32 0.0, %v1526
      %v1528 = vpop.f32.mrf.mxu0
      %v1529 = vadd.f32 0.0, %v1528
      %1530 = vmatmul.bf16.gmra.mxu0 %v1124
      %v1531 = vpop.f32.mrf.mxu0
      %v1532 = vadd.f32 0.0, %v1531
      %v1533 = vpop.f32.mrf.mxu0
      %v1534 = vadd.f32 0.0, %v1533
      %1535 = vmatmul.bf16.gmra.mxu0 %v1127
      %v1536 = vpop.f32.mrf.mxu0
      %v1537 = vadd.f32 0.0, %v1536
      %v1538 = vpop.f32.mrf.mxu0
      %v1539 = vadd.f32 0.0, %v1538
      %1540 = vmatmul.bf16.gmra.mxu0 %v1130
      %v1541 = vpop.f32.mrf.mxu0
      %v1542 = vadd.f32 0.0, %v1541
      %v1543 = vpop.f32.mrf.mxu0
      %v1544 = vadd.f32 0.0, %v1543
      %1545 = vmatmul.bf16.gmra.mxu0 %v1133
      %v1546 = vpop.f32.mrf.mxu0
      %v1547 = vadd.f32 0.0, %v1546
      %v1548 = vpop.f32.mrf.mxu0
      %v1549 = vadd.f32 0.0, %v1548
      %1550 = vmatmul.bf16.gmra.mxu0 %v1136
      %v1551 = vpop.f32.mrf.mxu0
      %v1552 = vadd.f32 0.0, %v1551
      %v1553 = vpop.f32.mrf.mxu0
      %v1554 = vadd.f32 0.0, %v1553
      %1555 = vmatmul.bf16.gmra.mxu0 %v1139
      %v1556 = vpop.f32.mrf.mxu0
      %v1557 = vadd.f32 0.0, %v1556
      %v1558 = vpop.f32.mrf.mxu0
      %v1559 = vadd.f32 0.0, %v1558
      %1560 = vmatmul.bf16.gmra.mxu0 %v1142
      %v1561 = vpop.f32.mrf.mxu0
      %v1562 = vadd.f32 0.0, %v1561
      %v1563 = vpop.f32.mrf.mxu0
      %v1564 = vadd.f32 0.0, %v1563
      %1565 = vmatmul.bf16.gmra.mxu0 %v1145
      %v1566 = vpop.f32.mrf.mxu0
      %v1567 = vadd.f32 0.0, %v1566
      %v1568 = vpop.f32.mrf.mxu0
      %v1569 = vadd.f32 0.0, %v1568
      %1570 = vmatmul.bf16.gmra.mxu0 %v1148
      %v1571 = vpop.f32.mrf.mxu0
      %v1572 = vadd.f32 0.0, %v1571
      %v1573 = vpop.f32.mrf.mxu0
      %v1574 = vadd.f32 0.0, %v1573
      %1575 = vmatmul.bf16.gmra.mxu0 %v1151
      %v1576 = vpop.f32.mrf.mxu0
      %v1577 = vadd.f32 0.0, %v1576
      %v1578 = vpop.f32.mrf.mxu0
      %v1579 = vadd.f32 0.0, %v1578
      %1580 = vmatmul.bf16.gmra.mxu0 %v1154
      %v1581 = vpop.f32.mrf.mxu0
      %v1582 = vadd.f32 0.0, %v1581
      %v1583 = vpop.f32.mrf.mxu0
      %v1584 = vadd.f32 0.0, %v1583
      %1585 = vmatmul.bf16.gmra.mxu0 %v1157
      %v1586 = vpop.f32.mrf.mxu0
      %v1587 = vadd.f32 0.0, %v1586
      %v1588 = vpop.f32.mrf.mxu0
      %v1589 = vadd.f32 0.0, %v1588
      %1590 = vmatmul.bf16.gmra.mxu0 %v1160
      %v1591 = vpop.f32.mrf.mxu0
      %v1592 = vadd.f32 0.0, %v1591
      %v1593 = vpop.f32.mrf.mxu0
      %v1594 = vadd.f32 0.0, %v1593
      %1595 = vmatmul.bf16.gmra.mxu0 %v1163
      %v1596 = vpop.f32.mrf.mxu0
      %v1597 = vadd.f32 0.0, %v1596
      %v1598 = vpop.f32.mrf.mxu0
      %v1599 = vadd.f32 0.0, %v1598
      %1600 = vmatmul.bf16.gmra.mxu0 %v1166
      %v1601 = vpop.f32.mrf.mxu0
      %v1602 = vadd.f32 0.0, %v1601
      %v1603 = vpop.f32.mrf.mxu0
      %v1604 = vadd.f32 0.0, %v1603
      %1605 = vmatmul.bf16.gmra.mxu0 %v1169
      %v1606 = vpop.f32.mrf.mxu0
      %v1607 = vadd.f32 0.0, %v1606
      %v1608 = vpop.f32.mrf.mxu0
      %v1609 = vadd.f32 0.0, %v1608
      %1610 = vmatmul.bf16.gmra.mxu0 %v1172
      %v1611 = vpop.f32.mrf.mxu0
      %v1612 = vadd.f32 0.0, %v1611
      %v1613 = vpop.f32.mrf.mxu0
      %v1614 = vadd.f32 0.0, %v1613
      %1615 = vmatmul.bf16.gmra.mxu0 %v1175
      %v1616 = vpop.f32.mrf.mxu0
      %v1617 = vadd.f32 0.0, %v1616
      %v1618 = vpop.f32.mrf.mxu0
      %v1619 = vadd.f32 0.0, %v1618
      %1620 = vmatmul.bf16.gmra.mxu0 %v1178
      %v1621 = vpop.f32.mrf.mxu0
      %v1622 = vadd.f32 0.0, %v1621
      %v1623 = vpop.f32.mrf.mxu0
      %v1624 = vadd.f32 0.0, %v1623
      %1625 = vmatmul.bf16.gmra.mxu0 %v1181
      %v1626 = vpop.f32.mrf.mxu0
      %v1627 = vadd.f32 0.0, %v1626
      %v1628 = vpop.f32.mrf.mxu0
      %v1629 = vadd.f32 0.0, %v1628
      %1630 = vmatmul.bf16.gmra.mxu0 %v1184
      %v1631 = vpop.f32.mrf.mxu0
      %v1632 = vadd.f32 0.0, %v1631
      %v1633 = vpop.f32.mrf.mxu0
      %v1634 = vadd.f32 0.0, %v1633
      %1635 = vmatmul.bf16.gmra.mxu0 %v1187
      %v1636 = vpop.f32.mrf.mxu0
      %v1637 = vadd.f32 0.0, %v1636
      %v1638 = vpop.f32.mrf.mxu0
      %v1639 = vadd.f32 0.0, %v1638
      %1640 = vmatmul.bf16.gmra.mxu0 %v1190
      %v1641 = vpop.f32.mrf.mxu0
      %v1642 = vadd.f32 0.0, %v1641
      %v1643 = vpop.f32.mrf.mxu0
      %v1644 = vadd.f32 0.0, %v1643
      %1645 = vmatmul.bf16.gmra.mxu0 %v1193
      %v1646 = vpop.f32.mrf.mxu0
      %v1647 = vadd.f32 0.0, %v1646
      %v1648 = vpop.f32.mrf.mxu0
      %v1649 = vadd.f32 0.0, %v1648
      %1650 = vmatmul.bf16.gmra.mxu0 %v1196
      %v1651 = vpop.f32.mrf.mxu0
      %v1652 = vadd.f32 0.0, %v1651
      %v1653 = vpop.f32.mrf.mxu0
      %v1654 = vadd.f32 0.0, %v1653
      %1655 = vmatmul.bf16.gmra.mxu0 %v1199
      %v1656 = vpop.f32.mrf.mxu0
      %v1657 = vadd.f32 0.0, %v1656
      %v1658 = vpop.f32.mrf.mxu0
      %v1659 = vadd.f32 0.0, %v1658
      %1660 = vmatmul.bf16.gmra.mxu0 %v1202
      %v1661 = vpop.f32.mrf.mxu0
      %v1662 = vadd.f32 0.0, %v1661
      %v1663 = vpop.f32.mrf.mxu0
      %v1664 = vadd.f32 0.0, %v1663
      %1665 = vmatmul.bf16.gmra.mxu0 %v1205
      %v1666 = vpop.f32.mrf.mxu0
      %v1667 = vadd.f32 0.0, %v1666
      %v1668 = vpop.f32.mrf.mxu0
      %v1669 = vadd.f32 0.0, %v1668
      %1670 = vmatmul.bf16.gmra.mxu0 %v1208
      %v1671 = vpop.f32.mrf.mxu0
      %v1672 = vadd.f32 0.0, %v1671
      %v1673 = vpop.f32.mrf.mxu0
      %v1674 = vadd.f32 0.0, %v1673
      %1675 = vmatmul.bf16.gmra.mxu0 %v1211
      %v1676 = vpop.f32.mrf.mxu0
      %v1677 = vadd.f32 0.0, %v1676
      %v1678 = vpop.f32.mrf.mxu0
      %v1679 = vadd.f32 0.0, %v1678
      %1680 = vmatmul.bf16.gmra.mxu0 %v1214
      %v1681 = vpop.f32.mrf.mxu0
      %v1682 = vadd.f32 0.0, %v1681
      %v1683 = vpop.f32.mrf.mxu0
      %v1684 = vadd.f32 0.0, %v1683
      %1685 = vmatmul.bf16.gmra.mxu0 %v1217
      %v1686 = vpop.f32.mrf.mxu0
      %v1687 = vadd.f32 0.0, %v1686
      %v1688 = vpop.f32.mrf.mxu0
      %v1689 = vadd.f32 0.0, %v1688
      %1690 = vmatmul.bf16.gmra.mxu0 %v1220
      %v1691 = vpop.f32.mrf.mxu0
      %v1692 = vadd.f32 0.0, %v1691
      %v1693 = vpop.f32.mrf.mxu0
      %v1694 = vadd.f32 0.0, %v1693
      %1695 = vmatmul.bf16.gmra.mxu0 %v1223
      %v1696 = vpop.f32.mrf.mxu0
      %v1697 = vadd.f32 0.0, %v1696
      %v1698 = vpop.f32.mrf.mxu0
      %v1699 = vadd.f32 0.0, %v1698
      %1700 = vmatmul.bf16.gmra.mxu0 %v1226
      %v1701 = vpop.f32.mrf.mxu0
      %v1702 = vadd.f32 0.0, %v1701
      %v1703 = vpop.f32.mrf.mxu0
      %v1704 = vadd.f32 0.0, %v1703
      %1705 = vmatmul.bf16.gmra.mxu0 %v1229
      %v1706 = vpop.f32.mrf.mxu0
      %v1707 = vadd.f32 0.0, %v1706
      %v1708 = vpop.f32.mrf.mxu0
      %v1709 = vadd.f32 0.0, %v1708
      %1710 = vmatmul.bf16.gmra.mxu0 %v1232
      %v1711 = vpop.f32.mrf.mxu0
      %v1712 = vadd.f32 0.0, %v1711
      %v1713 = vpop.f32.mrf.mxu0
      %v1714 = vadd.f32 0.0, %v1713
      %1715 = vmatmul.bf16.gmra.mxu0 %v1235
      %v1716 = vpop.f32.mrf.mxu0
      %v1717 = vadd.f32 0.0, %v1716
      %v1718 = vpop.f32.mrf.mxu0
      %v1719 = vadd.f32 0.0, %v1718
      %1720 = vmatmul.bf16.gmra.mxu0 %v1238
      %v1721 = vpop.f32.mrf.mxu0
      %v1722 = vadd.f32 0.0, %v1721
      %v1723 = vpop.f32.mrf.mxu0
      %v1724 = vadd.f32 0.0, %v1723
      %1725 = vmatmul.bf16.gmra.mxu0 %v1241
      %v1726 = vpop.f32.mrf.mxu0
      %v1727 = vadd.f32 0.0, %v1726
      %v1728 = vpop.f32.mrf.mxu0
      %v1729 = vadd.f32 0.0, %v1728
      %1730 = vmatmul.bf16.gmra.mxu0 %v1244
      %v1731 = vpop.f32.mrf.mxu0
      %v1732 = vadd.f32 0.0, %v1731
      %v1733 = vpop.f32.mrf.mxu0
      %v1734 = vadd.f32 0.0, %v1733
      %1735 = vmatmul.bf16.gmra.mxu0 %v1247
      %v1736 = vpop.f32.mrf.mxu0
      %v1737 = vadd.f32 0.0, %v1736
      %v1738 = vpop.f32.mrf.mxu0
      %v1739 = vadd.f32 0.0, %v1738
      %1740 = vmatmul.bf16.gmra.mxu0 %v1250
      %v1741 = vpop.f32.mrf.mxu0
      %v1742 = vadd.f32 0.0, %v1741
      %v1743 = vpop.f32.mrf.mxu0
      %v1744 = vadd.f32 0.0, %v1743
      %1745 = vmatmul.bf16.gmra.mxu0 %v1253
      %v1746 = vpop.f32.mrf.mxu0
      %v1747 = vadd.f32 0.0, %v1746
      %v1748 = vpop.f32.mrf.mxu0
      %v1749 = vadd.f32 0.0, %v1748
      %1750 = vmatmul.bf16.gmra.mxu0 %v1256
      %v1751 = vpop.f32.mrf.mxu0
      %v1752 = vadd.f32 0.0, %v1751
      %v1753 = vpop.f32.mrf.mxu0
      %v1754 = vadd.f32 0.0, %v1753
      %1755 = vmatmul.bf16.gmra.mxu0 %v1259
      %v1756 = vpop.f32.mrf.mxu0
      %v1757 = vadd.f32 0.0, %v1756
      %v1758 = vpop.f32.mrf.mxu0
      %v1759 = vadd.f32 0.0, %v1758
      %1760 = vmatmul.bf16.gmra.mxu0 %v1262
      %v1761 = vpop.f32.mrf.mxu0
      %v1762 = vadd.f32 0.0, %v1761
      %v1763 = vpop.f32.mrf.mxu0
      %v1764 = vadd.f32 0.0, %v1763
      %1765 = vmatmul.bf16.gmra.mxu0 %v1265
      %v1766 = vpop.f32.mrf.mxu0
      %v1767 = vadd.f32 0.0, %v1766
      %v1768 = vpop.f32.mrf.mxu0
      %v1769 = vadd.f32 0.0, %v1768
      %1770 = vmatmul.bf16.gmra.mxu0 %v1268
      %v1771 = vpop.f32.mrf.mxu0
      %v1772 = vadd.f32 0.0, %v1771
      %v1773 = vpop.f32.mrf.mxu0
      %v1774 = vadd.f32 0.0, %v1773
      %1775 = vmatmul.bf16.gmra.mxu0 %v1271
      %v1776 = vpop.f32.mrf.mxu0
      %v1777 = vadd.f32 0.0, %v1776
      %v1778 = vpop.f32.mrf.mxu0
      %v1779 = vadd.f32 0.0, %v1778
      %1780 = vmatmul.bf16.gmra.mxu0 %v1274
      %v1781 = vpop.f32.mrf.mxu0
      %v1782 = vadd.f32 0.0, %v1781
      %v1783 = vpop.f32.mrf.mxu0
      %v1784 = vadd.f32 0.0, %v1783
      %1785 = vmatmul.bf16.gmra.mxu0 %v1277
      %v1786 = vpop.f32.mrf.mxu0
      %v1787 = vadd.f32 0.0, %v1786
      %v1788 = vpop.f32.mrf.mxu0
      %v1789 = vadd.f32 0.0, %v1788
      %1790 = vmatmul.bf16.gmra.mxu0 %v1280
      %v1791 = vpop.f32.mrf.mxu0
      %v1792 = vadd.f32 0.0, %v1791
      %v1793 = vpop.f32.mrf.mxu0
      %v1794 = vadd.f32 0.0, %v1793
      %1795 = vmatmul.bf16.gmra.mxu0 %v1283
      %v1796 = vpop.f32.mrf.mxu0
      %v1797 = vadd.f32 0.0, %v1796
      %v1798 = vpop.f32.mrf.mxu0
      %v1799 = vadd.f32 0.0, %v1798
      %1800 = vmatmul.bf16.gmra.mxu0 %v1286
      %v1801 = vpop.f32.mrf.mxu0
      %v1802 = vadd.f32 0.0, %v1801
      %v1803 = vpop.f32.mrf.mxu0
      %v1804 = vadd.f32 0.0, %v1803
      %1805 = vmatmul.bf16.gmra.mxu0 %v1289
      %v1806 = vpop.f32.mrf.mxu0
      %v1807 = vadd.f32 0.0, %v1806
      %v1808 = vpop.f32.mrf.mxu0
      %v1809 = vadd.f32 0.0, %v1808
      %1810 = vmatmul.bf16.gmra.mxu0 %v1292
      %v1811 = vpop.f32.mrf.mxu0
      %v1812 = vadd.f32 0.0, %v1811
      %v1813 = vpop.f32.mrf.mxu0
      %v1814 = vadd.f32 0.0, %v1813
      %1815 = vmatmul.bf16.gmra.mxu0 %v1295
      %v1816 = vpop.f32.mrf.mxu0
      %v1817 = vadd.f32 0.0, %v1816
      %v1818 = vpop.f32.mrf.mxu0
      %v1819 = vadd.f32 0.0, %v1818
      %1820 = vmatmul.bf16.gmra.mxu0 %v1298
      %v1821 = vpop.f32.mrf.mxu0
      %v1822 = vadd.f32 0.0, %v1821
      %v1823 = vpop.f32.mrf.mxu0
      %v1824 = vadd.f32 0.0, %v1823
      %1825 = vmatmul.bf16.gmra.mxu0 %v1301
      %v1826 = vpop.f32.mrf.mxu0
      %v1827 = vadd.f32 0.0, %v1826
      %v1828 = vpop.f32.mrf.mxu0
      %v1829 = vadd.f32 0.0, %v1828
      %1830 = vmatmul.bf16.gmra.mxu0 %v1304
      %v1831 = vpop.f32.mrf.mxu0
      %v1832 = vadd.f32 0.0, %v1831
      %v1833 = vpop.f32.mrf.mxu0
      %v1834 = vadd.f32 0.0, %v1833
      %1835 = vmatmul.bf16.gmra.mxu0 %v1307
      %v1836 = vpop.f32.mrf.mxu0
      %v1837 = vadd.f32 0.0, %v1836
      %v1838 = vpop.f32.mrf.mxu0
      %v1839 = vadd.f32 0.0, %v1838
      %1840 = vmatmul.bf16.gmra.mxu0 %v1310
      %v1841 = vpop.f32.mrf.mxu0
      %v1842 = vadd.f32 0.0, %v1841
      %v1843 = vpop.f32.mrf.mxu0
      %v1844 = vadd.f32 0.0, %v1843
      %1845 = vmatmul.bf16.gmra.mxu0 %v1313
      %v1846 = vpop.f32.mrf.mxu0
      %v1847 = vadd.f32 0.0, %v1846
      %v1848 = vpop.f32.mrf.mxu0
      %v1849 = vadd.f32 0.0, %v1848
      %1850 = vmatmul.bf16.gmra.mxu0 %v1316
      %v1851 = vpop.f32.mrf.mxu0
      %v1852 = vadd.f32 0.0, %v1851
      %v1853 = vpop.f32.mrf.mxu0
      %v1854 = vadd.f32 0.0, %v1853
      %1855 = vmatmul.bf16.gmra.mxu0 %v1319
      %v1856 = vpop.f32.mrf.mxu0
      %v1857 = vadd.f32 0.0, %v1856
      %v1858 = vpop.f32.mrf.mxu0
      %v1859 = vadd.f32 0.0, %v1858
      %1860 = vmatmul.bf16.gmra.mxu0 %v1322
      %v1861 = vpop.f32.mrf.mxu0
      %v1862 = vadd.f32 0.0, %v1861
      %v1863 = vpop.f32.mrf.mxu0
      %v1864 = vadd.f32 0.0, %v1863
      %1865 = vmatmul.bf16.gmra.mxu0 %v1325
      %v1866 = vpop.f32.mrf.mxu0
      %v1867 = vadd.f32 0.0, %v1866
      %v1868 = vpop.f32.mrf.mxu0
      %v1869 = vadd.f32 0.0, %v1868
      %1870 = vmatmul.bf16.gmra.mxu0 %v1328
      %v1871 = vpop.f32.mrf.mxu0
      %v1872 = vadd.f32 0.0, %v1871
      %v1873 = vpop.f32.mrf.mxu0
      %v1874 = vadd.f32 0.0, %v1873
      %1875 = vmatmul.bf16.gmra.mxu0 %v1331
      %v1876 = vpop.f32.mrf.mxu0
      %v1877 = vadd.f32 0.0, %v1876
      %v1878 = vpop.f32.mrf.mxu0
      %v1879 = vadd.f32 0.0, %v1878
      %1880 = vmatmul.bf16.gmra.mxu0 %v1334
      %v1881 = vpop.f32.mrf.mxu0
      %v1882 = vadd.f32 0.0, %v1881
      %v1883 = vpop.f32.mrf.mxu0
      %v1884 = vadd.f32 0.0, %v1883
      %1885 = vmatmul.bf16.gmra.mxu0 %v1337
      %v1886 = vpop.f32.mrf.mxu0
      %v1887 = vadd.f32 0.0, %v1886
      %v1888 = vpop.f32.mrf.mxu0
      %v1889 = vadd.f32 0.0, %v1888
      %1890 = vmatmul.bf16.gmra.mxu0 %v1340
      %v1891 = vpop.f32.mrf.mxu0
      %v1892 = vadd.f32 0.0, %v1891
      %v1893 = vpop.f32.mrf.mxu0
      %v1894 = vadd.f32 0.0, %v1893
      %1895 = vmatmul.bf16.gmra.mxu0 %v1343
      %v1896 = vpop.f32.mrf.mxu0
      %v1897 = vadd.f32 0.0, %v1896
      %v1898 = vpop.f32.mrf.mxu0
      %v1899 = vadd.f32 0.0, %v1898
      %1900 = vmatmul.bf16.gmra.mxu0 %v1346
      %v1901 = vpop.f32.mrf.mxu0
      %v1902 = vadd.f32 0.0, %v1901
      %v1903 = vpop.f32.mrf.mxu0
      %v1904 = vadd.f32 0.0, %v1903
      %1905 = vmatmul.bf16.gmra.mxu0 %v1349
      %v1906 = vpop.f32.mrf.mxu0
      %v1907 = vadd.f32 0.0, %v1906
      %v1908 = vpop.f32.mrf.mxu0
      %v1909 = vadd.f32 0.0, %v1908
      %1910 = vmatmul.bf16.gmra.mxu0 %v1352
      %v1911 = vpop.f32.mrf.mxu0
      %v1912 = vadd.f32 0.0, %v1911
      %v1913 = vpop.f32.mrf.mxu0
      %v1914 = vadd.f32 0.0, %v1913
      %1915 = vmatmul.bf16.gmra.mxu0 %v1355
      %v1916 = vpop.f32.mrf.mxu0
      %v1917 = vadd.f32 0.0, %v1916
      %v1918 = vpop.f32.mrf.mxu0
      %v1919 = vadd.f32 0.0, %v1918
      %1920 = vmatmul.bf16.gmra.mxu0 %v1358
      %v1921 = vpop.f32.mrf.mxu0
      %v1922 = vadd.f32 0.0, %v1921
      %v1923 = vpop.f32.mrf.mxu0
      %v1924 = vadd.f32 0.0, %v1923
      %1925 = vmatmul.bf16.gmra.mxu0 %v1361
      %v1926 = vpop.f32.mrf.mxu0
      %v1927 = vadd.f32 0.0, %v1926
      %v1928 = vpop.f32.mrf.mxu0
      %v1929 = vadd.f32 0.0, %v1928
      %1930 = vmatmul.bf16.gmra.mxu0 %v1364
      %v1931 = vpop.f32.mrf.mxu0
      %v1932 = vadd.f32 0.0, %v1931
      %v1933 = vpop.f32.mrf.mxu0
      %v1934 = vadd.f32 0.0, %v1933
      %1935 = vmatmul.bf16.gmra.mxu0 %v1367
      %v1936 = vpop.f32.mrf.mxu0
      %v1937 = vadd.f32 0.0, %v1936
      %v1938 = vpop.f32.mrf.mxu0
      %v1939 = vadd.f32 0.0, %v1938
      %1940 = vmatmul.bf16.gmra.mxu0 %v1370
      %v1941 = vpop.f32.mrf.mxu0
      %v1942 = vadd.f32 0.0, %v1941
      %v1943 = vpop.f32.mrf.mxu0
      %v1944 = vadd.f32 0.0, %v1943
      %1945 = vmatmul.bf16.gmra.mxu0 %v1373
      %v1946 = vpop.f32.mrf.mxu0
      %v1947 = vadd.f32 0.0, %v1946
      %v1948 = vpop.f32.mrf.mxu0
      %v1949 = vadd.f32 0.0, %v1948
      %1950 = vmatmul.bf16.gmra.mxu0 %v1376
      %v1951 = vpop.f32.mrf.mxu0
      %v1952 = vadd.f32 0.0, %v1951
      %v1953 = vpop.f32.mrf.mxu0
      %v1954 = vadd.f32 0.0, %v1953
      %1955 = vmatmul.bf16.gmra.mxu0 %v1379
      %v1956 = vpop.f32.mrf.mxu0
      %v1957 = vadd.f32 0.0, %v1956
      %v1958 = vpop.f32.mrf.mxu0
      %v1959 = vadd.f32 0.0, %v1958
      %1960 = vmatmul.bf16.gmra.mxu0 %v1382
      %v1961 = vpop.f32.mrf.mxu0
      %v1962 = vadd.f32 0.0, %v1961
      %v1963 = vpop.f32.mrf.mxu0
      %v1964 = vadd.f32 0.0, %v1963
      %1965 = vmatmul.bf16.gmra.mxu0 %v1385
      %v1966 = vpop.f32.mrf.mxu0
      %v1967 = vadd.f32 0.0, %v1966
      %v1968 = vpop.f32.mrf.mxu0
      %v1969 = vadd.f32 0.0, %v1968
      %1970 = vmatmul.bf16.gmra.mxu0 %v1388
      %v1971 = vpop.f32.mrf.mxu0
      %v1972 = vadd.f32 0.0, %v1971
      %v1973 = vpop.f32.mrf.mxu0
      %v1974 = vadd.f32 0.0, %v1973
      %1975 = vmatmul.bf16.gmra.mxu0 %v1391
      %v1976 = vpop.f32.mrf.mxu0
      %v1977 = vadd.f32 0.0, %v1976
      %v1978 = vpop.f32.mrf.mxu0
      %v1979 = vadd.f32 0.0, %v1978
      %1980 = vmatmul.bf16.gmra.mxu0 %v1394
      %v1981 = vpop.f32.mrf.mxu0
      %v1982 = vadd.f32 0.0, %v1981
      %v1983 = vpop.f32.mrf.mxu0
      %v1984 = vadd.f32 0.0, %v1983
      %1985 = vmatmul.bf16.gmra.mxu0 %v1397
      %v1986 = vpop.f32.mrf.mxu0
      %v1987 = vadd.f32 0.0, %v1986
      %v1988 = vpop.f32.mrf.mxu0
      %v1989 = vadd.f32 0.0, %v1988
      %1990 = vmatmul.bf16.gmra.mxu0 %v1400
      %v1991 = vpop.f32.mrf.mxu0
      %v1992 = vadd.f32 0.0, %v1991
      %v1993 = vpop.f32.mrf.mxu0
      %v1994 = vadd.f32 0.0, %v1993
      %1995 = vmatmul.bf16.gmra.mxu0 %v1403
      %v1996 = vpop.f32.mrf.mxu0
      %v1997 = vadd.f32 0.0, %v1996
      %v1998 = vpop.f32.mrf.mxu0
      %v1999 = vadd.f32 0.0, %v1998
      %2000 = vmatmul.bf16.gmra.mxu0 %v1406
      %v2001 = vpop.f32.mrf.mxu0
      %v2002 = vadd.f32 0.0, %v2001
      %v2003 = vpop.f32.mrf.mxu0
      %v2004 = vadd.f32 0.0, %v2003
      %2005 = vmatmul.bf16.gmra.mxu0 %v1409
      %v2006 = vpop.f32.mrf.mxu0
      %v2007 = vadd.f32 0.0, %v2006
      %v2008 = vpop.f32.mrf.mxu0
      %v2009 = vadd.f32 0.0, %v2008
      %2010 = vmatmul.bf16.gmra.mxu0 %v1412
      %v2011 = vpop.f32.mrf.mxu0
      %v2012 = vadd.f32 0.0, %v2011
      %v2013 = vpop.f32.mrf.mxu0
      %v2014 = vadd.f32 0.0, %v2013
      %2015 = vmatmul.bf16.gmra.mxu0 %v1415
      %v2016 = vpop.f32.mrf.mxu0
      %v2017 = vadd.f32 0.0, %v2016
      %v2018 = vpop.f32.mrf.mxu0
      %v2019 = vadd.f32 0.0, %v2018
      %2020 = vmatmul.bf16.gmra.mxu0 %v1418
      %v2021 = vpop.f32.mrf.mxu0
      %v2022 = vadd.f32 0.0, %v2021
      %v2023 = vpop.f32.mrf.mxu0
      %v2024 = vadd.f32 0.0, %v2023
      %2025 = vmatmul.bf16.gmra.mxu0 %v1421
      %v2026 = vpop.f32.mrf.mxu0
      %v2027 = vadd.f32 0.0, %v2026
      %v2028 = vpop.f32.mrf.mxu0
      %v2029 = vadd.f32 0.0, %v2028
      %2030 = vmatmul.bf16.gmra.mxu0 %v1424
      %v2031 = vpop.f32.mrf.mxu0
      %v2032 = vadd.f32 0.0, %v2031
      %v2033 = vpop.f32.mrf.mxu0
      %v2034 = vadd.f32 0.0, %v2033
      %2035 = vmatmul.bf16.gmra.mxu0 %v1427
      %v2036 = vpop.f32.mrf.mxu0
      %v2037 = vadd.f32 0.0, %v2036
      %v2038 = vpop.f32.mrf.mxu0
      %v2039 = vadd.f32 0.0, %v2038
      %2040 = vmatmul.bf16.gmra.mxu0 %v1430
      %v2041 = vpop.f32.mrf.mxu0
      %v2042 = vadd.f32 0.0, %v2041
      %v2043 = vpop.f32.mrf.mxu0
      %v2044 = vadd.f32 0.0, %v2043
      %2045 = vmatmul.bf16.gmra.mxu0 %v1433
      %v2046 = vpop.f32.mrf.mxu0
      %v2047 = vadd.f32 0.0, %v2046
      %v2048 = vpop.f32.mrf.mxu0
      %v2049 = vadd.f32 0.0, %v2048
      %2050 = vmatmul.bf16.gmra.mxu0 %v1436
      %v2051 = vpop.f32.mrf.mxu0
      %v2052 = vadd.f32 0.0, %v2051
      %v2053 = vpop.f32.mrf.mxu0
      %v2054 = vadd.f32 0.0, %v2053
      %2055 = vmatmul.bf16.gmra.mxu0 %v1439
      %v2056 = vpop.f32.mrf.mxu0
      %v2057 = vadd.f32 0.0, %v2056
      %v2058 = vpop.f32.mrf.mxu0
      %v2059 = vadd.f32 0.0, %v2058
      %2060 = vmatmul.bf16.gmra.mxu0 %v1442
      %v2061 = vpop.f32.mrf.mxu0
      %v2062 = vadd.f32 0.0, %v2061
      %v2063 = vpop.f32.mrf.mxu0
      %v2064 = vadd.f32 0.0, %v2063
      %2065 = vmatmul.bf16.gmra.mxu0 %v1445
      %v2066 = vpop.f32.mrf.mxu0
      %v2067 = vadd.f32 0.0, %v2066
      %v2068 = vpop.f32.mrf.mxu0
      %v2069 = vadd.f32 0.0, %v2068
      %2070 = vmatmul.bf16.gmra.mxu0 %v1448
      %v2071 = vpop.f32.mrf.mxu0
      %v2072 = vadd.f32 0.0, %v2071
      %v2073 = vpop.f32.mrf.mxu0
      %v2074 = vadd.f32 0.0, %v2073
      %2075 = vmatmul.bf16.gmra.mxu0 %v1451
      %v2076 = vpop.f32.mrf.mxu0
      %v2077 = vadd.f32 0.0, %v2076
      %v2078 = vpop.f32.mrf.mxu0
      %v2079 = vadd.f32 0.0, %v2078
      %2080 = vmatmul.bf16.gmra.mxu0 %v1454
      %v2081 = vpop.f32.mrf.mxu0
      %v2082 = vadd.f32 0.0, %v2081
      %v2083 = vpop.f32.mrf.mxu0
      %v2084 = vadd.f32 0.0, %v2083
      %2085 = vmatmul.bf16.gmra.mxu0 %v1457
      %v2086 = vpop.f32.mrf.mxu0
      %v2087 = vadd.f32 0.0, %v2086
      %v2088 = vpop.f32.mrf.mxu0
      %v2089 = vadd.f32 0.0, %v2088
      %2090 = vmatmul.bf16.gmra.mxu0 %v1460
      %v2091 = vpop.f32.mrf.mxu0
      %v2092 = vadd.f32 0.0, %v2091
      %v2093 = vpop.f32.mrf.mxu0
      %v2094 = vadd.f32 0.0, %v2093
      %2095 = vmatmul.bf16.gmra.mxu0 %v1463
      %v2096 = vpop.f32.mrf.mxu0
      %v2097 = vadd.f32 0.0, %v2096
      %v2098 = vpop.f32.mrf.mxu0
      %v2099 = vadd.f32 0.0, %v2098
      %2100 = vmatmul.bf16.gmra.mxu0 %v1466
      %v2101 = vpop.f32.mrf.mxu0
      %v2102 = vadd.f32 0.0, %v2101
      %v2103 = vpop.f32.mrf.mxu0
      %v2104 = vadd.f32 0.0, %v2103
      %2105 = vmatmul.bf16.gmra.mxu0 %v1469
      %v2106 = vpop.f32.mrf.mxu0
      %v2107 = vadd.f32 0.0, %v2106
      %v2108 = vpop.f32.mrf.mxu0
      %v2109 = vadd.f32 0.0, %v2108
      %2110 = vmatmul.bf16.gmra.mxu0 %v1472
      %v2111 = vpop.f32.mrf.mxu0
      %v2112 = vadd.f32 0.0, %v2111
      %v2113 = vpop.f32.mrf.mxu0
      %v2114 = vadd.f32 0.0, %v2113
      %2115 = vmatmul.bf16.gmra.mxu0 %v1475
      %v2116 = vpop.f32.mrf.mxu0
      %v2117 = vadd.f32 0.0, %v2116
      %v2118 = vpop.f32.mrf.mxu0
      %v2119 = vadd.f32 0.0, %v2118
      %2120 = vmatmul.bf16.gmra.mxu0 %v1478
      %v2121 = vpop.f32.mrf.mxu0
      %v2122 = vadd.f32 0.0, %v2121
      %v2123 = vpop.f32.mrf.mxu0
      %v2124 = vadd.f32 0.0, %v2123
      %2125 = vmatmul.bf16.gmra.mxu0 %v1481
      %v2126 = vpop.f32.mrf.mxu0
      %v2127 = vadd.f32 0.0, %v2126
      %v2128 = vpop.f32.mrf.mxu0
      %v2129 = vadd.f32 0.0, %v2128
      %2130 = vmatmul.bf16.gmra.mxu0 %v1484
      %v2131 = vpop.f32.mrf.mxu0
      %v2132 = vadd.f32 0.0, %v2131
      %v2133 = vpop.f32.mrf.mxu0
      %v2134 = vadd.f32 0.0, %v2133
      %2135 = vmatmul.bf16.gmra.mxu0 %v1487
      %v2136 = vpop.f32.mrf.mxu0
      %v2137 = vadd.f32 0.0, %v2136
      %v2138 = vpop.f32.mrf.mxu0
      %v2139 = vadd.f32 0.0, %v2138
      %2140 = vmatmul.bf16.gmra.mxu0 %v1490
      %v2141 = vpop.f32.mrf.mxu0
      %v2142 = vadd.f32 0.0, %v2141
      %v2143 = vpop.f32.mrf.mxu0
      %v2144 = vadd.f32 0.0, %v2143
      %2145 = vmatmul.bf16.gmra.mxu0 %v1493
      %v2146 = vpop.f32.mrf.mxu0
      %v2147 = vadd.f32 0.0, %v2146
      %v2148 = vpop.f32.mrf.mxu0
      %v2149 = vadd.f32 0.0, %v2148
      %2150 = vdwg.mxu0
      %v2151 = vmax.f32 %v1512, %v1672
      %v2152 = vmax.f32 %v1514, %v1674
      %v2153 = vmax.f32 %v1517, %v1677
      %v2154 = vmax.f32 %v1519, %v1679
      %v2155 = vmax.f32 %v1522, %v1682
      %v2156 = vmax.f32 %v1524, %v1684
      %v2157 = vmax.f32 %v1527, %v1687
      %v2158 = vmax.f32 %v1529, %v1689
      %v2159 = vmax.f32 %v1532, %v1692
      %v2160 = vmax.f32 %v1534, %v1694
      %v2161 = vmax.f32 %v1537, %v1697
      %v2162 = vmax.f32 %v1539, %v1699
      %v2163 = vmax.f32 %v1542, %v1702
      %v2164 = vmax.f32 %v1544, %v1704
      %v2165 = vmax.f32 %v1547, %v1707
      %v2166 = vmax.f32 %v1549, %v1709
      %v2167 = vmax.f32 %v1552, %v1712
      %v2168 = vmax.f32 %v1554, %v1714
      %v2169 = vmax.f32 %v1557, %v1717
      %v2170 = vmax.f32 %v1559, %v1719
      %v2171 = vmax.f32 %v1562, %v1722
      %v2172 = vmax.f32 %v1564, %v1724
      %v2173 = vmax.f32 %v1567, %v1727
      %v2174 = vmax.f32 %v1569, %v1729
      %v2175 = vmax.f32 %v1572, %v1732
      %v2176 = vmax.f32 %v1574, %v1734
      %v2177 = vmax.f32 %v1577, %v1737
      %v2178 = vmax.f32 %v1579, %v1739
      %v2179 = vmax.f32 %v1582, %v1742
      %v2180 = vmax.f32 %v1584, %v1744
      %v2181 = vmax.f32 %v1587, %v1747
      %v2182 = vmax.f32 %v1589, %v1749
      %v2183 = vmax.f32 %v1592, %v1752
      %v2184 = vmax.f32 %v1594, %v1754
      %v2185 = vmax.f32 %v1597, %v1757
      %v2186 = vmax.f32 %v1599, %v1759
      %v2187 = vmax.f32 %v1602, %v1762
      %v2188 = vmax.f32 %v1604, %v1764
      %v2189 = vmax.f32 %v1607, %v1767
      %v2190 = vmax.f32 %v1609, %v1769
      %v2191 = vmax.f32 %v1612, %v1772
      %v2192 = vmax.f32 %v1614, %v1774
      %v2193 = vmax.f32 %v1617, %v1777
      %v2194 = vmax.f32 %v1619, %v1779
      %v2195 = vmax.f32 %v1622, %v1782
      %v2196 = vmax.f32 %v1624, %v1784
      %v2197 = vmax.f32 %v1627, %v1787
      %v2198 = vmax.f32 %v1629, %v1789
      %v2199 = vmax.f32 %v1632, %v1792
      %v2200 = vmax.f32 %v1634, %v1794
      %v2201 = vmax.f32 %v1637, %v1797
      %v2202 = vmax.f32 %v1639, %v1799
      %v2203 = vmax.f32 %v1642, %v1802
      %v2204 = vmax.f32 %v1644, %v1804
      %v2205 = vmax.f32 %v1647, %v1807
      %v2206 = vmax.f32 %v1649, %v1809
      %v2207 = vmax.f32 %v1652, %v1812
      %v2208 = vmax.f32 %v1654, %v1814
      %v2209 = vmax.f32 %v1657, %v1817
      %v2210 = vmax.f32 %v1659, %v1819
      %v2211 = vmax.f32 %v1662, %v1822
      %v2212 = vmax.f32 %v1664, %v1824
      %v2213 = vmax.f32 %v1667, %v1827
      %v2214 = vmax.f32 %v1669, %v1829
      %v2215 = vmax.f32 %v1832, %v1992
      %v2216 = vmax.f32 %v1834, %v1994
      %v2217 = vmax.f32 %v1837, %v1997
      %v2218 = vmax.f32 %v1839, %v1999
      %v2219 = vmax.f32 %v1842, %v2002
      %v2220 = vmax.f32 %v1844, %v2004
      %v2221 = vmax.f32 %v1847, %v2007
      %v2222 = vmax.f32 %v1849, %v2009
      %v2223 = vmax.f32 %v1852, %v2012
      %v2224 = vmax.f32 %v1854, %v2014
      %v2225 = vmax.f32 %v1857, %v2017
      %v2226 = vmax.f32 %v1859, %v2019
      %v2227 = vmax.f32 %v1862, %v2022
      %v2228 = vmax.f32 %v1864, %v2024
      %v2229 = vmax.f32 %v1867, %v2027
      %v2230 = vmax.f32 %v1869, %v2029
      %v2231 = vmax.f32 %v1872, %v2032
      %v2232 = vmax.f32 %v1874, %v2034
      %v2233 = vmax.f32 %v1877, %v2037
      %v2234 = vmax.f32 %v1879, %v2039
      %v2235 = vmax.f32 %v1882, %v2042
      %v2236 = vmax.f32 %v1884, %v2044
      %v2237 = vmax.f32 %v1887, %v2047
      %v2238 = vmax.f32 %v1889, %v2049
      %v2239 = vmax.f32 %v1892, %v2052
      %v2240 = vmax.f32 %v1894, %v2054
      %v2241 = vmax.f32 %v1897, %v2057
      %v2242 = vmax.f32 %v1899, %v2059
      %v2243 = vmax.f32 %v1902, %v2062
      %v2244 = vmax.f32 %v1904, %v2064
      %v2245 = vmax.f32 %v1907, %v2067
      %v2246 = vmax.f32 %v1909, %v2069
      %v2247 = vmax.f32 %v1912, %v2072
      %v2248 = vmax.f32 %v1914, %v2074
      %v2249 = vmax.f32 %v1917, %v2077
      %v2250 = vmax.f32 %v1919, %v2079
      %v2251 = vmax.f32 %v1922, %v2082
      %v2252 = vmax.f32 %v1924, %v2084
      %v2253 = vmax.f32 %v1927, %v2087
      %v2254 = vmax.f32 %v1929, %v2089
      %v2255 = vmax.f32 %v1932, %v2092
      %v2256 = vmax.f32 %v1934, %v2094
      %v2257 = vmax.f32 %v1937, %v2097
      %v2258 = vmax.f32 %v1939, %v2099
      %v2259 = vmax.f32 %v1942, %v2102
      %v2260 = vmax.f32 %v1944, %v2104
      %v2261 = vmax.f32 %v1947, %v2107
      %v2262 = vmax.f32 %v1949, %v2109
      %v2263 = vmax.f32 %v1952, %v2112
      %v2264 = vmax.f32 %v1954, %v2114
      %v2265 = vmax.f32 %v1957, %v2117
      %v2266 = vmax.f32 %v1959, %v2119
      %v2267 = vmax.f32 %v1962, %v2122
      %v2268 = vmax.f32 %v1964, %v2124
      %v2269 = vmax.f32 %v1967, %v2127
      %v2270 = vmax.f32 %v1969, %v2129
      %v2271 = vmax.f32 %v1972, %v2132
      %v2272 = vmax.f32 %v1974, %v2134
      %v2273 = vmax.f32 %v1977, %v2137
      %v2274 = vmax.f32 %v1979, %v2139
      %v2275 = vmax.f32 %v1982, %v2142
      %v2276 = vmax.f32 %v1984, %v2144
      %v2277 = vmax.f32 %v1987, %v2147
      %v2278 = vmax.f32 %v1989, %v2149
      %v2279 = vmax.f32 %v2151, %v2215
      %v2280 = vmax.f32 %v2152, %v2216
      %v2281 = vmax.f32 %v2153, %v2217
      %v2282 = vmax.f32 %v2154, %v2218
      %v2283 = vmax.f32 %v2155, %v2219
      %v2284 = vmax.f32 %v2156, %v2220
      %v2285 = vmax.f32 %v2157, %v2221
      %v2286 = vmax.f32 %v2158, %v2222
      %v2287 = vmax.f32 %v2159, %v2223
      %v2288 = vmax.f32 %v2160, %v2224
      %v2289 = vmax.f32 %v2161, %v2225
      %v2290 = vmax.f32 %v2162, %v2226
      %v2291 = vmax.f32 %v2163, %v2227
      %v2292 = vmax.f32 %v2164, %v2228
      %v2293 = vmax.f32 %v2165, %v2229
      %v2294 = vmax.f32 %v2166, %v2230
      %v2295 = vmax.f32 %v2167, %v2231
      %v2296 = vmax.f32 %v2168, %v2232
      %v2297 = vmax.f32 %v2169, %v2233
      %v2298 = vmax.f32 %v2170, %v2234
      %v2299 = vmax.f32 %v2171, %v2235
      %v2300 = vmax.f32 %v2172, %v2236
      %v2301 = vmax.f32 %v2173, %v2237
      %v2302 = vmax.f32 %v2174, %v2238
      %v2303 = vmax.f32 %v2175, %v2239
      %v2304 = vmax.f32 %v2176, %v2240
      %v2305 = vmax.f32 %v2177, %v2241
      %v2306 = vmax.f32 %v2178, %v2242
      %v2307 = vmax.f32 %v2179, %v2243
      %v2308 = vmax.f32 %v2180, %v2244
      %v2309 = vmax.f32 %v2181, %v2245
      %v2310 = vmax.f32 %v2182, %v2246
      %v2311 = vmax.f32 %v2183, %v2247
      %v2312 = vmax.f32 %v2184, %v2248
      %v2313 = vmax.f32 %v2185, %v2249
      %v2314 = vmax.f32 %v2186, %v2250
      %v2315 = vmax.f32 %v2187, %v2251
      %v2316 = vmax.f32 %v2188, %v2252
      %v2317 = vmax.f32 %v2189, %v2253
      %v2318 = vmax.f32 %v2190, %v2254
      %v2319 = vmax.f32 %v2191, %v2255
      %v2320 = vmax.f32 %v2192, %v2256
      %v2321 = vmax.f32 %v2193, %v2257
      %v2322 = vmax.f32 %v2194, %v2258
      %v2323 = vmax.f32 %v2195, %v2259
      %v2324 = vmax.f32 %v2196, %v2260
      %v2325 = vmax.f32 %v2197, %v2261
      %v2326 = vmax.f32 %v2198, %v2262
      %v2327 = vmax.f32 %v2199, %v2263
      %v2328 = vmax.f32 %v2200, %v2264
      %v2329 = vmax.f32 %v2201, %v2265
      %v2330 = vmax.f32 %v2202, %v2266
      %v2331 = vmax.f32 %v2203, %v2267
      %v2332 = vmax.f32 %v2204, %v2268
      %v2333 = vmax.f32 %v2205, %v2269
      %v2334 = vmax.f32 %v2206, %v2270
      %v2335 = vmax.f32 %v2207, %v2271
      %v2336 = vmax.f32 %v2208, %v2272
      %v2337 = vmax.f32 %v2209, %v2273
      %v2338 = vmax.f32 %v2210, %v2274
      %v2339 = vmax.f32 %v2211, %v2275
      %v2340 = vmax.f32 %v2212, %v2276
      %v2341 = vmax.f32 %v2213, %v2277
      %v2342 = vmax.f32 %v2214, %v2278
      %v2343 = vld [vmem:[%s2] sm:$0x1]
      %v2345 = vperm.slane %v2343, 0
      %v2347 = vadd.f32 %v2279, %v2345
      %v2348 = vadd.f32 %v2280, %v2345
      %v2349 = vadd.f32 %v2281, %v2345
      %v2350 = vadd.f32 %v2282, %v2345
      %v2351 = vadd.f32 %v2283, %v2345
      %v2352 = vadd.f32 %v2284, %v2345
      %v2353 = vadd.f32 %v2285, %v2345
      %v2354 = vadd.f32 %v2286, %v2345
      %v2355 = vadd.f32 %v2287, %v2345
      %v2356 = vadd.f32 %v2288, %v2345
      %v2357 = vadd.f32 %v2289, %v2345
      %v2358 = vadd.f32 %v2290, %v2345
      %v2359 = vadd.f32 %v2291, %v2345
      %v2360 = vadd.f32 %v2292, %v2345
      %v2361 = vadd.f32 %v2293, %v2345
      %v2362 = vadd.f32 %v2294, %v2345
      %v2363 = vadd.f32 %v2295, %v2345
      %v2364 = vadd.f32 %v2296, %v2345
      %v2365 = vadd.f32 %v2297, %v2345
      %v2366 = vadd.f32 %v2298, %v2345
      %v2367 = vadd.f32 %v2299, %v2345
      %v2368 = vadd.f32 %v2300, %v2345
      %v2369 = vadd.f32 %v2301, %v2345
      %v2370 = vadd.f32 %v2302, %v2345
      %v2371 = vadd.f32 %v2303, %v2345
      %v2372 = vadd.f32 %v2304, %v2345
      %v2373 = vadd.f32 %v2305, %v2345
      %v2374 = vadd.f32 %v2306, %v2345
      %v2375 = vadd.f32 %v2307, %v2345
      %v2376 = vadd.f32 %v2308, %v2345
      %v2377 = vadd.f32 %v2309, %v2345
      %v2378 = vadd.f32 %v2310, %v2345
      %v2379 = vadd.f32 %v2311, %v2345
      %v2380 = vadd.f32 %v2312, %v2345
      %v2381 = vadd.f32 %v2313, %v2345
      %v2382 = vadd.f32 %v2314, %v2345
      %v2383 = vadd.f32 %v2315, %v2345
      %v2384 = vadd.f32 %v2316, %v2345
      %v2385 = vadd.f32 %v2317, %v2345
      %v2386 = vadd.f32 %v2318, %v2345
      %v2387 = vadd.f32 %v2319, %v2345
      %v2388 = vadd.f32 %v2320, %v2345
      %v2389 = vadd.f32 %v2321, %v2345
      %v2390 = vadd.f32 %v2322, %v2345
      %v2391 = vadd.f32 %v2323, %v2345
      %v2392 = vadd.f32 %v2324, %v2345
      %v2393 = vadd.f32 %v2325, %v2345
      %v2394 = vadd.f32 %v2326, %v2345
      %v2395 = vadd.f32 %v2327, %v2345
      %v2396 = vadd.f32 %v2328, %v2345
      %v2397 = vadd.f32 %v2329, %v2345
      %v2398 = vadd.f32 %v2330, %v2345
      %v2399 = vadd.f32 %v2331, %v2345
      %v2400 = vadd.f32 %v2332, %v2345
      %v2401 = vadd.f32 %v2333, %v2345
      %v2402 = vadd.f32 %v2334, %v2345
      %v2403 = vadd.f32 %v2335, %v2345
      %v2404 = vadd.f32 %v2336, %v2345
      %v2405 = vadd.f32 %v2337, %v2345
      %v2406 = vadd.f32 %v2338, %v2345
      %v2407 = vadd.f32 %v2339, %v2345
      %v2408 = vadd.f32 %v2340, %v2345
      %v2409 = vadd.f32 %v2341, %v2345
      %v2410 = vadd.f32 %v2342, %v2345
      %v2411 = vmax.f32 %v2347, 0.0
      %v2412 = vmax.f32 %v2348, 0.0
      %v2413 = vmax.f32 %v2349, 0.0
      %v2414 = vmax.f32 %v2350, 0.0
      %v2415 = vmax.f32 %v2351, 0.0
      %v2416 = vmax.f32 %v2352, 0.0
      %v2417 = vmax.f32 %v2353, 0.0
      %v2418 = vmax.f32 %v2354, 0.0
      %v2419 = vmax.f32 %v2355, 0.0
      %v2420 = vmax.f32 %v2356, 0.0
      %v2421 = vmax.f32 %v2357, 0.0
      %v2422 = vmax.f32 %v2358, 0.0
      %v2423 = vmax.f32 %v2359, 0.0
      %v2424 = vmax.f32 %v2360, 0.0
      %v2425 = vmax.f32 %v2361, 0.0
      %v2426 = vmax.f32 %v2362, 0.0
      %v2427 = vmax.f32 %v2363, 0.0
      %v2428 = vmax.f32 %v2364, 0.0
      %v2429 = vmax.f32 %v2365, 0.0
      %v2430 = vmax.f32 %v2366, 0.0
      %v2431 = vmax.f32 %v2367, 0.0
      %v2432 = vmax.f32 %v2368, 0.0
      %v2433 = vmax.f32 %v2369, 0.0
      %v2434 = vmax.f32 %v2370, 0.0
      %v2435 = vmax.f32 %v2371, 0.0
      %v2436 = vmax.f32 %v2372, 0.0
      %v2437 = vmax.f32 %v2373, 0.0
      %v2438 = vmax.f32 %v2374, 0.0
      %v2439 = vmax.f32 %v2375, 0.0
      %v2440 = vmax.f32 %v2376, 0.0
      %v2441 = vmax.f32 %v2377, 0.0
      %v2442 = vmax.f32 %v2378, 0.0
      %v2443 = vmax.f32 %v2379, 0.0
      %v2444 = vmax.f32 %v2380, 0.0
      %v2445 = vmax.f32 %v2381, 0.0
      %v2446 = vmax.f32 %v2382, 0.0
      %v2447 = vmax.f32 %v2383, 0.0
      %v2448 = vmax.f32 %v2384, 0.0
      %v2449 = vmax.f32 %v2385, 0.0
      %v2450 = vmax.f32 %v2386, 0.0
      %v2451 = vmax.f32 %v2387, 0.0
      %v2452 = vmax.f32 %v2388, 0.0
      %v2453 = vmax.f32 %v2389, 0.0
      %v2454 = vmax.f32 %v2390, 0.0
      %v2455 = vmax.f32 %v2391, 0.0
      %v2456 = vmax.f32 %v2392, 0.0
      %v2457 = vmax.f32 %v2393, 0.0
      %v2458 = vmax.f32 %v2394, 0.0
      %v2459 = vmax.f32 %v2395, 0.0
      %v2460 = vmax.f32 %v2396, 0.0
      %v2461 = vmax.f32 %v2397, 0.0
      %v2462 = vmax.f32 %v2398, 0.0
      %v2463 = vmax.f32 %v2399, 0.0
      %v2464 = vmax.f32 %v2400, 0.0
      %v2465 = vmax.f32 %v2401, 0.0
      %v2466 = vmax.f32 %v2402, 0.0
      %v2467 = vmax.f32 %v2403, 0.0
      %v2468 = vmax.f32 %v2404, 0.0
      %v2469 = vmax.f32 %v2405, 0.0
      %v2470 = vmax.f32 %v2406, 0.0
      %v2471 = vmax.f32 %v2407, 0.0
      %v2472 = vmax.f32 %v2408, 0.0
      %v2473 = vmax.f32 %v2409, 0.0
      %v2474 = vmax.f32 %v2410, 0.0
      %vm2475 = vcmask 523264
      %2476 = vst.msk [vmem:[%s172] sm:$0xff] %vm2475, %v2411
      %2477 = vst.msk [vmem:[%s172 + $0x8] sm:$0xff] %vm2475, %v2412
      %2478 = vst.msk [vmem:[%s172 + $0x10] sm:$0xff] %vm2475, %v2413
      %2479 = vst.msk [vmem:[%s172 + $0x18] sm:$0xff] %vm2475, %v2414
      %2480 = vst.msk [vmem:[%s172 + $0x20] sm:$0xff] %vm2475, %v2415
      %2481 = vst.msk [vmem:[%s172 + $0x28] sm:$0xff] %vm2475, %v2416
      %2482 = vst.msk [vmem:[%s172 + $0x30] sm:$0xff] %vm2475, %v2417
      %2483 = vst.msk [vmem:[%s172 + $0x38] sm:$0xff] %vm2475, %v2418
      %2484 = vst.msk [vmem:[%s172 + $0x40] sm:$0xff] %vm2475, %v2419
      %2485 = vst.msk [vmem:[%s172 + $0x48] sm:$0xff] %vm2475, %v2420
      %2486 = vst.msk [vmem:[%s172 + $0x50] sm:$0xff] %vm2475, %v2421
      %2487 = vst.msk [vmem:[%s172 + $0x58] sm:$0xff] %vm2475, %v2422
      %2488 = vst.msk [vmem:[%s172 + $0x60] sm:$0xff] %vm2475, %v2423
      %2489 = vst.msk [vmem:[%s172 + $0x68] sm:$0xff] %vm2475, %v2424
      %2490 = vst.msk [vmem:[%s172 + $0x70] sm:$0xff] %vm2475, %v2425
      %2491 = vst.msk [vmem:[%s172 + $0x78] sm:$0xff] %vm2475, %v2426
      %2492 = vst.msk [vmem:[%s172 + $0x80] sm:$0xff] %vm2475, %v2427
      %2493 = vst.msk [vmem:[%s172 + $0x88] sm:$0xff] %vm2475, %v2428
      %2494 = vst.msk [vmem:[%s172 + $0x90] sm:$0xff] %vm2475, %v2429
      %2495 = vst.msk [vmem:[%s172 + $0x98] sm:$0xff] %vm2475, %v2430
      %2496 = vst.msk [vmem:[%s172 + $0xa0] sm:$0xff] %vm2475, %v2431
      %2497 = vst.msk [vmem:[%s172 + $0xa8] sm:$0xff] %vm2475, %v2432
      %2498 = vst.msk [vmem:[%s172 + $0xb0] sm:$0xff] %vm2475, %v2433
      %2499 = vst.msk [vmem:[%s172 + $0xb8] sm:$0xff] %vm2475, %v2434
      %2500 = vst.msk [vmem:[%s172 + $0xc0] sm:$0xff] %vm2475, %v2435
      %2501 = vst.msk [vmem:[%s172 + $0xc8] sm:$0xff] %vm2475, %v2436
      %2502 = vst.msk [vmem:[%s172 + $0xd0] sm:$0xff] %vm2475, %v2437
      %2503 = vst.msk [vmem:[%s172 + $0xd8] sm:$0xff] %vm2475, %v2438
      %2504 = vst.msk [vmem:[%s172 + $0xe0] sm:$0xff] %vm2475, %v2439
      %2505 = vst.msk [vmem:[%s172 + $0xe8] sm:$0xff] %vm2475, %v2440
      %2506 = vst.msk [vmem:[%s172 + $0xf0] sm:$0xff] %vm2475, %v2441
      %2507 = vst.msk [vmem:[%s172 + $0xf8] sm:$0xff] %vm2475, %v2442
      %2508 = vst.msk [vmem:[%s172 + $0x100] sm:$0xff] %vm2475, %v2443
      %2509 = vst.msk [vmem:[%s172 + $0x108] sm:$0xff] %vm2475, %v2444
      %2510 = vst.msk [vmem:[%s172 + $0x110] sm:$0xff] %vm2475, %v2445
      %2511 = vst.msk [vmem:[%s172 + $0x118] sm:$0xff] %vm2475, %v2446
      %2512 = vst.msk [vmem:[%s172 + $0x120] sm:$0xff] %vm2475, %v2447
      %2513 = vst.msk [vmem:[%s172 + $0x128] sm:$0xff] %vm2475, %v2448
      %2514 = vst.msk [vmem:[%s172 + $0x130] sm:$0xff] %vm2475, %v2449
      %2515 = vst.msk [vmem:[%s172 + $0x138] sm:$0xff] %vm2475, %v2450
      %2516 = vst.msk [vmem:[%s172 + $0x140] sm:$0xff] %vm2475, %v2451
      %2517 = vst.msk [vmem:[%s172 + $0x148] sm:$0xff] %vm2475, %v2452
      %2518 = vst.msk [vmem:[%s172 + $0x150] sm:$0xff] %vm2475, %v2453
      %2519 = vst.msk [vmem:[%s172 + $0x158] sm:$0xff] %vm2475, %v2454
      %2520 = vst.msk [vmem:[%s172 + $0x160] sm:$0xff] %vm2475, %v2455
      %2521 = vst.msk [vmem:[%s172 + $0x168] sm:$0xff] %vm2475, %v2456
      %2522 = vst.msk [vmem:[%s172 + $0x170] sm:$0xff] %vm2475, %v2457
      %2523 = vst.msk [vmem:[%s172 + $0x178] sm:$0xff] %vm2475, %v2458
      %2524 = vst.msk [vmem:[%s172 + $0x180] sm:$0xff] %vm2475, %v2459
      %2525 = vst.msk [vmem:[%s172 + $0x188] sm:$0xff] %vm2475, %v2460
      %2526 = vst.msk [vmem:[%s172 + $0x190] sm:$0xff] %vm2475, %v2461
      %2527 = vst.msk [vmem:[%s172 + $0x198] sm:$0xff] %vm2475, %v2462
      %2528 = vst.msk [vmem:[%s172 + $0x1a0] sm:$0xff] %vm2475, %v2463
      %2529 = vst.msk [vmem:[%s172 + $0x1a8] sm:$0xff] %vm2475, %v2464
      %2530 = vst.msk [vmem:[%s172 + $0x1b0] sm:$0xff] %vm2475, %v2465
      %2531 = vst.msk [vmem:[%s172 + $0x1b8] sm:$0xff] %vm2475, %v2466
      %2532 = vst.msk [vmem:[%s172 + $0x1c0] sm:$0xff] %vm2475, %v2467
      %2533 = vst.msk [vmem:[%s172 + $0x1c8] sm:$0xff] %vm2475, %v2468
      %2534 = vst.msk [vmem:[%s172 + $0x1d0] sm:$0xff] %vm2475, %v2469
      %2535 = vst.msk [vmem:[%s172 + $0x1d8] sm:$0xff] %vm2475, %v2470
      %2536 = vst.msk [vmem:[%s172 + $0x1e0] sm:$0xff] %vm2475, %v2471
      %2537 = vst.msk [vmem:[%s172 + $0x1e8] sm:$0xff] %vm2475, %v2472
      %2538 = vst.msk [vmem:[%s172 + $0x1f0] sm:$0xff] %vm2475, %v2473
      %2539 = vst.msk [vmem:[%s172 + $0x1f8] sm:$0xff] %vm2475, %v2474
      %s2540 = smul.u32 64, %s14
      %p2541 = scmp.lt.s32.totalorder %s2540, 127
      %s2542 = scalar_select %p2541, %s2540, 127
      %s2543 = smul.addr %s2542, 8
      %s2544 = scalar_lea.vmem %s3, %s2543
      // Predicated region
      $region33: #{cnn_forward.3} parent=31 // pred_check
        %p2545 = pneg %p100
      $region34: #{cnn_forward.3} parent=31 // pred_check_branch
        %2547 = sbr.rel (%p2545) target = $region36
      $region35: #{cnn_forward.3} parent=31 // pred_region
        %s2548 = smul.u32 64, %s14
      $region36: #{cnn_forward.3} parent=31 // pred_fallthru
        _
    $region32: #{cnn_forward.3} parent=5 // pred_fallthru
      _
    %p2549 = scmp.le.s32.totalorder 2, %s9
    // Predicated region
    $region37: #{cnn_forward.3} parent=5 // pred_check
      %p2550 = pneg %p2549
    $region38: #{cnn_forward.3} parent=5 // pred_check_branch
      %2552 = sbr.rel (%p2550) target = $region40
    $region39: #{cnn_forward.3} parent=5 // pred_region
      %s2553 = ssub.s32 %s9, 2
      // Predicated region
      $region41: #{cnn_forward.3} parent=39 // pred_check
        %p2554 = pneg %p106
      $region42: #{cnn_forward.3} parent=39 // pred_check_branch
        %2556 = sbr.rel (%p2554) target = $region44
      $region43: #{cnn_forward.3} parent=39 // pred_region
        %s2557 = smul.u32 64, %s15
        %p2558 = scmp.lt.s32.totalorder %s2557, 127
        %s2559 = scalar_select %p2558, %s2557, 127
        %s2560 = smul.addr %s2559, 8
        %s2561 = scalar_lea.vmem %s3, %s2560
      $region44: #{cnn_forward.3} parent=39 // pred_fallthru
        _
    $region40: #{cnn_forward.3} parent=5 // pred_fallthru
      _
  $region6: #{cnn_forward.3} parent=0 // loop_footer
    %s13 = sadd.s32 1, %s9
  $region7: #{cnn_forward.3} parent=0 // loop_footer_branch
    %8 = sbr.rel target = $region3
  $region8: #{cnn_forward.3} parent=0 // loop_exit
    _

// kernel: cnn_forward.4
$region0: #{cnn_forward.4}
  #allocation0 [shape = 'u32[]', space=smem, size = 0x4, offset = 0x4, fixed_abs, tag = 'smem constant byte address 0x4 - core index']
  #allocation1 [shape = 'u32[72,128]{1,0:T(1,128)}', space=vmem, size = 0x9000, scoped, tag = 'internal scratch']
  %s0 = inlined_call_operand.vmem [shape: bf16[416,1600], index: 0, kind: input, shape index: {}]
  %s1 = inlined_call_operand.vmem [shape: bf16[1600,64], index: 1, kind: input, shape index: {}]
  %s2 = inlined_call_operand.vmem [shape: f32[1,64], index: 2, kind: input, shape index: {}]
  %s3 = inlined_call_operand.vmem [shape: f32[104,64], index: 3, kind: output, shape index: {}]
  %s4 = sld [smem:[#allocation0]]
  $region22: #{cnn_forward.4} parent=0
    _
  %s6 = ssub.s32 1, %s4
  %s7 = scalar_select 0, %s6, %s4
  // Predicated region
  $region2: #{cnn_forward.4} parent=0 // pred_check
    _
  $region3: #{cnn_forward.4} parent=0 // pred_check_branch
    %9 = sbr.rel (0) target = $region5
  $region4: #{cnn_forward.4} parent=0 // pred_region
    _
  $region5: #{cnn_forward.4} parent=0 // pred_fallthru
    _
  // Predicated region
  $region6: #{cnn_forward.4} parent=0 // pred_check
    _
  $region7: #{cnn_forward.4} parent=0 // pred_check_branch
    %11 = sbr.rel (0) target = $region9
  $region8: #{cnn_forward.4} parent=0 // pred_region
    _
  $region9: #{cnn_forward.4} parent=0 // pred_fallthru
    _
  // Predicated region
  $region10: #{cnn_forward.4} parent=0 // pred_check
    _
  $region11: #{cnn_forward.4} parent=0 // pred_check_branch
    %13 = sbr.rel (0) target = $region13
  $region12: #{cnn_forward.4} parent=0 // pred_region
    _
  $region13: #{cnn_forward.4} parent=0 // pred_fallthru
    _
  %v15 = vld [vmem:[%s0] sm:$0xff]
  %v16 = vld [vmem:[%s0 + $0x8] sm:$0xff]
  %v17 = vld [vmem:[%s0 + $0x10] sm:$0xff]
  %v18 = vld [vmem:[%s0 + $0x18] sm:$0xff]
  %v19 = vld [vmem:[%s0 + $0x20] sm:$0xff]
  %v20 = vld [vmem:[%s0 + $0x28] sm:$0xff]
  %v21 = vld [vmem:[%s0 + $0x30] sm:$0xf]
  %v22 = vld [vmem:[%s0 + $0x34] sm:$0xff]
  %v23 = vld [vmem:[%s0 + $0x3c] sm:$0xff]
  %v24 = vld [vmem:[%s0 + $0x44] sm:$0xff]
  %v25 = vld [vmem:[%s0 + $0x4c] sm:$0xff]
  %v26 = vld [vmem:[%s0 + $0x54] sm:$0xff]
  %v27 = vld [vmem:[%s0 + $0x5c] sm:$0xff]
  %v28 = vld [vmem:[%s0 + $0x64] sm:$0xf]
  %v29 = vld [vmem:[%s0 + $0x68] sm:$0xff]
  %v30 = vld [vmem:[%s0 + $0x70] sm:$0xff]
  %v31 = vld [vmem:[%s0 + $0x78] sm:$0xff]
  %v32 = vld [vmem:[%s0 + $0x80] sm:$0xff]
  %v33 = vld [vmem:[%s0 + $0x88] sm:$0xff]
  %v34 = vld [vmem:[%s0 + $0x90] sm:$0xff]
  %v35 = vld [vmem:[%s0 + $0x98] sm:$0xf]
  %v36 = vld [vmem:[%s0 + $0x9c] sm:$0xff]
  %v37 = vld [vmem:[%s0 + $0xa4] sm:$0xff]
  %v38 = vld [vmem:[%s0 + $0xac] sm:$0xff]
  %v39 = vld [vmem:[%s0 + $0xb4] sm:$0xff]
  %v40 = vld [vmem:[%s0 + $0xbc] sm:$0xff]
  %v41 = vld [vmem:[%s0 + $0xc4] sm:$0xff]
  %v42 = vld [vmem:[%s0 + $0xcc] sm:$0xf]
  %v43 = vld [vmem:[%s0 + $0xd0] sm:$0xff]
  %v44 = vld [vmem:[%s0 + $0xd8] sm:$0xff]
  %v45 = vld [vmem:[%s0 + $0xe0] sm:$0xff]
  %v46 = vld [vmem:[%s0 + $0xe8] sm:$0xff]
  %v47 = vld [vmem:[%s0 + $0xf0] sm:$0xff]
  %v48 = vld [vmem:[%s0 + $0xf8] sm:$0xff]
  %v49 = vld [vmem:[%s0 + $0x100] sm:$0xf]
  %v50 = vld [vmem:[%s0 + $0x104] sm:$0xff]
  %v51 = vld [vmem:[%s0 + $0x10c] sm:$0xff]
  %v52 = vld [vmem:[%s0 + $0x114] sm:$0xff]
  %v53 = vld [vmem:[%s0 + $0x11c] sm:$0xff]
  %v54 = vld [vmem:[%s0 + $0x124] sm:$0xff]
  %v55 = vld [vmem:[%s0 + $0x12c] sm:$0xff]
  %v56 = vld [vmem:[%s0 + $0x134] sm:$0xf]
  %v57 = vld [vmem:[%s0 + $0x138] sm:$0xff]
  %v58 = vld [vmem:[%s0 + $0x140] sm:$0xff]
  %v59 = vld [vmem:[%s0 + $0x148] sm:$0xff]
  %v60 = vld [vmem:[%s0 + $0x150] sm:$0xff]
  %v61 = vld [vmem:[%s0 + $0x158] sm:$0xff]
  %v62 = vld [vmem:[%s0 + $0x160] sm:$0xff]
  %v63 = vld [vmem:[%s0 + $0x168] sm:$0xf]
  %v64 = vld [vmem:[%s0 + $0x16c] sm:$0xff]
  %v65 = vld [vmem:[%s0 + $0x174] sm:$0xff]
  %v66 = vld [vmem:[%s0 + $0x17c] sm:$0xff]
  %v67 = vld [vmem:[%s0 + $0x184] sm:$0xff]
  %v68 = vld [vmem:[%s0 + $0x18c] sm:$0xff]
  %v69 = vld [vmem:[%s0 + $0x194] sm:$0xff]
  %v70 = vld [vmem:[%s0 + $0x19c] sm:$0xf]
  %v71 = vld [vmem:[%s0 + $0x1a0] sm:$0xff]
  %v72 = vld [vmem:[%s0 + $0x1a8] sm:$0xff]
  %v73 = vld [vmem:[%s0 + $0x1b0] sm:$0xff]
  %v74 = vld [vmem:[%s0 + $0x1b8] sm:$0xff]
  %v75 = vld [vmem:[%s0 + $0x1c0] sm:$0xff]
  %v76 = vld [vmem:[%s0 + $0x1c8] sm:$0xff]
  %v77 = vld [vmem:[%s0 + $0x1d0] sm:$0xf]
  %v78 = vld [vmem:[%s0 + $0x1d4] sm:$0xff]
  %v79 = vld [vmem:[%s0 + $0x1dc] sm:$0xff]
  %v80 = vld [vmem:[%s0 + $0x1e4] sm:$0xff]
  %v81 = vld [vmem:[%s0 + $0x1ec] sm:$0xff]
  %v82 = vld [vmem:[%s0 + $0x1f4] sm:$0xff]
  %v83 = vld [vmem:[%s0 + $0x1fc] sm:$0xff]
  %v84 = vld [vmem:[%s0 + $0x204] sm:$0xf]
  %v85 = vld [vmem:[%s0 + $0x208] sm:$0xff]
  %v86 = vld [vmem:[%s0 + $0x210] sm:$0xff]
  %v87 = vld [vmem:[%s0 + $0x218] sm:$0xff]
  %v88 = vld [vmem:[%s0 + $0x220] sm:$0xff]
  %v89 = vld [vmem:[%s0 + $0x228] sm:$0xff]
  %v90 = vld [vmem:[%s0 + $0x230] sm:$0xff]
  %v91 = vld [vmem:[%s0 + $0x238] sm:$0xf]
  %v92 = vld [vmem:[%s0 + $0x23c] sm:$0xff]
  %v93 = vld [vmem:[%s0 + $0x244] sm:$0xff]
  %v94 = vld [vmem:[%s0 + $0x24c] sm:$0xff]
  %v95 = vld [vmem:[%s0 + $0x254] sm:$0xff]
  %v96 = vld [vmem:[%s0 + $0x25c] sm:$0xff]
  %v97 = vld [vmem:[%s0 + $0x264] sm:$0xff]
  %v98 = vld [vmem:[%s0 + $0x26c] sm:$0xf]
  %v99 = vld [vmem:[%s0 + $0x270] sm:$0xff]
  %v100 = vld [vmem:[%s0 + $0x278] sm:$0xff]
  %v101 = vld [vmem:[%s0 + $0x280] sm:$0xff]
  %v102 = vld [vmem:[%s0 + $0x288] sm:$0xff]
  %v103 = vld [vmem:[%s0 + $0x290] sm:$0xff]
  %v104 = vld [vmem:[%s0 + $0x298] sm:$0xff]
  %v105 = vld [vmem:[%s0 + $0x2a0] sm:$0xf]
  %v106 = vld [vmem:[%s0 + $0x2a4] sm:$0xff]
  %v107 = vld [vmem:[%s0 + $0x2ac] sm:$0xff]
  %v108 = vld [vmem:[%s0 + $0x2b4] sm:$0xff]
  %v109 = vld [vmem:[%s0 + $0x2bc] sm:$0xff]
  %v110 = vld [vmem:[%s0 + $0x2c4] sm:$0xff]
  %v111 = vld [vmem:[%s0 + $0x2cc] sm:$0xff]
  %v112 = vld [vmem:[%s0 + $0x2d4] sm:$0xf]
  %v113 = vld [vmem:[%s0 + $0x2d8] sm:$0xff]
  %v114 = vld [vmem:[%s0 + $0x2e0] sm:$0xff]
  %v115 = vld [vmem:[%s0 + $0x2e8] sm:$0xff]
  %v116 = vld [vmem:[%s0 + $0x2f0] sm:$0xff]
  %v117 = vld [vmem:[%s0 + $0x2f8] sm:$0xff]
  %v118 = vld [vmem:[%s0 + $0x300] sm:$0xff]
  %v119 = vld [vmem:[%s0 + $0x308] sm:$0xf]
  %v120 = vld [vmem:[%s0 + $0x30c] sm:$0xff]
  %v121 = vld [vmem:[%s0 + $0x314] sm:$0xff]
  %v122 = vld [vmem:[%s0 + $0x31c] sm:$0xff]
  %v123 = vld [vmem:[%s0 + $0x324] sm:$0xff]
  %v124 = vld [vmem:[%s0 + $0x32c] sm:$0xff]
  %v125 = vld [vmem:[%s0 + $0x334] sm:$0xff]
  %v126 = vld [vmem:[%s0 + $0x33c] sm:$0xf]
  %v127 = vld [vmem:[%s0 + $0x340] sm:$0xff]
  %v128 = vld [vmem:[%s0 + $0x348] sm:$0xff]
  %v129 = vld [vmem:[%s0 + $0x350] sm:$0xff]
  %v130 = vld [vmem:[%s0 + $0x358] sm:$0xff]
  %v131 = vld [vmem:[%s0 + $0x360] sm:$0xff]
  %v132 = vld [vmem:[%s0 + $0x368] sm:$0xff]
  %v133 = vld [vmem:[%s0 + $0x370] sm:$0xf]
  %v134 = vld [vmem:[%s0 + $0x374] sm:$0xff]
  %v135 = vld [vmem:[%s0 + $0x37c] sm:$0xff]
  %v136 = vld [vmem:[%s0 + $0x384] sm:$0xff]
  %v137 = vld [vmem:[%s0 + $0x38c] sm:$0xff]
  %v138 = vld [vmem:[%s0 + $0x394] sm:$0xff]
  %v139 = vld [vmem:[%s0 + $0x39c] sm:$0xff]
  %v140 = vld [vmem:[%s0 + $0x3a4] sm:$0xf]
  %v141 = vld [vmem:[%s0 + $0x3a8] sm:$0xff]
  %v142 = vld [vmem:[%s0 + $0x3b0] sm:$0xff]
  %v143 = vld [vmem:[%s0 + $0x3b8] sm:$0xff]
  %v144 = vld [vmem:[%s0 + $0x3c0] sm:$0xff]
  %v145 = vld [vmem:[%s0 + $0x3c8] sm:$0xff]
  %v146 = vld [vmem:[%s0 + $0x3d0] sm:$0xff]
  %v147 = vld [vmem:[%s0 + $0x3d8] sm:$0xf]
  %v148 = vld [vmem:[%s0 + $0x3dc] sm:$0xff]
  %v149 = vld [vmem:[%s0 + $0x3e4] sm:$0xff]
  %v150 = vld [vmem:[%s0 + $0x3ec] sm:$0xff]
  %v151 = vld [vmem:[%s0 + $0x3f4] sm:$0xff]
  %v152 = vld [vmem:[%s0 + $0x3fc] sm:$0xff]
  %v153 = vld [vmem:[%s0 + $0x404] sm:$0xff]
  %v154 = vld [vmem:[%s0 + $0x40c] sm:$0xf]
  %v155 = vld [vmem:[%s0 + $0x410] sm:$0xff]
  %v156 = vld [vmem:[%s0 + $0x418] sm:$0xff]
  %v157 = vld [vmem:[%s0 + $0x420] sm:$0xff]
  %v158 = vld [vmem:[%s0 + $0x428] sm:$0xff]
  %v159 = vld [vmem:[%s0 + $0x430] sm:$0xff]
  %v160 = vld [vmem:[%s0 + $0x438] sm:$0xff]
  %v161 = vld [vmem:[%s0 + $0x440] sm:$0xf]
  %v162 = vld [vmem:[%s0 + $0x444] sm:$0xff]
  %v163 = vld [vmem:[%s0 + $0x44c] sm:$0xff]
  %v164 = vld [vmem:[%s0 + $0x454] sm:$0xff]
  %v165 = vld [vmem:[%s0 + $0x45c] sm:$0xff]
  %v166 = vld [vmem:[%s0 + $0x464] sm:$0xff]
  %v167 = vld [vmem:[%s0 + $0x46c] sm:$0xff]
  %v168 = vld [vmem:[%s0 + $0x474] sm:$0xf]
  %v169 = vld [vmem:[%s0 + $0x478] sm:$0xff]
  %v170 = vld [vmem:[%s0 + $0x480] sm:$0xff]
  %v171 = vld [vmem:[%s0 + $0x488] sm:$0xff]
  %v172 = vld [vmem:[%s0 + $0x490] sm:$0xff]
  %v173 = vld [vmem:[%s0 + $0x498] sm:$0xff]
  %v174 = vld [vmem:[%s0 + $0x4a0] sm:$0xff]
  %v175 = vld [vmem:[%s0 + $0x4a8] sm:$0xf]
  %v176 = vld [vmem:[%s0 + $0x4ac] sm:$0xff]
  %v177 = vld [vmem:[%s0 + $0x4b4] sm:$0xff]
  %v178 = vld [vmem:[%s0 + $0x4bc] sm:$0xff]
  %v179 = vld [vmem:[%s0 + $0x4c4] sm:$0xff]
  %v180 = vld [vmem:[%s0 + $0x4cc] sm:$0xff]
  %v181 = vld [vmem:[%s0 + $0x4d4] sm:$0xff]
  %v182 = vld [vmem:[%s0 + $0x4dc] sm:$0xf]
  %v183 = vld [vmem:[%s0 + $0x4e0] sm:$0xff]
  %v184 = vld [vmem:[%s0 + $0x4e8] sm:$0xff]
  %v185 = vld [vmem:[%s0 + $0x4f0] sm:$0xff]
  %v186 = vld [vmem:[%s0 + $0x4f8] sm:$0xff]
  %v187 = vld [vmem:[%s0 + $0x500] sm:$0xff]
  %v188 = vld [vmem:[%s0 + $0x508] sm:$0xff]
  %v189 = vld [vmem:[%s0 + $0x510] sm:$0xf]
  %v190 = vld [vmem:[%s0 + $0x514] sm:$0xff]
  %v191 = vld [vmem:[%s0 + $0x51c] sm:$0xff]
  %v192 = vld [vmem:[%s0 + $0x524] sm:$0xff]
  %v193 = vld [vmem:[%s0 + $0x52c] sm:$0xff]
  %v194 = vld [vmem:[%s0 + $0x534] sm:$0xff]
  %v195 = vld [vmem:[%s0 + $0x53c] sm:$0xff]
  %v196 = vld [vmem:[%s0 + $0x544] sm:$0xf]
  %v197 = vld [vmem:[%s0 + $0x548] sm:$0xff]
  %v198 = vld [vmem:[%s0 + $0x550] sm:$0xff]
  %v199 = vld [vmem:[%s0 + $0x558] sm:$0xff]
  %v200 = vld [vmem:[%s0 + $0x560] sm:$0xff]
  %v201 = vld [vmem:[%s0 + $0x568] sm:$0xff]
  %v202 = vld [vmem:[%s0 + $0x570] sm:$0xff]
  %v203 = vld [vmem:[%s0 + $0x578] sm:$0xf]
  %v204 = vld [vmem:[%s0 + $0x57c] sm:$0xff]
  %v205 = vld [vmem:[%s0 + $0x584] sm:$0xff]
  %v206 = vld [vmem:[%s0 + $0x58c] sm:$0xff]
  %v207 = vld [vmem:[%s0 + $0x594] sm:$0xff]
  %v208 = vld [vmem:[%s0 + $0x59c] sm:$0xff]
  %v209 = vld [vmem:[%s0 + $0x5a4] sm:$0xff]
  %v210 = vld [vmem:[%s0 + $0x5ac] sm:$0xf]
  %v211 = vld [vmem:[%s0 + $0x5b0] sm:$0xff]
  %v212 = vld [vmem:[%s0 + $0x5b8] sm:$0xff]
  %v213 = vld [vmem:[%s0 + $0x5c0] sm:$0xff]
  %v214 = vld [vmem:[%s0 + $0x5c8] sm:$0xff]
  %v215 = vld [vmem:[%s0 + $0x5d0] sm:$0xff]
  %v216 = vld [vmem:[%s0 + $0x5d8] sm:$0xff]
  %v217 = vld [vmem:[%s0 + $0x5e0] sm:$0xf]
  %v218 = vld [vmem:[%s0 + $0x5e4] sm:$0xff]
  %v219 = vld [vmem:[%s0 + $0x5ec] sm:$0xff]
  %v220 = vld [vmem:[%s0 + $0x5f4] sm:$0xff]
  %v221 = vld [vmem:[%s0 + $0x5fc] sm:$0xff]
  %v222 = vld [vmem:[%s0 + $0x604] sm:$0xff]
  %v223 = vld [vmem:[%s0 + $0x60c] sm:$0xff]
  %v224 = vld [vmem:[%s0 + $0x614] sm:$0xf]
  %v225 = vld [vmem:[%s0 + $0x618] sm:$0xff]
  %v226 = vld [vmem:[%s0 + $0x620] sm:$0xff]
  %v227 = vld [vmem:[%s0 + $0x628] sm:$0xff]
  %v228 = vld [vmem:[%s0 + $0x630] sm:$0xff]
  %v229 = vld [vmem:[%s0 + $0x638] sm:$0xff]
  %v230 = vld [vmem:[%s0 + $0x640] sm:$0xff]
  %v231 = vld [vmem:[%s0 + $0x648] sm:$0xf]
  %v232 = vld [vmem:[%s0 + $0x64c] sm:$0xff]
  %v233 = vld [vmem:[%s0 + $0x654] sm:$0xff]
  %v234 = vld [vmem:[%s0 + $0x65c] sm:$0xff]
  %v235 = vld [vmem:[%s0 + $0x664] sm:$0xff]
  %v236 = vld [vmem:[%s0 + $0x66c] sm:$0xff]
  %v237 = vld [vmem:[%s0 + $0x674] sm:$0xff]
  %v238 = vld [vmem:[%s0 + $0x67c] sm:$0xf]
  %v239 = vld [vmem:[%s0 + $0x680] sm:$0xff]
  %v240 = vld [vmem:[%s0 + $0x688] sm:$0xff]
  %v241 = vld [vmem:[%s0 + $0x690] sm:$0xff]
  %v242 = vld [vmem:[%s0 + $0x698] sm:$0xff]
  %v243 = vld [vmem:[%s0 + $0x6a0] sm:$0xff]
  %v244 = vld [vmem:[%s0 + $0x6a8] sm:$0xff]
  %v245 = vld [vmem:[%s0 + $0x6b0] sm:$0xf]
  %v246 = vld [vmem:[%s0 + $0x6b4] sm:$0xff]
  %v247 = vld [vmem:[%s0 + $0x6bc] sm:$0xff]
  %v248 = vld [vmem:[%s0 + $0x6c4] sm:$0xff]
  %v249 = vld [vmem:[%s0 + $0x6cc] sm:$0xff]
  %v250 = vld [vmem:[%s0 + $0x6d4] sm:$0xff]
  %v251 = vld [vmem:[%s0 + $0x6dc] sm:$0xff]
  %v252 = vld [vmem:[%s0 + $0x6e4] sm:$0xf]
  %v253 = vld [vmem:[%s0 + $0x6e8] sm:$0xff]
  %v254 = vld [vmem:[%s0 + $0x6f0] sm:$0xff]
  %v255 = vld [vmem:[%s0 + $0x6f8] sm:$0xff]
  %v256 = vld [vmem:[%s0 + $0x700] sm:$0xff]
  %v257 = vld [vmem:[%s0 + $0x708] sm:$0xff]
  %v258 = vld [vmem:[%s0 + $0x710] sm:$0xff]
  %v259 = vld [vmem:[%s0 + $0x718] sm:$0xf]
  %v260 = vld [vmem:[%s0 + $0x71c] sm:$0xff]
  %v261 = vld [vmem:[%s0 + $0x724] sm:$0xff]
  %v262 = vld [vmem:[%s0 + $0x72c] sm:$0xff]
  %v263 = vld [vmem:[%s0 + $0x734] sm:$0xff]
  %v264 = vld [vmem:[%s0 + $0x73c] sm:$0xff]
  %v265 = vld [vmem:[%s0 + $0x744] sm:$0xff]
  %v266 = vld [vmem:[%s0 + $0x74c] sm:$0xf]
  %v267 = vld [vmem:[%s0 + $0x750] sm:$0xff]
  %v268 = vld [vmem:[%s0 + $0x758] sm:$0xff]
  %v269 = vld [vmem:[%s0 + $0x760] sm:$0xff]
  %v270 = vld [vmem:[%s0 + $0x768] sm:$0xff]
  %v271 = vld [vmem:[%s0 + $0x770] sm:$0xff]
  %v272 = vld [vmem:[%s0 + $0x778] sm:$0xff]
  %v273 = vld [vmem:[%s0 + $0x780] sm:$0xf]
  %v274 = vld [vmem:[%s0 + $0x784] sm:$0xff]
  %v275 = vld [vmem:[%s0 + $0x78c] sm:$0xff]
  %v276 = vld [vmem:[%s0 + $0x794] sm:$0xff]
  %v277 = vld [vmem:[%s0 + $0x79c] sm:$0xff]
  %v278 = vld [vmem:[%s0 + $0x7a4] sm:$0xff]
  %v279 = vld [vmem:[%s0 + $0x7ac] sm:$0xff]
  %v280 = vld [vmem:[%s0 + $0x7b4] sm:$0xf]
  %v281 = vld [vmem:[%s0 + $0x7b8] sm:$0xff]
  %v282 = vld [vmem:[%s0 + $0x7c0] sm:$0xff]
  %v283 = vld [vmem:[%s0 + $0x7c8] sm:$0xff]
  %v284 = vld [vmem:[%s0 + $0x7d0] sm:$0xff]
  %v285 = vld [vmem:[%s0 + $0x7d8] sm:$0xff]
  %v286 = vld [vmem:[%s0 + $0x7e0] sm:$0xff]
  %v287 = vld [vmem:[%s0 + $0x7e8] sm:$0xf]
  %v288 = vld [vmem:[%s0 + $0x7ec] sm:$0xff]
  %v289 = vld [vmem:[%s0 + $0x7f4] sm:$0xff]
  %v290 = vld [vmem:[%s0 + $0x7fc] sm:$0xff]
  %v291 = vld [vmem:[%s0 + $0x804] sm:$0xff]
  %v292 = vld [vmem:[%s0 + $0x80c] sm:$0xff]
  %v293 = vld [vmem:[%s0 + $0x814] sm:$0xff]
  %v294 = vld [vmem:[%s0 + $0x81c] sm:$0xf]
  %v295 = vld [vmem:[%s0 + $0x820] sm:$0xff]
  %v296 = vld [vmem:[%s0 + $0x828] sm:$0xff]
  %v297 = vld [vmem:[%s0 + $0x830] sm:$0xff]
  %v298 = vld [vmem:[%s0 + $0x838] sm:$0xff]
  %v299 = vld [vmem:[%s0 + $0x840] sm:$0xff]
  %v300 = vld [vmem:[%s0 + $0x848] sm:$0xff]
  %v301 = vld [vmem:[%s0 + $0x850] sm:$0xf]
  %v302 = vld [vmem:[%s0 + $0x854] sm:$0xff]
  %v303 = vld [vmem:[%s0 + $0x85c] sm:$0xff]
  %v304 = vld [vmem:[%s0 + $0x864] sm:$0xff]
  %v305 = vld [vmem:[%s0 + $0x86c] sm:$0xff]
  %v306 = vld [vmem:[%s0 + $0x874] sm:$0xff]
  %v307 = vld [vmem:[%s0 + $0x87c] sm:$0xff]
  %v308 = vld [vmem:[%s0 + $0x884] sm:$0xf]
  %v309 = vld [vmem:[%s0 + $0x888] sm:$0xff]
  %v310 = vld [vmem:[%s0 + $0x890] sm:$0xff]
  %v311 = vld [vmem:[%s0 + $0x898] sm:$0xff]
  %v312 = vld [vmem:[%s0 + $0x8a0] sm:$0xff]
  %v313 = vld [vmem:[%s0 + $0x8a8] sm:$0xff]
  %v314 = vld [vmem:[%s0 + $0x8b0] sm:$0xff]
  %v315 = vld [vmem:[%s0 + $0x8b8] sm:$0xf]
  %v316 = vld [vmem:[%s0 + $0x8bc] sm:$0xff]
  %v317 = vld [vmem:[%s0 + $0x8c4] sm:$0xff]
  %v318 = vld [vmem:[%s0 + $0x8cc] sm:$0xff]
  %v319 = vld [vmem:[%s0 + $0x8d4] sm:$0xff]
  %v320 = vld [vmem:[%s0 + $0x8dc] sm:$0xff]
  %v321 = vld [vmem:[%s0 + $0x8e4] sm:$0xff]
  %v322 = vld [vmem:[%s0 + $0x8ec] sm:$0xf]
  %v323 = vld [vmem:[%s0 + $0x8f0] sm:$0xff]
  %v324 = vld [vmem:[%s0 + $0x8f8] sm:$0xff]
  %v325 = vld [vmem:[%s0 + $0x900] sm:$0xff]
  %v326 = vld [vmem:[%s0 + $0x908] sm:$0xff]
  %v327 = vld [vmem:[%s0 + $0x910] sm:$0xff]
  %v328 = vld [vmem:[%s0 + $0x918] sm:$0xff]
  %v329 = vld [vmem:[%s0 + $0x920] sm:$0xf]
  %v330 = vld [vmem:[%s0 + $0x924] sm:$0xff]
  %v331 = vld [vmem:[%s0 + $0x92c] sm:$0xff]
  %v332 = vld [vmem:[%s0 + $0x934] sm:$0xff]
  %v333 = vld [vmem:[%s0 + $0x93c] sm:$0xff]
  %v334 = vld [vmem:[%s0 + $0x944] sm:$0xff]
  %v335 = vld [vmem:[%s0 + $0x94c] sm:$0xff]
  %v336 = vld [vmem:[%s0 + $0x954] sm:$0xf]
  %v337 = vld [vmem:[%s0 + $0x958] sm:$0xff]
  %v338 = vld [vmem:[%s0 + $0x960] sm:$0xff]
  %v339 = vld [vmem:[%s0 + $0x968] sm:$0xff]
  %v340 = vld [vmem:[%s0 + $0x970] sm:$0xff]
  %v341 = vld [vmem:[%s0 + $0x978] sm:$0xff]
  %v342 = vld [vmem:[%s0 + $0x980] sm:$0xff]
  %v343 = vld [vmem:[%s0 + $0x988] sm:$0xf]
  %v344 = vld [vmem:[%s0 + $0x98c] sm:$0xff]
  %v345 = vld [vmem:[%s0 + $0x994] sm:$0xff]
  %v346 = vld [vmem:[%s0 + $0x99c] sm:$0xff]
  %v347 = vld [vmem:[%s0 + $0x9a4] sm:$0xff]
  %v348 = vld [vmem:[%s0 + $0x9ac] sm:$0xff]
  %v349 = vld [vmem:[%s0 + $0x9b4] sm:$0xff]
  %v350 = vld [vmem:[%s0 + $0x9bc] sm:$0xf]
  %v351 = vld [vmem:[%s0 + $0x9c0] sm:$0xff]
  %v352 = vld [vmem:[%s0 + $0x9c8] sm:$0xff]
  %v353 = vld [vmem:[%s0 + $0x9d0] sm:$0xff]
  %v354 = vld [vmem:[%s0 + $0x9d8] sm:$0xff]
  %v355 = vld [vmem:[%s0 + $0x9e0] sm:$0xff]
  %v356 = vld [vmem:[%s0 + $0x9e8] sm:$0xff]
  %v357 = vld [vmem:[%s0 + $0x9f0] sm:$0xf]
  %v358 = vld [vmem:[%s0 + $0x9f4] sm:$0xff]
  %v359 = vld [vmem:[%s0 + $0x9fc] sm:$0xff]
  %v360 = vld [vmem:[%s0 + $0xa04] sm:$0xff]
  %v361 = vld [vmem:[%s0 + $0xa0c] sm:$0xff]
  %v362 = vld [vmem:[%s0 + $0xa14] sm:$0xff]
  %v363 = vld [vmem:[%s0 + $0xa1c] sm:$0xff]
  %v364 = vld [vmem:[%s0 + $0xa24] sm:$0xf]
  %v365 = vld [vmem:[%s0 + $0xa28] sm:$0xff]
  %v366 = vld [vmem:[%s0 + $0xa30] sm:$0xff]
  %v367 = vld [vmem:[%s0 + $0xa38] sm:$0xff]
  %v368 = vld [vmem:[%s0 + $0xa40] sm:$0xff]
  %v369 = vld [vmem:[%s0 + $0xa48] sm:$0xff]
  %v370 = vld [vmem:[%s0 + $0xa50] sm:$0xff]
  %v371 = vld [vmem:[%s0 + $0xa58] sm:$0xf]
  %v372 = vld [vmem:[%s0 + $0xa5c] sm:$0xff]
  %v373 = vld [vmem:[%s0 + $0xa64] sm:$0xff]
  %v374 = vld [vmem:[%s0 + $0xa6c] sm:$0xff]
  %v375 = vld [vmem:[%s0 + $0xa74] sm:$0xff]
  %v376 = vld [vmem:[%s0 + $0xa7c] sm:$0xff]
  %v377 = vld [vmem:[%s0 + $0xa84] sm:$0xff]
  %v378 = vld [vmem:[%s0 + $0xa8c] sm:$0xf]
  %v379 = vld [vmem:[%s1] sm:$0xf]
  %v380 = vld [vmem:[%s1 + $0x4] sm:$0xf]
  %v381 = vld [vmem:[%s1 + $0x8] sm:$0xf]
  %v382 = vld [vmem:[%s1 + $0xc] sm:$0xf]
  %v383 = vld [vmem:[%s1 + $0x10] sm:$0xf]
  %v384 = vld [vmem:[%s1 + $0x14] sm:$0xf]
  %v385 = vld [vmem:[%s1 + $0x18] sm:$0xf]
  %v386 = vld [vmem:[%s1 + $0x1c] sm:$0xf]
  %v387 = vld [vmem:[%s1 + $0x20] sm:$0xf]
  %v388 = vld [vmem:[%s1 + $0x24] sm:$0xf]
  %v389 = vld [vmem:[%s1 + $0x28] sm:$0xf]
  %v390 = vld [vmem:[%s1 + $0x2c] sm:$0xf]
  %v391 = vld [vmem:[%s1 + $0x30] sm:$0xf]
  %v392 = vld [vmem:[%s1 + $0x34] sm:$0xf]
  %v393 = vld [vmem:[%s1 + $0x38] sm:$0xf]
  %v394 = vld [vmem:[%s1 + $0x3c] sm:$0xf]
  %v395 = vld [vmem:[%s1 + $0x40] sm:$0xf]
  %v396 = vld [vmem:[%s1 + $0x44] sm:$0xf]
  %v397 = vld [vmem:[%s1 + $0x48] sm:$0xf]
  %v398 = vld [vmem:[%s1 + $0x4c] sm:$0xf]
  %v399 = vld [vmem:[%s1 + $0x50] sm:$0xf]
  %v400 = vld [vmem:[%s1 + $0x54] sm:$0xf]
  %v401 = vld [vmem:[%s1 + $0x58] sm:$0xf]
  %v402 = vld [vmem:[%s1 + $0x5c] sm:$0xf]
  %v403 = vld [vmem:[%s1 + $0x60] sm:$0xf]
  %v404 = vld [vmem:[%s1 + $0x64] sm:$0xf]
  %v405 = vld [vmem:[%s1 + $0x68] sm:$0xf]
  %v406 = vld [vmem:[%s1 + $0x6c] sm:$0xf]
  %v407 = vld [vmem:[%s1 + $0x70] sm:$0xf]
  %v408 = vld [vmem:[%s1 + $0x74] sm:$0xf]
  %v409 = vld [vmem:[%s1 + $0x78] sm:$0xf]
  %v410 = vld [vmem:[%s1 + $0x7c] sm:$0xf]
  %v411 = vld [vmem:[%s1 + $0x80] sm:$0xf]
  %v412 = vld [vmem:[%s1 + $0x84] sm:$0xf]
  %v413 = vld [vmem:[%s1 + $0x88] sm:$0xf]
  %v414 = vld [vmem:[%s1 + $0x8c] sm:$0xf]
  %v415 = vld [vmem:[%s1 + $0x90] sm:$0xf]
  %v416 = vld [vmem:[%s1 + $0x94] sm:$0xf]
  %v417 = vld [vmem:[%s1 + $0x98] sm:$0xf]
  %v418 = vld [vmem:[%s1 + $0x9c] sm:$0xf]
  %v419 = vld [vmem:[%s1 + $0xa0] sm:$0xf]
  %v420 = vld [vmem:[%s1 + $0xa4] sm:$0xf]
  %v421 = vld [vmem:[%s1 + $0xa8] sm:$0xf]
  %v422 = vld [vmem:[%s1 + $0xac] sm:$0xf]
  %v423 = vld [vmem:[%s1 + $0xb0] sm:$0xf]
  %v424 = vld [vmem:[%s1 + $0xb4] sm:$0xf]
  %v425 = vld [vmem:[%s1 + $0xb8] sm:$0xf]
  %v426 = vld [vmem:[%s1 + $0xbc] sm:$0xf]
  %v427 = vld [vmem:[%s1 + $0xc0] sm:$0xf]
  %v428 = vld [vmem:[%s1 + $0xc4] sm:$0xf]
  %v429 = vld [vmem:[%s1 + $0xc8] sm:$0xf]
  %v430 = vld [vmem:[%s1 + $0xcc] sm:$0xf]
  %v431 = vld [vmem:[%s1 + $0xd0] sm:$0xf]
  %v432 = vld [vmem:[%s1 + $0xd4] sm:$0xf]
  %v433 = vld [vmem:[%s1 + $0xd8] sm:$0xf]
  %v434 = vld [vmem:[%s1 + $0xdc] sm:$0xf]
  %v435 = vld [vmem:[%s1 + $0xe0] sm:$0xf]
  %v436 = vld [vmem:[%s1 + $0xe4] sm:$0xf]
  %v437 = vld [vmem:[%s1 + $0xe8] sm:$0xf]
  %v438 = vld [vmem:[%s1 + $0xec] sm:$0xf]
  %v439 = vld [vmem:[%s1 + $0xf0] sm:$0xf]
  %v440 = vld [vmem:[%s1 + $0xf4] sm:$0xf]
  %v441 = vld [vmem:[%s1 + $0xf8] sm:$0xf]
  %v442 = vld [vmem:[%s1 + $0xfc] sm:$0xf]
  %v443 = vld [vmem:[%s1 + $0x100] sm:$0xf]
  %v444 = vld [vmem:[%s1 + $0x104] sm:$0xf]
  %v445 = vld [vmem:[%s1 + $0x108] sm:$0xf]
  %v446 = vld [vmem:[%s1 + $0x10c] sm:$0xf]
  %v447 = vld [vmem:[%s1 + $0x110] sm:$0xf]
  %v448 = vld [vmem:[%s1 + $0x114] sm:$0xf]
  %v449 = vld [vmem:[%s1 + $0x118] sm:$0xf]
  %v450 = vld [vmem:[%s1 + $0x11c] sm:$0xf]
  %v451 = vld [vmem:[%s1 + $0x120] sm:$0xf]
  %v452 = vld [vmem:[%s1 + $0x124] sm:$0xf]
  %v453 = vld [vmem:[%s1 + $0x128] sm:$0xf]
  %v454 = vld [vmem:[%s1 + $0x12c] sm:$0xf]
  %v455 = vld [vmem:[%s1 + $0x130] sm:$0xf]
  %v456 = vld [vmem:[%s1 + $0x134] sm:$0xf]
  %v457 = vld [vmem:[%s1 + $0x138] sm:$0xf]
  %v458 = vld [vmem:[%s1 + $0x13c] sm:$0xf]
  %v459 = vld [vmem:[%s1 + $0x140] sm:$0xf]
  %v460 = vld [vmem:[%s1 + $0x144] sm:$0xf]
  %v461 = vld [vmem:[%s1 + $0x148] sm:$0xf]
  %v462 = vld [vmem:[%s1 + $0x14c] sm:$0xf]
  %v463 = vld [vmem:[%s1 + $0x150] sm:$0xf]
  %v464 = vld [vmem:[%s1 + $0x154] sm:$0xf]
  %v465 = vld [vmem:[%s1 + $0x158] sm:$0xf]
  %v466 = vld [vmem:[%s1 + $0x15c] sm:$0xf]
  %v467 = vld [vmem:[%s1 + $0x160] sm:$0xf]
  %v468 = vld [vmem:[%s1 + $0x164] sm:$0xf]
  %v469 = vld [vmem:[%s1 + $0x168] sm:$0xf]
  %v470 = vld [vmem:[%s1 + $0x16c] sm:$0xf]
  %v471 = vld [vmem:[%s1 + $0x170] sm:$0xf]
  %v472 = vld [vmem:[%s1 + $0x174] sm:$0xf]
  %v473 = vld [vmem:[%s1 + $0x178] sm:$0xf]
  %v474 = vld [vmem:[%s1 + $0x17c] sm:$0xf]
  %v475 = vld [vmem:[%s1 + $0x180] sm:$0xf]
  %v476 = vld [vmem:[%s1 + $0x184] sm:$0xf]
  %v477 = vld [vmem:[%s1 + $0x188] sm:$0xf]
  %v478 = vld [vmem:[%s1 + $0x18c] sm:$0xf]
  %v479 = vld [vmem:[%s1 + $0x190] sm:$0xf]
  %v480 = vld [vmem:[%s1 + $0x194] sm:$0xf]
  %v481 = vld [vmem:[%s1 + $0x198] sm:$0xf]
  %v482 = vld [vmem:[%s1 + $0x19c] sm:$0xf]
  %v483 = vld [vmem:[%s1 + $0x1a0] sm:$0xf]
  %v484 = vld [vmem:[%s1 + $0x1a4] sm:$0xf]
  %v485 = vld [vmem:[%s1 + $0x1a8] sm:$0xf]
  %v486 = vld [vmem:[%s1 + $0x1ac] sm:$0xf]
  %v487 = vld [vmem:[%s1 + $0x1b0] sm:$0xf]
  %v488 = vld [vmem:[%s1 + $0x1b4] sm:$0xf]
  %v489 = vld [vmem:[%s1 + $0x1b8] sm:$0xf]
  %v490 = vld [vmem:[%s1 + $0x1bc] sm:$0xf]
  %v491 = vld [vmem:[%s1 + $0x1c0] sm:$0xf]
  %v492 = vld [vmem:[%s1 + $0x1c4] sm:$0xf]
  %v493 = vld [vmem:[%s1 + $0x1c8] sm:$0xf]
  %v494 = vld [vmem:[%s1 + $0x1cc] sm:$0xf]
  %v495 = vld [vmem:[%s1 + $0x1d0] sm:$0xf]
  %v496 = vld [vmem:[%s1 + $0x1d4] sm:$0xf]
  %v497 = vld [vmem:[%s1 + $0x1d8] sm:$0xf]
  %v498 = vld [vmem:[%s1 + $0x1dc] sm:$0xf]
  %v499 = vld [vmem:[%s1 + $0x1e0] sm:$0xf]
  %v500 = vld [vmem:[%s1 + $0x1e4] sm:$0xf]
  %v501 = vld [vmem:[%s1 + $0x1e8] sm:$0xf]
  %v502 = vld [vmem:[%s1 + $0x1ec] sm:$0xf]
  %v503 = vld [vmem:[%s1 + $0x1f0] sm:$0xf]
  %v504 = vld [vmem:[%s1 + $0x1f4] sm:$0xf]
  %v505 = vld [vmem:[%s1 + $0x1f8] sm:$0xf]
  %v506 = vld [vmem:[%s1 + $0x1fc] sm:$0xf]
  %v507 = vld [vmem:[%s1 + $0x200] sm:$0xf]
  %v508 = vld [vmem:[%s1 + $0x204] sm:$0xf]
  %v509 = vld [vmem:[%s1 + $0x208] sm:$0xf]
  %v510 = vld [vmem:[%s1 + $0x20c] sm:$0xf]
  %v511 = vld [vmem:[%s1 + $0x210] sm:$0xf]
  %v512 = vld [vmem:[%s1 + $0x214] sm:$0xf]
  %v513 = vld [vmem:[%s1 + $0x218] sm:$0xf]
  %v514 = vld [vmem:[%s1 + $0x21c] sm:$0xf]
  %v515 = vld [vmem:[%s1 + $0x220] sm:$0xf]
  %v516 = vld [vmem:[%s1 + $0x224] sm:$0xf]
  %v517 = vld [vmem:[%s1 + $0x228] sm:$0xf]
  %v518 = vld [vmem:[%s1 + $0x22c] sm:$0xf]
  %v519 = vld [vmem:[%s1 + $0x230] sm:$0xf]
  %v520 = vld [vmem:[%s1 + $0x234] sm:$0xf]
  %v521 = vld [vmem:[%s1 + $0x238] sm:$0xf]
  %v522 = vld [vmem:[%s1 + $0x23c] sm:$0xf]
  %v523 = vld [vmem:[%s1 + $0x240] sm:$0xf]
  %v524 = vld [vmem:[%s1 + $0x244] sm:$0xf]
  %v525 = vld [vmem:[%s1 + $0x248] sm:$0xf]
  %v526 = vld [vmem:[%s1 + $0x24c] sm:$0xf]
  %v527 = vld [vmem:[%s1 + $0x250] sm:$0xf]
  %v528 = vld [vmem:[%s1 + $0x254] sm:$0xf]
  %v529 = vld [vmem:[%s1 + $0x258] sm:$0xf]
  %v530 = vld [vmem:[%s1 + $0x25c] sm:$0xf]
  %v531 = vld [vmem:[%s1 + $0x260] sm:$0xf]
  %v532 = vld [vmem:[%s1 + $0x264] sm:$0xf]
  %v533 = vld [vmem:[%s1 + $0x268] sm:$0xf]
  %v534 = vld [vmem:[%s1 + $0x26c] sm:$0xf]
  %v535 = vld [vmem:[%s1 + $0x270] sm:$0xf]
  %v536 = vld [vmem:[%s1 + $0x274] sm:$0xf]
  %v537 = vld [vmem:[%s1 + $0x278] sm:$0xf]
  %v538 = vld [vmem:[%s1 + $0x27c] sm:$0xf]
  %v539 = vld [vmem:[%s1 + $0x280] sm:$0xf]
  %v540 = vld [vmem:[%s1 + $0x284] sm:$0xf]
  %v541 = vld [vmem:[%s1 + $0x288] sm:$0xf]
  %v542 = vld [vmem:[%s1 + $0x28c] sm:$0xf]
  %v543 = vld [vmem:[%s1 + $0x290] sm:$0xf]
  %v544 = vld [vmem:[%s1 + $0x294] sm:$0xf]
  %v545 = vld [vmem:[%s1 + $0x298] sm:$0xf]
  %v546 = vld [vmem:[%s1 + $0x29c] sm:$0xf]
  %v547 = vld [vmem:[%s1 + $0x2a0] sm:$0xf]
  %v548 = vld [vmem:[%s1 + $0x2a4] sm:$0xf]
  %v549 = vld [vmem:[%s1 + $0x2a8] sm:$0xf]
  %v550 = vld [vmem:[%s1 + $0x2ac] sm:$0xf]
  %v551 = vld [vmem:[%s1 + $0x2b0] sm:$0xf]
  %v552 = vld [vmem:[%s1 + $0x2b4] sm:$0xf]
  %v553 = vld [vmem:[%s1 + $0x2b8] sm:$0xf]
  %v554 = vld [vmem:[%s1 + $0x2bc] sm:$0xf]
  %v555 = vld [vmem:[%s1 + $0x2c0] sm:$0xf]
  %v556 = vld [vmem:[%s1 + $0x2c4] sm:$0xf]
  %v557 = vld [vmem:[%s1 + $0x2c8] sm:$0xf]
  %v558 = vld [vmem:[%s1 + $0x2cc] sm:$0xf]
  %v559 = vld [vmem:[%s1 + $0x2d0] sm:$0xf]
  %v560 = vld [vmem:[%s1 + $0x2d4] sm:$0xf]
  %v561 = vld [vmem:[%s1 + $0x2d8] sm:$0xf]
  %v562 = vld [vmem:[%s1 + $0x2dc] sm:$0xf]
  %v563 = vld [vmem:[%s1 + $0x2e0] sm:$0xf]
  %v564 = vld [vmem:[%s1 + $0x2e4] sm:$0xf]
  %v565 = vld [vmem:[%s1 + $0x2e8] sm:$0xf]
  %v566 = vld [vmem:[%s1 + $0x2ec] sm:$0xf]
  %v567 = vld [vmem:[%s1 + $0x2f0] sm:$0xf]
  %v568 = vld [vmem:[%s1 + $0x2f4] sm:$0xf]
  %v569 = vld [vmem:[%s1 + $0x2f8] sm:$0xf]
  %v570 = vld [vmem:[%s1 + $0x2fc] sm:$0xf]
  %v571 = vld [vmem:[%s1 + $0x300] sm:$0xf]
  %v572 = vld [vmem:[%s1 + $0x304] sm:$0xf]
  %v573 = vld [vmem:[%s1 + $0x308] sm:$0xf]
  %v574 = vld [vmem:[%s1 + $0x30c] sm:$0xf]
  %v575 = vld [vmem:[%s1 + $0x310] sm:$0xf]
  %v576 = vld [vmem:[%s1 + $0x314] sm:$0xf]
  %v577 = vld [vmem:[%s1 + $0x318] sm:$0xf]
  %v578 = vld [vmem:[%s1 + $0x31c] sm:$0xf]
  %v943 = vunpack.c.l.b16 %v15
  %v944 = vunpack.c.h.b16 %v15
  %v945 = vunpack.c.l.b16 %v16
  %v946 = vunpack.c.h.b16 %v16
  %v947 = vunpack.c.l.b16 %v17
  %v948 = vunpack.c.h.b16 %v17
  %v949 = vunpack.c.l.b16 %v18
  %v950 = vunpack.c.h.b16 %v18
  %v951 = vunpack.c.l.b16 %v19
  %v952 = vunpack.c.h.b16 %v19
  %v953 = vunpack.c.l.b16 %v20
  %v954 = vunpack.c.h.b16 %v20
  %v955 = vunpack.c.l.b16 %v21
  %v956 = vunpack.c.l.b16 %v22
  %v957 = vunpack.c.h.b16 %v22
  %v958 = vunpack.c.l.b16 %v23
  %v959 = vunpack.c.h.b16 %v23
  %v960 = vunpack.c.l.b16 %v24
  %v961 = vunpack.c.h.b16 %v24
  %v962 = vunpack.c.l.b16 %v25
  %v963 = vunpack.c.h.b16 %v25
  %v964 = vunpack.c.l.b16 %v26
  %v965 = vunpack.c.h.b16 %v26
  %v966 = vunpack.c.l.b16 %v27
  %v967 = vunpack.c.h.b16 %v27
  %v968 = vunpack.c.l.b16 %v28
  %v969 = vunpack.c.l.b16 %v29
  %v970 = vunpack.c.h.b16 %v29
  %v971 = vunpack.c.l.b16 %v30
  %v972 = vunpack.c.h.b16 %v30
  %v973 = vunpack.c.l.b16 %v31
  %v974 = vunpack.c.h.b16 %v31
  %v975 = vunpack.c.l.b16 %v32
  %v976 = vunpack.c.h.b16 %v32
  %v977 = vunpack.c.l.b16 %v33
  %v978 = vunpack.c.h.b16 %v33
  %v979 = vunpack.c.l.b16 %v34
  %v980 = vunpack.c.h.b16 %v34
  %v981 = vunpack.c.l.b16 %v35
  %v982 = vunpack.c.l.b16 %v36
  %v983 = vunpack.c.h.b16 %v36
  %v984 = vunpack.c.l.b16 %v37
  %v985 = vunpack.c.h.b16 %v37
  %v986 = vunpack.c.l.b16 %v38
  %v987 = vunpack.c.h.b16 %v38
  %v988 = vunpack.c.l.b16 %v39
  %v989 = vunpack.c.h.b16 %v39
  %v990 = vunpack.c.l.b16 %v40
  %v991 = vunpack.c.h.b16 %v40
  %v992 = vunpack.c.l.b16 %v41
  %v993 = vunpack.c.h.b16 %v41
  %v994 = vunpack.c.l.b16 %v42
  %v995 = vunpack.c.l.b16 %v43
  %v996 = vunpack.c.h.b16 %v43
  %v997 = vunpack.c.l.b16 %v44
  %v998 = vunpack.c.h.b16 %v44
  %v999 = vunpack.c.l.b16 %v45
  %v1000 = vunpack.c.h.b16 %v45
  %v1001 = vunpack.c.l.b16 %v46
  %v1002 = vunpack.c.h.b16 %v46
  %v1003 = vunpack.c.l.b16 %v47
  %v1004 = vunpack.c.h.b16 %v47
  %v1005 = vunpack.c.l.b16 %v48
  %v1006 = vunpack.c.h.b16 %v48
  %v1007 = vunpack.c.l.b16 %v49
  %v1008 = vunpack.c.l.b16 %v50
  %v1009 = vunpack.c.h.b16 %v50
  %v1010 = vunpack.c.l.b16 %v51
  %v1011 = vunpack.c.h.b16 %v51
  %v1012 = vunpack.c.l.b16 %v52
  %v1013 = vunpack.c.h.b16 %v52
  %v1014 = vunpack.c.l.b16 %v53
  %v1015 = vunpack.c.h.b16 %v53
  %v1016 = vunpack.c.l.b16 %v54
  %v1017 = vunpack.c.h.b16 %v54
  %v1018 = vunpack.c.l.b16 %v55
  %v1019 = vunpack.c.h.b16 %v55
  %v1020 = vunpack.c.l.b16 %v56
  %v1021 = vunpack.c.l.b16 %v57
  %v1022 = vunpack.c.h.b16 %v57
  %v1023 = vunpack.c.l.b16 %v58
  %v1024 = vunpack.c.h.b16 %v58
  %v1025 = vunpack.c.l.b16 %v59
  %v1026 = vunpack.c.h.b16 %v59
  %v1027 = vunpack.c.l.b16 %v60
  %v1028 = vunpack.c.h.b16 %v60
  %v1029 = vunpack.c.l.b16 %v61
  %v1030 = vunpack.c.h.b16 %v61
  %v1031 = vunpack.c.l.b16 %v62
  %v1032 = vunpack.c.h.b16 %v62
  %v1033 = vunpack.c.l.b16 %v63
  %v1034 = vunpack.c.l.b16 %v64
  %v1035 = vunpack.c.h.b16 %v64
  %v1036 = vunpack.c.l.b16 %v65
  %v1037 = vunpack.c.h.b16 %v65
  %v1038 = vunpack.c.l.b16 %v66
  %v1039 = vunpack.c.h.b16 %v66
  %v1040 = vunpack.c.l.b16 %v67
  %v1041 = vunpack.c.h.b16 %v67
  %v1042 = vunpack.c.l.b16 %v68
  %v1043 = vunpack.c.h.b16 %v68
  %v1044 = vunpack.c.l.b16 %v69
  %v1045 = vunpack.c.h.b16 %v69
  %v1046 = vunpack.c.l.b16 %v70
  %v1047 = vunpack.c.l.b16 %v71
  %v1048 = vunpack.c.h.b16 %v71
  %v1049 = vunpack.c.l.b16 %v72
  %v1050 = vunpack.c.h.b16 %v72
  %v1051 = vunpack.c.l.b16 %v73
  %v1052 = vunpack.c.h.b16 %v73
  %v1053 = vunpack.c.l.b16 %v74
  %v1054 = vunpack.c.h.b16 %v74
  %v1055 = vunpack.c.l.b16 %v75
  %v1056 = vunpack.c.h.b16 %v75
  %v1057 = vunpack.c.l.b16 %v76
  %v1058 = vunpack.c.h.b16 %v76
  %v1059 = vunpack.c.l.b16 %v77
  %v1060 = vunpack.c.l.b16 %v78
  %v1061 = vunpack.c.h.b16 %v78
  %v1062 = vunpack.c.l.b16 %v79
  %v1063 = vunpack.c.h.b16 %v79
  %v1064 = vunpack.c.l.b16 %v80
  %v1065 = vunpack.c.h.b16 %v80
  %v1066 = vunpack.c.l.b16 %v81
  %v1067 = vunpack.c.h.b16 %v81
  %v1068 = vunpack.c.l.b16 %v82
  %v1069 = vunpack.c.h.b16 %v82
  %v1070 = vunpack.c.l.b16 %v83
  %v1071 = vunpack.c.h.b16 %v83
  %v1072 = vunpack.c.l.b16 %v84
  %v1073 = vunpack.c.l.b16 %v85
  %v1074 = vunpack.c.h.b16 %v85
  %v1075 = vunpack.c.l.b16 %v86
  %v1076 = vunpack.c.h.b16 %v86
  %v1077 = vunpack.c.l.b16 %v87
  %v1078 = vunpack.c.h.b16 %v87
  %v1079 = vunpack.c.l.b16 %v88
  %v1080 = vunpack.c.h.b16 %v88
  %v1081 = vunpack.c.l.b16 %v89
  %v1082 = vunpack.c.h.b16 %v89
  %v1083 = vunpack.c.l.b16 %v90
  %v1084 = vunpack.c.h.b16 %v90
  %v1085 = vunpack.c.l.b16 %v91
  %v1086 = vunpack.c.l.b16 %v92
  %v1087 = vunpack.c.h.b16 %v92
  %v1088 = vunpack.c.l.b16 %v93
  %v1089 = vunpack.c.h.b16 %v93
  %v1090 = vunpack.c.l.b16 %v94
  %v1091 = vunpack.c.h.b16 %v94
  %v1092 = vunpack.c.l.b16 %v95
  %v1093 = vunpack.c.h.b16 %v95
  %v1094 = vunpack.c.l.b16 %v96
  %v1095 = vunpack.c.h.b16 %v96
  %v1096 = vunpack.c.l.b16 %v97
  %v1097 = vunpack.c.h.b16 %v97
  %v1098 = vunpack.c.l.b16 %v98
  %v1099 = vunpack.c.l.b16 %v99
  %v1100 = vunpack.c.h.b16 %v99
  %v1101 = vunpack.c.l.b16 %v100
  %v1102 = vunpack.c.h.b16 %v100
  %v1103 = vunpack.c.l.b16 %v101
  %v1104 = vunpack.c.h.b16 %v101
  %v1105 = vunpack.c.l.b16 %v102
  %v1106 = vunpack.c.h.b16 %v102
  %v1107 = vunpack.c.l.b16 %v103
  %v1108 = vunpack.c.h.b16 %v103
  %v1109 = vunpack.c.l.b16 %v104
  %v1110 = vunpack.c.h.b16 %v104
  %v1111 = vunpack.c.l.b16 %v105
  %v1112 = vunpack.c.l.b16 %v106
  %v1113 = vunpack.c.h.b16 %v106
  %v1114 = vunpack.c.l.b16 %v107
  %v1115 = vunpack.c.h.b16 %v107
  %v1116 = vunpack.c.l.b16 %v108
  %v1117 = vunpack.c.h.b16 %v108
  %v1118 = vunpack.c.l.b16 %v109
  %v1119 = vunpack.c.h.b16 %v109
  %v1120 = vunpack.c.l.b16 %v110
  %v1121 = vunpack.c.h.b16 %v110
  %v1122 = vunpack.c.l.b16 %v111
  %v1123 = vunpack.c.h.b16 %v111
  %v1124 = vunpack.c.l.b16 %v112
  %v1125 = vunpack.c.l.b16 %v113
  %v1126 = vunpack.c.h.b16 %v113
  %v1127 = vunpack.c.l.b16 %v114
  %v1128 = vunpack.c.h.b16 %v114
  %v1129 = vunpack.c.l.b16 %v115
  %v1130 = vunpack.c.h.b16 %v115
  %v1131 = vunpack.c.l.b16 %v116
  %v1132 = vunpack.c.h.b16 %v116
  %v1133 = vunpack.c.l.b16 %v117
  %v1134 = vunpack.c.h.b16 %v117
  %v1135 = vunpack.c.l.b16 %v118
  %v1136 = vunpack.c.h.b16 %v118
  %v1137 = vunpack.c.l.b16 %v119
  %v1138 = vunpack.c.l.b16 %v120
  %v1139 = vunpack.c.h.b16 %v120
  %v1140 = vunpack.c.l.b16 %v121
  %v1141 = vunpack.c.h.b16 %v121
  %v1142 = vunpack.c.l.b16 %v122
  %v1143 = vunpack.c.h.b16 %v122
  %v1144 = vunpack.c.l.b16 %v123
  %v1145 = vunpack.c.h.b16 %v123
  %v1146 = vunpack.c.l.b16 %v124
  %v1147 = vunpack.c.h.b16 %v124
  %v1148 = vunpack.c.l.b16 %v125
  %v1149 = vunpack.c.h.b16 %v125
  %v1150 = vunpack.c.l.b16 %v126
  %v1151 = vunpack.c.l.b16 %v127
  %v1152 = vunpack.c.h.b16 %v127
  %v1153 = vunpack.c.l.b16 %v128
  %v1154 = vunpack.c.h.b16 %v128
  %v1155 = vunpack.c.l.b16 %v129
  %v1156 = vunpack.c.h.b16 %v129
  %v1157 = vunpack.c.l.b16 %v130
  %v1158 = vunpack.c.h.b16 %v130
  %v1159 = vunpack.c.l.b16 %v131
  %v1160 = vunpack.c.h.b16 %v131
  %v1161 = vunpack.c.l.b16 %v132
  %v1162 = vunpack.c.h.b16 %v132
  %v1163 = vunpack.c.l.b16 %v133
  %v1164 = vunpack.c.l.b16 %v134
  %v1165 = vunpack.c.h.b16 %v134
  %v1166 = vunpack.c.l.b16 %v135
  %v1167 = vunpack.c.h.b16 %v135
  %v1168 = vunpack.c.l.b16 %v136
  %v1169 = vunpack.c.h.b16 %v136
  %v1170 = vunpack.c.l.b16 %v137
  %v1171 = vunpack.c.h.b16 %v137
  %v1172 = vunpack.c.l.b16 %v138
  %v1173 = vunpack.c.h.b16 %v138
  %v1174 = vunpack.c.l.b16 %v139
  %v1175 = vunpack.c.h.b16 %v139
  %v1176 = vunpack.c.l.b16 %v140
  %v1177 = vunpack.c.l.b16 %v141
  %v1178 = vunpack.c.h.b16 %v141
  %v1179 = vunpack.c.l.b16 %v142
  %v1180 = vunpack.c.h.b16 %v142
  %v1181 = vunpack.c.l.b16 %v143
  %v1182 = vunpack.c.h.b16 %v143
  %v1183 = vunpack.c.l.b16 %v144
  %v1184 = vunpack.c.h.b16 %v144
  %v1185 = vunpack.c.l.b16 %v145
  %v1186 = vunpack.c.h.b16 %v145
  %v1187 = vunpack.c.l.b16 %v146
  %v1188 = vunpack.c.h.b16 %v146
  %v1189 = vunpack.c.l.b16 %v147
  %v1190 = vunpack.c.l.b16 %v148
  %v1191 = vunpack.c.h.b16 %v148
  %v1192 = vunpack.c.l.b16 %v149
  %v1193 = vunpack.c.h.b16 %v149
  %v1194 = vunpack.c.l.b16 %v150
  %v1195 = vunpack.c.h.b16 %v150
  %v1196 = vunpack.c.l.b16 %v151
  %v1197 = vunpack.c.h.b16 %v151
  %v1198 = vunpack.c.l.b16 %v152
  %v1199 = vunpack.c.h.b16 %v152
  %v1200 = vunpack.c.l.b16 %v153
  %v1201 = vunpack.c.h.b16 %v153
  %v1202 = vunpack.c.l.b16 %v154
  %v1203 = vunpack.c.l.b16 %v155
  %v1204 = vunpack.c.h.b16 %v155
  %v1205 = vunpack.c.l.b16 %v156
  %v1206 = vunpack.c.h.b16 %v156
  %v1207 = vunpack.c.l.b16 %v157
  %v1208 = vunpack.c.h.b16 %v157
  %v1209 = vunpack.c.l.b16 %v158
  %v1210 = vunpack.c.h.b16 %v158
  %v1211 = vunpack.c.l.b16 %v159
  %v1212 = vunpack.c.h.b16 %v159
  %v1213 = vunpack.c.l.b16 %v160
  %v1214 = vunpack.c.h.b16 %v160
  %v1215 = vunpack.c.l.b16 %v161
  %v1216 = vunpack.c.l.b16 %v162
  %v1217 = vunpack.c.h.b16 %v162
  %v1218 = vunpack.c.l.b16 %v163
  %v1219 = vunpack.c.h.b16 %v163
  %v1220 = vunpack.c.l.b16 %v164
  %v1221 = vunpack.c.h.b16 %v164
  %v1222 = vunpack.c.l.b16 %v165
  %v1223 = vunpack.c.h.b16 %v165
  %v1224 = vunpack.c.l.b16 %v166
  %v1225 = vunpack.c.h.b16 %v166
  %v1226 = vunpack.c.l.b16 %v167
  %v1227 = vunpack.c.h.b16 %v167
  %v1228 = vunpack.c.l.b16 %v168
  %v1229 = vunpack.c.l.b16 %v169
  %v1230 = vunpack.c.h.b16 %v169
  %v1231 = vunpack.c.l.b16 %v170
  %v1232 = vunpack.c.h.b16 %v170
  %v1233 = vunpack.c.l.b16 %v171
  %v1234 = vunpack.c.h.b16 %v171
  %v1235 = vunpack.c.l.b16 %v172
  %v1236 = vunpack.c.h.b16 %v172
  %v1237 = vunpack.c.l.b16 %v173
  %v1238 = vunpack.c.h.b16 %v173
  %v1239 = vunpack.c.l.b16 %v174
  %v1240 = vunpack.c.h.b16 %v174
  %v1241 = vunpack.c.l.b16 %v175
  %v1242 = vunpack.c.l.b16 %v176
  %v1243 = vunpack.c.h.b16 %v176
  %v1244 = vunpack.c.l.b16 %v177
  %v1245 = vunpack.c.h.b16 %v177
  %v1246 = vunpack.c.l.b16 %v178
  %v1247 = vunpack.c.h.b16 %v178
  %v1248 = vunpack.c.l.b16 %v179
  %v1249 = vunpack.c.h.b16 %v179
  %v1250 = vunpack.c.l.b16 %v180
  %v1251 = vunpack.c.h.b16 %v180
  %v1252 = vunpack.c.l.b16 %v181
  %v1253 = vunpack.c.h.b16 %v181
  %v1254 = vunpack.c.l.b16 %v182
  %v1255 = vunpack.c.l.b16 %v183
  %v1256 = vunpack.c.h.b16 %v183
  %v1257 = vunpack.c.l.b16 %v184
  %v1258 = vunpack.c.h.b16 %v184
  %v1259 = vunpack.c.l.b16 %v185
  %v1260 = vunpack.c.h.b16 %v185
  %v1261 = vunpack.c.l.b16 %v186
  %v1262 = vunpack.c.h.b16 %v186
  %v1263 = vunpack.c.l.b16 %v187
  %v1264 = vunpack.c.h.b16 %v187
  %v1265 = vunpack.c.l.b16 %v188
  %v1266 = vunpack.c.h.b16 %v188
  %v1267 = vunpack.c.l.b16 %v189
  %v1268 = vunpack.c.l.b16 %v190
  %v1269 = vunpack.c.h.b16 %v190
  %v1270 = vunpack.c.l.b16 %v191
  %v1271 = vunpack.c.h.b16 %v191
  %v1272 = vunpack.c.l.b16 %v192
  %v1273 = vunpack.c.h.b16 %v192
  %v1274 = vunpack.c.l.b16 %v193
  %v1275 = vunpack.c.h.b16 %v193
  %v1276 = vunpack.c.l.b16 %v194
  %v1277 = vunpack.c.h.b16 %v194
  %v1278 = vunpack.c.l.b16 %v195
  %v1279 = vunpack.c.h.b16 %v195
  %v1280 = vunpack.c.l.b16 %v196
  %v1281 = vunpack.c.l.b16 %v197
  %v1282 = vunpack.c.h.b16 %v197
  %v1283 = vunpack.c.l.b16 %v198
  %v1284 = vunpack.c.h.b16 %v198
  %v1285 = vunpack.c.l.b16 %v199
  %v1286 = vunpack.c.h.b16 %v199
  %v1287 = vunpack.c.l.b16 %v200
  %v1288 = vunpack.c.h.b16 %v200
  %v1289 = vunpack.c.l.b16 %v201
  %v1290 = vunpack.c.h.b16 %v201
  %v1291 = vunpack.c.l.b16 %v202
  %v1292 = vunpack.c.h.b16 %v202
  %v1293 = vunpack.c.l.b16 %v203
  %v1294 = vunpack.c.l.b16 %v204
  %v1295 = vunpack.c.h.b16 %v204
  %v1296 = vunpack.c.l.b16 %v205
  %v1297 = vunpack.c.h.b16 %v205
  %v1298 = vunpack.c.l.b16 %v206
  %v1299 = vunpack.c.h.b16 %v206
  %v1300 = vunpack.c.l.b16 %v207
  %v1301 = vunpack.c.h.b16 %v207
  %v1302 = vunpack.c.l.b16 %v208
  %v1303 = vunpack.c.h.b16 %v208
  %v1304 = vunpack.c.l.b16 %v209
  %v1305 = vunpack.c.h.b16 %v209
  %v1306 = vunpack.c.l.b16 %v210
  %v1307 = vunpack.c.l.b16 %v211
  %v1308 = vunpack.c.h.b16 %v211
  %v1309 = vunpack.c.l.b16 %v212
  %v1310 = vunpack.c.h.b16 %v212
  %v1311 = vunpack.c.l.b16 %v213
  %v1312 = vunpack.c.h.b16 %v213
  %v1313 = vunpack.c.l.b16 %v214
  %v1314 = vunpack.c.h.b16 %v214
  %v1315 = vunpack.c.l.b16 %v215
  %v1316 = vunpack.c.h.b16 %v215
  %v1317 = vunpack.c.l.b16 %v216
  %v1318 = vunpack.c.h.b16 %v216
  %v1319 = vunpack.c.l.b16 %v217
  %v1320 = vunpack.c.l.b16 %v218
  %v1321 = vunpack.c.h.b16 %v218
  %v1322 = vunpack.c.l.b16 %v219
  %v1323 = vunpack.c.h.b16 %v219
  %v1324 = vunpack.c.l.b16 %v220
  %v1325 = vunpack.c.h.b16 %v220
  %v1326 = vunpack.c.l.b16 %v221
  %v1327 = vunpack.c.h.b16 %v221
  %v1328 = vunpack.c.l.b16 %v222
  %v1329 = vunpack.c.h.b16 %v222
  %v1330 = vunpack.c.l.b16 %v223
  %v1331 = vunpack.c.h.b16 %v223
  %v1332 = vunpack.c.l.b16 %v224
  %v1333 = vunpack.c.l.b16 %v225
  %v1334 = vunpack.c.h.b16 %v225
  %v1335 = vunpack.c.l.b16 %v226
  %v1336 = vunpack.c.h.b16 %v226
  %v1337 = vunpack.c.l.b16 %v227
  %v1338 = vunpack.c.h.b16 %v227
  %v1339 = vunpack.c.l.b16 %v228
  %v1340 = vunpack.c.h.b16 %v228
  %v1341 = vunpack.c.l.b16 %v229
  %v1342 = vunpack.c.h.b16 %v229
  %v1343 = vunpack.c.l.b16 %v230
  %v1344 = vunpack.c.h.b16 %v230
  %v1345 = vunpack.c.l.b16 %v231
  %v1346 = vunpack.c.l.b16 %v232
  %v1347 = vunpack.c.h.b16 %v232
  %v1348 = vunpack.c.l.b16 %v233
  %v1349 = vunpack.c.h.b16 %v233
  %v1350 = vunpack.c.l.b16 %v234
  %v1351 = vunpack.c.h.b16 %v234
  %v1352 = vunpack.c.l.b16 %v235
  %v1353 = vunpack.c.h.b16 %v235
  %v1354 = vunpack.c.l.b16 %v236
  %v1355 = vunpack.c.h.b16 %v236
  %v1356 = vunpack.c.l.b16 %v237
  %v1357 = vunpack.c.h.b16 %v237
  %v1358 = vunpack.c.l.b16 %v238
  %v1359 = vunpack.c.l.b16 %v239
  %v1360 = vunpack.c.h.b16 %v239
  %v1361 = vunpack.c.l.b16 %v240
  %v1362 = vunpack.c.h.b16 %v240
  %v1363 = vunpack.c.l.b16 %v241
  %v1364 = vunpack.c.h.b16 %v241
  %v1365 = vunpack.c.l.b16 %v242
  %v1366 = vunpack.c.h.b16 %v242
  %v1367 = vunpack.c.l.b16 %v243
  %v1368 = vunpack.c.h.b16 %v243
  %v1369 = vunpack.c.l.b16 %v244
  %v1370 = vunpack.c.h.b16 %v244
  %v1371 = vunpack.c.l.b16 %v245
  %v1372 = vunpack.c.l.b16 %v246
  %v1373 = vunpack.c.h.b16 %v246
  %v1374 = vunpack.c.l.b16 %v247
  %v1375 = vunpack.c.h.b16 %v247
  %v1376 = vunpack.c.l.b16 %v248
  %v1377 = vunpack.c.h.b16 %v248
  %v1378 = vunpack.c.l.b16 %v249
  %v1379 = vunpack.c.h.b16 %v249
  %v1380 = vunpack.c.l.b16 %v250
  %v1381 = vunpack.c.h.b16 %v250
  %v1382 = vunpack.c.l.b16 %v251
  %v1383 = vunpack.c.h.b16 %v251
  %v1384 = vunpack.c.l.b16 %v252
  %v1385 = vunpack.c.l.b16 %v253
  %v1386 = vunpack.c.h.b16 %v253
  %v1387 = vunpack.c.l.b16 %v254
  %v1388 = vunpack.c.h.b16 %v254
  %v1389 = vunpack.c.l.b16 %v255
  %v1390 = vunpack.c.h.b16 %v255
  %v1391 = vunpack.c.l.b16 %v256
  %v1392 = vunpack.c.h.b16 %v256
  %v1393 = vunpack.c.l.b16 %v257
  %v1394 = vunpack.c.h.b16 %v257
  %v1395 = vunpack.c.l.b16 %v258
  %v1396 = vunpack.c.h.b16 %v258
  %v1397 = vunpack.c.l.b16 %v259
  %v1398 = vunpack.c.l.b16 %v260
  %v1399 = vunpack.c.h.b16 %v260
  %v1400 = vunpack.c.l.b16 %v261
  %v1401 = vunpack.c.h.b16 %v261
  %v1402 = vunpack.c.l.b16 %v262
  %v1403 = vunpack.c.h.b16 %v262
  %v1404 = vunpack.c.l.b16 %v263
  %v1405 = vunpack.c.h.b16 %v263
  %v1406 = vunpack.c.l.b16 %v264
  %v1407 = vunpack.c.h.b16 %v264
  %v1408 = vunpack.c.l.b16 %v265
  %v1409 = vunpack.c.h.b16 %v265
  %v1410 = vunpack.c.l.b16 %v266
  %v1411 = vunpack.c.l.b16 %v267
  %v1412 = vunpack.c.h.b16 %v267
  %v1413 = vunpack.c.l.b16 %v268
  %v1414 = vunpack.c.h.b16 %v268
  %v1415 = vunpack.c.l.b16 %v269
  %v1416 = vunpack.c.h.b16 %v269
  %v1417 = vunpack.c.l.b16 %v270
  %v1418 = vunpack.c.h.b16 %v270
  %v1419 = vunpack.c.l.b16 %v271
  %v1420 = vunpack.c.h.b16 %v271
  %v1421 = vunpack.c.l.b16 %v272
  %v1422 = vunpack.c.h.b16 %v272
  %v1423 = vunpack.c.l.b16 %v273
  %v1424 = vunpack.c.l.b16 %v274
  %v1425 = vunpack.c.h.b16 %v274
  %v1426 = vunpack.c.l.b16 %v275
  %v1427 = vunpack.c.h.b16 %v275
  %v1428 = vunpack.c.l.b16 %v276
  %v1429 = vunpack.c.h.b16 %v276
  %v1430 = vunpack.c.l.b16 %v277
  %v1431 = vunpack.c.h.b16 %v277
  %v1432 = vunpack.c.l.b16 %v278
  %v1433 = vunpack.c.h.b16 %v278
  %v1434 = vunpack.c.l.b16 %v279
  %v1435 = vunpack.c.h.b16 %v279
  %v1436 = vunpack.c.l.b16 %v280
  %v1437 = vunpack.c.l.b16 %v281
  %v1438 = vunpack.c.h.b16 %v281
  %v1439 = vunpack.c.l.b16 %v282
  %v1440 = vunpack.c.h.b16 %v282
  %v1441 = vunpack.c.l.b16 %v283
  %v1442 = vunpack.c.h.b16 %v283
  %v1443 = vunpack.c.l.b16 %v284
  %v1444 = vunpack.c.h.b16 %v284
  %v1445 = vunpack.c.l.b16 %v285
  %v1446 = vunpack.c.h.b16 %v285
  %v1447 = vunpack.c.l.b16 %v286
  %v1448 = vunpack.c.h.b16 %v286
  %v1449 = vunpack.c.l.b16 %v287
  %v1450 = vunpack.c.l.b16 %v288
  %v1451 = vunpack.c.h.b16 %v288
  %v1452 = vunpack.c.l.b16 %v289
  %v1453 = vunpack.c.h.b16 %v289
  %v1454 = vunpack.c.l.b16 %v290
  %v1455 = vunpack.c.h.b16 %v290
  %v1456 = vunpack.c.l.b16 %v291
  %v1457 = vunpack.c.h.b16 %v291
  %v1458 = vunpack.c.l.b16 %v292
  %v1459 = vunpack.c.h.b16 %v292
  %v1460 = vunpack.c.l.b16 %v293
  %v1461 = vunpack.c.h.b16 %v293
  %v1462 = vunpack.c.l.b16 %v294
  %v1463 = vunpack.c.l.b16 %v295
  %v1464 = vunpack.c.h.b16 %v295
  %v1465 = vunpack.c.l.b16 %v296
  %v1466 = vunpack.c.h.b16 %v296
  %v1467 = vunpack.c.l.b16 %v297
  %v1468 = vunpack.c.h.b16 %v297
  %v1469 = vunpack.c.l.b16 %v298
  %v1470 = vunpack.c.h.b16 %v298
  %v1471 = vunpack.c.l.b16 %v299
  %v1472 = vunpack.c.h.b16 %v299
  %v1473 = vunpack.c.l.b16 %v300
  %v1474 = vunpack.c.h.b16 %v300
  %v1475 = vunpack.c.l.b16 %v301
  %v1476 = vunpack.c.l.b16 %v302
  %v1477 = vunpack.c.h.b16 %v302
  %v1478 = vunpack.c.l.b16 %v303
  %v1479 = vunpack.c.h.b16 %v303
  %v1480 = vunpack.c.l.b16 %v304
  %v1481 = vunpack.c.h.b16 %v304
  %v1482 = vunpack.c.l.b16 %v305
  %v1483 = vunpack.c.h.b16 %v305
  %v1484 = vunpack.c.l.b16 %v306
  %v1485 = vunpack.c.h.b16 %v306
  %v1486 = vunpack.c.l.b16 %v307
  %v1487 = vunpack.c.h.b16 %v307
  %v1488 = vunpack.c.l.b16 %v308
  %v1489 = vunpack.c.l.b16 %v309
  %v1490 = vunpack.c.h.b16 %v309
  %v1491 = vunpack.c.l.b16 %v310
  %v1492 = vunpack.c.h.b16 %v310
  %v1493 = vunpack.c.l.b16 %v311
  %v1494 = vunpack.c.h.b16 %v311
  %v1495 = vunpack.c.l.b16 %v312
  %v1496 = vunpack.c.h.b16 %v312
  %v1497 = vunpack.c.l.b16 %v313
  %v1498 = vunpack.c.h.b16 %v313
  %v1499 = vunpack.c.l.b16 %v314
  %v1500 = vunpack.c.h.b16 %v314
  %v1501 = vunpack.c.l.b16 %v315
  %v1502 = vunpack.c.l.b16 %v316
  %v1503 = vunpack.c.h.b16 %v316
  %v1504 = vunpack.c.l.b16 %v317
  %v1505 = vunpack.c.h.b16 %v317
  %v1506 = vunpack.c.l.b16 %v318
  %v1507 = vunpack.c.h.b16 %v318
  %v1508 = vunpack.c.l.b16 %v319
  %v1509 = vunpack.c.h.b16 %v319
  %v1510 = vunpack.c.l.b16 %v320
  %v1511 = vunpack.c.h.b16 %v320
  %v1512 = vunpack.c.l.b16 %v321
  %v1513 = vunpack.c.h.b16 %v321
  %v1514 = vunpack.c.l.b16 %v322
  %v1515 = vunpack.c.l.b16 %v323
  %v1516 = vunpack.c.h.b16 %v323
  %v1517 = vunpack.c.l.b16 %v324
  %v1518 = vunpack.c.h.b16 %v324
  %v1519 = vunpack.c.l.b16 %v325
  %v1520 = vunpack.c.h.b16 %v325
  %v1521 = vunpack.c.l.b16 %v326
  %v1522 = vunpack.c.h.b16 %v326
  %v1523 = vunpack.c.l.b16 %v327
  %v1524 = vunpack.c.h.b16 %v327
  %v1525 = vunpack.c.l.b16 %v328
  %v1526 = vunpack.c.h.b16 %v328
  %v1527 = vunpack.c.l.b16 %v329
  %v1528 = vunpack.c.l.b16 %v330
  %v1529 = vunpack.c.h.b16 %v330
  %v1530 = vunpack.c.l.b16 %v331
  %v1531 = vunpack.c.h.b16 %v331
  %v1532 = vunpack.c.l.b16 %v332
  %v1533 = vunpack.c.h.b16 %v332
  %v1534 = vunpack.c.l.b16 %v333
  %v1535 = vunpack.c.h.b16 %v333
  %v1536 = vunpack.c.l.b16 %v334
  %v1537 = vunpack.c.h.b16 %v334
  %v1538 = vunpack.c.l.b16 %v335
  %v1539 = vunpack.c.h.b16 %v335
  %v1540 = vunpack.c.l.b16 %v336
  %v1541 = vunpack.c.l.b16 %v337
  %v1542 = vunpack.c.h.b16 %v337
  %v1543 = vunpack.c.l.b16 %v338
  %v1544 = vunpack.c.h.b16 %v338
  %v1545 = vunpack.c.l.b16 %v339
  %v1546 = vunpack.c.h.b16 %v339
  %v1547 = vunpack.c.l.b16 %v340
  %v1548 = vunpack.c.h.b16 %v340
  %v1549 = vunpack.c.l.b16 %v341
  %v1550 = vunpack.c.h.b16 %v341
  %v1551 = vunpack.c.l.b16 %v342
  %v1552 = vunpack.c.h.b16 %v342
  %v1553 = vunpack.c.l.b16 %v343
  %v1554 = vunpack.c.l.b16 %v344
  %v1555 = vunpack.c.h.b16 %v344
  %v1556 = vunpack.c.l.b16 %v345
  %v1557 = vunpack.c.h.b16 %v345
  %v1558 = vunpack.c.l.b16 %v346
  %v1559 = vunpack.c.h.b16 %v346
  %v1560 = vunpack.c.l.b16 %v347
  %v1561 = vunpack.c.h.b16 %v347
  %v1562 = vunpack.c.l.b16 %v348
  %v1563 = vunpack.c.h.b16 %v348
  %v1564 = vunpack.c.l.b16 %v349
  %v1565 = vunpack.c.h.b16 %v349
  %v1566 = vunpack.c.l.b16 %v350
  %v1567 = vunpack.c.l.b16 %v351
  %v1568 = vunpack.c.h.b16 %v351
  %v1569 = vunpack.c.l.b16 %v352
  %v1570 = vunpack.c.h.b16 %v352
  %v1571 = vunpack.c.l.b16 %v353
  %v1572 = vunpack.c.h.b16 %v353
  %v1573 = vunpack.c.l.b16 %v354
  %v1574 = vunpack.c.h.b16 %v354
  %v1575 = vunpack.c.l.b16 %v355
  %v1576 = vunpack.c.h.b16 %v355
  %v1577 = vunpack.c.l.b16 %v356
  %v1578 = vunpack.c.h.b16 %v356
  %v1579 = vunpack.c.l.b16 %v357
  %v1580 = vunpack.c.l.b16 %v358
  %v1581 = vunpack.c.h.b16 %v358
  %v1582 = vunpack.c.l.b16 %v359
  %v1583 = vunpack.c.h.b16 %v359
  %v1584 = vunpack.c.l.b16 %v360
  %v1585 = vunpack.c.h.b16 %v360
  %v1586 = vunpack.c.l.b16 %v361
  %v1587 = vunpack.c.h.b16 %v361
  %v1588 = vunpack.c.l.b16 %v362
  %v1589 = vunpack.c.h.b16 %v362
  %v1590 = vunpack.c.l.b16 %v363
  %v1591 = vunpack.c.h.b16 %v363
  %v1592 = vunpack.c.l.b16 %v364
  %v1593 = vunpack.c.l.b16 %v365
  %v1594 = vunpack.c.h.b16 %v365
  %v1595 = vunpack.c.l.b16 %v366
  %v1596 = vunpack.c.h.b16 %v366
  %v1597 = vunpack.c.l.b16 %v367
  %v1598 = vunpack.c.h.b16 %v367
  %v1599 = vunpack.c.l.b16 %v368
  %v1600 = vunpack.c.h.b16 %v368
  %v1601 = vunpack.c.l.b16 %v369
  %v1602 = vunpack.c.h.b16 %v369
  %v1603 = vunpack.c.l.b16 %v370
  %v1604 = vunpack.c.h.b16 %v370
  %v1605 = vunpack.c.l.b16 %v371
  %v1606 = vunpack.c.l.b16 %v372
  %v1607 = vunpack.c.h.b16 %v372
  %v1608 = vunpack.c.l.b16 %v373
  %v1609 = vunpack.c.h.b16 %v373
  %v1610 = vunpack.c.l.b16 %v374
  %v1611 = vunpack.c.h.b16 %v374
  %v1612 = vunpack.c.l.b16 %v375
  %v1613 = vunpack.c.h.b16 %v375
  %v1614 = vunpack.c.l.b16 %v376
  %v1615 = vunpack.c.h.b16 %v376
  %v1616 = vunpack.c.l.b16 %v377
  %v1617 = vunpack.c.h.b16 %v377
  %v1618 = vunpack.c.l.b16 %v378
  %v1619 = vpack.c.b16 %v956, %v943
  %v1620 = vpack.c.b16 %v957, %v944
  %v1621 = vpack.c.b16 %v958, %v945
  %v1622 = vpack.c.b16 %v959, %v946
  %v1623 = vpack.c.b16 %v960, %v947
  %v1624 = vpack.c.b16 %v961, %v948
  %v1625 = vpack.c.b16 %v962, %v949
  %v1626 = vpack.c.b16 %v963, %v950
  %v1627 = vpack.c.b16 %v964, %v951
  %v1628 = vpack.c.b16 %v965, %v952
  %v1629 = vpack.c.b16 %v966, %v953
  %v1630 = vpack.c.b16 %v967, %v954
  %v1631 = vpack.c.b16 %v968, %v955
  %v1632 = vpack.c.b16 %v982, %v969
  %v1633 = vpack.c.b16 %v983, %v970
  %v1634 = vpack.c.b16 %v984, %v971
  %v1635 = vpack.c.b16 %v985, %v972
  %v1636 = vpack.c.b16 %v986, %v973
  %v1637 = vpack.c.b16 %v987, %v974
  %v1638 = vpack.c.b16 %v988, %v975
  %v1639 = vpack.c.b16 %v989, %v976
  %v1640 = vpack.c.b16 %v990, %v977
  %v1641 = vpack.c.b16 %v991, %v978
  %v1642 = vpack.c.b16 %v992, %v979
  %v1643 = vpack.c.b16 %v993, %v980
  %v1644 = vpack.c.b16 %v994, %v981
  %v1645 = vpack.c.b16 %v1008, %v995
  %v1646 = vpack.c.b16 %v1009, %v996
  %v1647 = vpack.c.b16 %v1010, %v997
  %v1648 = vpack.c.b16 %v1011, %v998
  %v1649 = vpack.c.b16 %v1012, %v999
  %v1650 = vpack.c.b16 %v1013, %v1000
  %v1651 = vpack.c.b16 %v1014, %v1001
  %v1652 = vpack.c.b16 %v1015, %v1002
  %v1653 = vpack.c.b16 %v1016, %v1003
  %v1654 = vpack.c.b16 %v1017, %v1004
  %v1655 = vpack.c.b16 %v1018, %v1005
  %v1656 = vpack.c.b16 %v1019, %v1006
  %v1657 = vpack.c.b16 %v1020, %v1007
  %v1658 = vpack.c.b16 %v1034, %v1021
  %v1659 = vpack.c.b16 %v1035, %v1022
  %v1660 = vpack.c.b16 %v1036, %v1023
  %v1661 = vpack.c.b16 %v1037, %v1024
  %v1662 = vpack.c.b16 %v1038, %v1025
  %v1663 = vpack.c.b16 %v1039, %v1026
  %v1664 = vpack.c.b16 %v1040, %v1027
  %v1665 = vpack.c.b16 %v1041, %v1028
  %v1666 = vpack.c.b16 %v1042, %v1029
  %v1667 = vpack.c.b16 %v1043, %v1030
  %v1668 = vpack.c.b16 %v1044, %v1031
  %v1669 = vpack.c.b16 %v1045, %v1032
  %v1670 = vpack.c.b16 %v1046, %v1033
  %v1671 = vpack.c.b16 %v1060, %v1047
  %v1672 = vpack.c.b16 %v1061, %v1048
  %v1673 = vpack.c.b16 %v1062, %v1049
  %v1674 = vpack.c.b16 %v1063, %v1050
  %v1675 = vpack.c.b16 %v1064, %v1051
  %v1676 = vpack.c.b16 %v1065, %v1052
  %v1677 = vpack.c.b16 %v1066, %v1053
  %v1678 = vpack.c.b16 %v1067, %v1054
  %v1679 = vpack.c.b16 %v1068, %v1055
  %v1680 = vpack.c.b16 %v1069, %v1056
  %v1681 = vpack.c.b16 %v1070, %v1057
  %v1682 = vpack.c.b16 %v1071, %v1058
  %v1683 = vpack.c.b16 %v1072, %v1059
  %v1684 = vpack.c.b16 %v1086, %v1073
  %v1685 = vpack.c.b16 %v1087, %v1074
  %v1686 = vpack.c.b16 %v1088, %v1075
  %v1687 = vpack.c.b16 %v1089, %v1076
  %v1688 = vpack.c.b16 %v1090, %v1077
  %v1689 = vpack.c.b16 %v1091, %v1078
  %v1690 = vpack.c.b16 %v1092, %v1079
  %v1691 = vpack.c.b16 %v1093, %v1080
  %v1692 = vpack.c.b16 %v1094, %v1081
  %v1693 = vpack.c.b16 %v1095, %v1082
  %v1694 = vpack.c.b16 %v1096, %v1083
  %v1695 = vpack.c.b16 %v1097, %v1084
  %v1696 = vpack.c.b16 %v1098, %v1085
  %v1697 = vpack.c.b16 %v1112, %v1099
  %v1698 = vpack.c.b16 %v1113, %v1100
  %v1699 = vpack.c.b16 %v1114, %v1101
  %v1700 = vpack.c.b16 %v1115, %v1102
  %v1701 = vpack.c.b16 %v1116, %v1103
  %v1702 = vpack.c.b16 %v1117, %v1104
  %v1703 = vpack.c.b16 %v1118, %v1105
  %v1704 = vpack.c.b16 %v1119, %v1106
  %v1705 = vpack.c.b16 %v1120, %v1107
  %v1706 = vpack.c.b16 %v1121, %v1108
  %v1707 = vpack.c.b16 %v1122, %v1109
  %v1708 = vpack.c.b16 %v1123, %v1110
  %v1709 = vpack.c.b16 %v1124, %v1111
  %v1710 = vpack.c.b16 %v1138, %v1125
  %v1711 = vpack.c.b16 %v1139, %v1126
  %v1712 = vpack.c.b16 %v1140, %v1127
  %v1713 = vpack.c.b16 %v1141, %v1128
  %v1714 = vpack.c.b16 %v1142, %v1129
  %v1715 = vpack.c.b16 %v1143, %v1130
  %v1716 = vpack.c.b16 %v1144, %v1131
  %v1717 = vpack.c.b16 %v1145, %v1132
  %v1718 = vpack.c.b16 %v1146, %v1133
  %v1719 = vpack.c.b16 %v1147, %v1134
  %v1720 = vpack.c.b16 %v1148, %v1135
  %v1721 = vpack.c.b16 %v1149, %v1136
  %v1722 = vpack.c.b16 %v1150, %v1137
  %v1723 = vpack.c.b16 %v1164, %v1151
  %v1724 = vpack.c.b16 %v1165, %v1152
  %v1725 = vpack.c.b16 %v1166, %v1153
  %v1726 = vpack.c.b16 %v1167, %v1154
  %v1727 = vpack.c.b16 %v1168, %v1155
  %v1728 = vpack.c.b16 %v1169, %v1156
  %v1729 = vpack.c.b16 %v1170, %v1157
  %v1730 = vpack.c.b16 %v1171, %v1158
  %v1731 = vpack.c.b16 %v1172, %v1159
  %v1732 = vpack.c.b16 %v1173, %v1160
  %v1733 = vpack.c.b16 %v1174, %v1161
  %v1734 = vpack.c.b16 %v1175, %v1162
  %v1735 = vpack.c.b16 %v1176, %v1163
  %v1736 = vpack.c.b16 %v1190, %v1177
  %v1737 = vpack.c.b16 %v1191, %v1178
  %v1738 = vpack.c.b16 %v1192, %v1179
  %v1739 = vpack.c.b16 %v1193, %v1180
  %v1740 = vpack.c.b16 %v1194, %v1181
  %v1741 = vpack.c.b16 %v1195, %v1182
  %v1742 = vpack.c.b16 %v1196, %v1183
  %v1743 = vpack.c.b16 %v1197, %v1184
  %v1744 = vpack.c.b16 %v1198, %v1185
  %v1745 = vpack.c.b16 %v1199, %v1186
  %v1746 = vpack.c.b16 %v1200, %v1187
  %v1747 = vpack.c.b16 %v1201, %v1188
  %v1748 = vpack.c.b16 %v1202, %v1189
  %v1749 = vpack.c.b16 %v1216, %v1203
  %v1750 = vpack.c.b16 %v1217, %v1204
  %v1751 = vpack.c.b16 %v1218, %v1205
  %v1752 = vpack.c.b16 %v1219, %v1206
  %v1753 = vpack.c.b16 %v1220, %v1207
  %v1754 = vpack.c.b16 %v1221, %v1208
  %v1755 = vpack.c.b16 %v1222, %v1209
  %v1756 = vpack.c.b16 %v1223, %v1210
  %v1757 = vpack.c.b16 %v1224, %v1211
  %v1758 = vpack.c.b16 %v1225, %v1212
  %v1759 = vpack.c.b16 %v1226, %v1213
  %v1760 = vpack.c.b16 %v1227, %v1214
  %v1761 = vpack.c.b16 %v1228, %v1215
  %v1762 = vpack.c.b16 %v1242, %v1229
  %v1763 = vpack.c.b16 %v1243, %v1230
  %v1764 = vpack.c.b16 %v1244, %v1231
  %v1765 = vpack.c.b16 %v1245, %v1232
  %v1766 = vpack.c.b16 %v1246, %v1233
  %v1767 = vpack.c.b16 %v1247, %v1234
  %v1768 = vpack.c.b16 %v1248, %v1235
  %v1769 = vpack.c.b16 %v1249, %v1236
  %v1770 = vpack.c.b16 %v1250, %v1237
  %v1771 = vpack.c.b16 %v1251, %v1238
  %v1772 = vpack.c.b16 %v1252, %v1239
  %v1773 = vpack.c.b16 %v1253, %v1240
  %v1774 = vpack.c.b16 %v1254, %v1241
  %v1775 = vpack.c.b16 %v1268, %v1255
  %v1776 = vpack.c.b16 %v1269, %v1256
  %v1777 = vpack.c.b16 %v1270, %v1257
  %v1778 = vpack.c.b16 %v1271, %v1258
  %v1779 = vpack.c.b16 %v1272, %v1259
  %v1780 = vpack.c.b16 %v1273, %v1260
  %v1781 = vpack.c.b16 %v1274, %v1261
  %v1782 = vpack.c.b16 %v1275, %v1262
  %v1783 = vpack.c.b16 %v1276, %v1263
  %v1784 = vpack.c.b16 %v1277, %v1264
  %v1785 = vpack.c.b16 %v1278, %v1265
  %v1786 = vpack.c.b16 %v1279, %v1266
  %v1787 = vpack.c.b16 %v1280, %v1267
  %v1788 = vpack.c.b16 %v1294, %v1281
  %v1789 = vpack.c.b16 %v1295, %v1282
  %v1790 = vpack.c.b16 %v1296, %v1283
  %v1791 = vpack.c.b16 %v1297, %v1284
  %v1792 = vpack.c.b16 %v1298, %v1285
  %v1793 = vpack.c.b16 %v1299, %v1286
  %v1794 = vpack.c.b16 %v1300, %v1287
  %v1795 = vpack.c.b16 %v1301, %v1288
  %v1796 = vpack.c.b16 %v1302, %v1289
  %v1797 = vpack.c.b16 %v1303, %v1290
  %v1798 = vpack.c.b16 %v1304, %v1291
  %v1799 = vpack.c.b16 %v1305, %v1292
  %v1800 = vpack.c.b16 %v1306, %v1293
  %v1801 = vpack.c.b16 %v1320, %v1307
  %v1802 = vpack.c.b16 %v1321, %v1308
  %v1803 = vpack.c.b16 %v1322, %v1309
  %v1804 = vpack.c.b16 %v1323, %v1310
  %v1805 = vpack.c.b16 %v1324, %v1311
  %v1806 = vpack.c.b16 %v1325, %v1312
  %v1807 = vpack.c.b16 %v1326, %v1313
  %v1808 = vpack.c.b16 %v1327, %v1314
  %v1809 = vpack.c.b16 %v1328, %v1315
  %v1810 = vpack.c.b16 %v1329, %v1316
  %v1811 = vpack.c.b16 %v1330, %v1317
  %v1812 = vpack.c.b16 %v1331, %v1318
  %v1813 = vpack.c.b16 %v1332, %v1319
  %v1814 = vpack.c.b16 %v1346, %v1333
  %v1815 = vpack.c.b16 %v1347, %v1334
  %v1816 = vpack.c.b16 %v1348, %v1335
  %v1817 = vpack.c.b16 %v1349, %v1336
  %v1818 = vpack.c.b16 %v1350, %v1337
  %v1819 = vpack.c.b16 %v1351, %v1338
  %v1820 = vpack.c.b16 %v1352, %v1339
  %v1821 = vpack.c.b16 %v1353, %v1340
  %v1822 = vpack.c.b16 %v1354, %v1341
  %v1823 = vpack.c.b16 %v1355, %v1342
  %v1824 = vpack.c.b16 %v1356, %v1343
  %v1825 = vpack.c.b16 %v1357, %v1344
  %v1826 = vpack.c.b16 %v1358, %v1345
  %v1827 = vpack.c.b16 %v1372, %v1359
  %v1828 = vpack.c.b16 %v1373, %v1360
  %v1829 = vpack.c.b16 %v1374, %v1361
  %v1830 = vpack.c.b16 %v1375, %v1362
  %v1831 = vpack.c.b16 %v1376, %v1363
  %v1832 = vpack.c.b16 %v1377, %v1364
  %v1833 = vpack.c.b16 %v1378, %v1365
  %v1834 = vpack.c.b16 %v1379, %v1366
  %v1835 = vpack.c.b16 %v1380, %v1367
  %v1836 = vpack.c.b16 %v1381, %v1368
  %v1837 = vpack.c.b16 %v1382, %v1369
  %v1838 = vpack.c.b16 %v1383, %v1370
  %v1839 = vpack.c.b16 %v1384, %v1371
  %v1840 = vpack.c.b16 %v1398, %v1385
  %v1841 = vpack.c.b16 %v1399, %v1386
  %v1842 = vpack.c.b16 %v1400, %v1387
  %v1843 = vpack.c.b16 %v1401, %v1388
  %v1844 = vpack.c.b16 %v1402, %v1389
  %v1845 = vpack.c.b16 %v1403, %v1390
  %v1846 = vpack.c.b16 %v1404, %v1391
  %v1847 = vpack.c.b16 %v1405, %v1392
  %v1848 = vpack.c.b16 %v1406, %v1393
  %v1849 = vpack.c.b16 %v1407, %v1394
  %v1850 = vpack.c.b16 %v1408, %v1395
  %v1851 = vpack.c.b16 %v1409, %v1396
  %v1852 = vpack.c.b16 %v1410, %v1397
  %v1853 = vpack.c.b16 %v1424, %v1411
  %v1854 = vpack.c.b16 %v1425, %v1412
  %v1855 = vpack.c.b16 %v1426, %v1413
  %v1856 = vpack.c.b16 %v1427, %v1414
  %v1857 = vpack.c.b16 %v1428, %v1415
  %v1858 = vpack.c.b16 %v1429, %v1416
  %v1859 = vpack.c.b16 %v1430, %v1417
  %v1860 = vpack.c.b16 %v1431, %v1418
  %v1861 = vpack.c.b16 %v1432, %v1419
  %v1862 = vpack.c.b16 %v1433, %v1420
  %v1863 = vpack.c.b16 %v1434, %v1421
  %v1864 = vpack.c.b16 %v1435, %v1422
  %v1865 = vpack.c.b16 %v1436, %v1423
  %v1866 = vpack.c.b16 %v1450, %v1437
  %v1867 = vpack.c.b16 %v1451, %v1438
  %v1868 = vpack.c.b16 %v1452, %v1439
  %v1869 = vpack.c.b16 %v1453, %v1440
  %v1870 = vpack.c.b16 %v1454, %v1441
  %v1871 = vpack.c.b16 %v1455, %v1442
  %v1872 = vpack.c.b16 %v1456, %v1443
  %v1873 = vpack.c.b16 %v1457, %v1444
  %v1874 = vpack.c.b16 %v1458, %v1445
  %v1875 = vpack.c.b16 %v1459, %v1446
  %v1876 = vpack.c.b16 %v1460, %v1447
  %v1877 = vpack.c.b16 %v1461, %v1448
  %v1878 = vpack.c.b16 %v1462, %v1449
  %v1879 = vpack.c.b16 %v1476, %v1463
  %v1880 = vpack.c.b16 %v1477, %v1464
  %v1881 = vpack.c.b16 %v1478, %v1465
  %v1882 = vpack.c.b16 %v1479, %v1466
  %v1883 = vpack.c.b16 %v1480, %v1467
  %v1884 = vpack.c.b16 %v1481, %v1468
  %v1885 = vpack.c.b16 %v1482, %v1469
  %v1886 = vpack.c.b16 %v1483, %v1470
  %v1887 = vpack.c.b16 %v1484, %v1471
  %v1888 = vpack.c.b16 %v1485, %v1472
  %v1889 = vpack.c.b16 %v1486, %v1473
  %v1890 = vpack.c.b16 %v1487, %v1474
  %v1891 = vpack.c.b16 %v1488, %v1475
  %v1892 = vpack.c.b16 %v1502, %v1489
  %v1893 = vpack.c.b16 %v1503, %v1490
  %v1894 = vpack.c.b16 %v1504, %v1491
  %v1895 = vpack.c.b16 %v1505, %v1492
  %v1896 = vpack.c.b16 %v1506, %v1493
  %v1897 = vpack.c.b16 %v1507, %v1494
  %v1898 = vpack.c.b16 %v1508, %v1495
  %v1899 = vpack.c.b16 %v1509, %v1496
  %v1900 = vpack.c.b16 %v1510, %v1497
  %v1901 = vpack.c.b16 %v1511, %v1498
  %v1902 = vpack.c.b16 %v1512, %v1499
  %v1903 = vpack.c.b16 %v1513, %v1500
  %v1904 = vpack.c.b16 %v1514, %v1501
  %v1905 = vpack.c.b16 %v1528, %v1515
  %v1906 = vpack.c.b16 %v1529, %v1516
  %v1907 = vpack.c.b16 %v1530, %v1517
  %v1908 = vpack.c.b16 %v1531, %v1518
  %v1909 = vpack.c.b16 %v1532, %v1519
  %v1910 = vpack.c.b16 %v1533, %v1520
  %v1911 = vpack.c.b16 %v1534, %v1521
  %v1912 = vpack.c.b16 %v1535, %v1522
  %v1913 = vpack.c.b16 %v1536, %v1523
  %v1914 = vpack.c.b16 %v1537, %v1524
  %v1915 = vpack.c.b16 %v1538, %v1525
  %v1916 = vpack.c.b16 %v1539, %v1526
  %v1917 = vpack.c.b16 %v1540, %v1527
  %v1918 = vpack.c.b16 %v1554, %v1541
  %v1919 = vpack.c.b16 %v1555, %v1542
  %v1920 = vpack.c.b16 %v1556, %v1543
  %v1921 = vpack.c.b16 %v1557, %v1544
  %v1922 = vpack.c.b16 %v1558, %v1545
  %v1923 = vpack.c.b16 %v1559, %v1546
  %v1924 = vpack.c.b16 %v1560, %v1547
  %v1925 = vpack.c.b16 %v1561, %v1548
  %v1926 = vpack.c.b16 %v1562, %v1549
  %v1927 = vpack.c.b16 %v1563, %v1550
  %v1928 = vpack.c.b16 %v1564, %v1551
  %v1929 = vpack.c.b16 %v1565, %v1552
  %v1930 = vpack.c.b16 %v1566, %v1553
  %v1931 = vpack.c.b16 %v1580, %v1567
  %v1932 = vpack.c.b16 %v1581, %v1568
  %v1933 = vpack.c.b16 %v1582, %v1569
  %v1934 = vpack.c.b16 %v1583, %v1570
  %v1935 = vpack.c.b16 %v1584, %v1571
  %v1936 = vpack.c.b16 %v1585, %v1572
  %v1937 = vpack.c.b16 %v1586, %v1573
  %v1938 = vpack.c.b16 %v1587, %v1574
  %v1939 = vpack.c.b16 %v1588, %v1575
  %v1940 = vpack.c.b16 %v1589, %v1576
  %v1941 = vpack.c.b16 %v1590, %v1577
  %v1942 = vpack.c.b16 %v1591, %v1578
  %v1943 = vpack.c.b16 %v1592, %v1579
  %v1944 = vpack.c.b16 %v1606, %v1593
  %v1945 = vpack.c.b16 %v1607, %v1594
  %v1946 = vpack.c.b16 %v1608, %v1595
  %v1947 = vpack.c.b16 %v1609, %v1596
  %v1948 = vpack.c.b16 %v1610, %v1597
  %v1949 = vpack.c.b16 %v1611, %v1598
  %v1950 = vpack.c.b16 %v1612, %v1599
  %v1951 = vpack.c.b16 %v1613, %v1600
  %v1952 = vpack.c.b16 %v1614, %v1601
  %v1953 = vpack.c.b16 %v1615, %v1602
  %v1954 = vpack.c.b16 %v1616, %v1603
  %v1955 = vpack.c.b16 %v1617, %v1604
  %v1956 = vpack.c.b16 %v1618, %v1605
  %v2469 = vunpack.c.l.b16 %v379
  %v2470 = vunpack.c.l.b16 %v380
  %v2471 = vunpack.c.l.b16 %v381
  %v2472 = vunpack.c.l.b16 %v382
  %v2473 = vunpack.c.l.b16 %v383
  %v2474 = vunpack.c.l.b16 %v384
  %v2475 = vunpack.c.l.b16 %v385
  %v2476 = vunpack.c.l.b16 %v386
  %v2477 = vunpack.c.l.b16 %v387
  %v2478 = vunpack.c.l.b16 %v388
  %v2479 = vunpack.c.l.b16 %v389
  %v2480 = vunpack.c.l.b16 %v390
  %v2481 = vunpack.c.l.b16 %v391
  %v2482 = vunpack.c.l.b16 %v392
  %v2483 = vunpack.c.l.b16 %v393
  %v2484 = vunpack.c.l.b16 %v394
  %v2485 = vunpack.c.l.b16 %v395
  %v2486 = vunpack.c.l.b16 %v396
  %v2487 = vunpack.c.l.b16 %v397
  %v2488 = vunpack.c.l.b16 %v398
  %v2489 = vunpack.c.l.b16 %v399
  %v2490 = vunpack.c.l.b16 %v400
  %v2491 = vunpack.c.l.b16 %v401
  %v2492 = vunpack.c.l.b16 %v402
  %v2493 = vunpack.c.l.b16 %v403
  %v2494 = vunpack.c.l.b16 %v404
  %v2495 = vunpack.c.l.b16 %v405
  %v2496 = vunpack.c.l.b16 %v406
  %v2497 = vunpack.c.l.b16 %v407
  %v2498 = vunpack.c.l.b16 %v408
  %v2499 = vunpack.c.l.b16 %v409
  %v2500 = vunpack.c.l.b16 %v410
  %v2501 = vunpack.c.l.b16 %v411
  %v2502 = vunpack.c.l.b16 %v412
  %v2503 = vunpack.c.l.b16 %v413
  %v2504 = vunpack.c.l.b16 %v414
  %v2505 = vunpack.c.l.b16 %v415
  %v2506 = vunpack.c.l.b16 %v416
  %v2507 = vunpack.c.l.b16 %v417
  %v2508 = vunpack.c.l.b16 %v418
  %v2509 = vunpack.c.l.b16 %v419
  %v2510 = vunpack.c.l.b16 %v420
  %v2511 = vunpack.c.l.b16 %v421
  %v2512 = vunpack.c.l.b16 %v422
  %v2513 = vunpack.c.l.b16 %v423
  %v2514 = vunpack.c.l.b16 %v424
  %v2515 = vunpack.c.l.b16 %v425
  %v2516 = vunpack.c.l.b16 %v426
  %v2517 = vunpack.c.l.b16 %v427
  %v2518 = vunpack.c.l.b16 %v428
  %v2519 = vunpack.c.l.b16 %v429
  %v2520 = vunpack.c.l.b16 %v430
  %v2521 = vunpack.c.l.b16 %v431
  %v2522 = vunpack.c.l.b16 %v432
  %v2523 = vunpack.c.l.b16 %v433
  %v2524 = vunpack.c.l.b16 %v434
  %v2525 = vunpack.c.l.b16 %v435
  %v2526 = vunpack.c.l.b16 %v436
  %v2527 = vunpack.c.l.b16 %v437
  %v2528 = vunpack.c.l.b16 %v438
  %v2529 = vunpack.c.l.b16 %v439
  %v2530 = vunpack.c.l.b16 %v440
  %v2531 = vunpack.c.l.b16 %v441
  %v2532 = vunpack.c.l.b16 %v442
  %v2533 = vunpack.c.l.b16 %v443
  %v2534 = vunpack.c.l.b16 %v444
  %v2535 = vunpack.c.l.b16 %v445
  %v2536 = vunpack.c.l.b16 %v446
  %v2537 = vunpack.c.l.b16 %v447
  %v2538 = vunpack.c.l.b16 %v448
  %v2539 = vunpack.c.l.b16 %v449
  %v2540 = vunpack.c.l.b16 %v450
  %v2541 = vunpack.c.l.b16 %v451
  %v2542 = vunpack.c.l.b16 %v452
  %v2543 = vunpack.c.l.b16 %v453
  %v2544 = vunpack.c.l.b16 %v454
  %v2545 = vunpack.c.l.b16 %v455
  %v2546 = vunpack.c.l.b16 %v456
  %v2547 = vunpack.c.l.b16 %v457
  %v2548 = vunpack.c.l.b16 %v458
  %v2549 = vunpack.c.l.b16 %v459
  %v2550 = vunpack.c.l.b16 %v460
  %v2551 = vunpack.c.l.b16 %v461
  %v2552 = vunpack.c.l.b16 %v462
  %v2553 = vunpack.c.l.b16 %v463
  %v2554 = vunpack.c.l.b16 %v464
  %v2555 = vunpack.c.l.b16 %v465
  %v2556 = vunpack.c.l.b16 %v466
  %v2557 = vunpack.c.l.b16 %v467
  %v2558 = vunpack.c.l.b16 %v468
  %v2559 = vunpack.c.l.b16 %v469
  %v2560 = vunpack.c.l.b16 %v470
  %v2561 = vunpack.c.l.b16 %v471
  %v2562 = vunpack.c.l.b16 %v472
  %v2563 = vunpack.c.l.b16 %v473
  %v2564 = vunpack.c.l.b16 %v474
  %v2565 = vunpack.c.l.b16 %v475
  %v2566 = vunpack.c.l.b16 %v476
  %v2567 = vunpack.c.l.b16 %v477
  %v2568 = vunpack.c.l.b16 %v478
  %v2569 = vunpack.c.l.b16 %v479
  %v2570 = vunpack.c.l.b16 %v480
  %v2571 = vunpack.c.l.b16 %v481
  %v2572 = vunpack.c.l.b16 %v482
  %v2573 = vunpack.c.l.b16 %v483
  %v2574 = vunpack.c.l.b16 %v484
  %v2575 = vunpack.c.l.b16 %v485
  %v2576 = vunpack.c.l.b16 %v486
  %v2577 = vunpack.c.l.b16 %v487
  %v2578 = vunpack.c.l.b16 %v488
  %v2579 = vunpack.c.l.b16 %v489
  %v2580 = vunpack.c.l.b16 %v490
  %v2581 = vunpack.c.l.b16 %v491
  %v2582 = vunpack.c.l.b16 %v492
  %v2583 = vunpack.c.l.b16 %v493
  %v2584 = vunpack.c.l.b16 %v494
  %v2585 = vunpack.c.l.b16 %v495
  %v2586 = vunpack.c.l.b16 %v496
  %v2587 = vunpack.c.l.b16 %v497
  %v2588 = vunpack.c.l.b16 %v498
  %v2589 = vunpack.c.l.b16 %v499
  %v2590 = vunpack.c.l.b16 %v500
  %v2591 = vunpack.c.l.b16 %v501
  %v2592 = vunpack.c.l.b16 %v502
  %v2593 = vunpack.c.l.b16 %v503
  %v2594 = vunpack.c.l.b16 %v504
  %v2595 = vunpack.c.l.b16 %v505
  %v2596 = vunpack.c.l.b16 %v506
  %v2597 = vunpack.c.l.b16 %v507
  %v2598 = vunpack.c.l.b16 %v508
  %v2599 = vunpack.c.l.b16 %v509
  %v2600 = vunpack.c.l.b16 %v510
  %v2601 = vunpack.c.l.b16 %v511
  %v2602 = vunpack.c.l.b16 %v512
  %v2603 = vunpack.c.l.b16 %v513
  %v2604 = vunpack.c.l.b16 %v514
  %v2605 = vunpack.c.l.b16 %v515
  %v2606 = vunpack.c.l.b16 %v516
  %v2607 = vunpack.c.l.b16 %v517
  %v2608 = vunpack.c.l.b16 %v518
  %v2609 = vunpack.c.l.b16 %v519
  %v2610 = vunpack.c.l.b16 %v520
  %v2611 = vunpack.c.l.b16 %v521
  %v2612 = vunpack.c.l.b16 %v522
  %v2613 = vunpack.c.l.b16 %v523
  %v2614 = vunpack.c.l.b16 %v524
  %v2615 = vunpack.c.l.b16 %v525
  %v2616 = vunpack.c.l.b16 %v526
  %v2617 = vunpack.c.l.b16 %v527
  %v2618 = vunpack.c.l.b16 %v528
  %v2619 = vunpack.c.l.b16 %v529
  %v2620 = vunpack.c.l.b16 %v530
  %v2621 = vunpack.c.l.b16 %v531
  %v2622 = vunpack.c.l.b16 %v532
  %v2623 = vunpack.c.l.b16 %v533
  %v2624 = vunpack.c.l.b16 %v534
  %v2625 = vunpack.c.l.b16 %v535
  %v2626 = vunpack.c.l.b16 %v536
  %v2627 = vunpack.c.l.b16 %v537
  %v2628 = vunpack.c.l.b16 %v538
  %v2629 = vunpack.c.l.b16 %v539
  %v2630 = vunpack.c.l.b16 %v540
  %v2631 = vunpack.c.l.b16 %v541
  %v2632 = vunpack.c.l.b16 %v542
  %v2633 = vunpack.c.l.b16 %v543
  %v2634 = vunpack.c.l.b16 %v544
  %v2635 = vunpack.c.l.b16 %v545
  %v2636 = vunpack.c.l.b16 %v546
  %v2637 = vunpack.c.l.b16 %v547
  %v2638 = vunpack.c.l.b16 %v548
  %v2639 = vunpack.c.l.b16 %v549
  %v2640 = vunpack.c.l.b16 %v550
  %v2641 = vunpack.c.l.b16 %v551
  %v2642 = vunpack.c.l.b16 %v552
  %v2643 = vunpack.c.l.b16 %v553
  %v2644 = vunpack.c.l.b16 %v554
  %v2645 = vunpack.c.l.b16 %v555
  %v2646 = vunpack.c.l.b16 %v556
  %v2647 = vunpack.c.l.b16 %v557
  %v2648 = vunpack.c.l.b16 %v558
  %v2649 = vunpack.c.l.b16 %v559
  %v2650 = vunpack.c.l.b16 %v560
  %v2651 = vunpack.c.l.b16 %v561
  %v2652 = vunpack.c.l.b16 %v562
  %v2653 = vunpack.c.l.b16 %v563
  %v2654 = vunpack.c.l.b16 %v564
  %v2655 = vunpack.c.l.b16 %v565
  %v2656 = vunpack.c.l.b16 %v566
  %v2657 = vunpack.c.l.b16 %v567
  %v2658 = vunpack.c.l.b16 %v568
  %v2659 = vunpack.c.l.b16 %v569
  %v2660 = vunpack.c.l.b16 %v570
  %v2661 = vunpack.c.l.b16 %v571
  %v2662 = vunpack.c.l.b16 %v572
  %v2663 = vunpack.c.l.b16 %v573
  %v2664 = vunpack.c.l.b16 %v574
  %v2665 = vunpack.c.l.b16 %v575
  %v2666 = vunpack.c.l.b16 %v576
  %v2667 = vunpack.c.l.b16 %v577
  %v2668 = vunpack.c.l.b16 %v578
  %v2669 = vpack.c.b16 %v2470, %v2469
  %v2670 = vpack.c.b16 %v2472, %v2471
  %v2671 = vpack.c.b16 %v2474, %v2473
  %v2672 = vpack.c.b16 %v2476, %v2475
  %v2673 = vpack.c.b16 %v2478, %v2477
  %v2674 = vpack.c.b16 %v2480, %v2479
  %v2675 = vpack.c.b16 %v2482, %v2481
  %v2676 = vpack.c.b16 %v2484, %v2483
  %v2677 = vpack.c.b16 %v2486, %v2485
  %v2678 = vpack.c.b16 %v2488, %v2487
  %v2679 = vpack.c.b16 %v2490, %v2489
  %v2680 = vpack.c.b16 %v2492, %v2491
  %v2681 = vpack.c.b16 %v2494, %v2493
  %v2682 = vpack.c.b16 %v2496, %v2495
  %v2683 = vpack.c.b16 %v2498, %v2497
  %v2684 = vpack.c.b16 %v2500, %v2499
  %v2685 = vpack.c.b16 %v2502, %v2501
  %v2686 = vpack.c.b16 %v2504, %v2503
  %v2687 = vpack.c.b16 %v2506, %v2505
  %v2688 = vpack.c.b16 %v2508, %v2507
  %v2689 = vpack.c.b16 %v2510, %v2509
  %v2690 = vpack.c.b16 %v2512, %v2511
  %v2691 = vpack.c.b16 %v2514, %v2513
  %v2692 = vpack.c.b16 %v2516, %v2515
  %v2693 = vpack.c.b16 %v2518, %v2517
  %v2694 = vpack.c.b16 %v2520, %v2519
  %v2695 = vpack.c.b16 %v2522, %v2521
  %v2696 = vpack.c.b16 %v2524, %v2523
  %v2697 = vpack.c.b16 %v2526, %v2525
  %v2698 = vpack.c.b16 %v2528, %v2527
  %v2699 = vpack.c.b16 %v2530, %v2529
  %v2700 = vpack.c.b16 %v2532, %v2531
  %v2701 = vpack.c.b16 %v2534, %v2533
  %v2702 = vpack.c.b16 %v2536, %v2535
  %v2703 = vpack.c.b16 %v2538, %v2537
  %v2704 = vpack.c.b16 %v2540, %v2539
  %v2705 = vpack.c.b16 %v2542, %v2541
  %v2706 = vpack.c.b16 %v2544, %v2543
  %v2707 = vpack.c.b16 %v2546, %v2545
  %v2708 = vpack.c.b16 %v2548, %v2547
  %v2709 = vpack.c.b16 %v2550, %v2549
  %v2710 = vpack.c.b16 %v2552, %v2551
  %v2711 = vpack.c.b16 %v2554, %v2553
  %v2712 = vpack.c.b16 %v2556, %v2555
  %v2713 = vpack.c.b16 %v2558, %v2557
  %v2714 = vpack.c.b16 %v2560, %v2559
  %v2715 = vpack.c.b16 %v2562, %v2561
  %v2716 = vpack.c.b16 %v2564, %v2563
  %v2717 = vpack.c.b16 %v2566, %v2565
  %v2718 = vpack.c.b16 %v2568, %v2567
  %v2719 = vpack.c.b16 %v2570, %v2569
  %v2720 = vpack.c.b16 %v2572, %v2571
  %v2721 = vpack.c.b16 %v2574, %v2573
  %v2722 = vpack.c.b16 %v2576, %v2575
  %v2723 = vpack.c.b16 %v2578, %v2577
  %v2724 = vpack.c.b16 %v2580, %v2579
  %v2725 = vpack.c.b16 %v2582, %v2581
  %v2726 = vpack.c.b16 %v2584, %v2583
  %v2727 = vpack.c.b16 %v2586, %v2585
  %v2728 = vpack.c.b16 %v2588, %v2587
  %v2729 = vpack.c.b16 %v2590, %v2589
  %v2730 = vpack.c.b16 %v2592, %v2591
  %v2731 = vpack.c.b16 %v2594, %v2593
  %v2732 = vpack.c.b16 %v2596, %v2595
  %v2733 = vpack.c.b16 %v2598, %v2597
  %v2734 = vpack.c.b16 %v2600, %v2599
  %v2735 = vpack.c.b16 %v2602, %v2601
  %v2736 = vpack.c.b16 %v2604, %v2603
  %v2737 = vpack.c.b16 %v2606, %v2605
  %v2738 = vpack.c.b16 %v2608, %v2607
  %v2739 = vpack.c.b16 %v2610, %v2609
  %v2740 = vpack.c.b16 %v2612, %v2611
  %v2741 = vpack.c.b16 %v2614, %v2613
  %v2742 = vpack.c.b16 %v2616, %v2615
  %v2743 = vpack.c.b16 %v2618, %v2617
  %v2744 = vpack.c.b16 %v2620, %v2619
  %v2745 = vpack.c.b16 %v2622, %v2621
  %v2746 = vpack.c.b16 %v2624, %v2623
  %v2747 = vpack.c.b16 %v2626, %v2625
  %v2748 = vpack.c.b16 %v2628, %v2627
  %v2749 = vpack.c.b16 %v2630, %v2629
  %v2750 = vpack.c.b16 %v2632, %v2631
  %v2751 = vpack.c.b16 %v2634, %v2633
  %v2752 = vpack.c.b16 %v2636, %v2635
  %v2753 = vpack.c.b16 %v2638, %v2637
  %v2754 = vpack.c.b16 %v2640, %v2639
  %v2755 = vpack.c.b16 %v2642, %v2641
  %v2756 = vpack.c.b16 %v2644, %v2643
  %v2757 = vpack.c.b16 %v2646, %v2645
  %v2758 = vpack.c.b16 %v2648, %v2647
  %v2759 = vpack.c.b16 %v2650, %v2649
  %v2760 = vpack.c.b16 %v2652, %v2651
  %v2761 = vpack.c.b16 %v2654, %v2653
  %v2762 = vpack.c.b16 %v2656, %v2655
  %v2763 = vpack.c.b16 %v2658, %v2657
  %v2764 = vpack.c.b16 %v2660, %v2659
  %v2765 = vpack.c.b16 %v2662, %v2661
  %v2766 = vpack.c.b16 %v2664, %v2663
  %v2767 = vpack.c.b16 %v2666, %v2665
  %v2768 = vpack.c.b16 %v2668, %v2667
  %vm2869 = vcmask 523264
  %v2871 = vsel %vm2869, %v1631, 0
  %v2874 = vsel %vm2869, %v1644, 0
  %v2877 = vsel %vm2869, %v1657, 0
  %v2880 = vsel %vm2869, %v1670, 0
  %v2883 = vsel %vm2869, %v1683, 0
  %v2886 = vsel %vm2869, %v1696, 0
  %v2889 = vsel %vm2869, %v1709, 0
  %v2892 = vsel %vm2869, %v1722, 0
  %v2895 = vsel %vm2869, %v1735, 0
  %v2898 = vsel %vm2869, %v1748, 0
  %v2901 = vsel %vm2869, %v1761, 0
  %v2904 = vsel %vm2869, %v1774, 0
  %v2907 = vsel %vm2869, %v1787, 0
  %v2910 = vsel %vm2869, %v1800, 0
  %v2913 = vsel %vm2869, %v1813, 0
  %v2916 = vsel %vm2869, %v1826, 0
  %v2919 = vsel %vm2869, %v1839, 0
  %v2922 = vsel %vm2869, %v1852, 0
  %v2925 = vsel %vm2869, %v1865, 0
  %v2928 = vsel %vm2869, %v1878, 0
  %v2931 = vsel %vm2869, %v1891, 0
  %v2934 = vsel %vm2869, %v1904, 0
  %v2937 = vsel %vm2869, %v1917, 0
  %v2940 = vsel %vm2869, %v1930, 0
  %v2943 = vsel %vm2869, %v1943, 0
  %v2946 = vsel %vm2869, %v1956, 0
  %2948 = vmatpush.bf16.msra.mxu0 %v2676
  %2949 = vmatpush.bf16.msra.mxu0 %v2675
  %2950 = vmatpush.bf16.msra.mxu0 %v2674
  %2951 = vmatpush.bf16.msra.mxu0 %v2673
  %2952 = vmatpush.bf16.msra.mxu0 %v2672
  %2953 = vmatpush.bf16.msra.mxu0 %v2671
  %2954 = vmatpush.bf16.msra.mxu0 %v2670
  %2955 = vmatpush.bf16.msra.mxu0 %v2669
  %2956 = vmatmul.bf16.gmra.mxu0 %v1619
  %v2957 = vpop.f32.mrf.mxu0
  %v2958 = vadd.f32 0.0, %v2957
  %v2959 = vpop.f32.mrf.mxu0
  %v2960 = vadd.f32 0.0, %v2959
  %2961 = vmatmul.bf16.gmra.mxu0 %v1632
  %v2962 = vpop.f32.mrf.mxu0
  %v2963 = vadd.f32 0.0, %v2962
  %v2964 = vpop.f32.mrf.mxu0
  %v2965 = vadd.f32 0.0, %v2964
  %2966 = vmatmul.bf16.gmra.mxu0 %v1645
  %v2967 = vpop.f32.mrf.mxu0
  %v2968 = vadd.f32 0.0, %v2967
  %v2969 = vpop.f32.mrf.mxu0
  %v2970 = vadd.f32 0.0, %v2969
  %2971 = vmatmul.bf16.gmra.mxu0 %v1658
  %v2972 = vpop.f32.mrf.mxu0
  %v2973 = vadd.f32 0.0, %v2972
  %v2974 = vpop.f32.mrf.mxu0
  %v2975 = vadd.f32 0.0, %v2974
  %2976 = vmatmul.bf16.gmra.mxu0 %v1671
  %v2977 = vpop.f32.mrf.mxu0
  %v2978 = vadd.f32 0.0, %v2977
  %v2979 = vpop.f32.mrf.mxu0
  %v2980 = vadd.f32 0.0, %v2979
  %2981 = vmatmul.bf16.gmra.mxu0 %v1684
  %v2982 = vpop.f32.mrf.mxu0
  %v2983 = vadd.f32 0.0, %v2982
  %v2984 = vpop.f32.mrf.mxu0
  %v2985 = vadd.f32 0.0, %v2984
  %2986 = vmatmul.bf16.gmra.mxu0 %v1697
  %v2987 = vpop.f32.mrf.mxu0
  %v2988 = vadd.f32 0.0, %v2987
  %v2989 = vpop.f32.mrf.mxu0
  %v2990 = vadd.f32 0.0, %v2989
  %2991 = vmatmul.bf16.gmra.mxu0 %v1710
  %v2992 = vpop.f32.mrf.mxu0
  %v2993 = vadd.f32 0.0, %v2992
  %v2994 = vpop.f32.mrf.mxu0
  %v2995 = vadd.f32 0.0, %v2994
  %2996 = vmatmul.bf16.gmra.mxu0 %v1723
  %v2997 = vpop.f32.mrf.mxu0
  %v2998 = vadd.f32 0.0, %v2997
  %v2999 = vpop.f32.mrf.mxu0
  %v3000 = vadd.f32 0.0, %v2999
  %3001 = vmatmul.bf16.gmra.mxu0 %v1736
  %v3002 = vpop.f32.mrf.mxu0
  %v3003 = vadd.f32 0.0, %v3002
  %v3004 = vpop.f32.mrf.mxu0
  %v3005 = vadd.f32 0.0, %v3004
  %3006 = vmatmul.bf16.gmra.mxu0 %v1749
  %v3007 = vpop.f32.mrf.mxu0
  %v3008 = vadd.f32 0.0, %v3007
  %v3009 = vpop.f32.mrf.mxu0
  %v3010 = vadd.f32 0.0, %v3009
  %3011 = vmatmul.bf16.gmra.mxu0 %v1762
  %v3012 = vpop.f32.mrf.mxu0
  %v3013 = vadd.f32 0.0, %v3012
  %v3014 = vpop.f32.mrf.mxu0
  %v3015 = vadd.f32 0.0, %v3014
  %3016 = vmatmul.bf16.gmra.mxu0 %v1775
  %v3017 = vpop.f32.mrf.mxu0
  %v3018 = vadd.f32 0.0, %v3017
  %v3019 = vpop.f32.mrf.mxu0
  %v3020 = vadd.f32 0.0, %v3019
  %3021 = vmatmul.bf16.gmra.mxu0 %v1788
  %v3022 = vpop.f32.mrf.mxu0
  %v3023 = vadd.f32 0.0, %v3022
  %v3024 = vpop.f32.mrf.mxu0
  %v3025 = vadd.f32 0.0, %v3024
  %3026 = vmatmul.bf16.gmra.mxu0 %v1801
  %v3027 = vpop.f32.mrf.mxu0
  %v3028 = vadd.f32 0.0, %v3027
  %v3029 = vpop.f32.mrf.mxu0
  %v3030 = vadd.f32 0.0, %v3029
  %3031 = vmatmul.bf16.gmra.mxu0 %v1814
  %v3032 = vpop.f32.mrf.mxu0
  %v3033 = vadd.f32 0.0, %v3032
  %v3034 = vpop.f32.mrf.mxu0
  %v3035 = vadd.f32 0.0, %v3034
  %3036 = vmatmul.bf16.gmra.mxu0 %v1827
  %v3037 = vpop.f32.mrf.mxu0
  %v3038 = vadd.f32 0.0, %v3037
  %v3039 = vpop.f32.mrf.mxu0
  %v3040 = vadd.f32 0.0, %v3039
  %3041 = vmatmul.bf16.gmra.mxu0 %v1840
  %v3042 = vpop.f32.mrf.mxu0
  %v3043 = vadd.f32 0.0, %v3042
  %v3044 = vpop.f32.mrf.mxu0
  %v3045 = vadd.f32 0.0, %v3044
  %3046 = vmatmul.bf16.gmra.mxu0 %v1853
  %v3047 = vpop.f32.mrf.mxu0
  %v3048 = vadd.f32 0.0, %v3047
  %v3049 = vpop.f32.mrf.mxu0
  %v3050 = vadd.f32 0.0, %v3049
  %3051 = vmatmul.bf16.gmra.mxu0 %v1866
  %v3052 = vpop.f32.mrf.mxu0
  %v3053 = vadd.f32 0.0, %v3052
  %v3054 = vpop.f32.mrf.mxu0
  %v3055 = vadd.f32 0.0, %v3054
  %3056 = vmatmul.bf16.gmra.mxu0 %v1879
  %v3057 = vpop.f32.mrf.mxu0
  %v3058 = vadd.f32 0.0, %v3057
  %v3059 = vpop.f32.mrf.mxu0
  %v3060 = vadd.f32 0.0, %v3059
  %3061 = vmatmul.bf16.gmra.mxu0 %v1892
  %v3062 = vpop.f32.mrf.mxu0
  %v3063 = vadd.f32 0.0, %v3062
  %v3064 = vpop.f32.mrf.mxu0
  %v3065 = vadd.f32 0.0, %v3064
  %3066 = vmatmul.bf16.gmra.mxu0 %v1905
  %v3067 = vpop.f32.mrf.mxu0
  %v3068 = vadd.f32 0.0, %v3067
  %v3069 = vpop.f32.mrf.mxu0
  %v3070 = vadd.f32 0.0, %v3069
  %3071 = vmatmul.bf16.gmra.mxu0 %v1918
  %v3072 = vpop.f32.mrf.mxu0
  %v3073 = vadd.f32 0.0, %v3072
  %v3074 = vpop.f32.mrf.mxu0
  %v3075 = vadd.f32 0.0, %v3074
  %3076 = vmatmul.bf16.gmra.mxu0 %v1931
  %v3077 = vpop.f32.mrf.mxu0
  %v3078 = vadd.f32 0.0, %v3077
  %v3079 = vpop.f32.mrf.mxu0
  %v3080 = vadd.f32 0.0, %v3079
  %3081 = vmatmul.bf16.gmra.mxu0 %v1944
  %v3082 = vpop.f32.mrf.mxu0
  %v3083 = vadd.f32 0.0, %v3082
  %v3084 = vpop.f32.mrf.mxu0
  %v3085 = vadd.f32 0.0, %v3084
  %3086 = vdwg.mxu0
  %3087 = vmatpush.bf16.msra.mxu0 %v2684
  %3088 = vmatpush.bf16.msra.mxu0 %v2683
  %3089 = vmatpush.bf16.msra.mxu0 %v2682
  %3090 = vmatpush.bf16.msra.mxu0 %v2681
  %3091 = vmatpush.bf16.msra.mxu0 %v2680
  %3092 = vmatpush.bf16.msra.mxu0 %v2679
  %3093 = vmatpush.bf16.msra.mxu0 %v2678
  %3094 = vmatpush.bf16.msra.mxu0 %v2677
  %3095 = vmatmul.bf16.gmra.mxu0 %v1620
  %v3096 = vpop.f32.mrf.mxu0
  %v3097 = vadd.f32 %v2958, %v3096
  %v3098 = vpop.f32.mrf.mxu0
  %v3099 = vadd.f32 %v2960, %v3098
  %3100 = vmatmul.bf16.gmra.mxu0 %v1633
  %v3101 = vpop.f32.mrf.mxu0
  %v3102 = vadd.f32 %v2963, %v3101
  %v3103 = vpop.f32.mrf.mxu0
  %v3104 = vadd.f32 %v2965, %v3103
  %3105 = vmatmul.bf16.gmra.mxu0 %v1646
  %v3106 = vpop.f32.mrf.mxu0
  %v3107 = vadd.f32 %v2968, %v3106
  %v3108 = vpop.f32.mrf.mxu0
  %v3109 = vadd.f32 %v2970, %v3108
  %3110 = vmatmul.bf16.gmra.mxu0 %v1659
  %v3111 = vpop.f32.mrf.mxu0
  %v3112 = vadd.f32 %v2973, %v3111
  %v3113 = vpop.f32.mrf.mxu0
  %v3114 = vadd.f32 %v2975, %v3113
  %3115 = vmatmul.bf16.gmra.mxu0 %v1672
  %v3116 = vpop.f32.mrf.mxu0
  %v3117 = vadd.f32 %v2978, %v3116
  %v3118 = vpop.f32.mrf.mxu0
  %v3119 = vadd.f32 %v2980, %v3118
  %3120 = vmatmul.bf16.gmra.mxu0 %v1685
  %v3121 = vpop.f32.mrf.mxu0
  %v3122 = vadd.f32 %v2983, %v3121
  %v3123 = vpop.f32.mrf.mxu0
  %v3124 = vadd.f32 %v2985, %v3123
  %3125 = vmatmul.bf16.gmra.mxu0 %v1698
  %v3126 = vpop.f32.mrf.mxu0
  %v3127 = vadd.f32 %v2988, %v3126
  %v3128 = vpop.f32.mrf.mxu0
  %v3129 = vadd.f32 %v2990, %v3128
  %3130 = vmatmul.bf16.gmra.mxu0 %v1711
  %v3131 = vpop.f32.mrf.mxu0
  %v3132 = vadd.f32 %v2993, %v3131
  %v3133 = vpop.f32.mrf.mxu0
  %v3134 = vadd.f32 %v2995, %v3133
  %3135 = vmatmul.bf16.gmra.mxu0 %v1724
  %v3136 = vpop.f32.mrf.mxu0
  %v3137 = vadd.f32 %v2998, %v3136
  %v3138 = vpop.f32.mrf.mxu0
  %v3139 = vadd.f32 %v3000, %v3138
  %3140 = vmatmul.bf16.gmra.mxu0 %v1737
  %v3141 = vpop.f32.mrf.mxu0
  %v3142 = vadd.f32 %v3003, %v3141
  %v3143 = vpop.f32.mrf.mxu0
  %v3144 = vadd.f32 %v3005, %v3143
  %3145 = vmatmul.bf16.gmra.mxu0 %v1750
  %v3146 = vpop.f32.mrf.mxu0
  %v3147 = vadd.f32 %v3008, %v3146
  %v3148 = vpop.f32.mrf.mxu0
  %v3149 = vadd.f32 %v3010, %v3148
  %3150 = vmatmul.bf16.gmra.mxu0 %v1763
  %v3151 = vpop.f32.mrf.mxu0
  %v3152 = vadd.f32 %v3013, %v3151
  %v3153 = vpop.f32.mrf.mxu0
  %v3154 = vadd.f32 %v3015, %v3153
  %3155 = vmatmul.bf16.gmra.mxu0 %v1776
  %v3156 = vpop.f32.mrf.mxu0
  %v3157 = vadd.f32 %v3018, %v3156
  %v3158 = vpop.f32.mrf.mxu0
  %v3159 = vadd.f32 %v3020, %v3158
  %3160 = vmatmul.bf16.gmra.mxu0 %v1789
  %v3161 = vpop.f32.mrf.mxu0
  %v3162 = vadd.f32 %v3023, %v3161
  %v3163 = vpop.f32.mrf.mxu0
  %v3164 = vadd.f32 %v3025, %v3163
  %3165 = vmatmul.bf16.gmra.mxu0 %v1802
  %v3166 = vpop.f32.mrf.mxu0
  %v3167 = vadd.f32 %v3028, %v3166
  %v3168 = vpop.f32.mrf.mxu0
  %v3169 = vadd.f32 %v3030, %v3168
  %3170 = vmatmul.bf16.gmra.mxu0 %v1815
  %v3171 = vpop.f32.mrf.mxu0
  %v3172 = vadd.f32 %v3033, %v3171
  %v3173 = vpop.f32.mrf.mxu0
  %v3174 = vadd.f32 %v3035, %v3173
  %3175 = vmatmul.bf16.gmra.mxu0 %v1828
  %v3176 = vpop.f32.mrf.mxu0
  %v3177 = vadd.f32 %v3038, %v3176
  %v3178 = vpop.f32.mrf.mxu0
  %v3179 = vadd.f32 %v3040, %v3178
  %3180 = vmatmul.bf16.gmra.mxu0 %v1841
  %v3181 = vpop.f32.mrf.mxu0
  %v3182 = vadd.f32 %v3043, %v3181
  %v3183 = vpop.f32.mrf.mxu0
  %v3184 = vadd.f32 %v3045, %v3183
  %3185 = vmatmul.bf16.gmra.mxu0 %v1854
  %v3186 = vpop.f32.mrf.mxu0
  %v3187 = vadd.f32 %v3048, %v3186
  %v3188 = vpop.f32.mrf.mxu0
  %v3189 = vadd.f32 %v3050, %v3188
  %3190 = vmatmul.bf16.gmra.mxu0 %v1867
  %v3191 = vpop.f32.mrf.mxu0
  %v3192 = vadd.f32 %v3053, %v3191
  %v3193 = vpop.f32.mrf.mxu0
  %v3194 = vadd.f32 %v3055, %v3193
  %3195 = vmatmul.bf16.gmra.mxu0 %v1880
  %v3196 = vpop.f32.mrf.mxu0
  %v3197 = vadd.f32 %v3058, %v3196
  %v3198 = vpop.f32.mrf.mxu0
  %v3199 = vadd.f32 %v3060, %v3198
  %3200 = vmatmul.bf16.gmra.mxu0 %v1893
  %v3201 = vpop.f32.mrf.mxu0
  %v3202 = vadd.f32 %v3063, %v3201
  %v3203 = vpop.f32.mrf.mxu0
  %v3204 = vadd.f32 %v3065, %v3203
  %3205 = vmatmul.bf16.gmra.mxu0 %v1906
  %v3206 = vpop.f32.mrf.mxu0
  %v3207 = vadd.f32 %v3068, %v3206
  %v3208 = vpop.f32.mrf.mxu0
  %v3209 = vadd.f32 %v3070, %v3208
  %3210 = vmatmul.bf16.gmra.mxu0 %v1919
  %v3211 = vpop.f32.mrf.mxu0
  %v3212 = vadd.f32 %v3073, %v3211
  %v3213 = vpop.f32.mrf.mxu0
  %v3214 = vadd.f32 %v3075, %v3213
  %3215 = vmatmul.bf16.gmra.mxu0 %v1932
  %v3216 = vpop.f32.mrf.mxu0
  %v3217 = vadd.f32 %v3078, %v3216
  %v3218 = vpop.f32.mrf.mxu0
  %v3219 = vadd.f32 %v3080, %v3218
  %3220 = vmatmul.bf16.gmra.mxu0 %v1945
  %v3221 = vpop.f32.mrf.mxu0
  %v3222 = vadd.f32 %v3083, %v3221
  %v3223 = vpop.f32.mrf.mxu0
  %v3224 = vadd.f32 %v3085, %v3223
  %3225 = vdwg.mxu0
  %3226 = vmatpush.bf16.msra.mxu0 %v2692
  %3227 = vmatpush.bf16.msra.mxu0 %v2691
  %3228 = vmatpush.bf16.msra.mxu0 %v2690
  %3229 = vmatpush.bf16.msra.mxu0 %v2689
  %3230 = vmatpush.bf16.msra.mxu0 %v2688
  %3231 = vmatpush.bf16.msra.mxu0 %v2687
  %3232 = vmatpush.bf16.msra.mxu0 %v2686
  %3233 = vmatpush.bf16.msra.mxu0 %v2685
  %3234 = vmatmul.bf16.gmra.mxu0 %v1621
  %v3235 = vpop.f32.mrf.mxu0
  %v3236 = vadd.f32 %v3097, %v3235
  %v3237 = vpop.f32.mrf.mxu0
  %v3238 = vadd.f32 %v3099, %v3237
  %3239 = vmatmul.bf16.gmra.mxu0 %v1634
  %v3240 = vpop.f32.mrf.mxu0
  %v3241 = vadd.f32 %v3102, %v3240
  %v3242 = vpop.f32.mrf.mxu0
  %v3243 = vadd.f32 %v3104, %v3242
  %3244 = vmatmul.bf16.gmra.mxu0 %v1647
  %v3245 = vpop.f32.mrf.mxu0
  %v3246 = vadd.f32 %v3107, %v3245
  %v3247 = vpop.f32.mrf.mxu0
  %v3248 = vadd.f32 %v3109, %v3247
  %3249 = vmatmul.bf16.gmra.mxu0 %v1660
  %v3250 = vpop.f32.mrf.mxu0
  %v3251 = vadd.f32 %v3112, %v3250
  %v3252 = vpop.f32.mrf.mxu0
  %v3253 = vadd.f32 %v3114, %v3252
  %3254 = vmatmul.bf16.gmra.mxu0 %v1673
  %v3255 = vpop.f32.mrf.mxu0
  %v3256 = vadd.f32 %v3117, %v3255
  %v3257 = vpop.f32.mrf.mxu0
  %v3258 = vadd.f32 %v3119, %v3257
  %3259 = vmatmul.bf16.gmra.mxu0 %v1686
  %v3260 = vpop.f32.mrf.mxu0
  %v3261 = vadd.f32 %v3122, %v3260
  %v3262 = vpop.f32.mrf.mxu0
  %v3263 = vadd.f32 %v3124, %v3262
  %3264 = vmatmul.bf16.gmra.mxu0 %v1699
  %v3265 = vpop.f32.mrf.mxu0
  %v3266 = vadd.f32 %v3127, %v3265
  %v3267 = vpop.f32.mrf.mxu0
  %v3268 = vadd.f32 %v3129, %v3267
  %3269 = vmatmul.bf16.gmra.mxu0 %v1712
  %v3270 = vpop.f32.mrf.mxu0
  %v3271 = vadd.f32 %v3132, %v3270
  %v3272 = vpop.f32.mrf.mxu0
  %v3273 = vadd.f32 %v3134, %v3272
  %3274 = vmatmul.bf16.gmra.mxu0 %v1725
  %v3275 = vpop.f32.mrf.mxu0
  %v3276 = vadd.f32 %v3137, %v3275
  %v3277 = vpop.f32.mrf.mxu0
  %v3278 = vadd.f32 %v3139, %v3277
  %3279 = vmatmul.bf16.gmra.mxu0 %v1738
  %v3280 = vpop.f32.mrf.mxu0
  %v3281 = vadd.f32 %v3142, %v3280
  %v3282 = vpop.f32.mrf.mxu0
  %v3283 = vadd.f32 %v3144, %v3282
  %3284 = vmatmul.bf16.gmra.mxu0 %v1751
  %v3285 = vpop.f32.mrf.mxu0
  %v3286 = vadd.f32 %v3147, %v3285
  %v3287 = vpop.f32.mrf.mxu0
  %v3288 = vadd.f32 %v3149, %v3287
  %3289 = vmatmul.bf16.gmra.mxu0 %v1764
  %v3290 = vpop.f32.mrf.mxu0
  %v3291 = vadd.f32 %v3152, %v3290
  %v3292 = vpop.f32.mrf.mxu0
  %v3293 = vadd.f32 %v3154, %v3292
  %3294 = vmatmul.bf16.gmra.mxu0 %v1777
  %v3295 = vpop.f32.mrf.mxu0
  %v3296 = vadd.f32 %v3157, %v3295
  %v3297 = vpop.f32.mrf.mxu0
  %v3298 = vadd.f32 %v3159, %v3297
  %3299 = vmatmul.bf16.gmra.mxu0 %v1790
  %v3300 = vpop.f32.mrf.mxu0
  %v3301 = vadd.f32 %v3162, %v3300
  %v3302 = vpop.f32.mrf.mxu0
  %v3303 = vadd.f32 %v3164, %v3302
  %3304 = vmatmul.bf16.gmra.mxu0 %v1803
  %v3305 = vpop.f32.mrf.mxu0
  %v3306 = vadd.f32 %v3167, %v3305
  %v3307 = vpop.f32.mrf.mxu0
  %v3308 = vadd.f32 %v3169, %v3307
  %3309 = vmatmul.bf16.gmra.mxu0 %v1816
  %v3310 = vpop.f32.mrf.mxu0
  %v3311 = vadd.f32 %v3172, %v3310
  %v3312 = vpop.f32.mrf.mxu0
  %v3313 = vadd.f32 %v3174, %v3312
  %3314 = vmatmul.bf16.gmra.mxu0 %v1829
  %v3315 = vpop.f32.mrf.mxu0
  %v3316 = vadd.f32 %v3177, %v3315
  %v3317 = vpop.f32.mrf.mxu0
  %v3318 = vadd.f32 %v3179, %v3317
  %3319 = vmatmul.bf16.gmra.mxu0 %v1842
  %v3320 = vpop.f32.mrf.mxu0
  %v3321 = vadd.f32 %v3182, %v3320
  %v3322 = vpop.f32.mrf.mxu0
  %v3323 = vadd.f32 %v3184, %v3322
  %3324 = vmatmul.bf16.gmra.mxu0 %v1855
  %v3325 = vpop.f32.mrf.mxu0
  %v3326 = vadd.f32 %v3187, %v3325
  %v3327 = vpop.f32.mrf.mxu0
  %v3328 = vadd.f32 %v3189, %v3327
  %3329 = vmatmul.bf16.gmra.mxu0 %v1868
  %v3330 = vpop.f32.mrf.mxu0
  %v3331 = vadd.f32 %v3192, %v3330
  %v3332 = vpop.f32.mrf.mxu0
  %v3333 = vadd.f32 %v3194, %v3332
  %3334 = vmatmul.bf16.gmra.mxu0 %v1881
  %v3335 = vpop.f32.mrf.mxu0
  %v3336 = vadd.f32 %v3197, %v3335
  %v3337 = vpop.f32.mrf.mxu0
  %v3338 = vadd.f32 %v3199, %v3337
  %3339 = vmatmul.bf16.gmra.mxu0 %v1894
  %v3340 = vpop.f32.mrf.mxu0
  %v3341 = vadd.f32 %v3202, %v3340
  %v3342 = vpop.f32.mrf.mxu0
  %v3343 = vadd.f32 %v3204, %v3342
  %3344 = vmatmul.bf16.gmra.mxu0 %v1907
  %v3345 = vpop.f32.mrf.mxu0
  %v3346 = vadd.f32 %v3207, %v3345
  %v3347 = vpop.f32.mrf.mxu0
  %v3348 = vadd.f32 %v3209, %v3347
  %3349 = vmatmul.bf16.gmra.mxu0 %v1920
  %v3350 = vpop.f32.mrf.mxu0
  %v3351 = vadd.f32 %v3212, %v3350
  %v3352 = vpop.f32.mrf.mxu0
  %v3353 = vadd.f32 %v3214, %v3352
  %3354 = vmatmul.bf16.gmra.mxu0 %v1933
  %v3355 = vpop.f32.mrf.mxu0
  %v3356 = vadd.f32 %v3217, %v3355
  %v3357 = vpop.f32.mrf.mxu0
  %v3358 = vadd.f32 %v3219, %v3357
  %3359 = vmatmul.bf16.gmra.mxu0 %v1946
  %v3360 = vpop.f32.mrf.mxu0
  %v3361 = vadd.f32 %v3222, %v3360
  %v3362 = vpop.f32.mrf.mxu0
  %v3363 = vadd.f32 %v3224, %v3362
  %3364 = vdwg.mxu0
  %3365 = vmatpush.bf16.msra.mxu0 %v2700
  %3366 = vmatpush.bf16.msra.mxu0 %v2699
  %3367 = vmatpush.bf16.msra.mxu0 %v2698
  %3368 = vmatpush.bf16.msra.mxu0 %v2697
  %3369 = vmatpush.bf16.msra.mxu0 %v2696
  %3370 = vmatpush.bf16.msra.mxu0 %v2695
  %3371 = vmatpush.bf16.msra.mxu0 %v2694
  %3372 = vmatpush.bf16.msra.mxu0 %v2693
  %3373 = vmatmul.bf16.gmra.mxu0 %v1622
  %v3374 = vpop.f32.mrf.mxu0
  %v3375 = vadd.f32 %v3236, %v3374
  %v3376 = vpop.f32.mrf.mxu0
  %v3377 = vadd.f32 %v3238, %v3376
  %3378 = vmatmul.bf16.gmra.mxu0 %v1635
  %v3379 = vpop.f32.mrf.mxu0
  %v3380 = vadd.f32 %v3241, %v3379
  %v3381 = vpop.f32.mrf.mxu0
  %v3382 = vadd.f32 %v3243, %v3381
  %3383 = vmatmul.bf16.gmra.mxu0 %v1648
  %v3384 = vpop.f32.mrf.mxu0
  %v3385 = vadd.f32 %v3246, %v3384
  %v3386 = vpop.f32.mrf.mxu0
  %v3387 = vadd.f32 %v3248, %v3386
  %3388 = vmatmul.bf16.gmra.mxu0 %v1661
  %v3389 = vpop.f32.mrf.mxu0
  %v3390 = vadd.f32 %v3251, %v3389
  %v3391 = vpop.f32.mrf.mxu0
  %v3392 = vadd.f32 %v3253, %v3391
  %3393 = vmatmul.bf16.gmra.mxu0 %v1674
  %v3394 = vpop.f32.mrf.mxu0
  %v3395 = vadd.f32 %v3256, %v3394
  %v3396 = vpop.f32.mrf.mxu0
  %v3397 = vadd.f32 %v3258, %v3396
  %3398 = vmatmul.bf16.gmra.mxu0 %v1687
  %v3399 = vpop.f32.mrf.mxu0
  %v3400 = vadd.f32 %v3261, %v3399
  %v3401 = vpop.f32.mrf.mxu0
  %v3402 = vadd.f32 %v3263, %v3401
  %3403 = vmatmul.bf16.gmra.mxu0 %v1700
  %v3404 = vpop.f32.mrf.mxu0
  %v3405 = vadd.f32 %v3266, %v3404
  %v3406 = vpop.f32.mrf.mxu0
  %v3407 = vadd.f32 %v3268, %v3406
  %3408 = vmatmul.bf16.gmra.mxu0 %v1713
  %v3409 = vpop.f32.mrf.mxu0
  %v3410 = vadd.f32 %v3271, %v3409
  %v3411 = vpop.f32.mrf.mxu0
  %v3412 = vadd.f32 %v3273, %v3411
  %3413 = vmatmul.bf16.gmra.mxu0 %v1726
  %v3414 = vpop.f32.mrf.mxu0
  %v3415 = vadd.f32 %v3276, %v3414
  %v3416 = vpop.f32.mrf.mxu0
  %v3417 = vadd.f32 %v3278, %v3416
  %3418 = vmatmul.bf16.gmra.mxu0 %v1739
  %v3419 = vpop.f32.mrf.mxu0
  %v3420 = vadd.f32 %v3281, %v3419
  %v3421 = vpop.f32.mrf.mxu0
  %v3422 = vadd.f32 %v3283, %v3421
  %3423 = vmatmul.bf16.gmra.mxu0 %v1752
  %v3424 = vpop.f32.mrf.mxu0
  %v3425 = vadd.f32 %v3286, %v3424
  %v3426 = vpop.f32.mrf.mxu0
  %v3427 = vadd.f32 %v3288, %v3426
  %3428 = vmatmul.bf16.gmra.mxu0 %v1765
  %v3429 = vpop.f32.mrf.mxu0
  %v3430 = vadd.f32 %v3291, %v3429
  %v3431 = vpop.f32.mrf.mxu0
  %v3432 = vadd.f32 %v3293, %v3431
  %3433 = vmatmul.bf16.gmra.mxu0 %v1778
  %v3434 = vpop.f32.mrf.mxu0
  %v3435 = vadd.f32 %v3296, %v3434
  %v3436 = vpop.f32.mrf.mxu0
  %v3437 = vadd.f32 %v3298, %v3436
  %3438 = vmatmul.bf16.gmra.mxu0 %v1791
  %v3439 = vpop.f32.mrf.mxu0
  %v3440 = vadd.f32 %v3301, %v3439
  %v3441 = vpop.f32.mrf.mxu0
  %v3442 = vadd.f32 %v3303, %v3441
  %3443 = vmatmul.bf16.gmra.mxu0 %v1804
  %v3444 = vpop.f32.mrf.mxu0
  %v3445 = vadd.f32 %v3306, %v3444
  %v3446 = vpop.f32.mrf.mxu0
  %v3447 = vadd.f32 %v3308, %v3446
  %3448 = vmatmul.bf16.gmra.mxu0 %v1817
  %v3449 = vpop.f32.mrf.mxu0
  %v3450 = vadd.f32 %v3311, %v3449
  %v3451 = vpop.f32.mrf.mxu0
  %v3452 = vadd.f32 %v3313, %v3451
  %3453 = vmatmul.bf16.gmra.mxu0 %v1830
  %v3454 = vpop.f32.mrf.mxu0
  %v3455 = vadd.f32 %v3316, %v3454
  %v3456 = vpop.f32.mrf.mxu0
  %v3457 = vadd.f32 %v3318, %v3456
  %3458 = vmatmul.bf16.gmra.mxu0 %v1843
  %v3459 = vpop.f32.mrf.mxu0
  %v3460 = vadd.f32 %v3321, %v3459
  %v3461 = vpop.f32.mrf.mxu0
  %v3462 = vadd.f32 %v3323, %v3461
  %3463 = vmatmul.bf16.gmra.mxu0 %v1856
  %v3464 = vpop.f32.mrf.mxu0
  %v3465 = vadd.f32 %v3326, %v3464
  %v3466 = vpop.f32.mrf.mxu0
  %v3467 = vadd.f32 %v3328, %v3466
  %3468 = vmatmul.bf16.gmra.mxu0 %v1869
  %v3469 = vpop.f32.mrf.mxu0
  %v3470 = vadd.f32 %v3331, %v3469
  %v3471 = vpop.f32.mrf.mxu0
  %v3472 = vadd.f32 %v3333, %v3471
  %3473 = vmatmul.bf16.gmra.mxu0 %v1882
  %v3474 = vpop.f32.mrf.mxu0
  %v3475 = vadd.f32 %v3336, %v3474
  %v3476 = vpop.f32.mrf.mxu0
  %v3477 = vadd.f32 %v3338, %v3476
  %3478 = vmatmul.bf16.gmra.mxu0 %v1895
  %v3479 = vpop.f32.mrf.mxu0
  %v3480 = vadd.f32 %v3341, %v3479
  %v3481 = vpop.f32.mrf.mxu0
  %v3482 = vadd.f32 %v3343, %v3481
  %3483 = vmatmul.bf16.gmra.mxu0 %v1908
  %v3484 = vpop.f32.mrf.mxu0
  %v3485 = vadd.f32 %v3346, %v3484
  %v3486 = vpop.f32.mrf.mxu0
  %v3487 = vadd.f32 %v3348, %v3486
  %3488 = vmatmul.bf16.gmra.mxu0 %v1921
  %v3489 = vpop.f32.mrf.mxu0
  %v3490 = vadd.f32 %v3351, %v3489
  %v3491 = vpop.f32.mrf.mxu0
  %v3492 = vadd.f32 %v3353, %v3491
  %3493 = vmatmul.bf16.gmra.mxu0 %v1934
  %v3494 = vpop.f32.mrf.mxu0
  %v3495 = vadd.f32 %v3356, %v3494
  %v3496 = vpop.f32.mrf.mxu0
  %v3497 = vadd.f32 %v3358, %v3496
  %3498 = vmatmul.bf16.gmra.mxu0 %v1947
  %v3499 = vpop.f32.mrf.mxu0
  %v3500 = vadd.f32 %v3361, %v3499
  %v3501 = vpop.f32.mrf.mxu0
  %v3502 = vadd.f32 %v3363, %v3501
  %3503 = vdwg.mxu0
  %3504 = vmatpush.bf16.msra.mxu0 %v2708
  %3505 = vmatpush.bf16.msra.mxu0 %v2707
  %3506 = vmatpush.bf16.msra.mxu0 %v2706
  %3507 = vmatpush.bf16.msra.mxu0 %v2705
  %3508 = vmatpush.bf16.msra.mxu0 %v2704
  %3509 = vmatpush.bf16.msra.mxu0 %v2703
  %3510 = vmatpush.bf16.msra.mxu0 %v2702
  %3511 = vmatpush.bf16.msra.mxu0 %v2701
  %3512 = vmatmul.bf16.gmra.mxu0 %v1623
  %v3513 = vpop.f32.mrf.mxu0
  %v3514 = vadd.f32 %v3375, %v3513
  %v3515 = vpop.f32.mrf.mxu0
  %v3516 = vadd.f32 %v3377, %v3515
  %3517 = vmatmul.bf16.gmra.mxu0 %v1636
  %v3518 = vpop.f32.mrf.mxu0
  %v3519 = vadd.f32 %v3380, %v3518
  %v3520 = vpop.f32.mrf.mxu0
  %v3521 = vadd.f32 %v3382, %v3520
  %3522 = vmatmul.bf16.gmra.mxu0 %v1649
  %v3523 = vpop.f32.mrf.mxu0
  %v3524 = vadd.f32 %v3385, %v3523
  %v3525 = vpop.f32.mrf.mxu0
  %v3526 = vadd.f32 %v3387, %v3525
  %3527 = vmatmul.bf16.gmra.mxu0 %v1662
  %v3528 = vpop.f32.mrf.mxu0
  %v3529 = vadd.f32 %v3390, %v3528
  %v3530 = vpop.f32.mrf.mxu0
  %v3531 = vadd.f32 %v3392, %v3530
  %3532 = vmatmul.bf16.gmra.mxu0 %v1675
  %v3533 = vpop.f32.mrf.mxu0
  %v3534 = vadd.f32 %v3395, %v3533
  %v3535 = vpop.f32.mrf.mxu0
  %v3536 = vadd.f32 %v3397, %v3535
  %3537 = vmatmul.bf16.gmra.mxu0 %v1688
  %v3538 = vpop.f32.mrf.mxu0
  %v3539 = vadd.f32 %v3400, %v3538
  %v3540 = vpop.f32.mrf.mxu0
  %v3541 = vadd.f32 %v3402, %v3540
  %3542 = vmatmul.bf16.gmra.mxu0 %v1701
  %v3543 = vpop.f32.mrf.mxu0
  %v3544 = vadd.f32 %v3405, %v3543
  %v3545 = vpop.f32.mrf.mxu0
  %v3546 = vadd.f32 %v3407, %v3545
  %3547 = vmatmul.bf16.gmra.mxu0 %v1714
  %v3548 = vpop.f32.mrf.mxu0
  %v3549 = vadd.f32 %v3410, %v3548
  %v3550 = vpop.f32.mrf.mxu0
  %v3551 = vadd.f32 %v3412, %v3550
  %3552 = vmatmul.bf16.gmra.mxu0 %v1727
  %v3553 = vpop.f32.mrf.mxu0
  %v3554 = vadd.f32 %v3415, %v3553
  %v3555 = vpop.f32.mrf.mxu0
  %v3556 = vadd.f32 %v3417, %v3555
  %3557 = vmatmul.bf16.gmra.mxu0 %v1740
  %v3558 = vpop.f32.mrf.mxu0
  %v3559 = vadd.f32 %v3420, %v3558
  %v3560 = vpop.f32.mrf.mxu0
  %v3561 = vadd.f32 %v3422, %v3560
  %3562 = vmatmul.bf16.gmra.mxu0 %v1753
  %v3563 = vpop.f32.mrf.mxu0
  %v3564 = vadd.f32 %v3425, %v3563
  %v3565 = vpop.f32.mrf.mxu0
  %v3566 = vadd.f32 %v3427, %v3565
  %3567 = vmatmul.bf16.gmra.mxu0 %v1766
  %v3568 = vpop.f32.mrf.mxu0
  %v3569 = vadd.f32 %v3430, %v3568
  %v3570 = vpop.f32.mrf.mxu0
  %v3571 = vadd.f32 %v3432, %v3570
  %3572 = vmatmul.bf16.gmra.mxu0 %v1779
  %v3573 = vpop.f32.mrf.mxu0
  %v3574 = vadd.f32 %v3435, %v3573
  %v3575 = vpop.f32.mrf.mxu0
  %v3576 = vadd.f32 %v3437, %v3575
  %3577 = vmatmul.bf16.gmra.mxu0 %v1792
  %v3578 = vpop.f32.mrf.mxu0
  %v3579 = vadd.f32 %v3440, %v3578
  %v3580 = vpop.f32.mrf.mxu0
  %v3581 = vadd.f32 %v3442, %v3580
  %3582 = vmatmul.bf16.gmra.mxu0 %v1805
  %v3583 = vpop.f32.mrf.mxu0
  %v3584 = vadd.f32 %v3445, %v3583
  %v3585 = vpop.f32.mrf.mxu0
  %v3586 = vadd.f32 %v3447, %v3585
  %3587 = vmatmul.bf16.gmra.mxu0 %v1818
  %v3588 = vpop.f32.mrf.mxu0
  %v3589 = vadd.f32 %v3450, %v3588
  %v3590 = vpop.f32.mrf.mxu0
  %v3591 = vadd.f32 %v3452, %v3590
  %3592 = vmatmul.bf16.gmra.mxu0 %v1831
  %v3593 = vpop.f32.mrf.mxu0
  %v3594 = vadd.f32 %v3455, %v3593
  %v3595 = vpop.f32.mrf.mxu0
  %v3596 = vadd.f32 %v3457, %v3595
  %3597 = vmatmul.bf16.gmra.mxu0 %v1844
  %v3598 = vpop.f32.mrf.mxu0
  %v3599 = vadd.f32 %v3460, %v3598
  %v3600 = vpop.f32.mrf.mxu0
  %v3601 = vadd.f32 %v3462, %v3600
  %3602 = vmatmul.bf16.gmra.mxu0 %v1857
  %v3603 = vpop.f32.mrf.mxu0
  %v3604 = vadd.f32 %v3465, %v3603
  %v3605 = vpop.f32.mrf.mxu0
  %v3606 = vadd.f32 %v3467, %v3605
  %3607 = vmatmul.bf16.gmra.mxu0 %v1870
  %v3608 = vpop.f32.mrf.mxu0
  %v3609 = vadd.f32 %v3470, %v3608
  %v3610 = vpop.f32.mrf.mxu0
  %v3611 = vadd.f32 %v3472, %v3610
  %3612 = vmatmul.bf16.gmra.mxu0 %v1883
  %v3613 = vpop.f32.mrf.mxu0
  %v3614 = vadd.f32 %v3475, %v3613
  %v3615 = vpop.f32.mrf.mxu0
  %v3616 = vadd.f32 %v3477, %v3615
  %3617 = vmatmul.bf16.gmra.mxu0 %v1896
  %v3618 = vpop.f32.mrf.mxu0
  %v3619 = vadd.f32 %v3480, %v3618
  %v3620 = vpop.f32.mrf.mxu0
  %v3621 = vadd.f32 %v3482, %v3620
  %3622 = vmatmul.bf16.gmra.mxu0 %v1909
  %v3623 = vpop.f32.mrf.mxu0
  %v3624 = vadd.f32 %v3485, %v3623
  %v3625 = vpop.f32.mrf.mxu0
  %v3626 = vadd.f32 %v3487, %v3625
  %3627 = vmatmul.bf16.gmra.mxu0 %v1922
  %v3628 = vpop.f32.mrf.mxu0
  %v3629 = vadd.f32 %v3490, %v3628
  %v3630 = vpop.f32.mrf.mxu0
  %v3631 = vadd.f32 %v3492, %v3630
  %3632 = vmatmul.bf16.gmra.mxu0 %v1935
  %v3633 = vpop.f32.mrf.mxu0
  %v3634 = vadd.f32 %v3495, %v3633
  %v3635 = vpop.f32.mrf.mxu0
  %v3636 = vadd.f32 %v3497, %v3635
  %3637 = vmatmul.bf16.gmra.mxu0 %v1948
  %v3638 = vpop.f32.mrf.mxu0
  %v3639 = vadd.f32 %v3500, %v3638
  %v3640 = vpop.f32.mrf.mxu0
  %v3641 = vadd.f32 %v3502, %v3640
  %3642 = vdwg.mxu0
  %3643 = vmatpush.bf16.msra.mxu0 %v2716
  %3644 = vmatpush.bf16.msra.mxu0 %v2715
  %3645 = vmatpush.bf16.msra.mxu0 %v2714
  %3646 = vmatpush.bf16.msra.mxu0 %v2713
  %3647 = vmatpush.bf16.msra.mxu0 %v2712
  %3648 = vmatpush.bf16.msra.mxu0 %v2711
  %3649 = vmatpush.bf16.msra.mxu0 %v2710
  %3650 = vmatpush.bf16.msra.mxu0 %v2709
  %3651 = vmatmul.bf16.gmra.mxu0 %v1624
  %v3652 = vpop.f32.mrf.mxu0
  %v3653 = vadd.f32 %v3514, %v3652
  %v3654 = vpop.f32.mrf.mxu0
  %v3655 = vadd.f32 %v3516, %v3654
  %3656 = vmatmul.bf16.gmra.mxu0 %v1637
  %v3657 = vpop.f32.mrf.mxu0
  %v3658 = vadd.f32 %v3519, %v3657
  %v3659 = vpop.f32.mrf.mxu0
  %v3660 = vadd.f32 %v3521, %v3659
  %3661 = vmatmul.bf16.gmra.mxu0 %v1650
  %v3662 = vpop.f32.mrf.mxu0
  %v3663 = vadd.f32 %v3524, %v3662
  %v3664 = vpop.f32.mrf.mxu0
  %v3665 = vadd.f32 %v3526, %v3664
  %3666 = vmatmul.bf16.gmra.mxu0 %v1663
  %v3667 = vpop.f32.mrf.mxu0
  %v3668 = vadd.f32 %v3529, %v3667
  %v3669 = vpop.f32.mrf.mxu0
  %v3670 = vadd.f32 %v3531, %v3669
  %3671 = vmatmul.bf16.gmra.mxu0 %v1676
  %v3672 = vpop.f32.mrf.mxu0
  %v3673 = vadd.f32 %v3534, %v3672
  %v3674 = vpop.f32.mrf.mxu0
  %v3675 = vadd.f32 %v3536, %v3674
  %3676 = vmatmul.bf16.gmra.mxu0 %v1689
  %v3677 = vpop.f32.mrf.mxu0
  %v3678 = vadd.f32 %v3539, %v3677
  %v3679 = vpop.f32.mrf.mxu0
  %v3680 = vadd.f32 %v3541, %v3679
  %3681 = vmatmul.bf16.gmra.mxu0 %v1702
  %v3682 = vpop.f32.mrf.mxu0
  %v3683 = vadd.f32 %v3544, %v3682
  %v3684 = vpop.f32.mrf.mxu0
  %v3685 = vadd.f32 %v3546, %v3684
  %3686 = vmatmul.bf16.gmra.mxu0 %v1715
  %v3687 = vpop.f32.mrf.mxu0
  %v3688 = vadd.f32 %v3549, %v3687
  %v3689 = vpop.f32.mrf.mxu0
  %v3690 = vadd.f32 %v3551, %v3689
  %3691 = vmatmul.bf16.gmra.mxu0 %v1728
  %v3692 = vpop.f32.mrf.mxu0
  %v3693 = vadd.f32 %v3554, %v3692
  %v3694 = vpop.f32.mrf.mxu0
  %v3695 = vadd.f32 %v3556, %v3694
  %3696 = vmatmul.bf16.gmra.mxu0 %v1741
  %v3697 = vpop.f32.mrf.mxu0
  %v3698 = vadd.f32 %v3559, %v3697
  %v3699 = vpop.f32.mrf.mxu0
  %v3700 = vadd.f32 %v3561, %v3699
  %3701 = vmatmul.bf16.gmra.mxu0 %v1754
  %v3702 = vpop.f32.mrf.mxu0
  %v3703 = vadd.f32 %v3564, %v3702
  %v3704 = vpop.f32.mrf.mxu0
  %v3705 = vadd.f32 %v3566, %v3704
  %3706 = vmatmul.bf16.gmra.mxu0 %v1767
  %v3707 = vpop.f32.mrf.mxu0
  %v3708 = vadd.f32 %v3569, %v3707
  %v3709 = vpop.f32.mrf.mxu0
  %v3710 = vadd.f32 %v3571, %v3709
  %3711 = vmatmul.bf16.gmra.mxu0 %v1780
  %v3712 = vpop.f32.mrf.mxu0
  %v3713 = vadd.f32 %v3574, %v3712
  %v3714 = vpop.f32.mrf.mxu0
  %v3715 = vadd.f32 %v3576, %v3714
  %3716 = vmatmul.bf16.gmra.mxu0 %v1793
  %v3717 = vpop.f32.mrf.mxu0
  %v3718 = vadd.f32 %v3579, %v3717
  %v3719 = vpop.f32.mrf.mxu0
  %v3720 = vadd.f32 %v3581, %v3719
  %3721 = vmatmul.bf16.gmra.mxu0 %v1806
  %v3722 = vpop.f32.mrf.mxu0
  %v3723 = vadd.f32 %v3584, %v3722
  %v3724 = vpop.f32.mrf.mxu0
  %v3725 = vadd.f32 %v3586, %v3724
  %3726 = vmatmul.bf16.gmra.mxu0 %v1819
  %v3727 = vpop.f32.mrf.mxu0
  %v3728 = vadd.f32 %v3589, %v3727
  %v3729 = vpop.f32.mrf.mxu0
  %v3730 = vadd.f32 %v3591, %v3729
  %3731 = vmatmul.bf16.gmra.mxu0 %v1832
  %v3732 = vpop.f32.mrf.mxu0
  %v3733 = vadd.f32 %v3594, %v3732
  %v3734 = vpop.f32.mrf.mxu0
  %v3735 = vadd.f32 %v3596, %v3734
  %3736 = vmatmul.bf16.gmra.mxu0 %v1845
  %v3737 = vpop.f32.mrf.mxu0
  %v3738 = vadd.f32 %v3599, %v3737
  %v3739 = vpop.f32.mrf.mxu0
  %v3740 = vadd.f32 %v3601, %v3739
  %3741 = vmatmul.bf16.gmra.mxu0 %v1858
  %v3742 = vpop.f32.mrf.mxu0
  %v3743 = vadd.f32 %v3604, %v3742
  %v3744 = vpop.f32.mrf.mxu0
  %v3745 = vadd.f32 %v3606, %v3744
  %3746 = vmatmul.bf16.gmra.mxu0 %v1871
  %v3747 = vpop.f32.mrf.mxu0
  %v3748 = vadd.f32 %v3609, %v3747
  %v3749 = vpop.f32.mrf.mxu0
  %v3750 = vadd.f32 %v3611, %v3749
  %3751 = vmatmul.bf16.gmra.mxu0 %v1884
  %v3752 = vpop.f32.mrf.mxu0
  %v3753 = vadd.f32 %v3614, %v3752
  %v3754 = vpop.f32.mrf.mxu0
  %v3755 = vadd.f32 %v3616, %v3754
  %3756 = vmatmul.bf16.gmra.mxu0 %v1897
  %v3757 = vpop.f32.mrf.mxu0
  %v3758 = vadd.f32 %v3619, %v3757
  %v3759 = vpop.f32.mrf.mxu0
  %v3760 = vadd.f32 %v3621, %v3759
  %3761 = vmatmul.bf16.gmra.mxu0 %v1910
  %v3762 = vpop.f32.mrf.mxu0
  %v3763 = vadd.f32 %v3624, %v3762
  %v3764 = vpop.f32.mrf.mxu0
  %v3765 = vadd.f32 %v3626, %v3764
  %3766 = vmatmul.bf16.gmra.mxu0 %v1923
  %v3767 = vpop.f32.mrf.mxu0
  %v3768 = vadd.f32 %v3629, %v3767
  %v3769 = vpop.f32.mrf.mxu0
  %v3770 = vadd.f32 %v3631, %v3769
  %3771 = vmatmul.bf16.gmra.mxu0 %v1936
  %v3772 = vpop.f32.mrf.mxu0
  %v3773 = vadd.f32 %v3634, %v3772
  %v3774 = vpop.f32.mrf.mxu0
  %v3775 = vadd.f32 %v3636, %v3774
  %3776 = vmatmul.bf16.gmra.mxu0 %v1949
  %v3777 = vpop.f32.mrf.mxu0
  %v3778 = vadd.f32 %v3639, %v3777
  %v3779 = vpop.f32.mrf.mxu0
  %v3780 = vadd.f32 %v3641, %v3779
  %3781 = vdwg.mxu0
  %3782 = vmatpush.bf16.msra.mxu0 %v2724
  %3783 = vmatpush.bf16.msra.mxu0 %v2723
  %3784 = vmatpush.bf16.msra.mxu0 %v2722
  %3785 = vmatpush.bf16.msra.mxu0 %v2721
  %3786 = vmatpush.bf16.msra.mxu0 %v2720
  %3787 = vmatpush.bf16.msra.mxu0 %v2719
  %3788 = vmatpush.bf16.msra.mxu0 %v2718
  %3789 = vmatpush.bf16.msra.mxu0 %v2717
  %3790 = vmatmul.bf16.gmra.mxu0 %v1625
  %v3791 = vpop.f32.mrf.mxu0
  %v3792 = vadd.f32 %v3653, %v3791
  %v3793 = vpop.f32.mrf.mxu0
  %v3794 = vadd.f32 %v3655, %v3793
  %3795 = vmatmul.bf16.gmra.mxu0 %v1638
  %v3796 = vpop.f32.mrf.mxu0
  %v3797 = vadd.f32 %v3658, %v3796
  %v3798 = vpop.f32.mrf.mxu0
  %v3799 = vadd.f32 %v3660, %v3798
  %3800 = vmatmul.bf16.gmra.mxu0 %v1651
  %v3801 = vpop.f32.mrf.mxu0
  %v3802 = vadd.f32 %v3663, %v3801
  %v3803 = vpop.f32.mrf.mxu0
  %v3804 = vadd.f32 %v3665, %v3803
  %3805 = vmatmul.bf16.gmra.mxu0 %v1664
  %v3806 = vpop.f32.mrf.mxu0
  %v3807 = vadd.f32 %v3668, %v3806
  %v3808 = vpop.f32.mrf.mxu0
  %v3809 = vadd.f32 %v3670, %v3808
  %3810 = vmatmul.bf16.gmra.mxu0 %v1677
  %v3811 = vpop.f32.mrf.mxu0
  %v3812 = vadd.f32 %v3673, %v3811
  %v3813 = vpop.f32.mrf.mxu0
  %v3814 = vadd.f32 %v3675, %v3813
  %3815 = vmatmul.bf16.gmra.mxu0 %v1690
  %v3816 = vpop.f32.mrf.mxu0
  %v3817 = vadd.f32 %v3678, %v3816
  %v3818 = vpop.f32.mrf.mxu0
  %v3819 = vadd.f32 %v3680, %v3818
  %3820 = vmatmul.bf16.gmra.mxu0 %v1703
  %v3821 = vpop.f32.mrf.mxu0
  %v3822 = vadd.f32 %v3683, %v3821
  %v3823 = vpop.f32.mrf.mxu0
  %v3824 = vadd.f32 %v3685, %v3823
  %3825 = vmatmul.bf16.gmra.mxu0 %v1716
  %v3826 = vpop.f32.mrf.mxu0
  %v3827 = vadd.f32 %v3688, %v3826
  %v3828 = vpop.f32.mrf.mxu0
  %v3829 = vadd.f32 %v3690, %v3828
  %3830 = vmatmul.bf16.gmra.mxu0 %v1729
  %v3831 = vpop.f32.mrf.mxu0
  %v3832 = vadd.f32 %v3693, %v3831
  %v3833 = vpop.f32.mrf.mxu0
  %v3834 = vadd.f32 %v3695, %v3833
  %3835 = vmatmul.bf16.gmra.mxu0 %v1742
  %v3836 = vpop.f32.mrf.mxu0
  %v3837 = vadd.f32 %v3698, %v3836
  %v3838 = vpop.f32.mrf.mxu0
  %v3839 = vadd.f32 %v3700, %v3838
  %3840 = vmatmul.bf16.gmra.mxu0 %v1755
  %v3841 = vpop.f32.mrf.mxu0
  %v3842 = vadd.f32 %v3703, %v3841
  %v3843 = vpop.f32.mrf.mxu0
  %v3844 = vadd.f32 %v3705, %v3843
  %3845 = vmatmul.bf16.gmra.mxu0 %v1768
  %v3846 = vpop.f32.mrf.mxu0
  %v3847 = vadd.f32 %v3708, %v3846
  %v3848 = vpop.f32.mrf.mxu0
  %v3849 = vadd.f32 %v3710, %v3848
  %3850 = vmatmul.bf16.gmra.mxu0 %v1781
  %v3851 = vpop.f32.mrf.mxu0
  %v3852 = vadd.f32 %v3713, %v3851
  %v3853 = vpop.f32.mrf.mxu0
  %v3854 = vadd.f32 %v3715, %v3853
  %3855 = vmatmul.bf16.gmra.mxu0 %v1794
  %v3856 = vpop.f32.mrf.mxu0
  %v3857 = vadd.f32 %v3718, %v3856
  %v3858 = vpop.f32.mrf.mxu0
  %v3859 = vadd.f32 %v3720, %v3858
  %3860 = vmatmul.bf16.gmra.mxu0 %v1807
  %v3861 = vpop.f32.mrf.mxu0
  %v3862 = vadd.f32 %v3723, %v3861
  %v3863 = vpop.f32.mrf.mxu0
  %v3864 = vadd.f32 %v3725, %v3863
  %3865 = vmatmul.bf16.gmra.mxu0 %v1820
  %v3866 = vpop.f32.mrf.mxu0
  %v3867 = vadd.f32 %v3728, %v3866
  %v3868 = vpop.f32.mrf.mxu0
  %v3869 = vadd.f32 %v3730, %v3868
  %3870 = vmatmul.bf16.gmra.mxu0 %v1833
  %v3871 = vpop.f32.mrf.mxu0
  %v3872 = vadd.f32 %v3733, %v3871
  %v3873 = vpop.f32.mrf.mxu0
  %v3874 = vadd.f32 %v3735, %v3873
  %3875 = vmatmul.bf16.gmra.mxu0 %v1846
  %v3876 = vpop.f32.mrf.mxu0
  %v3877 = vadd.f32 %v3738, %v3876
  %v3878 = vpop.f32.mrf.mxu0
  %v3879 = vadd.f32 %v3740, %v3878
  %3880 = vmatmul.bf16.gmra.mxu0 %v1859
  %v3881 = vpop.f32.mrf.mxu0
  %v3882 = vadd.f32 %v3743, %v3881
  %v3883 = vpop.f32.mrf.mxu0
  %v3884 = vadd.f32 %v3745, %v3883
  %3885 = vmatmul.bf16.gmra.mxu0 %v1872
  %v3886 = vpop.f32.mrf.mxu0
  %v3887 = vadd.f32 %v3748, %v3886
  %v3888 = vpop.f32.mrf.mxu0
  %v3889 = vadd.f32 %v3750, %v3888
  %3890 = vmatmul.bf16.gmra.mxu0 %v1885
  %v3891 = vpop.f32.mrf.mxu0
  %v3892 = vadd.f32 %v3753, %v3891
  %v3893 = vpop.f32.mrf.mxu0
  %v3894 = vadd.f32 %v3755, %v3893
  %3895 = vmatmul.bf16.gmra.mxu0 %v1898
  %v3896 = vpop.f32.mrf.mxu0
  %v3897 = vadd.f32 %v3758, %v3896
  %v3898 = vpop.f32.mrf.mxu0
  %v3899 = vadd.f32 %v3760, %v3898
  %3900 = vmatmul.bf16.gmra.mxu0 %v1911
  %v3901 = vpop.f32.mrf.mxu0
  %v3902 = vadd.f32 %v3763, %v3901
  %v3903 = vpop.f32.mrf.mxu0
  %v3904 = vadd.f32 %v3765, %v3903
  %3905 = vmatmul.bf16.gmra.mxu0 %v1924
  %v3906 = vpop.f32.mrf.mxu0
  %v3907 = vadd.f32 %v3768, %v3906
  %v3908 = vpop.f32.mrf.mxu0
  %v3909 = vadd.f32 %v3770, %v3908
  %3910 = vmatmul.bf16.gmra.mxu0 %v1937
  %v3911 = vpop.f32.mrf.mxu0
  %v3912 = vadd.f32 %v3773, %v3911
  %v3913 = vpop.f32.mrf.mxu0
  %v3914 = vadd.f32 %v3775, %v3913
  %3915 = vmatmul.bf16.gmra.mxu0 %v1950
  %v3916 = vpop.f32.mrf.mxu0
  %v3917 = vadd.f32 %v3778, %v3916
  %v3918 = vpop.f32.mrf.mxu0
  %v3919 = vadd.f32 %v3780, %v3918
  %3920 = vdwg.mxu0
  %3921 = vmatpush.bf16.msra.mxu0 %v2732
  %3922 = vmatpush.bf16.msra.mxu0 %v2731
  %3923 = vmatpush.bf16.msra.mxu0 %v2730
  %3924 = vmatpush.bf16.msra.mxu0 %v2729
  %3925 = vmatpush.bf16.msra.mxu0 %v2728
  %3926 = vmatpush.bf16.msra.mxu0 %v2727
  %3927 = vmatpush.bf16.msra.mxu0 %v2726
  %3928 = vmatpush.bf16.msra.mxu0 %v2725
  %3929 = vmatmul.bf16.gmra.mxu0 %v1626
  %v3930 = vpop.f32.mrf.mxu0
  %v3931 = vadd.f32 %v3792, %v3930
  %v3932 = vpop.f32.mrf.mxu0
  %v3933 = vadd.f32 %v3794, %v3932
  %3934 = vmatmul.bf16.gmra.mxu0 %v1639
  %v3935 = vpop.f32.mrf.mxu0
  %v3936 = vadd.f32 %v3797, %v3935
  %v3937 = vpop.f32.mrf.mxu0
  %v3938 = vadd.f32 %v3799, %v3937
  %3939 = vmatmul.bf16.gmra.mxu0 %v1652
  %v3940 = vpop.f32.mrf.mxu0
  %v3941 = vadd.f32 %v3802, %v3940
  %v3942 = vpop.f32.mrf.mxu0
  %v3943 = vadd.f32 %v3804, %v3942
  %3944 = vmatmul.bf16.gmra.mxu0 %v1665
  %v3945 = vpop.f32.mrf.mxu0
  %v3946 = vadd.f32 %v3807, %v3945
  %v3947 = vpop.f32.mrf.mxu0
  %v3948 = vadd.f32 %v3809, %v3947
  %3949 = vmatmul.bf16.gmra.mxu0 %v1678
  %v3950 = vpop.f32.mrf.mxu0
  %v3951 = vadd.f32 %v3812, %v3950
  %v3952 = vpop.f32.mrf.mxu0
  %v3953 = vadd.f32 %v3814, %v3952
  %3954 = vmatmul.bf16.gmra.mxu0 %v1691
  %v3955 = vpop.f32.mrf.mxu0
  %v3956 = vadd.f32 %v3817, %v3955
  %v3957 = vpop.f32.mrf.mxu0
  %v3958 = vadd.f32 %v3819, %v3957
  %3959 = vmatmul.bf16.gmra.mxu0 %v1704
  %v3960 = vpop.f32.mrf.mxu0
  %v3961 = vadd.f32 %v3822, %v3960
  %v3962 = vpop.f32.mrf.mxu0
  %v3963 = vadd.f32 %v3824, %v3962
  %3964 = vmatmul.bf16.gmra.mxu0 %v1717
  %v3965 = vpop.f32.mrf.mxu0
  %v3966 = vadd.f32 %v3827, %v3965
  %v3967 = vpop.f32.mrf.mxu0
  %v3968 = vadd.f32 %v3829, %v3967
  %3969 = vmatmul.bf16.gmra.mxu0 %v1730
  %v3970 = vpop.f32.mrf.mxu0
  %v3971 = vadd.f32 %v3832, %v3970
  %v3972 = vpop.f32.mrf.mxu0
  %v3973 = vadd.f32 %v3834, %v3972
  %3974 = vmatmul.bf16.gmra.mxu0 %v1743
  %v3975 = vpop.f32.mrf.mxu0
  %v3976 = vadd.f32 %v3837, %v3975
  %v3977 = vpop.f32.mrf.mxu0
  %v3978 = vadd.f32 %v3839, %v3977
  %3979 = vmatmul.bf16.gmra.mxu0 %v1756
  %v3980 = vpop.f32.mrf.mxu0
  %v3981 = vadd.f32 %v3842, %v3980
  %v3982 = vpop.f32.mrf.mxu0
  %v3983 = vadd.f32 %v3844, %v3982
  %3984 = vmatmul.bf16.gmra.mxu0 %v1769
  %v3985 = vpop.f32.mrf.mxu0
  %v3986 = vadd.f32 %v3847, %v3985
  %v3987 = vpop.f32.mrf.mxu0
  %v3988 = vadd.f32 %v3849, %v3987
  %3989 = vmatmul.bf16.gmra.mxu0 %v1782
  %v3990 = vpop.f32.mrf.mxu0
  %v3991 = vadd.f32 %v3852, %v3990
  %v3992 = vpop.f32.mrf.mxu0
  %v3993 = vadd.f32 %v3854, %v3992
  %3994 = vmatmul.bf16.gmra.mxu0 %v1795
  %v3995 = vpop.f32.mrf.mxu0
  %v3996 = vadd.f32 %v3857, %v3995
  %v3997 = vpop.f32.mrf.mxu0
  %v3998 = vadd.f32 %v3859, %v3997
  %3999 = vmatmul.bf16.gmra.mxu0 %v1808
  %v4000 = vpop.f32.mrf.mxu0
  %v4001 = vadd.f32 %v3862, %v4000
  %v4002 = vpop.f32.mrf.mxu0
  %v4003 = vadd.f32 %v3864, %v4002
  %4004 = vmatmul.bf16.gmra.mxu0 %v1821
  %v4005 = vpop.f32.mrf.mxu0
  %v4006 = vadd.f32 %v3867, %v4005
  %v4007 = vpop.f32.mrf.mxu0
  %v4008 = vadd.f32 %v3869, %v4007
  %4009 = vmatmul.bf16.gmra.mxu0 %v1834
  %v4010 = vpop.f32.mrf.mxu0
  %v4011 = vadd.f32 %v3872, %v4010
  %v4012 = vpop.f32.mrf.mxu0
  %v4013 = vadd.f32 %v3874, %v4012
  %4014 = vmatmul.bf16.gmra.mxu0 %v1847
  %v4015 = vpop.f32.mrf.mxu0
  %v4016 = vadd.f32 %v3877, %v4015
  %v4017 = vpop.f32.mrf.mxu0
  %v4018 = vadd.f32 %v3879, %v4017
  %4019 = vmatmul.bf16.gmra.mxu0 %v1860
  %v4020 = vpop.f32.mrf.mxu0
  %v4021 = vadd.f32 %v3882, %v4020
  %v4022 = vpop.f32.mrf.mxu0
  %v4023 = vadd.f32 %v3884, %v4022
  %4024 = vmatmul.bf16.gmra.mxu0 %v1873
  %v4025 = vpop.f32.mrf.mxu0
  %v4026 = vadd.f32 %v3887, %v4025
  %v4027 = vpop.f32.mrf.mxu0
  %v4028 = vadd.f32 %v3889, %v4027
  %4029 = vmatmul.bf16.gmra.mxu0 %v1886
  %v4030 = vpop.f32.mrf.mxu0
  %v4031 = vadd.f32 %v3892, %v4030
  %v4032 = vpop.f32.mrf.mxu0
  %v4033 = vadd.f32 %v3894, %v4032
  %4034 = vmatmul.bf16.gmra.mxu0 %v1899
  %v4035 = vpop.f32.mrf.mxu0
  %v4036 = vadd.f32 %v3897, %v4035
  %v4037 = vpop.f32.mrf.mxu0
  %v4038 = vadd.f32 %v3899, %v4037
  %4039 = vmatmul.bf16.gmra.mxu0 %v1912
  %v4040 = vpop.f32.mrf.mxu0
  %v4041 = vadd.f32 %v3902, %v4040
  %v4042 = vpop.f32.mrf.mxu0
  %v4043 = vadd.f32 %v3904, %v4042
  %4044 = vmatmul.bf16.gmra.mxu0 %v1925
  %v4045 = vpop.f32.mrf.mxu0
  %v4046 = vadd.f32 %v3907, %v4045
  %v4047 = vpop.f32.mrf.mxu0
  %v4048 = vadd.f32 %v3909, %v4047
  %4049 = vmatmul.bf16.gmra.mxu0 %v1938
  %v4050 = vpop.f32.mrf.mxu0
  %v4051 = vadd.f32 %v3912, %v4050
  %v4052 = vpop.f32.mrf.mxu0
  %v4053 = vadd.f32 %v3914, %v4052
  %4054 = vmatmul.bf16.gmra.mxu0 %v1951
  %v4055 = vpop.f32.mrf.mxu0
  %v4056 = vadd.f32 %v3917, %v4055
  %v4057 = vpop.f32.mrf.mxu0
  %v4058 = vadd.f32 %v3919, %v4057
  %4059 = vdwg.mxu0
  %4060 = vmatpush.bf16.msra.mxu0 %v2740
  %4061 = vmatpush.bf16.msra.mxu0 %v2739
  %4062 = vmatpush.bf16.msra.mxu0 %v2738
  %4063 = vmatpush.bf16.msra.mxu0 %v2737
  %4064 = vmatpush.bf16.msra.mxu0 %v2736
  %4065 = vmatpush.bf16.msra.mxu0 %v2735
  %4066 = vmatpush.bf16.msra.mxu0 %v2734
  %4067 = vmatpush.bf16.msra.mxu0 %v2733
  %4068 = vmatmul.bf16.gmra.mxu0 %v1627
  %v4069 = vpop.f32.mrf.mxu0
  %v4070 = vadd.f32 %v3931, %v4069
  %v4071 = vpop.f32.mrf.mxu0
  %v4072 = vadd.f32 %v3933, %v4071
  %4073 = vmatmul.bf16.gmra.mxu0 %v1640
  %v4074 = vpop.f32.mrf.mxu0
  %v4075 = vadd.f32 %v3936, %v4074
  %v4076 = vpop.f32.mrf.mxu0
  %v4077 = vadd.f32 %v3938, %v4076
  %4078 = vmatmul.bf16.gmra.mxu0 %v1653
  %v4079 = vpop.f32.mrf.mxu0
  %v4080 = vadd.f32 %v3941, %v4079
  %v4081 = vpop.f32.mrf.mxu0
  %v4082 = vadd.f32 %v3943, %v4081
  %4083 = vmatmul.bf16.gmra.mxu0 %v1666
  %v4084 = vpop.f32.mrf.mxu0
  %v4085 = vadd.f32 %v3946, %v4084
  %v4086 = vpop.f32.mrf.mxu0
  %v4087 = vadd.f32 %v3948, %v4086
  %4088 = vmatmul.bf16.gmra.mxu0 %v1679
  %v4089 = vpop.f32.mrf.mxu0
  %v4090 = vadd.f32 %v3951, %v4089
  %v4091 = vpop.f32.mrf.mxu0
  %v4092 = vadd.f32 %v3953, %v4091
  %4093 = vmatmul.bf16.gmra.mxu0 %v1692
  %v4094 = vpop.f32.mrf.mxu0
  %v4095 = vadd.f32 %v3956, %v4094
  %v4096 = vpop.f32.mrf.mxu0
  %v4097 = vadd.f32 %v3958, %v4096
  %4098 = vmatmul.bf16.gmra.mxu0 %v1705
  %v4099 = vpop.f32.mrf.mxu0
  %v4100 = vadd.f32 %v3961, %v4099
  %v4101 = vpop.f32.mrf.mxu0
  %v4102 = vadd.f32 %v3963, %v4101
  %4103 = vmatmul.bf16.gmra.mxu0 %v1718
  %v4104 = vpop.f32.mrf.mxu0
  %v4105 = vadd.f32 %v3966, %v4104
  %v4106 = vpop.f32.mrf.mxu0
  %v4107 = vadd.f32 %v3968, %v4106
  %4108 = vmatmul.bf16.gmra.mxu0 %v1731
  %v4109 = vpop.f32.mrf.mxu0
  %v4110 = vadd.f32 %v3971, %v4109
  %v4111 = vpop.f32.mrf.mxu0
  %v4112 = vadd.f32 %v3973, %v4111
  %4113 = vmatmul.bf16.gmra.mxu0 %v1744
  %v4114 = vpop.f32.mrf.mxu0
  %v4115 = vadd.f32 %v3976, %v4114
  %v4116 = vpop.f32.mrf.mxu0
  %v4117 = vadd.f32 %v3978, %v4116
  %4118 = vmatmul.bf16.gmra.mxu0 %v1757
  %v4119 = vpop.f32.mrf.mxu0
  %v4120 = vadd.f32 %v3981, %v4119
  %v4121 = vpop.f32.mrf.mxu0
  %v4122 = vadd.f32 %v3983, %v4121
  %4123 = vmatmul.bf16.gmra.mxu0 %v1770
  %v4124 = vpop.f32.mrf.mxu0
  %v4125 = vadd.f32 %v3986, %v4124
  %v4126 = vpop.f32.mrf.mxu0
  %v4127 = vadd.f32 %v3988, %v4126
  %4128 = vmatmul.bf16.gmra.mxu0 %v1783
  %v4129 = vpop.f32.mrf.mxu0
  %v4130 = vadd.f32 %v3991, %v4129
  %v4131 = vpop.f32.mrf.mxu0
  %v4132 = vadd.f32 %v3993, %v4131
  %4133 = vmatmul.bf16.gmra.mxu0 %v1796
  %v4134 = vpop.f32.mrf.mxu0
  %v4135 = vadd.f32 %v3996, %v4134
  %v4136 = vpop.f32.mrf.mxu0
  %v4137 = vadd.f32 %v3998, %v4136
  %4138 = vmatmul.bf16.gmra.mxu0 %v1809
  %v4139 = vpop.f32.mrf.mxu0
  %v4140 = vadd.f32 %v4001, %v4139
  %v4141 = vpop.f32.mrf.mxu0
  %v4142 = vadd.f32 %v4003, %v4141
  %4143 = vmatmul.bf16.gmra.mxu0 %v1822
  %v4144 = vpop.f32.mrf.mxu0
  %v4145 = vadd.f32 %v4006, %v4144
  %v4146 = vpop.f32.mrf.mxu0
  %v4147 = vadd.f32 %v4008, %v4146
  %4148 = vmatmul.bf16.gmra.mxu0 %v1835
  %v4149 = vpop.f32.mrf.mxu0
  %v4150 = vadd.f32 %v4011, %v4149
  %v4151 = vpop.f32.mrf.mxu0
  %v4152 = vadd.f32 %v4013, %v4151
  %4153 = vmatmul.bf16.gmra.mxu0 %v1848
  %v4154 = vpop.f32.mrf.mxu0
  %v4155 = vadd.f32 %v4016, %v4154
  %v4156 = vpop.f32.mrf.mxu0
  %v4157 = vadd.f32 %v4018, %v4156
  %4158 = vmatmul.bf16.gmra.mxu0 %v1861
  %v4159 = vpop.f32.mrf.mxu0
  %v4160 = vadd.f32 %v4021, %v4159
  %v4161 = vpop.f32.mrf.mxu0
  %v4162 = vadd.f32 %v4023, %v4161
  %4163 = vmatmul.bf16.gmra.mxu0 %v1874
  %v4164 = vpop.f32.mrf.mxu0
  %v4165 = vadd.f32 %v4026, %v4164
  %v4166 = vpop.f32.mrf.mxu0
  %v4167 = vadd.f32 %v4028, %v4166
  %4168 = vmatmul.bf16.gmra.mxu0 %v1887
  %v4169 = vpop.f32.mrf.mxu0
  %v4170 = vadd.f32 %v4031, %v4169
  %v4171 = vpop.f32.mrf.mxu0
  %v4172 = vadd.f32 %v4033, %v4171
  %4173 = vmatmul.bf16.gmra.mxu0 %v1900
  %v4174 = vpop.f32.mrf.mxu0
  %v4175 = vadd.f32 %v4036, %v4174
  %v4176 = vpop.f32.mrf.mxu0
  %v4177 = vadd.f32 %v4038, %v4176
  %4178 = vmatmul.bf16.gmra.mxu0 %v1913
  %v4179 = vpop.f32.mrf.mxu0
  %v4180 = vadd.f32 %v4041, %v4179
  %v4181 = vpop.f32.mrf.mxu0
  %v4182 = vadd.f32 %v4043, %v4181
  %4183 = vmatmul.bf16.gmra.mxu0 %v1926
  %v4184 = vpop.f32.mrf.mxu0
  %v4185 = vadd.f32 %v4046, %v4184
  %v4186 = vpop.f32.mrf.mxu0
  %v4187 = vadd.f32 %v4048, %v4186
  %4188 = vmatmul.bf16.gmra.mxu0 %v1939
  %v4189 = vpop.f32.mrf.mxu0
  %v4190 = vadd.f32 %v4051, %v4189
  %v4191 = vpop.f32.mrf.mxu0
  %v4192 = vadd.f32 %v4053, %v4191
  %4193 = vmatmul.bf16.gmra.mxu0 %v1952
  %v4194 = vpop.f32.mrf.mxu0
  %v4195 = vadd.f32 %v4056, %v4194
  %v4196 = vpop.f32.mrf.mxu0
  %v4197 = vadd.f32 %v4058, %v4196
  %4198 = vdwg.mxu0
  %4199 = vmatpush.bf16.msra.mxu0 %v2748
  %4200 = vmatpush.bf16.msra.mxu0 %v2747
  %4201 = vmatpush.bf16.msra.mxu0 %v2746
  %4202 = vmatpush.bf16.msra.mxu0 %v2745
  %4203 = vmatpush.bf16.msra.mxu0 %v2744
  %4204 = vmatpush.bf16.msra.mxu0 %v2743
  %4205 = vmatpush.bf16.msra.mxu0 %v2742
  %4206 = vmatpush.bf16.msra.mxu0 %v2741
  %4207 = vmatmul.bf16.gmra.mxu0 %v1628
  %v4208 = vpop.f32.mrf.mxu0
  %v4209 = vadd.f32 %v4070, %v4208
  %v4210 = vpop.f32.mrf.mxu0
  %v4211 = vadd.f32 %v4072, %v4210
  %4212 = vmatmul.bf16.gmra.mxu0 %v1641
  %v4213 = vpop.f32.mrf.mxu0
  %v4214 = vadd.f32 %v4075, %v4213
  %v4215 = vpop.f32.mrf.mxu0
  %v4216 = vadd.f32 %v4077, %v4215
  %4217 = vmatmul.bf16.gmra.mxu0 %v1654
  %v4218 = vpop.f32.mrf.mxu0
  %v4219 = vadd.f32 %v4080, %v4218
  %v4220 = vpop.f32.mrf.mxu0
  %v4221 = vadd.f32 %v4082, %v4220
  %4222 = vmatmul.bf16.gmra.mxu0 %v1667
  %v4223 = vpop.f32.mrf.mxu0
  %v4224 = vadd.f32 %v4085, %v4223
  %v4225 = vpop.f32.mrf.mxu0
  %v4226 = vadd.f32 %v4087, %v4225
  %4227 = vmatmul.bf16.gmra.mxu0 %v1680
  %v4228 = vpop.f32.mrf.mxu0
  %v4229 = vadd.f32 %v4090, %v4228
  %v4230 = vpop.f32.mrf.mxu0
  %v4231 = vadd.f32 %v4092, %v4230
  %4232 = vmatmul.bf16.gmra.mxu0 %v1693
  %v4233 = vpop.f32.mrf.mxu0
  %v4234 = vadd.f32 %v4095, %v4233
  %v4235 = vpop.f32.mrf.mxu0
  %v4236 = vadd.f32 %v4097, %v4235
  %4237 = vmatmul.bf16.gmra.mxu0 %v1706
  %v4238 = vpop.f32.mrf.mxu0
  %v4239 = vadd.f32 %v4100, %v4238
  %v4240 = vpop.f32.mrf.mxu0
  %v4241 = vadd.f32 %v4102, %v4240
  %4242 = vmatmul.bf16.gmra.mxu0 %v1719
  %v4243 = vpop.f32.mrf.mxu0
  %v4244 = vadd.f32 %v4105, %v4243
  %v4245 = vpop.f32.mrf.mxu0
  %v4246 = vadd.f32 %v4107, %v4245
  %4247 = vmatmul.bf16.gmra.mxu0 %v1732
  %v4248 = vpop.f32.mrf.mxu0
  %v4249 = vadd.f32 %v4110, %v4248
  %v4250 = vpop.f32.mrf.mxu0
  %v4251 = vadd.f32 %v4112, %v4250
  %4252 = vmatmul.bf16.gmra.mxu0 %v1745
  %v4253 = vpop.f32.mrf.mxu0
  %v4254 = vadd.f32 %v4115, %v4253
  %v4255 = vpop.f32.mrf.mxu0
  %v4256 = vadd.f32 %v4117, %v4255
  %4257 = vmatmul.bf16.gmra.mxu0 %v1758
  %v4258 = vpop.f32.mrf.mxu0
  %v4259 = vadd.f32 %v4120, %v4258
  %v4260 = vpop.f32.mrf.mxu0
  %v4261 = vadd.f32 %v4122, %v4260
  %4262 = vmatmul.bf16.gmra.mxu0 %v1771
  %v4263 = vpop.f32.mrf.mxu0
  %v4264 = vadd.f32 %v4125, %v4263
  %v4265 = vpop.f32.mrf.mxu0
  %v4266 = vadd.f32 %v4127, %v4265
  %4267 = vmatmul.bf16.gmra.mxu0 %v1784
  %v4268 = vpop.f32.mrf.mxu0
  %v4269 = vadd.f32 %v4130, %v4268
  %v4270 = vpop.f32.mrf.mxu0
  %v4271 = vadd.f32 %v4132, %v4270
  %4272 = vmatmul.bf16.gmra.mxu0 %v1797
  %v4273 = vpop.f32.mrf.mxu0
  %v4274 = vadd.f32 %v4135, %v4273
  %v4275 = vpop.f32.mrf.mxu0
  %v4276 = vadd.f32 %v4137, %v4275
  %4277 = vmatmul.bf16.gmra.mxu0 %v1810
  %v4278 = vpop.f32.mrf.mxu0
  %v4279 = vadd.f32 %v4140, %v4278
  %v4280 = vpop.f32.mrf.mxu0
  %v4281 = vadd.f32 %v4142, %v4280
  %4282 = vmatmul.bf16.gmra.mxu0 %v1823
  %v4283 = vpop.f32.mrf.mxu0
  %v4284 = vadd.f32 %v4145, %v4283
  %v4285 = vpop.f32.mrf.mxu0
  %v4286 = vadd.f32 %v4147, %v4285
  %4287 = vmatmul.bf16.gmra.mxu0 %v1836
  %v4288 = vpop.f32.mrf.mxu0
  %v4289 = vadd.f32 %v4150, %v4288
  %v4290 = vpop.f32.mrf.mxu0
  %v4291 = vadd.f32 %v4152, %v4290
  %4292 = vmatmul.bf16.gmra.mxu0 %v1849
  %v4293 = vpop.f32.mrf.mxu0
  %v4294 = vadd.f32 %v4155, %v4293
  %v4295 = vpop.f32.mrf.mxu0
  %v4296 = vadd.f32 %v4157, %v4295
  %4297 = vmatmul.bf16.gmra.mxu0 %v1862
  %v4298 = vpop.f32.mrf.mxu0
  %v4299 = vadd.f32 %v4160, %v4298
  %v4300 = vpop.f32.mrf.mxu0
  %v4301 = vadd.f32 %v4162, %v4300
  %4302 = vmatmul.bf16.gmra.mxu0 %v1875
  %v4303 = vpop.f32.mrf.mxu0
  %v4304 = vadd.f32 %v4165, %v4303
  %v4305 = vpop.f32.mrf.mxu0
  %v4306 = vadd.f32 %v4167, %v4305
  %4307 = vmatmul.bf16.gmra.mxu0 %v1888
  %v4308 = vpop.f32.mrf.mxu0
  %v4309 = vadd.f32 %v4170, %v4308
  %v4310 = vpop.f32.mrf.mxu0
  %v4311 = vadd.f32 %v4172, %v4310
  %4312 = vmatmul.bf16.gmra.mxu0 %v1901
  %v4313 = vpop.f32.mrf.mxu0
  %v4314 = vadd.f32 %v4175, %v4313
  %v4315 = vpop.f32.mrf.mxu0
  %v4316 = vadd.f32 %v4177, %v4315
  %4317 = vmatmul.bf16.gmra.mxu0 %v1914
  %v4318 = vpop.f32.mrf.mxu0
  %v4319 = vadd.f32 %v4180, %v4318
  %v4320 = vpop.f32.mrf.mxu0
  %v4321 = vadd.f32 %v4182, %v4320
  %4322 = vmatmul.bf16.gmra.mxu0 %v1927
  %v4323 = vpop.f32.mrf.mxu0
  %v4324 = vadd.f32 %v4185, %v4323
  %v4325 = vpop.f32.mrf.mxu0
  %v4326 = vadd.f32 %v4187, %v4325
  %4327 = vmatmul.bf16.gmra.mxu0 %v1940
  %v4328 = vpop.f32.mrf.mxu0
  %v4329 = vadd.f32 %v4190, %v4328
  %v4330 = vpop.f32.mrf.mxu0
  %v4331 = vadd.f32 %v4192, %v4330
  %4332 = vmatmul.bf16.gmra.mxu0 %v1953
  %v4333 = vpop.f32.mrf.mxu0
  %v4334 = vadd.f32 %v4195, %v4333
  %v4335 = vpop.f32.mrf.mxu0
  %v4336 = vadd.f32 %v4197, %v4335
  %4337 = vdwg.mxu0
  %4338 = vmatpush.bf16.msra.mxu0 %v2756
  %4339 = vmatpush.bf16.msra.mxu0 %v2755
  %4340 = vmatpush.bf16.msra.mxu0 %v2754
  %4341 = vmatpush.bf16.msra.mxu0 %v2753
  %4342 = vmatpush.bf16.msra.mxu0 %v2752
  %4343 = vmatpush.bf16.msra.mxu0 %v2751
  %4344 = vmatpush.bf16.msra.mxu0 %v2750
  %4345 = vmatpush.bf16.msra.mxu0 %v2749
  %4346 = vmatmul.bf16.gmra.mxu0 %v1629
  %v4347 = vpop.f32.mrf.mxu0
  %v4348 = vadd.f32 %v4209, %v4347
  %v4349 = vpop.f32.mrf.mxu0
  %v4350 = vadd.f32 %v4211, %v4349
  %4351 = vmatmul.bf16.gmra.mxu0 %v1642
  %v4352 = vpop.f32.mrf.mxu0
  %v4353 = vadd.f32 %v4214, %v4352
  %v4354 = vpop.f32.mrf.mxu0
  %v4355 = vadd.f32 %v4216, %v4354
  %4356 = vmatmul.bf16.gmra.mxu0 %v1655
  %v4357 = vpop.f32.mrf.mxu0
  %v4358 = vadd.f32 %v4219, %v4357
  %v4359 = vpop.f32.mrf.mxu0
  %v4360 = vadd.f32 %v4221, %v4359
  %4361 = vmatmul.bf16.gmra.mxu0 %v1668
  %v4362 = vpop.f32.mrf.mxu0
  %v4363 = vadd.f32 %v4224, %v4362
  %v4364 = vpop.f32.mrf.mxu0
  %v4365 = vadd.f32 %v4226, %v4364
  %4366 = vmatmul.bf16.gmra.mxu0 %v1681
  %v4367 = vpop.f32.mrf.mxu0
  %v4368 = vadd.f32 %v4229, %v4367
  %v4369 = vpop.f32.mrf.mxu0
  %v4370 = vadd.f32 %v4231, %v4369
  %4371 = vmatmul.bf16.gmra.mxu0 %v1694
  %v4372 = vpop.f32.mrf.mxu0
  %v4373 = vadd.f32 %v4234, %v4372
  %v4374 = vpop.f32.mrf.mxu0
  %v4375 = vadd.f32 %v4236, %v4374
  %4376 = vmatmul.bf16.gmra.mxu0 %v1707
  %v4377 = vpop.f32.mrf.mxu0
  %v4378 = vadd.f32 %v4239, %v4377
  %v4379 = vpop.f32.mrf.mxu0
  %v4380 = vadd.f32 %v4241, %v4379
  %4381 = vmatmul.bf16.gmra.mxu0 %v1720
  %v4382 = vpop.f32.mrf.mxu0
  %v4383 = vadd.f32 %v4244, %v4382
  %v4384 = vpop.f32.mrf.mxu0
  %v4385 = vadd.f32 %v4246, %v4384
  %4386 = vmatmul.bf16.gmra.mxu0 %v1733
  %v4387 = vpop.f32.mrf.mxu0
  %v4388 = vadd.f32 %v4249, %v4387
  %v4389 = vpop.f32.mrf.mxu0
  %v4390 = vadd.f32 %v4251, %v4389
  %4391 = vmatmul.bf16.gmra.mxu0 %v1746
  %v4392 = vpop.f32.mrf.mxu0
  %v4393 = vadd.f32 %v4254, %v4392
  %v4394 = vpop.f32.mrf.mxu0
  %v4395 = vadd.f32 %v4256, %v4394
  %4396 = vmatmul.bf16.gmra.mxu0 %v1759
  %v4397 = vpop.f32.mrf.mxu0
  %v4398 = vadd.f32 %v4259, %v4397
  %v4399 = vpop.f32.mrf.mxu0
  %v4400 = vadd.f32 %v4261, %v4399
  %4401 = vmatmul.bf16.gmra.mxu0 %v1772
  %v4402 = vpop.f32.mrf.mxu0
  %v4403 = vadd.f32 %v4264, %v4402
  %v4404 = vpop.f32.mrf.mxu0
  %v4405 = vadd.f32 %v4266, %v4404
  %4406 = vmatmul.bf16.gmra.mxu0 %v1785
  %v4407 = vpop.f32.mrf.mxu0
  %v4408 = vadd.f32 %v4269, %v4407
  %v4409 = vpop.f32.mrf.mxu0
  %v4410 = vadd.f32 %v4271, %v4409
  %4411 = vmatmul.bf16.gmra.mxu0 %v1798
  %v4412 = vpop.f32.mrf.mxu0
  %v4413 = vadd.f32 %v4274, %v4412
  %v4414 = vpop.f32.mrf.mxu0
  %v4415 = vadd.f32 %v4276, %v4414
  %4416 = vmatmul.bf16.gmra.mxu0 %v1811
  %v4417 = vpop.f32.mrf.mxu0
  %v4418 = vadd.f32 %v4279, %v4417
  %v4419 = vpop.f32.mrf.mxu0
  %v4420 = vadd.f32 %v4281, %v4419
  %4421 = vmatmul.bf16.gmra.mxu0 %v1824
  %v4422 = vpop.f32.mrf.mxu0
  %v4423 = vadd.f32 %v4284, %v4422
  %v4424 = vpop.f32.mrf.mxu0
  %v4425 = vadd.f32 %v4286, %v4424
  %4426 = vmatmul.bf16.gmra.mxu0 %v1837
  %v4427 = vpop.f32.mrf.mxu0
  %v4428 = vadd.f32 %v4289, %v4427
  %v4429 = vpop.f32.mrf.mxu0
  %v4430 = vadd.f32 %v4291, %v4429
  %4431 = vmatmul.bf16.gmra.mxu0 %v1850
  %v4432 = vpop.f32.mrf.mxu0
  %v4433 = vadd.f32 %v4294, %v4432
  %v4434 = vpop.f32.mrf.mxu0
  %v4435 = vadd.f32 %v4296, %v4434
  %4436 = vmatmul.bf16.gmra.mxu0 %v1863
  %v4437 = vpop.f32.mrf.mxu0
  %v4438 = vadd.f32 %v4299, %v4437
  %v4439 = vpop.f32.mrf.mxu0
  %v4440 = vadd.f32 %v4301, %v4439
  %4441 = vmatmul.bf16.gmra.mxu0 %v1876
  %v4442 = vpop.f32.mrf.mxu0
  %v4443 = vadd.f32 %v4304, %v4442
  %v4444 = vpop.f32.mrf.mxu0
  %v4445 = vadd.f32 %v4306, %v4444
  %4446 = vmatmul.bf16.gmra.mxu0 %v1889
  %v4447 = vpop.f32.mrf.mxu0
  %v4448 = vadd.f32 %v4309, %v4447
  %v4449 = vpop.f32.mrf.mxu0
  %v4450 = vadd.f32 %v4311, %v4449
  %4451 = vmatmul.bf16.gmra.mxu0 %v1902
  %v4452 = vpop.f32.mrf.mxu0
  %v4453 = vadd.f32 %v4314, %v4452
  %v4454 = vpop.f32.mrf.mxu0
  %v4455 = vadd.f32 %v4316, %v4454
  %4456 = vmatmul.bf16.gmra.mxu0 %v1915
  %v4457 = vpop.f32.mrf.mxu0
  %v4458 = vadd.f32 %v4319, %v4457
  %v4459 = vpop.f32.mrf.mxu0
  %v4460 = vadd.f32 %v4321, %v4459
  %4461 = vmatmul.bf16.gmra.mxu0 %v1928
  %v4462 = vpop.f32.mrf.mxu0
  %v4463 = vadd.f32 %v4324, %v4462
  %v4464 = vpop.f32.mrf.mxu0
  %v4465 = vadd.f32 %v4326, %v4464
  %4466 = vmatmul.bf16.gmra.mxu0 %v1941
  %v4467 = vpop.f32.mrf.mxu0
  %v4468 = vadd.f32 %v4329, %v4467
  %v4469 = vpop.f32.mrf.mxu0
  %v4470 = vadd.f32 %v4331, %v4469
  %4471 = vmatmul.bf16.gmra.mxu0 %v1954
  %v4472 = vpop.f32.mrf.mxu0
  %v4473 = vadd.f32 %v4334, %v4472
  %v4474 = vpop.f32.mrf.mxu0
  %v4475 = vadd.f32 %v4336, %v4474
  %4476 = vdwg.mxu0
  %4477 = vmatpush.bf16.msra.mxu0 %v2764
  %4478 = vmatpush.bf16.msra.mxu0 %v2763
  %4479 = vmatpush.bf16.msra.mxu0 %v2762
  %4480 = vmatpush.bf16.msra.mxu0 %v2761
  %4481 = vmatpush.bf16.msra.mxu0 %v2760
  %4482 = vmatpush.bf16.msra.mxu0 %v2759
  %4483 = vmatpush.bf16.msra.mxu0 %v2758
  %4484 = vmatpush.bf16.msra.mxu0 %v2757
  %4485 = vmatmul.bf16.gmra.mxu0 %v1630
  %v4486 = vpop.f32.mrf.mxu0
  %v4487 = vadd.f32 %v4348, %v4486
  %v4488 = vpop.f32.mrf.mxu0
  %v4489 = vadd.f32 %v4350, %v4488
  %4490 = vmatmul.bf16.gmra.mxu0 %v1643
  %v4491 = vpop.f32.mrf.mxu0
  %v4492 = vadd.f32 %v4353, %v4491
  %v4493 = vpop.f32.mrf.mxu0
  %v4494 = vadd.f32 %v4355, %v4493
  %4495 = vmatmul.bf16.gmra.mxu0 %v1656
  %v4496 = vpop.f32.mrf.mxu0
  %v4497 = vadd.f32 %v4358, %v4496
  %v4498 = vpop.f32.mrf.mxu0
  %v4499 = vadd.f32 %v4360, %v4498
  %4500 = vmatmul.bf16.gmra.mxu0 %v1669
  %v4501 = vpop.f32.mrf.mxu0
  %v4502 = vadd.f32 %v4363, %v4501
  %v4503 = vpop.f32.mrf.mxu0
  %v4504 = vadd.f32 %v4365, %v4503
  %4505 = vmatmul.bf16.gmra.mxu0 %v1682
  %v4506 = vpop.f32.mrf.mxu0
  %v4507 = vadd.f32 %v4368, %v4506
  %v4508 = vpop.f32.mrf.mxu0
  %v4509 = vadd.f32 %v4370, %v4508
  %4510 = vmatmul.bf16.gmra.mxu0 %v1695
  %v4511 = vpop.f32.mrf.mxu0
  %v4512 = vadd.f32 %v4373, %v4511
  %v4513 = vpop.f32.mrf.mxu0
  %v4514 = vadd.f32 %v4375, %v4513
  %4515 = vmatmul.bf16.gmra.mxu0 %v1708
  %v4516 = vpop.f32.mrf.mxu0
  %v4517 = vadd.f32 %v4378, %v4516
  %v4518 = vpop.f32.mrf.mxu0
  %v4519 = vadd.f32 %v4380, %v4518
  %4520 = vmatmul.bf16.gmra.mxu0 %v1721
  %v4521 = vpop.f32.mrf.mxu0
  %v4522 = vadd.f32 %v4383, %v4521
  %v4523 = vpop.f32.mrf.mxu0
  %v4524 = vadd.f32 %v4385, %v4523
  %4525 = vmatmul.bf16.gmra.mxu0 %v1734
  %v4526 = vpop.f32.mrf.mxu0
  %v4527 = vadd.f32 %v4388, %v4526
  %v4528 = vpop.f32.mrf.mxu0
  %v4529 = vadd.f32 %v4390, %v4528
  %4530 = vmatmul.bf16.gmra.mxu0 %v1747
  %v4531 = vpop.f32.mrf.mxu0
  %v4532 = vadd.f32 %v4393, %v4531
  %v4533 = vpop.f32.mrf.mxu0
  %v4534 = vadd.f32 %v4395, %v4533
  %4535 = vmatmul.bf16.gmra.mxu0 %v1760
  %v4536 = vpop.f32.mrf.mxu0
  %v4537 = vadd.f32 %v4398, %v4536
  %v4538 = vpop.f32.mrf.mxu0
  %v4539 = vadd.f32 %v4400, %v4538
  %4540 = vmatmul.bf16.gmra.mxu0 %v1773
  %v4541 = vpop.f32.mrf.mxu0
  %v4542 = vadd.f32 %v4403, %v4541
  %v4543 = vpop.f32.mrf.mxu0
  %v4544 = vadd.f32 %v4405, %v4543
  %4545 = vmatmul.bf16.gmra.mxu0 %v1786
  %v4546 = vpop.f32.mrf.mxu0
  %v4547 = vadd.f32 %v4408, %v4546
  %v4548 = vpop.f32.mrf.mxu0
  %v4549 = vadd.f32 %v4410, %v4548
  %4550 = vmatmul.bf16.gmra.mxu0 %v1799
  %v4551 = vpop.f32.mrf.mxu0
  %v4552 = vadd.f32 %v4413, %v4551
  %v4553 = vpop.f32.mrf.mxu0
  %v4554 = vadd.f32 %v4415, %v4553
  %4555 = vmatmul.bf16.gmra.mxu0 %v1812
  %v4556 = vpop.f32.mrf.mxu0
  %v4557 = vadd.f32 %v4418, %v4556
  %v4558 = vpop.f32.mrf.mxu0
  %v4559 = vadd.f32 %v4420, %v4558
  %4560 = vmatmul.bf16.gmra.mxu0 %v1825
  %v4561 = vpop.f32.mrf.mxu0
  %v4562 = vadd.f32 %v4423, %v4561
  %v4563 = vpop.f32.mrf.mxu0
  %v4564 = vadd.f32 %v4425, %v4563
  %4565 = vmatmul.bf16.gmra.mxu0 %v1838
  %v4566 = vpop.f32.mrf.mxu0
  %v4567 = vadd.f32 %v4428, %v4566
  %v4568 = vpop.f32.mrf.mxu0
  %v4569 = vadd.f32 %v4430, %v4568
  %4570 = vmatmul.bf16.gmra.mxu0 %v1851
  %v4571 = vpop.f32.mrf.mxu0
  %v4572 = vadd.f32 %v4433, %v4571
  %v4573 = vpop.f32.mrf.mxu0
  %v4574 = vadd.f32 %v4435, %v4573
  %4575 = vmatmul.bf16.gmra.mxu0 %v1864
  %v4576 = vpop.f32.mrf.mxu0
  %v4577 = vadd.f32 %v4438, %v4576
  %v4578 = vpop.f32.mrf.mxu0
  %v4579 = vadd.f32 %v4440, %v4578
  %4580 = vmatmul.bf16.gmra.mxu0 %v1877
  %v4581 = vpop.f32.mrf.mxu0
  %v4582 = vadd.f32 %v4443, %v4581
  %v4583 = vpop.f32.mrf.mxu0
  %v4584 = vadd.f32 %v4445, %v4583
  %4585 = vmatmul.bf16.gmra.mxu0 %v1890
  %v4586 = vpop.f32.mrf.mxu0
  %v4587 = vadd.f32 %v4448, %v4586
  %v4588 = vpop.f32.mrf.mxu0
  %v4589 = vadd.f32 %v4450, %v4588
  %4590 = vmatmul.bf16.gmra.mxu0 %v1903
  %v4591 = vpop.f32.mrf.mxu0
  %v4592 = vadd.f32 %v4453, %v4591
  %v4593 = vpop.f32.mrf.mxu0
  %v4594 = vadd.f32 %v4455, %v4593
  %4595 = vmatmul.bf16.gmra.mxu0 %v1916
  %v4596 = vpop.f32.mrf.mxu0
  %v4597 = vadd.f32 %v4458, %v4596
  %v4598 = vpop.f32.mrf.mxu0
  %v4599 = vadd.f32 %v4460, %v4598
  %4600 = vmatmul.bf16.gmra.mxu0 %v1929
  %v4601 = vpop.f32.mrf.mxu0
  %v4602 = vadd.f32 %v4463, %v4601
  %v4603 = vpop.f32.mrf.mxu0
  %v4604 = vadd.f32 %v4465, %v4603
  %4605 = vmatmul.bf16.gmra.mxu0 %v1942
  %v4606 = vpop.f32.mrf.mxu0
  %v4607 = vadd.f32 %v4468, %v4606
  %v4608 = vpop.f32.mrf.mxu0
  %v4609 = vadd.f32 %v4470, %v4608
  %4610 = vmatmul.bf16.gmra.mxu0 %v1955
  %v4611 = vpop.f32.mrf.mxu0
  %v4612 = vadd.f32 %v4473, %v4611
  %v4613 = vpop.f32.mrf.mxu0
  %v4614 = vadd.f32 %v4475, %v4613
  %4615 = vdwg.mxu0
  %4616 = vmatpush.bf16.msra.mxu0 0
  %4617 = vmatpush.bf16.msra.mxu0 0
  %4618 = vmatpush.bf16.msra.mxu0 0
  %4619 = vmatpush.bf16.msra.mxu0 0
  %4620 = vmatpush.bf16.msra.mxu0 %v2768
  %4621 = vmatpush.bf16.msra.mxu0 %v2767
  %4622 = vmatpush.bf16.msra.mxu0 %v2766
  %4623 = vmatpush.bf16.msra.mxu0 %v2765
  %4624 = vmatmul.bf16.gmra.mxu0 %v2871
  %v4625 = vpop.f32.mrf.mxu0
  %v4626 = vadd.f32 %v4487, %v4625
  %v4627 = vpop.f32.mrf.mxu0
  %v4628 = vadd.f32 %v4489, %v4627
  %4629 = vmatmul.bf16.gmra.mxu0 %v2874
  %v4630 = vpop.f32.mrf.mxu0
  %v4631 = vadd.f32 %v4492, %v4630
  %v4632 = vpop.f32.mrf.mxu0
  %v4633 = vadd.f32 %v4494, %v4632
  %4634 = vmatmul.bf16.gmra.mxu0 %v2877
  %v4635 = vpop.f32.mrf.mxu0
  %v4636 = vadd.f32 %v4497, %v4635
  %v4637 = vpop.f32.mrf.mxu0
  %v4638 = vadd.f32 %v4499, %v4637
  %4639 = vmatmul.bf16.gmra.mxu0 %v2880
  %v4640 = vpop.f32.mrf.mxu0
  %v4641 = vadd.f32 %v4502, %v4640
  %v4642 = vpop.f32.mrf.mxu0
  %v4643 = vadd.f32 %v4504, %v4642
  %4644 = vmatmul.bf16.gmra.mxu0 %v2883
  %v4645 = vpop.f32.mrf.mxu0
  %v4646 = vadd.f32 %v4507, %v4645
  %v4647 = vpop.f32.mrf.mxu0
  %v4648 = vadd.f32 %v4509, %v4647
  %4649 = vmatmul.bf16.gmra.mxu0 %v2886
  %v4650 = vpop.f32.mrf.mxu0
  %v4651 = vadd.f32 %v4512, %v4650
  %v4652 = vpop.f32.mrf.mxu0
  %v4653 = vadd.f32 %v4514, %v4652
  %4654 = vmatmul.bf16.gmra.mxu0 %v2889
  %v4655 = vpop.f32.mrf.mxu0
  %v4656 = vadd.f32 %v4517, %v4655
  %v4657 = vpop.f32.mrf.mxu0
  %v4658 = vadd.f32 %v4519, %v4657
  %4659 = vmatmul.bf16.gmra.mxu0 %v2892
  %v4660 = vpop.f32.mrf.mxu0
  %v4661 = vadd.f32 %v4522, %v4660
  %v4662 = vpop.f32.mrf.mxu0
  %v4663 = vadd.f32 %v4524, %v4662
  %4664 = vmatmul.bf16.gmra.mxu0 %v2895
  %v4665 = vpop.f32.mrf.mxu0
  %v4666 = vadd.f32 %v4527, %v4665
  %v4667 = vpop.f32.mrf.mxu0
  %v4668 = vadd.f32 %v4529, %v4667
  %4669 = vmatmul.bf16.gmra.mxu0 %v2898
  %v4670 = vpop.f32.mrf.mxu0
  %v4671 = vadd.f32 %v4532, %v4670
  %v4672 = vpop.f32.mrf.mxu0
  %v4673 = vadd.f32 %v4534, %v4672
  %4674 = vmatmul.bf16.gmra.mxu0 %v2901
  %v4675 = vpop.f32.mrf.mxu0
  %v4676 = vadd.f32 %v4537, %v4675
  %v4677 = vpop.f32.mrf.mxu0
  %v4678 = vadd.f32 %v4539, %v4677
  %4679 = vmatmul.bf16.gmra.mxu0 %v2904
  %v4680 = vpop.f32.mrf.mxu0
  %v4681 = vadd.f32 %v4542, %v4680
  %v4682 = vpop.f32.mrf.mxu0
  %v4683 = vadd.f32 %v4544, %v4682
  %4684 = vmatmul.bf16.gmra.mxu0 %v2907
  %v4685 = vpop.f32.mrf.mxu0
  %v4686 = vadd.f32 %v4547, %v4685
  %v4687 = vpop.f32.mrf.mxu0
  %v4688 = vadd.f32 %v4549, %v4687
  %4689 = vmatmul.bf16.gmra.mxu0 %v2910
  %v4690 = vpop.f32.mrf.mxu0
  %v4691 = vadd.f32 %v4552, %v4690
  %v4692 = vpop.f32.mrf.mxu0
  %v4693 = vadd.f32 %v4554, %v4692
  %4694 = vmatmul.bf16.gmra.mxu0 %v2913
  %v4695 = vpop.f32.mrf.mxu0
  %v4696 = vadd.f32 %v4557, %v4695
  %v4697 = vpop.f32.mrf.mxu0
  %v4698 = vadd.f32 %v4559, %v4697
  %4699 = vmatmul.bf16.gmra.mxu0 %v2916
  %v4700 = vpop.f32.mrf.mxu0
  %v4701 = vadd.f32 %v4562, %v4700
  %v4702 = vpop.f32.mrf.mxu0
  %v4703 = vadd.f32 %v4564, %v4702
  %4704 = vmatmul.bf16.gmra.mxu0 %v2919
  %v4705 = vpop.f32.mrf.mxu0
  %v4706 = vadd.f32 %v4567, %v4705
  %v4707 = vpop.f32.mrf.mxu0
  %v4708 = vadd.f32 %v4569, %v4707
  %4709 = vmatmul.bf16.gmra.mxu0 %v2922
  %v4710 = vpop.f32.mrf.mxu0
  %v4711 = vadd.f32 %v4572, %v4710
  %v4712 = vpop.f32.mrf.mxu0
  %v4713 = vadd.f32 %v4574, %v4712
  %4714 = vmatmul.bf16.gmra.mxu0 %v2925
  %v4715 = vpop.f32.mrf.mxu0
  %v4716 = vadd.f32 %v4577, %v4715
  %v4717 = vpop.f32.mrf.mxu0
  %v4718 = vadd.f32 %v4579, %v4717
  %4719 = vmatmul.bf16.gmra.mxu0 %v2928
  %v4720 = vpop.f32.mrf.mxu0
  %v4721 = vadd.f32 %v4582, %v4720
  %v4722 = vpop.f32.mrf.mxu0
  %v4723 = vadd.f32 %v4584, %v4722
  %4724 = vmatmul.bf16.gmra.mxu0 %v2931
  %v4725 = vpop.f32.mrf.mxu0
  %v4726 = vadd.f32 %v4587, %v4725
  %v4727 = vpop.f32.mrf.mxu0
  %v4728 = vadd.f32 %v4589, %v4727
  %4729 = vmatmul.bf16.gmra.mxu0 %v2934
  %v4730 = vpop.f32.mrf.mxu0
  %v4731 = vadd.f32 %v4592, %v4730
  %v4732 = vpop.f32.mrf.mxu0
  %v4733 = vadd.f32 %v4594, %v4732
  %4734 = vmatmul.bf16.gmra.mxu0 %v2937
  %v4735 = vpop.f32.mrf.mxu0
  %v4736 = vadd.f32 %v4597, %v4735
  %v4737 = vpop.f32.mrf.mxu0
  %v4738 = vadd.f32 %v4599, %v4737
  %4739 = vmatmul.bf16.gmra.mxu0 %v2940
  %v4740 = vpop.f32.mrf.mxu0
  %v4741 = vadd.f32 %v4602, %v4740
  %v4742 = vpop.f32.mrf.mxu0
  %v4743 = vadd.f32 %v4604, %v4742
  %4744 = vmatmul.bf16.gmra.mxu0 %v2943
  %v4745 = vpop.f32.mrf.mxu0
  %v4746 = vadd.f32 %v4607, %v4745
  %v4747 = vpop.f32.mrf.mxu0
  %v4748 = vadd.f32 %v4609, %v4747
  %4749 = vmatmul.bf16.gmra.mxu0 %v2946
  %v4750 = vpop.f32.mrf.mxu0
  %v4751 = vadd.f32 %v4612, %v4750
  %v4752 = vpop.f32.mrf.mxu0
  %v4753 = vadd.f32 %v4614, %v4752
  %4754 = vdwg.mxu0
  %v4755 = vmax.f32 %v4626, %v4658
  %v4756 = vmax.f32 %v4628, %v4661
  %v4757 = vmax.f32 %v4631, %v4663
  %v4758 = vmax.f32 %v4633, %v4666
  %v4759 = vmax.f32 %v4636, %v4668
  %v4760 = vmax.f32 %v4638, %v4671
  %v4761 = vmax.f32 %v4641, %v4673
  %v4762 = vmax.f32 %v4643, %v4676
  %v4763 = vmax.f32 %v4646, %v4678
  %v4764 = vmax.f32 %v4648, %v4681
  %v4765 = vmax.f32 %v4651, %v4683
  %v4766 = vmax.f32 %v4653, %v4686
  %v4767 = vmax.f32 %v4656, %v4688
  %v4768 = vmax.f32 %v4691, %v4723
  %v4769 = vmax.f32 %v4693, %v4726
  %v4770 = vmax.f32 %v4696, %v4728
  %v4771 = vmax.f32 %v4698, %v4731
  %v4772 = vmax.f32 %v4701, %v4733
  %v4773 = vmax.f32 %v4703, %v4736
  %v4774 = vmax.f32 %v4706, %v4738
  %v4775 = vmax.f32 %v4708, %v4741
  %v4776 = vmax.f32 %v4711, %v4743
  %v4777 = vmax.f32 %v4713, %v4746
  %v4778 = vmax.f32 %v4716, %v4748
  %v4779 = vmax.f32 %v4718, %v4751
  %v4780 = vmax.f32 %v4721, %v4753
  %v4781 = vmax.f32 %v4755, %v4768
  %v4782 = vmax.f32 %v4756, %v4769
  %v4783 = vmax.f32 %v4757, %v4770
  %v4784 = vmax.f32 %v4758, %v4771
  %v4785 = vmax.f32 %v4759, %v4772
  %v4786 = vmax.f32 %v4760, %v4773
  %v4787 = vmax.f32 %v4761, %v4774
  %v4788 = vmax.f32 %v4762, %v4775
  %v4789 = vmax.f32 %v4763, %v4776
  %v4790 = vmax.f32 %v4764, %v4777
  %v4791 = vmax.f32 %v4765, %v4778
  %v4792 = vmax.f32 %v4766, %v4779
  %v4793 = vmax.f32 %v4767, %v4780
  %v4794 = vld [vmem:[%s2] sm:$0x1]
  %v4796 = vperm.slane %v4794, 0
  %v4798 = vadd.f32 %v4781, %v4796
  %v4799 = vadd.f32 %v4782, %v4796
  %v4800 = vadd.f32 %v4783, %v4796
  %v4801 = vadd.f32 %v4784, %v4796
  %v4802 = vadd.f32 %v4785, %v4796
  %v4803 = vadd.f32 %v4786, %v4796
  %v4804 = vadd.f32 %v4787, %v4796
  %v4805 = vadd.f32 %v4788, %v4796
  %v4806 = vadd.f32 %v4789, %v4796
  %v4807 = vadd.f32 %v4790, %v4796
  %v4808 = vadd.f32 %v4791, %v4796
  %v4809 = vadd.f32 %v4792, %v4796
  %v4810 = vadd.f32 %v4793, %v4796
  %v4811 = vmax.f32 %v4798, 0.0
  %v4812 = vmax.f32 %v4799, 0.0
  %v4813 = vmax.f32 %v4800, 0.0
  %v4814 = vmax.f32 %v4801, 0.0
  %v4815 = vmax.f32 %v4802, 0.0
  %v4816 = vmax.f32 %v4803, 0.0
  %v4817 = vmax.f32 %v4804, 0.0
  %v4818 = vmax.f32 %v4805, 0.0
  %v4819 = vmax.f32 %v4806, 0.0
  %v4820 = vmax.f32 %v4807, 0.0
  %v4821 = vmax.f32 %v4808, 0.0
  %v4822 = vmax.f32 %v4809, 0.0
  %v4823 = vmax.f32 %v4810, 0.0
  %4824 = vst.msk [vmem:[%s3] sm:$0xff] %vm2869, %v4811
  %4825 = vst.msk [vmem:[%s3 + $0x8] sm:$0xff] %vm2869, %v4812
  %4826 = vst.msk [vmem:[%s3 + $0x10] sm:$0xff] %vm2869, %v4813
  %4827 = vst.msk [vmem:[%s3 + $0x18] sm:$0xff] %vm2869, %v4814
  %4828 = vst.msk [vmem:[%s3 + $0x20] sm:$0xff] %vm2869, %v4815
  %4829 = vst.msk [vmem:[%s3 + $0x28] sm:$0xff] %vm2869, %v4816
  %4830 = vst.msk [vmem:[%s3 + $0x30] sm:$0xff] %vm2869, %v4817
  %4831 = vst.msk [vmem:[%s3 + $0x38] sm:$0xff] %vm2869, %v4818
  %4832 = vst.msk [vmem:[%s3 + $0x40] sm:$0xff] %vm2869, %v4819
  %4833 = vst.msk [vmem:[%s3 + $0x48] sm:$0xff] %vm2869, %v4820
  %4834 = vst.msk [vmem:[%s3 + $0x50] sm:$0xff] %vm2869, %v4821
  %4835 = vst.msk [vmem:[%s3 + $0x58] sm:$0xff] %vm2869, %v4822
  %4836 = vst.msk [vmem:[%s3 + $0x60] sm:$0xff] %vm2869, %v4823
  // Predicated region
  $region14: #{cnn_forward.4} parent=0 // pred_check
    _
  $region15: #{cnn_forward.4} parent=0 // pred_check_branch
    %4838 = sbr.rel (0) target = $region17
  $region16: #{cnn_forward.4} parent=0 // pred_region
    _
  $region17: #{cnn_forward.4} parent=0 // pred_fallthru
    _
  // Predicated region
  $region18: #{cnn_forward.4} parent=0 // pred_check
    _
  $region19: #{cnn_forward.4} parent=0 // pred_check_branch
    %4840 = sbr.rel (0) target = $region21
  $region20: #{cnn_forward.4} parent=0 // pred_region
    _
  $region21: #{cnn_forward.4} parent=0 // pred_fallthru
    _

// kernel: cnn_forward.5
$region0: #{cnn_forward.5}
  #allocation0 [shape = 'u32[]', space=smem, size = 0x4, offset = 0x4, fixed_abs, tag = 'smem constant byte address 0x4 - core index']
  #allocation1 [shape = 'u32[72,128]{1,0:T(1,128)}', space=vmem, size = 0x9000, scoped, tag = 'internal scratch']
  %s0 = inlined_call_operand.vmem [shape: bf16[16,1600], index: 0, kind: input, shape index: {}]
  %s1 = inlined_call_operand.vmem [shape: bf16[1600,384], index: 1, kind: input, shape index: {}]
  %s2 = inlined_call_operand.vmem [shape: f32[1,384], index: 2, kind: input, shape index: {}]
  %s3 = inlined_call_operand.vmem [shape: bf16[384,192], index: 3, kind: input, shape index: {}]
  %s4 = inlined_call_operand.vmem [shape: f32[1,192], index: 4, kind: input, shape index: {}]
  %s5 = inlined_call_operand.vmem [shape: bf16[192,100], index: 5, kind: input, shape index: {}]
  %s6 = inlined_call_operand.vmem [shape: f32[1,100], index: 6, kind: input, shape index: {}]
  %s7 = inlined_call_operand.vmem [shape: f32[16,100], index: 7, kind: output, shape index: {}]
  %s8 = sld [smem:[#allocation0]]
  $region38: #{cnn_forward.5} parent=0
    _
  %s10 = ssub.s32 1, %s8
  %s11 = scalar_select 0, %s10, %s8
  // Predicated region
  $region2: #{cnn_forward.5} parent=0 // pred_check
    _
  $region3: #{cnn_forward.5} parent=0 // pred_check_branch
    %13 = sbr.rel (0) target = $region5
  $region4: #{cnn_forward.5} parent=0 // pred_region
    _
  $region5: #{cnn_forward.5} parent=0 // pred_fallthru
    _
  // Predicated region
  $region6: #{cnn_forward.5} parent=0 // pred_check
    _
  $region7: #{cnn_forward.5} parent=0 // pred_check_branch
    %15 = sbr.rel (0) target = $region9
  $region8: #{cnn_forward.5} parent=0 // pred_region
    _
  $region9: #{cnn_forward.5} parent=0 // pred_fallthru
    _
  // Predicated region
  $region10: #{cnn_forward.5} parent=0 // pred_check
    _
  $region11: #{cnn_forward.5} parent=0 // pred_check_branch
    %17 = sbr.rel (0) target = $region13
  $region12: #{cnn_forward.5} parent=0 // pred_region
    _
  $region13: #{cnn_forward.5} parent=0 // pred_fallthru
    _
  // Predicated region
  $region14: #{cnn_forward.5} parent=0 // pred_check
    _
  $region15: #{cnn_forward.5} parent=0 // pred_check_branch
    %19 = sbr.rel (0) target = $region17
  $region16: #{cnn_forward.5} parent=0 // pred_region
    _
  $region17: #{cnn_forward.5} parent=0 // pred_fallthru
    _
  // Predicated region
  $region18: #{cnn_forward.5} parent=0 // pred_check
    _
  $region19: #{cnn_forward.5} parent=0 // pred_check_branch
    %21 = sbr.rel (0) target = $region21
  $region20: #{cnn_forward.5} parent=0 // pred_region
    _
  $region21: #{cnn_forward.5} parent=0 // pred_fallthru
    _
  // Predicated region
  $region22: #{cnn_forward.5} parent=0 // pred_check
    _
  $region23: #{cnn_forward.5} parent=0 // pred_check_branch
    %23 = sbr.rel (0) target = $region25
  $region24: #{cnn_forward.5} parent=0 // pred_region
    _
  $region25: #{cnn_forward.5} parent=0 // pred_fallthru
    _
  // Predicated region
  $region26: #{cnn_forward.5} parent=0 // pred_check
    _
  $region27: #{cnn_forward.5} parent=0 // pred_check_branch
    %25 = sbr.rel (0) target = $region29
  $region28: #{cnn_forward.5} parent=0 // pred_region
    _
  $region29: #{cnn_forward.5} parent=0 // pred_fallthru
    _
  %v27 = vld [vmem:[%s0] sm:$0xff]
  %v28 = vld [vmem:[%s0 + $0x8] sm:$0xff]
  %v29 = vld [vmem:[%s0 + $0x10] sm:$0xff]
  %v30 = vld [vmem:[%s0 + $0x18] sm:$0xff]
  %v31 = vld [vmem:[%s0 + $0x20] sm:$0xff]
  %v32 = vld [vmem:[%s0 + $0x28] sm:$0xff]
  %v33 = vld [vmem:[%s0 + $0x30] sm:$0xf]
  %v34 = vld [vmem:[%s0 + $0x34] sm:$0xff]
  %v35 = vld [vmem:[%s0 + $0x3c] sm:$0xff]
  %v36 = vld [vmem:[%s0 + $0x44] sm:$0xff]
  %v37 = vld [vmem:[%s0 + $0x4c] sm:$0xff]
  %v38 = vld [vmem:[%s0 + $0x54] sm:$0xff]
  %v39 = vld [vmem:[%s0 + $0x5c] sm:$0xff]
  %v40 = vld [vmem:[%s0 + $0x64] sm:$0xf]
  %v41 = vld [vmem:[%s1] sm:$0xff]
  %v42 = vld [vmem:[%s1 + $0x8] sm:$0xf]
  %v43 = vld [vmem:[%s1 + $0xc] sm:$0xff]
  %v44 = vld [vmem:[%s1 + $0x14] sm:$0xf]
  %v45 = vld [vmem:[%s1 + $0x18] sm:$0xff]
  %v46 = vld [vmem:[%s1 + $0x20] sm:$0xf]
  %v47 = vld [vmem:[%s1 + $0x24] sm:$0xff]
  %v48 = vld [vmem:[%s1 + $0x2c] sm:$0xf]
  %v49 = vld [vmem:[%s1 + $0x30] sm:$0xff]
  %v50 = vld [vmem:[%s1 + $0x38] sm:$0xf]
  %v51 = vld [vmem:[%s1 + $0x3c] sm:$0xff]
  %v52 = vld [vmem:[%s1 + $0x44] sm:$0xf]
  %v53 = vld [vmem:[%s1 + $0x48] sm:$0xff]
  %v54 = vld [vmem:[%s1 + $0x50] sm:$0xf]
  %v55 = vld [vmem:[%s1 + $0x54] sm:$0xff]
  %v56 = vld [vmem:[%s1 + $0x5c] sm:$0xf]
  %v57 = vld [vmem:[%s1 + $0x60] sm:$0xff]
  %v58 = vld [vmem:[%s1 + $0x68] sm:$0xf]
  %v59 = vld [vmem:[%s1 + $0x6c] sm:$0xff]
  %v60 = vld [vmem:[%s1 + $0x74] sm:$0xf]
  %v61 = vld [vmem:[%s1 + $0x78] sm:$0xff]
  %v62 = vld [vmem:[%s1 + $0x80] sm:$0xf]
  %v63 = vld [vmem:[%s1 + $0x84] sm:$0xff]
  %v64 = vld [vmem:[%s1 + $0x8c] sm:$0xf]
  %v65 = vld [vmem:[%s1 + $0x90] sm:$0xff]
  %v66 = vld [vmem:[%s1 + $0x98] sm:$0xf]
  %v67 = vld [vmem:[%s1 + $0x9c] sm:$0xff]
  %v68 = vld [vmem:[%s1 + $0xa4] sm:$0xf]
  %v69 = vld [vmem:[%s1 + $0xa8] sm:$0xff]
  %v70 = vld [vmem:[%s1 + $0xb0] sm:$0xf]
  %v71 = vld [vmem:[%s1 + $0xb4] sm:$0xff]
  %v72 = vld [vmem:[%s1 + $0xbc] sm:$0xf]
  %v73 = vld [vmem:[%s1 + $0xc0] sm:$0xff]
  %v74 = vld [vmem:[%s1 + $0xc8] sm:$0xf]
  %v75 = vld [vmem:[%s1 + $0xcc] sm:$0xff]
  %v76 = vld [vmem:[%s1 + $0xd4] sm:$0xf]
  %v77 = vld [vmem:[%s1 + $0xd8] sm:$0xff]
  %v78 = vld [vmem:[%s1 + $0xe0] sm:$0xf]
  %v79 = vld [vmem:[%s1 + $0xe4] sm:$0xff]
  %v80 = vld [vmem:[%s1 + $0xec] sm:$0xf]
  %v81 = vld [vmem:[%s1 + $0xf0] sm:$0xff]
  %v82 = vld [vmem:[%s1 + $0xf8] sm:$0xf]
  %v83 = vld [vmem:[%s1 + $0xfc] sm:$0xff]
  %v84 = vld [vmem:[%s1 + $0x104] sm:$0xf]
  %v85 = vld [vmem:[%s1 + $0x108] sm:$0xff]
  %v86 = vld [vmem:[%s1 + $0x110] sm:$0xf]
  %v87 = vld [vmem:[%s1 + $0x114] sm:$0xff]
  %v88 = vld [vmem:[%s1 + $0x11c] sm:$0xf]
  %v89 = vld [vmem:[%s1 + $0x120] sm:$0xff]
  %v90 = vld [vmem:[%s1 + $0x128] sm:$0xf]
  %v91 = vld [vmem:[%s1 + $0x12c] sm:$0xff]
  %v92 = vld [vmem:[%s1 + $0x134] sm:$0xf]
  %v93 = vld [vmem:[%s1 + $0x138] sm:$0xff]
  %v94 = vld [vmem:[%s1 + $0x140] sm:$0xf]
  %v95 = vld [vmem:[%s1 + $0x144] sm:$0xff]
  %v96 = vld [vmem:[%s1 + $0x14c] sm:$0xf]
  %v97 = vld [vmem:[%s1 + $0x150] sm:$0xff]
  %v98 = vld [vmem:[%s1 + $0x158] sm:$0xf]
  %v99 = vld [vmem:[%s1 + $0x15c] sm:$0xff]
  %v100 = vld [vmem:[%s1 + $0x164] sm:$0xf]
  %v101 = vld [vmem:[%s1 + $0x168] sm:$0xff]
  %v102 = vld [vmem:[%s1 + $0x170] sm:$0xf]
  %v103 = vld [vmem:[%s1 + $0x174] sm:$0xff]
  %v104 = vld [vmem:[%s1 + $0x17c] sm:$0xf]
  %v105 = vld [vmem:[%s1 + $0x180] sm:$0xff]
  %v106 = vld [vmem:[%s1 + $0x188] sm:$0xf]
  %v107 = vld [vmem:[%s1 + $0x18c] sm:$0xff]
  %v108 = vld [vmem:[%s1 + $0x194] sm:$0xf]
  %v109 = vld [vmem:[%s1 + $0x198] sm:$0xff]
  %v110 = vld [vmem:[%s1 + $0x1a0] sm:$0xf]
  %v111 = vld [vmem:[%s1 + $0x1a4] sm:$0xff]
  %v112 = vld [vmem:[%s1 + $0x1ac] sm:$0xf]
  %v113 = vld [vmem:[%s1 + $0x1b0] sm:$0xff]
  %v114 = vld [vmem:[%s1 + $0x1b8] sm:$0xf]
  %v115 = vld [vmem:[%s1 + $0x1bc] sm:$0xff]
  %v116 = vld [vmem:[%s1 + $0x1c4] sm:$0xf]
  %v117 = vld [vmem:[%s1 + $0x1c8] sm:$0xff]
  %v118 = vld [vmem:[%s1 + $0x1d0] sm:$0xf]
  %v119 = vld [vmem:[%s1 + $0x1d4] sm:$0xff]
  %v120 = vld [vmem:[%s1 + $0x1dc] sm:$0xf]
  %v121 = vld [vmem:[%s1 + $0x1e0] sm:$0xff]
  %v122 = vld [vmem:[%s1 + $0x1e8] sm:$0xf]
  %v123 = vld [vmem:[%s1 + $0x1ec] sm:$0xff]
  %v124 = vld [vmem:[%s1 + $0x1f4] sm:$0xf]
  %v125 = vld [vmem:[%s1 + $0x1f8] sm:$0xff]
  %v126 = vld [vmem:[%s1 + $0x200] sm:$0xf]
  %v127 = vld [vmem:[%s1 + $0x204] sm:$0xff]
  %v128 = vld [vmem:[%s1 + $0x20c] sm:$0xf]
  %v129 = vld [vmem:[%s1 + $0x210] sm:$0xff]
  %v130 = vld [vmem:[%s1 + $0x218] sm:$0xf]
  %v131 = vld [vmem:[%s1 + $0x21c] sm:$0xff]
  %v132 = vld [vmem:[%s1 + $0x224] sm:$0xf]
  %v133 = vld [vmem:[%s1 + $0x228] sm:$0xff]
  %v134 = vld [vmem:[%s1 + $0x230] sm:$0xf]
  %v135 = vld [vmem:[%s1 + $0x234] sm:$0xff]
  %v136 = vld [vmem:[%s1 + $0x23c] sm:$0xf]
  %v137 = vld [vmem:[%s1 + $0x240] sm:$0xff]
  %v138 = vld [vmem:[%s1 + $0x248] sm:$0xf]
  %v139 = vld [vmem:[%s1 + $0x24c] sm:$0xff]
  %v140 = vld [vmem:[%s1 + $0x254] sm:$0xf]
  %v141 = vld [vmem:[%s1 + $0x258] sm:$0xff]
  %v142 = vld [vmem:[%s1 + $0x260] sm:$0xf]
  %v143 = vld [vmem:[%s1 + $0x264] sm:$0xff]
  %v144 = vld [vmem:[%s1 + $0x26c] sm:$0xf]
  %v145 = vld [vmem:[%s1 + $0x270] sm:$0xff]
  %v146 = vld [vmem:[%s1 + $0x278] sm:$0xf]
  %v147 = vld [vmem:[%s1 + $0x27c] sm:$0xff]
  %v148 = vld [vmem:[%s1 + $0x284] sm:$0xf]
  %v149 = vld [vmem:[%s1 + $0x288] sm:$0xff]
  %v150 = vld [vmem:[%s1 + $0x290] sm:$0xf]
  %v151 = vld [vmem:[%s1 + $0x294] sm:$0xff]
  %v152 = vld [vmem:[%s1 + $0x29c] sm:$0xf]
  %v153 = vld [vmem:[%s1 + $0x2a0] sm:$0xff]
  %v154 = vld [vmem:[%s1 + $0x2a8] sm:$0xf]
  %v155 = vld [vmem:[%s1 + $0x2ac] sm:$0xff]
  %v156 = vld [vmem:[%s1 + $0x2b4] sm:$0xf]
  %v157 = vld [vmem:[%s1 + $0x2b8] sm:$0xff]
  %v158 = vld [vmem:[%s1 + $0x2c0] sm:$0xf]
  %v159 = vld [vmem:[%s1 + $0x2c4] sm:$0xff]
  %v160 = vld [vmem:[%s1 + $0x2cc] sm:$0xf]
  %v161 = vld [vmem:[%s1 + $0x2d0] sm:$0xff]
  %v162 = vld [vmem:[%s1 + $0x2d8] sm:$0xf]
  %v163 = vld [vmem:[%s1 + $0x2dc] sm:$0xff]
  %v164 = vld [vmem:[%s1 + $0x2e4] sm:$0xf]
  %v165 = vld [vmem:[%s1 + $0x2e8] sm:$0xff]
  %v166 = vld [vmem:[%s1 + $0x2f0] sm:$0xf]
  %v167 = vld [vmem:[%s1 + $0x2f4] sm:$0xff]
  %v168 = vld [vmem:[%s1 + $0x2fc] sm:$0xf]
  %v169 = vld [vmem:[%s1 + $0x300] sm:$0xff]
  %v170 = vld [vmem:[%s1 + $0x308] sm:$0xf]
  %v171 = vld [vmem:[%s1 + $0x30c] sm:$0xff]
  %v172 = vld [vmem:[%s1 + $0x314] sm:$0xf]
  %v173 = vld [vmem:[%s1 + $0x318] sm:$0xff]
  %v174 = vld [vmem:[%s1 + $0x320] sm:$0xf]
  %v175 = vld [vmem:[%s1 + $0x324] sm:$0xff]
  %v176 = vld [vmem:[%s1 + $0x32c] sm:$0xf]
  %v177 = vld [vmem:[%s1 + $0x330] sm:$0xff]
  %v178 = vld [vmem:[%s1 + $0x338] sm:$0xf]
  %v179 = vld [vmem:[%s1 + $0x33c] sm:$0xff]
  %v180 = vld [vmem:[%s1 + $0x344] sm:$0xf]
  %v181 = vld [vmem:[%s1 + $0x348] sm:$0xff]
  %v182 = vld [vmem:[%s1 + $0x350] sm:$0xf]
  %v183 = vld [vmem:[%s1 + $0x354] sm:$0xff]
  %v184 = vld [vmem:[%s1 + $0x35c] sm:$0xf]
  %v185 = vld [vmem:[%s1 + $0x360] sm:$0xff]
  %v186 = vld [vmem:[%s1 + $0x368] sm:$0xf]
  %v187 = vld [vmem:[%s1 + $0x36c] sm:$0xff]
  %v188 = vld [vmem:[%s1 + $0x374] sm:$0xf]
  %v189 = vld [vmem:[%s1 + $0x378] sm:$0xff]
  %v190 = vld [vmem:[%s1 + $0x380] sm:$0xf]
  %v191 = vld [vmem:[%s1 + $0x384] sm:$0xff]
  %v192 = vld [vmem:[%s1 + $0x38c] sm:$0xf]
  %v193 = vld [vmem:[%s1 + $0x390] sm:$0xff]
  %v194 = vld [vmem:[%s1 + $0x398] sm:$0xf]
  %v195 = vld [vmem:[%s1 + $0x39c] sm:$0xff]
  %v196 = vld [vmem:[%s1 + $0x3a4] sm:$0xf]
  %v197 = vld [vmem:[%s1 + $0x3a8] sm:$0xff]
  %v198 = vld [vmem:[%s1 + $0x3b0] sm:$0xf]
  %v199 = vld [vmem:[%s1 + $0x3b4] sm:$0xff]
  %v200 = vld [vmem:[%s1 + $0x3bc] sm:$0xf]
  %v201 = vld [vmem:[%s1 + $0x3c0] sm:$0xff]
  %v202 = vld [vmem:[%s1 + $0x3c8] sm:$0xf]
  %v203 = vld [vmem:[%s1 + $0x3cc] sm:$0xff]
  %v204 = vld [vmem:[%s1 + $0x3d4] sm:$0xf]
  %v205 = vld [vmem:[%s1 + $0x3d8] sm:$0xff]
  %v206 = vld [vmem:[%s1 + $0x3e0] sm:$0xf]
  %v207 = vld [vmem:[%s1 + $0x3e4] sm:$0xff]
  %v208 = vld [vmem:[%s1 + $0x3ec] sm:$0xf]
  %v209 = vld [vmem:[%s1 + $0x3f0] sm:$0xff]
  %v210 = vld [vmem:[%s1 + $0x3f8] sm:$0xf]
  %v211 = vld [vmem:[%s1 + $0x3fc] sm:$0xff]
  %v212 = vld [vmem:[%s1 + $0x404] sm:$0xf]
  %v213 = vld [vmem:[%s1 + $0x408] sm:$0xff]
  %v214 = vld [vmem:[%s1 + $0x410] sm:$0xf]
  %v215 = vld [vmem:[%s1 + $0x414] sm:$0xff]
  %v216 = vld [vmem:[%s1 + $0x41c] sm:$0xf]
  %v217 = vld [vmem:[%s1 + $0x420] sm:$0xff]
  %v218 = vld [vmem:[%s1 + $0x428] sm:$0xf]
  %v219 = vld [vmem:[%s1 + $0x42c] sm:$0xff]
  %v220 = vld [vmem:[%s1 + $0x434] sm:$0xf]
  %v221 = vld [vmem:[%s1 + $0x438] sm:$0xff]
  %v222 = vld [vmem:[%s1 + $0x440] sm:$0xf]
  %v223 = vld [vmem:[%s1 + $0x444] sm:$0xff]
  %v224 = vld [vmem:[%s1 + $0x44c] sm:$0xf]
  %v225 = vld [vmem:[%s1 + $0x450] sm:$0xff]
  %v226 = vld [vmem:[%s1 + $0x458] sm:$0xf]
  %v227 = vld [vmem:[%s1 + $0x45c] sm:$0xff]
  %v228 = vld [vmem:[%s1 + $0x464] sm:$0xf]
  %v229 = vld [vmem:[%s1 + $0x468] sm:$0xff]
  %v230 = vld [vmem:[%s1 + $0x470] sm:$0xf]
  %v231 = vld [vmem:[%s1 + $0x474] sm:$0xff]
  %v232 = vld [vmem:[%s1 + $0x47c] sm:$0xf]
  %v233 = vld [vmem:[%s1 + $0x480] sm:$0xff]
  %v234 = vld [vmem:[%s1 + $0x488] sm:$0xf]
  %v235 = vld [vmem:[%s1 + $0x48c] sm:$0xff]
  %v236 = vld [vmem:[%s1 + $0x494] sm:$0xf]
  %v237 = vld [vmem:[%s1 + $0x498] sm:$0xff]
  %v238 = vld [vmem:[%s1 + $0x4a0] sm:$0xf]
  %v239 = vld [vmem:[%s1 + $0x4a4] sm:$0xff]
  %v240 = vld [vmem:[%s1 + $0x4ac] sm:$0xf]
  %v241 = vld [vmem:[%s1 + $0x4b0] sm:$0xff]
  %v242 = vld [vmem:[%s1 + $0x4b8] sm:$0xf]
  %v243 = vld [vmem:[%s1 + $0x4bc] sm:$0xff]
  %v244 = vld [vmem:[%s1 + $0x4c4] sm:$0xf]
  %v245 = vld [vmem:[%s1 + $0x4c8] sm:$0xff]
  %v246 = vld [vmem:[%s1 + $0x4d0] sm:$0xf]
  %v247 = vld [vmem:[%s1 + $0x4d4] sm:$0xff]
  %v248 = vld [vmem:[%s1 + $0x4dc] sm:$0xf]
  %v249 = vld [vmem:[%s1 + $0x4e0] sm:$0xff]
  %v250 = vld [vmem:[%s1 + $0x4e8] sm:$0xf]
  %v251 = vld [vmem:[%s1 + $0x4ec] sm:$0xff]
  %v252 = vld [vmem:[%s1 + $0x4f4] sm:$0xf]
  %v253 = vld [vmem:[%s1 + $0x4f8] sm:$0xff]
  %v254 = vld [vmem:[%s1 + $0x500] sm:$0xf]
  %v255 = vld [vmem:[%s1 + $0x504] sm:$0xff]
  %v256 = vld [vmem:[%s1 + $0x50c] sm:$0xf]
  %v257 = vld [vmem:[%s1 + $0x510] sm:$0xff]
  %v258 = vld [vmem:[%s1 + $0x518] sm:$0xf]
  %v259 = vld [vmem:[%s1 + $0x51c] sm:$0xff]
  %v260 = vld [vmem:[%s1 + $0x524] sm:$0xf]
  %v261 = vld [vmem:[%s1 + $0x528] sm:$0xff]
  %v262 = vld [vmem:[%s1 + $0x530] sm:$0xf]
  %v263 = vld [vmem:[%s1 + $0x534] sm:$0xff]
  %v264 = vld [vmem:[%s1 + $0x53c] sm:$0xf]
  %v265 = vld [vmem:[%s1 + $0x540] sm:$0xff]
  %v266 = vld [vmem:[%s1 + $0x548] sm:$0xf]
  %v267 = vld [vmem:[%s1 + $0x54c] sm:$0xff]
  %v268 = vld [vmem:[%s1 + $0x554] sm:$0xf]
  %v269 = vld [vmem:[%s1 + $0x558] sm:$0xff]
  %v270 = vld [vmem:[%s1 + $0x560] sm:$0xf]
  %v271 = vld [vmem:[%s1 + $0x564] sm:$0xff]
  %v272 = vld [vmem:[%s1 + $0x56c] sm:$0xf]
  %v273 = vld [vmem:[%s1 + $0x570] sm:$0xff]
  %v274 = vld [vmem:[%s1 + $0x578] sm:$0xf]
  %v275 = vld [vmem:[%s1 + $0x57c] sm:$0xff]
  %v276 = vld [vmem:[%s1 + $0x584] sm:$0xf]
  %v277 = vld [vmem:[%s1 + $0x588] sm:$0xff]
  %v278 = vld [vmem:[%s1 + $0x590] sm:$0xf]
  %v279 = vld [vmem:[%s1 + $0x594] sm:$0xff]
  %v280 = vld [vmem:[%s1 + $0x59c] sm:$0xf]
  %v281 = vld [vmem:[%s1 + $0x5a0] sm:$0xff]
  %v282 = vld [vmem:[%s1 + $0x5a8] sm:$0xf]
  %v283 = vld [vmem:[%s1 + $0x5ac] sm:$0xff]
  %v284 = vld [vmem:[%s1 + $0x5b4] sm:$0xf]
  %v285 = vld [vmem:[%s1 + $0x5b8] sm:$0xff]
  %v286 = vld [vmem:[%s1 + $0x5c0] sm:$0xf]
  %v287 = vld [vmem:[%s1 + $0x5c4] sm:$0xff]
  %v288 = vld [vmem:[%s1 + $0x5cc] sm:$0xf]
  %v289 = vld [vmem:[%s1 + $0x5d0] sm:$0xff]
  %v290 = vld [vmem:[%s1 + $0x5d8] sm:$0xf]
  %v291 = vld [vmem:[%s1 + $0x5dc] sm:$0xff]
  %v292 = vld [vmem:[%s1 + $0x5e4] sm:$0xf]
  %v293 = vld [vmem:[%s1 + $0x5e8] sm:$0xff]
  %v294 = vld [vmem:[%s1 + $0x5f0] sm:$0xf]
  %v295 = vld [vmem:[%s1 + $0x5f4] sm:$0xff]
  %v296 = vld [vmem:[%s1 + $0x5fc] sm:$0xf]
  %v297 = vld [vmem:[%s1 + $0x600] sm:$0xff]
  %v298 = vld [vmem:[%s1 + $0x608] sm:$0xf]
  %v299 = vld [vmem:[%s1 + $0x60c] sm:$0xff]
  %v300 = vld [vmem:[%s1 + $0x614] sm:$0xf]
  %v301 = vld [vmem:[%s1 + $0x618] sm:$0xff]
  %v302 = vld [vmem:[%s1 + $0x620] sm:$0xf]
  %v303 = vld [vmem:[%s1 + $0x624] sm:$0xff]
  %v304 = vld [vmem:[%s1 + $0x62c] sm:$0xf]
  %v305 = vld [vmem:[%s1 + $0x630] sm:$0xff]
  %v306 = vld [vmem:[%s1 + $0x638] sm:$0xf]
  %v307 = vld [vmem:[%s1 + $0x63c] sm:$0xff]
  %v308 = vld [vmem:[%s1 + $0x644] sm:$0xf]
  %v309 = vld [vmem:[%s1 + $0x648] sm:$0xff]
  %v310 = vld [vmem:[%s1 + $0x650] sm:$0xf]
  %v311 = vld [vmem:[%s1 + $0x654] sm:$0xff]
  %v312 = vld [vmem:[%s1 + $0x65c] sm:$0xf]
  %v313 = vld [vmem:[%s1 + $0x660] sm:$0xff]
  %v314 = vld [vmem:[%s1 + $0x668] sm:$0xf]
  %v315 = vld [vmem:[%s1 + $0x66c] sm:$0xff]
  %v316 = vld [vmem:[%s1 + $0x674] sm:$0xf]
  %v317 = vld [vmem:[%s1 + $0x678] sm:$0xff]
  %v318 = vld [vmem:[%s1 + $0x680] sm:$0xf]
  %v319 = vld [vmem:[%s1 + $0x684] sm:$0xff]
  %v320 = vld [vmem:[%s1 + $0x68c] sm:$0xf]
  %v321 = vld [vmem:[%s1 + $0x690] sm:$0xff]
  %v322 = vld [vmem:[%s1 + $0x698] sm:$0xf]
  %v323 = vld [vmem:[%s1 + $0x69c] sm:$0xff]
  %v324 = vld [vmem:[%s1 + $0x6a4] sm:$0xf]
  %v325 = vld [vmem:[%s1 + $0x6a8] sm:$0xff]
  %v326 = vld [vmem:[%s1 + $0x6b0] sm:$0xf]
  %v327 = vld [vmem:[%s1 + $0x6b4] sm:$0xff]
  %v328 = vld [vmem:[%s1 + $0x6bc] sm:$0xf]
  %v329 = vld [vmem:[%s1 + $0x6c0] sm:$0xff]
  %v330 = vld [vmem:[%s1 + $0x6c8] sm:$0xf]
  %v331 = vld [vmem:[%s1 + $0x6cc] sm:$0xff]
  %v332 = vld [vmem:[%s1 + $0x6d4] sm:$0xf]
  %v333 = vld [vmem:[%s1 + $0x6d8] sm:$0xff]
  %v334 = vld [vmem:[%s1 + $0x6e0] sm:$0xf]
  %v335 = vld [vmem:[%s1 + $0x6e4] sm:$0xff]
  %v336 = vld [vmem:[%s1 + $0x6ec] sm:$0xf]
  %v337 = vld [vmem:[%s1 + $0x6f0] sm:$0xff]
  %v338 = vld [vmem:[%s1 + $0x6f8] sm:$0xf]
  %v339 = vld [vmem:[%s1 + $0x6fc] sm:$0xff]
  %v340 = vld [vmem:[%s1 + $0x704] sm:$0xf]
  %v341 = vld [vmem:[%s1 + $0x708] sm:$0xff]
  %v342 = vld [vmem:[%s1 + $0x710] sm:$0xf]
  %v343 = vld [vmem:[%s1 + $0x714] sm:$0xff]
  %v344 = vld [vmem:[%s1 + $0x71c] sm:$0xf]
  %v345 = vld [vmem:[%s1 + $0x720] sm:$0xff]
  %v346 = vld [vmem:[%s1 + $0x728] sm:$0xf]
  %v347 = vld [vmem:[%s1 + $0x72c] sm:$0xff]
  %v348 = vld [vmem:[%s1 + $0x734] sm:$0xf]
  %v349 = vld [vmem:[%s1 + $0x738] sm:$0xff]
  %v350 = vld [vmem:[%s1 + $0x740] sm:$0xf]
  %v351 = vld [vmem:[%s1 + $0x744] sm:$0xff]
  %v352 = vld [vmem:[%s1 + $0x74c] sm:$0xf]
  %v353 = vld [vmem:[%s1 + $0x750] sm:$0xff]
  %v354 = vld [vmem:[%s1 + $0x758] sm:$0xf]
  %v355 = vld [vmem:[%s1 + $0x75c] sm:$0xff]
  %v356 = vld [vmem:[%s1 + $0x764] sm:$0xf]
  %v357 = vld [vmem:[%s1 + $0x768] sm:$0xff]
  %v358 = vld [vmem:[%s1 + $0x770] sm:$0xf]
  %v359 = vld [vmem:[%s1 + $0x774] sm:$0xff]
  %v360 = vld [vmem:[%s1 + $0x77c] sm:$0xf]
  %v361 = vld [vmem:[%s1 + $0x780] sm:$0xff]
  %v362 = vld [vmem:[%s1 + $0x788] sm:$0xf]
  %v363 = vld [vmem:[%s1 + $0x78c] sm:$0xff]
  %v364 = vld [vmem:[%s1 + $0x794] sm:$0xf]
  %v365 = vld [vmem:[%s1 + $0x798] sm:$0xff]
  %v366 = vld [vmem:[%s1 + $0x7a0] sm:$0xf]
  %v367 = vld [vmem:[%s1 + $0x7a4] sm:$0xff]
  %v368 = vld [vmem:[%s1 + $0x7ac] sm:$0xf]
  %v369 = vld [vmem:[%s1 + $0x7b0] sm:$0xff]
  %v370 = vld [vmem:[%s1 + $0x7b8] sm:$0xf]
  %v371 = vld [vmem:[%s1 + $0x7bc] sm:$0xff]
  %v372 = vld [vmem:[%s1 + $0x7c4] sm:$0xf]
  %v373 = vld [vmem:[%s1 + $0x7c8] sm:$0xff]
  %v374 = vld [vmem:[%s1 + $0x7d0] sm:$0xf]
  %v375 = vld [vmem:[%s1 + $0x7d4] sm:$0xff]
  %v376 = vld [vmem:[%s1 + $0x7dc] sm:$0xf]
  %v377 = vld [vmem:[%s1 + $0x7e0] sm:$0xff]
  %v378 = vld [vmem:[%s1 + $0x7e8] sm:$0xf]
  %v379 = vld [vmem:[%s1 + $0x7ec] sm:$0xff]
  %v380 = vld [vmem:[%s1 + $0x7f4] sm:$0xf]
  %v381 = vld [vmem:[%s1 + $0x7f8] sm:$0xff]
  %v382 = vld [vmem:[%s1 + $0x800] sm:$0xf]
  %v383 = vld [vmem:[%s1 + $0x804] sm:$0xff]
  %v384 = vld [vmem:[%s1 + $0x80c] sm:$0xf]
  %v385 = vld [vmem:[%s1 + $0x810] sm:$0xff]
  %v386 = vld [vmem:[%s1 + $0x818] sm:$0xf]
  %v387 = vld [vmem:[%s1 + $0x81c] sm:$0xff]
  %v388 = vld [vmem:[%s1 + $0x824] sm:$0xf]
  %v389 = vld [vmem:[%s1 + $0x828] sm:$0xff]
  %v390 = vld [vmem:[%s1 + $0x830] sm:$0xf]
  %v391 = vld [vmem:[%s1 + $0x834] sm:$0xff]
  %v392 = vld [vmem:[%s1 + $0x83c] sm:$0xf]
  %v393 = vld [vmem:[%s1 + $0x840] sm:$0xff]
  %v394 = vld [vmem:[%s1 + $0x848] sm:$0xf]
  %v395 = vld [vmem:[%s1 + $0x84c] sm:$0xff]
  %v396 = vld [vmem:[%s1 + $0x854] sm:$0xf]
  %v397 = vld [vmem:[%s1 + $0x858] sm:$0xff]
  %v398 = vld [vmem:[%s1 + $0x860] sm:$0xf]
  %v399 = vld [vmem:[%s1 + $0x864] sm:$0xff]
  %v400 = vld [vmem:[%s1 + $0x86c] sm:$0xf]
  %v401 = vld [vmem:[%s1 + $0x870] sm:$0xff]
  %v402 = vld [vmem:[%s1 + $0x878] sm:$0xf]
  %v403 = vld [vmem:[%s1 + $0x87c] sm:$0xff]
  %v404 = vld [vmem:[%s1 + $0x884] sm:$0xf]
  %v405 = vld [vmem:[%s1 + $0x888] sm:$0xff]
  %v406 = vld [vmem:[%s1 + $0x890] sm:$0xf]
  %v407 = vld [vmem:[%s1 + $0x894] sm:$0xff]
  %v408 = vld [vmem:[%s1 + $0x89c] sm:$0xf]
  %v409 = vld [vmem:[%s1 + $0x8a0] sm:$0xff]
  %v410 = vld [vmem:[%s1 + $0x8a8] sm:$0xf]
  %v411 = vld [vmem:[%s1 + $0x8ac] sm:$0xff]
  %v412 = vld [vmem:[%s1 + $0x8b4] sm:$0xf]
  %v413 = vld [vmem:[%s1 + $0x8b8] sm:$0xff]
  %v414 = vld [vmem:[%s1 + $0x8c0] sm:$0xf]
  %v415 = vld [vmem:[%s1 + $0x8c4] sm:$0xff]
  %v416 = vld [vmem:[%s1 + $0x8cc] sm:$0xf]
  %v417 = vld [vmem:[%s1 + $0x8d0] sm:$0xff]
  %v418 = vld [vmem:[%s1 + $0x8d8] sm:$0xf]
  %v419 = vld [vmem:[%s1 + $0x8dc] sm:$0xff]
  %v420 = vld [vmem:[%s1 + $0x8e4] sm:$0xf]
  %v421 = vld [vmem:[%s1 + $0x8e8] sm:$0xff]
  %v422 = vld [vmem:[%s1 + $0x8f0] sm:$0xf]
  %v423 = vld [vmem:[%s1 + $0x8f4] sm:$0xff]
  %v424 = vld [vmem:[%s1 + $0x8fc] sm:$0xf]
  %v425 = vld [vmem:[%s1 + $0x900] sm:$0xff]
  %v426 = vld [vmem:[%s1 + $0x908] sm:$0xf]
  %v427 = vld [vmem:[%s1 + $0x90c] sm:$0xff]
  %v428 = vld [vmem:[%s1 + $0x914] sm:$0xf]
  %v429 = vld [vmem:[%s1 + $0x918] sm:$0xff]
  %v430 = vld [vmem:[%s1 + $0x920] sm:$0xf]
  %v431 = vld [vmem:[%s1 + $0x924] sm:$0xff]
  %v432 = vld [vmem:[%s1 + $0x92c] sm:$0xf]
  %v433 = vld [vmem:[%s1 + $0x930] sm:$0xff]
  %v434 = vld [vmem:[%s1 + $0x938] sm:$0xf]
  %v435 = vld [vmem:[%s1 + $0x93c] sm:$0xff]
  %v436 = vld [vmem:[%s1 + $0x944] sm:$0xf]
  %v437 = vld [vmem:[%s1 + $0x948] sm:$0xff]
  %v438 = vld [vmem:[%s1 + $0x950] sm:$0xf]
  %v439 = vld [vmem:[%s1 + $0x954] sm:$0xff]
  %v440 = vld [vmem:[%s1 + $0x95c] sm:$0xf]
  %v441 = vld [vmem:[%s2] sm:$0x7]
  %v443 = vperm.slane %v441, 0
  %v444 = vperm.slane %v441, 1
  %v445 = vperm.slane %v441, 2
  %v463 = vunpack.c.l.b16 %v27
  %v464 = vunpack.c.h.b16 %v27
  %v465 = vunpack.c.l.b16 %v28
  %v466 = vunpack.c.h.b16 %v28
  %v467 = vunpack.c.l.b16 %v29
  %v468 = vunpack.c.h.b16 %v29
  %v469 = vunpack.c.l.b16 %v30
  %v470 = vunpack.c.h.b16 %v30
  %v471 = vunpack.c.l.b16 %v31
  %v472 = vunpack.c.h.b16 %v31
  %v473 = vunpack.c.l.b16 %v32
  %v474 = vunpack.c.h.b16 %v32
  %v475 = vunpack.c.l.b16 %v33
  %v476 = vunpack.c.l.b16 %v34
  %v477 = vunpack.c.h.b16 %v34
  %v478 = vunpack.c.l.b16 %v35
  %v479 = vunpack.c.h.b16 %v35
  %v480 = vunpack.c.l.b16 %v36
  %v481 = vunpack.c.h.b16 %v36
  %v482 = vunpack.c.l.b16 %v37
  %v483 = vunpack.c.h.b16 %v37
  %v484 = vunpack.c.l.b16 %v38
  %v485 = vunpack.c.h.b16 %v38
  %v486 = vunpack.c.l.b16 %v39
  %v487 = vunpack.c.h.b16 %v39
  %v488 = vunpack.c.l.b16 %v40
  %v489 = vpack.c.b16 %v476, %v463
  %v490 = vpack.c.b16 %v477, %v464
  %v491 = vpack.c.b16 %v478, %v465
  %v492 = vpack.c.b16 %v479, %v466
  %v493 = vpack.c.b16 %v480, %v467
  %v494 = vpack.c.b16 %v481, %v468
  %v495 = vpack.c.b16 %v482, %v469
  %v496 = vpack.c.b16 %v483, %v470
  %v497 = vpack.c.b16 %v484, %v471
  %v498 = vpack.c.b16 %v485, %v472
  %v499 = vpack.c.b16 %v486, %v473
  %v500 = vpack.c.b16 %v487, %v474
  %v501 = vpack.c.b16 %v488, %v475
  %v914 = vunpack.c.l.b16 %v41
  %v915 = vunpack.c.h.b16 %v41
  %v916 = vunpack.c.l.b16 %v42
  %v917 = vunpack.c.l.b16 %v43
  %v918 = vunpack.c.h.b16 %v43
  %v919 = vunpack.c.l.b16 %v44
  %v920 = vunpack.c.l.b16 %v45
  %v921 = vunpack.c.h.b16 %v45
  %v922 = vunpack.c.l.b16 %v46
  %v923 = vunpack.c.l.b16 %v47
  %v924 = vunpack.c.h.b16 %v47
  %v925 = vunpack.c.l.b16 %v48
  %v926 = vunpack.c.l.b16 %v49
  %v927 = vunpack.c.h.b16 %v49
  %v928 = vunpack.c.l.b16 %v50
  %v929 = vunpack.c.l.b16 %v51
  %v930 = vunpack.c.h.b16 %v51
  %v931 = vunpack.c.l.b16 %v52
  %v932 = vunpack.c.l.b16 %v53
  %v933 = vunpack.c.h.b16 %v53
  %v934 = vunpack.c.l.b16 %v54
  %v935 = vunpack.c.l.b16 %v55
  %v936 = vunpack.c.h.b16 %v55
  %v937 = vunpack.c.l.b16 %v56
  %v938 = vunpack.c.l.b16 %v57
  %v939 = vunpack.c.h.b16 %v57
  %v940 = vunpack.c.l.b16 %v58
  %v941 = vunpack.c.l.b16 %v59
  %v942 = vunpack.c.h.b16 %v59
  %v943 = vunpack.c.l.b16 %v60
  %v944 = vunpack.c.l.b16 %v61
  %v945 = vunpack.c.h.b16 %v61
  %v946 = vunpack.c.l.b16 %v62
  %v947 = vunpack.c.l.b16 %v63
  %v948 = vunpack.c.h.b16 %v63
  %v949 = vunpack.c.l.b16 %v64
  %v950 = vunpack.c.l.b16 %v65
  %v951 = vunpack.c.h.b16 %v65
  %v952 = vunpack.c.l.b16 %v66
  %v953 = vunpack.c.l.b16 %v67
  %v954 = vunpack.c.h.b16 %v67
  %v955 = vunpack.c.l.b16 %v68
  %v956 = vunpack.c.l.b16 %v69
  %v957 = vunpack.c.h.b16 %v69
  %v958 = vunpack.c.l.b16 %v70
  %v959 = vunpack.c.l.b16 %v71
  %v960 = vunpack.c.h.b16 %v71
  %v961 = vunpack.c.l.b16 %v72
  %v962 = vunpack.c.l.b16 %v73
  %v963 = vunpack.c.h.b16 %v73
  %v964 = vunpack.c.l.b16 %v74
  %v965 = vunpack.c.l.b16 %v75
  %v966 = vunpack.c.h.b16 %v75
  %v967 = vunpack.c.l.b16 %v76
  %v968 = vunpack.c.l.b16 %v77
  %v969 = vunpack.c.h.b16 %v77
  %v970 = vunpack.c.l.b16 %v78
  %v971 = vunpack.c.l.b16 %v79
  %v972 = vunpack.c.h.b16 %v79
  %v973 = vunpack.c.l.b16 %v80
  %v974 = vunpack.c.l.b16 %v81
  %v975 = vunpack.c.h.b16 %v81
  %v976 = vunpack.c.l.b16 %v82
  %v977 = vunpack.c.l.b16 %v83
  %v978 = vunpack.c.h.b16 %v83
  %v979 = vunpack.c.l.b16 %v84
  %v980 = vunpack.c.l.b16 %v85
  %v981 = vunpack.c.h.b16 %v85
  %v982 = vunpack.c.l.b16 %v86
  %v983 = vunpack.c.l.b16 %v87
  %v984 = vunpack.c.h.b16 %v87
  %v985 = vunpack.c.l.b16 %v88
  %v986 = vunpack.c.l.b16 %v89
  %v987 = vunpack.c.h.b16 %v89
  %v988 = vunpack.c.l.b16 %v90
  %v989 = vunpack.c.l.b16 %v91
  %v990 = vunpack.c.h.b16 %v91
  %v991 = vunpack.c.l.b16 %v92
  %v992 = vunpack.c.l.b16 %v93
  %v993 = vunpack.c.h.b16 %v93
  %v994 = vunpack.c.l.b16 %v94
  %v995 = vunpack.c.l.b16 %v95
  %v996 = vunpack.c.h.b16 %v95
  %v997 = vunpack.c.l.b16 %v96
  %v998 = vunpack.c.l.b16 %v97
  %v999 = vunpack.c.h.b16 %v97
  %v1000 = vunpack.c.l.b16 %v98
  %v1001 = vunpack.c.l.b16 %v99
  %v1002 = vunpack.c.h.b16 %v99
  %v1003 = vunpack.c.l.b16 %v100
  %v1004 = vunpack.c.l.b16 %v101
  %v1005 = vunpack.c.h.b16 %v101
  %v1006 = vunpack.c.l.b16 %v102
  %v1007 = vunpack.c.l.b16 %v103
  %v1008 = vunpack.c.h.b16 %v103
  %v1009 = vunpack.c.l.b16 %v104
  %v1010 = vunpack.c.l.b16 %v105
  %v1011 = vunpack.c.h.b16 %v105
  %v1012 = vunpack.c.l.b16 %v106
  %v1013 = vunpack.c.l.b16 %v107
  %v1014 = vunpack.c.h.b16 %v107
  %v1015 = vunpack.c.l.b16 %v108
  %v1016 = vunpack.c.l.b16 %v109
  %v1017 = vunpack.c.h.b16 %v109
  %v1018 = vunpack.c.l.b16 %v110
  %v1019 = vunpack.c.l.b16 %v111
  %v1020 = vunpack.c.h.b16 %v111
  %v1021 = vunpack.c.l.b16 %v112
  %v1022 = vunpack.c.l.b16 %v113
  %v1023 = vunpack.c.h.b16 %v113
  %v1024 = vunpack.c.l.b16 %v114
  %v1025 = vunpack.c.l.b16 %v115
  %v1026 = vunpack.c.h.b16 %v115
  %v1027 = vunpack.c.l.b16 %v116
  %v1028 = vunpack.c.l.b16 %v117
  %v1029 = vunpack.c.h.b16 %v117
  %v1030 = vunpack.c.l.b16 %v118
  %v1031 = vunpack.c.l.b16 %v119
  %v1032 = vunpack.c.h.b16 %v119
  %v1033 = vunpack.c.l.b16 %v120
  %v1034 = vunpack.c.l.b16 %v121
  %v1035 = vunpack.c.h.b16 %v121
  %v1036 = vunpack.c.l.b16 %v122
  %v1037 = vunpack.c.l.b16 %v123
  %v1038 = vunpack.c.h.b16 %v123
  %v1039 = vunpack.c.l.b16 %v124
  %v1040 = vunpack.c.l.b16 %v125
  %v1041 = vunpack.c.h.b16 %v125
  %v1042 = vunpack.c.l.b16 %v126
  %v1043 = vunpack.c.l.b16 %v127
  %v1044 = vunpack.c.h.b16 %v127
  %v1045 = vunpack.c.l.b16 %v128
  %v1046 = vunpack.c.l.b16 %v129
  %v1047 = vunpack.c.h.b16 %v129
  %v1048 = vunpack.c.l.b16 %v130
  %v1049 = vunpack.c.l.b16 %v131
  %v1050 = vunpack.c.h.b16 %v131
  %v1051 = vunpack.c.l.b16 %v132
  %v1052 = vunpack.c.l.b16 %v133
  %v1053 = vunpack.c.h.b16 %v133
  %v1054 = vunpack.c.l.b16 %v134
  %v1055 = vunpack.c.l.b16 %v135
  %v1056 = vunpack.c.h.b16 %v135
  %v1057 = vunpack.c.l.b16 %v136
  %v1058 = vunpack.c.l.b16 %v137
  %v1059 = vunpack.c.h.b16 %v137
  %v1060 = vunpack.c.l.b16 %v138
  %v1061 = vunpack.c.l.b16 %v139
  %v1062 = vunpack.c.h.b16 %v139
  %v1063 = vunpack.c.l.b16 %v140
  %v1064 = vunpack.c.l.b16 %v141
  %v1065 = vunpack.c.h.b16 %v141
  %v1066 = vunpack.c.l.b16 %v142
  %v1067 = vunpack.c.l.b16 %v143
  %v1068 = vunpack.c.h.b16 %v143
  %v1069 = vunpack.c.l.b16 %v144
  %v1070 = vunpack.c.l.b16 %v145
  %v1071 = vunpack.c.h.b16 %v145
  %v1072 = vunpack.c.l.b16 %v146
  %v1073 = vunpack.c.l.b16 %v147
  %v1074 = vunpack.c.h.b16 %v147
  %v1075 = vunpack.c.l.b16 %v148
  %v1076 = vunpack.c.l.b16 %v149
  %v1077 = vunpack.c.h.b16 %v149
  %v1078 = vunpack.c.l.b16 %v150
  %v1079 = vunpack.c.l.b16 %v151
  %v1080 = vunpack.c.h.b16 %v151
  %v1081 = vunpack.c.l.b16 %v152
  %v1082 = vunpack.c.l.b16 %v153
  %v1083 = vunpack.c.h.b16 %v153
  %v1084 = vunpack.c.l.b16 %v154
  %v1085 = vunpack.c.l.b16 %v155
  %v1086 = vunpack.c.h.b16 %v155
  %v1087 = vunpack.c.l.b16 %v156
  %v1088 = vunpack.c.l.b16 %v157
  %v1089 = vunpack.c.h.b16 %v157
  %v1090 = vunpack.c.l.b16 %v158
  %v1091 = vunpack.c.l.b16 %v159
  %v1092 = vunpack.c.h.b16 %v159
  %v1093 = vunpack.c.l.b16 %v160
  %v1094 = vunpack.c.l.b16 %v161
  %v1095 = vunpack.c.h.b16 %v161
  %v1096 = vunpack.c.l.b16 %v162
  %v1097 = vunpack.c.l.b16 %v163
  %v1098 = vunpack.c.h.b16 %v163
  %v1099 = vunpack.c.l.b16 %v164
  %v1100 = vunpack.c.l.b16 %v165
  %v1101 = vunpack.c.h.b16 %v165
  %v1102 = vunpack.c.l.b16 %v166
  %v1103 = vunpack.c.l.b16 %v167
  %v1104 = vunpack.c.h.b16 %v167
  %v1105 = vunpack.c.l.b16 %v168
  %v1106 = vunpack.c.l.b16 %v169
  %v1107 = vunpack.c.h.b16 %v169
  %v1108 = vunpack.c.l.b16 %v170
  %v1109 = vunpack.c.l.b16 %v171
  %v1110 = vunpack.c.h.b16 %v171
  %v1111 = vunpack.c.l.b16 %v172
  %v1112 = vunpack.c.l.b16 %v173
  %v1113 = vunpack.c.h.b16 %v173
  %v1114 = vunpack.c.l.b16 %v174
  %v1115 = vunpack.c.l.b16 %v175
  %v1116 = vunpack.c.h.b16 %v175
  %v1117 = vunpack.c.l.b16 %v176
  %v1118 = vunpack.c.l.b16 %v177
  %v1119 = vunpack.c.h.b16 %v177
  %v1120 = vunpack.c.l.b16 %v178
  %v1121 = vunpack.c.l.b16 %v179
  %v1122 = vunpack.c.h.b16 %v179
  %v1123 = vunpack.c.l.b16 %v180
  %v1124 = vunpack.c.l.b16 %v181
  %v1125 = vunpack.c.h.b16 %v181
  %v1126 = vunpack.c.l.b16 %v182
  %v1127 = vunpack.c.l.b16 %v183
  %v1128 = vunpack.c.h.b16 %v183
  %v1129 = vunpack.c.l.b16 %v184
  %v1130 = vunpack.c.l.b16 %v185
  %v1131 = vunpack.c.h.b16 %v185
  %v1132 = vunpack.c.l.b16 %v186
  %v1133 = vunpack.c.l.b16 %v187
  %v1134 = vunpack.c.h.b16 %v187
  %v1135 = vunpack.c.l.b16 %v188
  %v1136 = vunpack.c.l.b16 %v189
  %v1137 = vunpack.c.h.b16 %v189
  %v1138 = vunpack.c.l.b16 %v190
  %v1139 = vunpack.c.l.b16 %v191
  %v1140 = vunpack.c.h.b16 %v191
  %v1141 = vunpack.c.l.b16 %v192
  %v1142 = vunpack.c.l.b16 %v193
  %v1143 = vunpack.c.h.b16 %v193
  %v1144 = vunpack.c.l.b16 %v194
  %v1145 = vunpack.c.l.b16 %v195
  %v1146 = vunpack.c.h.b16 %v195
  %v1147 = vunpack.c.l.b16 %v196
  %v1148 = vunpack.c.l.b16 %v197
  %v1149 = vunpack.c.h.b16 %v197
  %v1150 = vunpack.c.l.b16 %v198
  %v1151 = vunpack.c.l.b16 %v199
  %v1152 = vunpack.c.h.b16 %v199
  %v1153 = vunpack.c.l.b16 %v200
  %v1154 = vunpack.c.l.b16 %v201
  %v1155 = vunpack.c.h.b16 %v201
  %v1156 = vunpack.c.l.b16 %v202
  %v1157 = vunpack.c.l.b16 %v203
  %v1158 = vunpack.c.h.b16 %v203
  %v1159 = vunpack.c.l.b16 %v204
  %v1160 = vunpack.c.l.b16 %v205
  %v1161 = vunpack.c.h.b16 %v205
  %v1162 = vunpack.c.l.b16 %v206
  %v1163 = vunpack.c.l.b16 %v207
  %v1164 = vunpack.c.h.b16 %v207
  %v1165 = vunpack.c.l.b16 %v208
  %v1166 = vunpack.c.l.b16 %v209
  %v1167 = vunpack.c.h.b16 %v209
  %v1168 = vunpack.c.l.b16 %v210
  %v1169 = vunpack.c.l.b16 %v211
  %v1170 = vunpack.c.h.b16 %v211
  %v1171 = vunpack.c.l.b16 %v212
  %v1172 = vunpack.c.l.b16 %v213
  %v1173 = vunpack.c.h.b16 %v213
  %v1174 = vunpack.c.l.b16 %v214
  %v1175 = vunpack.c.l.b16 %v215
  %v1176 = vunpack.c.h.b16 %v215
  %v1177 = vunpack.c.l.b16 %v216
  %v1178 = vunpack.c.l.b16 %v217
  %v1179 = vunpack.c.h.b16 %v217
  %v1180 = vunpack.c.l.b16 %v218
  %v1181 = vunpack.c.l.b16 %v219
  %v1182 = vunpack.c.h.b16 %v219
  %v1183 = vunpack.c.l.b16 %v220
  %v1184 = vunpack.c.l.b16 %v221
  %v1185 = vunpack.c.h.b16 %v221
  %v1186 = vunpack.c.l.b16 %v222
  %v1187 = vunpack.c.l.b16 %v223
  %v1188 = vunpack.c.h.b16 %v223
  %v1189 = vunpack.c.l.b16 %v224
  %v1190 = vunpack.c.l.b16 %v225
  %v1191 = vunpack.c.h.b16 %v225
  %v1192 = vunpack.c.l.b16 %v226
  %v1193 = vunpack.c.l.b16 %v227
  %v1194 = vunpack.c.h.b16 %v227
  %v1195 = vunpack.c.l.b16 %v228
  %v1196 = vunpack.c.l.b16 %v229
  %v1197 = vunpack.c.h.b16 %v229
  %v1198 = vunpack.c.l.b16 %v230
  %v1199 = vunpack.c.l.b16 %v231
  %v1200 = vunpack.c.h.b16 %v231
  %v1201 = vunpack.c.l.b16 %v232
  %v1202 = vunpack.c.l.b16 %v233
  %v1203 = vunpack.c.h.b16 %v233
  %v1204 = vunpack.c.l.b16 %v234
  %v1205 = vunpack.c.l.b16 %v235
  %v1206 = vunpack.c.h.b16 %v235
  %v1207 = vunpack.c.l.b16 %v236
  %v1208 = vunpack.c.l.b16 %v237
  %v1209 = vunpack.c.h.b16 %v237
  %v1210 = vunpack.c.l.b16 %v238
  %v1211 = vunpack.c.l.b16 %v239
  %v1212 = vunpack.c.h.b16 %v239
  %v1213 = vunpack.c.l.b16 %v240
  %v1214 = vunpack.c.l.b16 %v241
  %v1215 = vunpack.c.h.b16 %v241
  %v1216 = vunpack.c.l.b16 %v242
  %v1217 = vunpack.c.l.b16 %v243
  %v1218 = vunpack.c.h.b16 %v243
  %v1219 = vunpack.c.l.b16 %v244
  %v1220 = vunpack.c.l.b16 %v245
  %v1221 = vunpack.c.h.b16 %v245
  %v1222 = vunpack.c.l.b16 %v246
  %v1223 = vunpack.c.l.b16 %v247
  %v1224 = vunpack.c.h.b16 %v247
  %v1225 = vunpack.c.l.b16 %v248
  %v1226 = vunpack.c.l.b16 %v249
  %v1227 = vunpack.c.h.b16 %v249
  %v1228 = vunpack.c.l.b16 %v250
  %v1229 = vunpack.c.l.b16 %v251
  %v1230 = vunpack.c.h.b16 %v251
  %v1231 = vunpack.c.l.b16 %v252
  %v1232 = vunpack.c.l.b16 %v253
  %v1233 = vunpack.c.h.b16 %v253
  %v1234 = vunpack.c.l.b16 %v254
  %v1235 = vunpack.c.l.b16 %v255
  %v1236 = vunpack.c.h.b16 %v255
  %v1237 = vunpack.c.l.b16 %v256
  %v1238 = vunpack.c.l.b16 %v257
  %v1239 = vunpack.c.h.b16 %v257
  %v1240 = vunpack.c.l.b16 %v258
  %v1241 = vunpack.c.l.b16 %v259
  %v1242 = vunpack.c.h.b16 %v259
  %v1243 = vunpack.c.l.b16 %v260
  %v1244 = vunpack.c.l.b16 %v261
  %v1245 = vunpack.c.h.b16 %v261
  %v1246 = vunpack.c.l.b16 %v262
  %v1247 = vunpack.c.l.b16 %v263
  %v1248 = vunpack.c.h.b16 %v263
  %v1249 = vunpack.c.l.b16 %v264
  %v1250 = vunpack.c.l.b16 %v265
  %v1251 = vunpack.c.h.b16 %v265
  %v1252 = vunpack.c.l.b16 %v266
  %v1253 = vunpack.c.l.b16 %v267
  %v1254 = vunpack.c.h.b16 %v267
  %v1255 = vunpack.c.l.b16 %v268
  %v1256 = vunpack.c.l.b16 %v269
  %v1257 = vunpack.c.h.b16 %v269
  %v1258 = vunpack.c.l.b16 %v270
  %v1259 = vunpack.c.l.b16 %v271
  %v1260 = vunpack.c.h.b16 %v271
  %v1261 = vunpack.c.l.b16 %v272
  %v1262 = vunpack.c.l.b16 %v273
  %v1263 = vunpack.c.h.b16 %v273
  %v1264 = vunpack.c.l.b16 %v274
  %v1265 = vunpack.c.l.b16 %v275
  %v1266 = vunpack.c.h.b16 %v275
  %v1267 = vunpack.c.l.b16 %v276
  %v1268 = vunpack.c.l.b16 %v277
  %v1269 = vunpack.c.h.b16 %v277
  %v1270 = vunpack.c.l.b16 %v278
  %v1271 = vunpack.c.l.b16 %v279
  %v1272 = vunpack.c.h.b16 %v279
  %v1273 = vunpack.c.l.b16 %v280
  %v1274 = vunpack.c.l.b16 %v281
  %v1275 = vunpack.c.h.b16 %v281
  %v1276 = vunpack.c.l.b16 %v282
  %v1277 = vunpack.c.l.b16 %v283
  %v1278 = vunpack.c.h.b16 %v283
  %v1279 = vunpack.c.l.b16 %v284
  %v1280 = vunpack.c.l.b16 %v285
  %v1281 = vunpack.c.h.b16 %v285
  %v1282 = vunpack.c.l.b16 %v286
  %v1283 = vunpack.c.l.b16 %v287
  %v1284 = vunpack.c.h.b16 %v287
  %v1285 = vunpack.c.l.b16 %v288
  %v1286 = vunpack.c.l.b16 %v289
  %v1287 = vunpack.c.h.b16 %v289
  %v1288 = vunpack.c.l.b16 %v290
  %v1289 = vunpack.c.l.b16 %v291
  %v1290 = vunpack.c.h.b16 %v291
  %v1291 = vunpack.c.l.b16 %v292
  %v1292 = vunpack.c.l.b16 %v293
  %v1293 = vunpack.c.h.b16 %v293
  %v1294 = vunpack.c.l.b16 %v294
  %v1295 = vunpack.c.l.b16 %v295
  %v1296 = vunpack.c.h.b16 %v295
  %v1297 = vunpack.c.l.b16 %v296
  %v1298 = vunpack.c.l.b16 %v297
  %v1299 = vunpack.c.h.b16 %v297
  %v1300 = vunpack.c.l.b16 %v298
  %v1301 = vunpack.c.l.b16 %v299
  %v1302 = vunpack.c.h.b16 %v299
  %v1303 = vunpack.c.l.b16 %v300
  %v1304 = vunpack.c.l.b16 %v301
  %v1305 = vunpack.c.h.b16 %v301
  %v1306 = vunpack.c.l.b16 %v302
  %v1307 = vunpack.c.l.b16 %v303
  %v1308 = vunpack.c.h.b16 %v303
  %v1309 = vunpack.c.l.b16 %v304
  %v1310 = vunpack.c.l.b16 %v305
  %v1311 = vunpack.c.h.b16 %v305
  %v1312 = vunpack.c.l.b16 %v306
  %v1313 = vunpack.c.l.b16 %v307
  %v1314 = vunpack.c.h.b16 %v307
  %v1315 = vunpack.c.l.b16 %v308
  %v1316 = vunpack.c.l.b16 %v309
  %v1317 = vunpack.c.h.b16 %v309
  %v1318 = vunpack.c.l.b16 %v310
  %v1319 = vunpack.c.l.b16 %v311
  %v1320 = vunpack.c.h.b16 %v311
  %v1321 = vunpack.c.l.b16 %v312
  %v1322 = vunpack.c.l.b16 %v313
  %v1323 = vunpack.c.h.b16 %v313
  %v1324 = vunpack.c.l.b16 %v314
  %v1325 = vunpack.c.l.b16 %v315
  %v1326 = vunpack.c.h.b16 %v315
  %v1327 = vunpack.c.l.b16 %v316
  %v1328 = vunpack.c.l.b16 %v317
  %v1329 = vunpack.c.h.b16 %v317
  %v1330 = vunpack.c.l.b16 %v318
  %v1331 = vunpack.c.l.b16 %v319
  %v1332 = vunpack.c.h.b16 %v319
  %v1333 = vunpack.c.l.b16 %v320
  %v1334 = vunpack.c.l.b16 %v321
  %v1335 = vunpack.c.h.b16 %v321
  %v1336 = vunpack.c.l.b16 %v322
  %v1337 = vunpack.c.l.b16 %v323
  %v1338 = vunpack.c.h.b16 %v323
  %v1339 = vunpack.c.l.b16 %v324
  %v1340 = vunpack.c.l.b16 %v325
  %v1341 = vunpack.c.h.b16 %v325
  %v1342 = vunpack.c.l.b16 %v326
  %v1343 = vunpack.c.l.b16 %v327
  %v1344 = vunpack.c.h.b16 %v327
  %v1345 = vunpack.c.l.b16 %v328
  %v1346 = vunpack.c.l.b16 %v329
  %v1347 = vunpack.c.h.b16 %v329
  %v1348 = vunpack.c.l.b16 %v330
  %v1349 = vunpack.c.l.b16 %v331
  %v1350 = vunpack.c.h.b16 %v331
  %v1351 = vunpack.c.l.b16 %v332
  %v1352 = vunpack.c.l.b16 %v333
  %v1353 = vunpack.c.h.b16 %v333
  %v1354 = vunpack.c.l.b16 %v334
  %v1355 = vunpack.c.l.b16 %v335
  %v1356 = vunpack.c.h.b16 %v335
  %v1357 = vunpack.c.l.b16 %v336
  %v1358 = vunpack.c.l.b16 %v337
  %v1359 = vunpack.c.h.b16 %v337
  %v1360 = vunpack.c.l.b16 %v338
  %v1361 = vunpack.c.l.b16 %v339
  %v1362 = vunpack.c.h.b16 %v339
  %v1363 = vunpack.c.l.b16 %v340
  %v1364 = vunpack.c.l.b16 %v341
  %v1365 = vunpack.c.h.b16 %v341
  %v1366 = vunpack.c.l.b16 %v342
  %v1367 = vunpack.c.l.b16 %v343
  %v1368 = vunpack.c.h.b16 %v343
  %v1369 = vunpack.c.l.b16 %v344
  %v1370 = vunpack.c.l.b16 %v345
  %v1371 = vunpack.c.h.b16 %v345
  %v1372 = vunpack.c.l.b16 %v346
  %v1373 = vunpack.c.l.b16 %v347
  %v1374 = vunpack.c.h.b16 %v347
  %v1375 = vunpack.c.l.b16 %v348
  %v1376 = vunpack.c.l.b16 %v349
  %v1377 = vunpack.c.h.b16 %v349
  %v1378 = vunpack.c.l.b16 %v350
  %v1379 = vunpack.c.l.b16 %v351
  %v1380 = vunpack.c.h.b16 %v351
  %v1381 = vunpack.c.l.b16 %v352
  %v1382 = vunpack.c.l.b16 %v353
  %v1383 = vunpack.c.h.b16 %v353
  %v1384 = vunpack.c.l.b16 %v354
  %v1385 = vunpack.c.l.b16 %v355
  %v1386 = vunpack.c.h.b16 %v355
  %v1387 = vunpack.c.l.b16 %v356
  %v1388 = vunpack.c.l.b16 %v357
  %v1389 = vunpack.c.h.b16 %v357
  %v1390 = vunpack.c.l.b16 %v358
  %v1391 = vunpack.c.l.b16 %v359
  %v1392 = vunpack.c.h.b16 %v359
  %v1393 = vunpack.c.l.b16 %v360
  %v1394 = vunpack.c.l.b16 %v361
  %v1395 = vunpack.c.h.b16 %v361
  %v1396 = vunpack.c.l.b16 %v362
  %v1397 = vunpack.c.l.b16 %v363
  %v1398 = vunpack.c.h.b16 %v363
  %v1399 = vunpack.c.l.b16 %v364
  %v1400 = vunpack.c.l.b16 %v365
  %v1401 = vunpack.c.h.b16 %v365
  %v1402 = vunpack.c.l.b16 %v366
  %v1403 = vunpack.c.l.b16 %v367
  %v1404 = vunpack.c.h.b16 %v367
  %v1405 = vunpack.c.l.b16 %v368
  %v1406 = vunpack.c.l.b16 %v369
  %v1407 = vunpack.c.h.b16 %v369
  %v1408 = vunpack.c.l.b16 %v370
  %v1409 = vunpack.c.l.b16 %v371
  %v1410 = vunpack.c.h.b16 %v371
  %v1411 = vunpack.c.l.b16 %v372
  %v1412 = vunpack.c.l.b16 %v373
  %v1413 = vunpack.c.h.b16 %v373
  %v1414 = vunpack.c.l.b16 %v374
  %v1415 = vunpack.c.l.b16 %v375
  %v1416 = vunpack.c.h.b16 %v375
  %v1417 = vunpack.c.l.b16 %v376
  %v1418 = vunpack.c.l.b16 %v377
  %v1419 = vunpack.c.h.b16 %v377
  %v1420 = vunpack.c.l.b16 %v378
  %v1421 = vunpack.c.l.b16 %v379
  %v1422 = vunpack.c.h.b16 %v379
  %v1423 = vunpack.c.l.b16 %v380
  %v1424 = vunpack.c.l.b16 %v381
  %v1425 = vunpack.c.h.b16 %v381
  %v1426 = vunpack.c.l.b16 %v382
  %v1427 = vunpack.c.l.b16 %v383
  %v1428 = vunpack.c.h.b16 %v383
  %v1429 = vunpack.c.l.b16 %v384
  %v1430 = vunpack.c.l.b16 %v385
  %v1431 = vunpack.c.h.b16 %v385
  %v1432 = vunpack.c.l.b16 %v386
  %v1433 = vunpack.c.l.b16 %v387
  %v1434 = vunpack.c.h.b16 %v387
  %v1435 = vunpack.c.l.b16 %v388
  %v1436 = vunpack.c.l.b16 %v389
  %v1437 = vunpack.c.h.b16 %v389
  %v1438 = vunpack.c.l.b16 %v390
  %v1439 = vunpack.c.l.b16 %v391
  %v1440 = vunpack.c.h.b16 %v391
  %v1441 = vunpack.c.l.b16 %v392
  %v1442 = vunpack.c.l.b16 %v393
  %v1443 = vunpack.c.h.b16 %v393
  %v1444 = vunpack.c.l.b16 %v394
  %v1445 = vunpack.c.l.b16 %v395
  %v1446 = vunpack.c.h.b16 %v395
  %v1447 = vunpack.c.l.b16 %v396
  %v1448 = vunpack.c.l.b16 %v397
  %v1449 = vunpack.c.h.b16 %v397
  %v1450 = vunpack.c.l.b16 %v398
  %v1451 = vunpack.c.l.b16 %v399
  %v1452 = vunpack.c.h.b16 %v399
  %v1453 = vunpack.c.l.b16 %v400
  %v1454 = vunpack.c.l.b16 %v401
  %v1455 = vunpack.c.h.b16 %v401
  %v1456 = vunpack.c.l.b16 %v402
  %v1457 = vunpack.c.l.b16 %v403
  %v1458 = vunpack.c.h.b16 %v403
  %v1459 = vunpack.c.l.b16 %v404
  %v1460 = vunpack.c.l.b16 %v405
  %v1461 = vunpack.c.h.b16 %v405
  %v1462 = vunpack.c.l.b16 %v406
  %v1463 = vunpack.c.l.b16 %v407
  %v1464 = vunpack.c.h.b16 %v407
  %v1465 = vunpack.c.l.b16 %v408
  %v1466 = vunpack.c.l.b16 %v409
  %v1467 = vunpack.c.h.b16 %v409
  %v1468 = vunpack.c.l.b16 %v410
  %v1469 = vunpack.c.l.b16 %v411
  %v1470 = vunpack.c.h.b16 %v411
  %v1471 = vunpack.c.l.b16 %v412
  %v1472 = vunpack.c.l.b16 %v413
  %v1473 = vunpack.c.h.b16 %v413
  %v1474 = vunpack.c.l.b16 %v414
  %v1475 = vunpack.c.l.b16 %v415
  %v1476 = vunpack.c.h.b16 %v415
  %v1477 = vunpack.c.l.b16 %v416
  %v1478 = vunpack.c.l.b16 %v417
  %v1479 = vunpack.c.h.b16 %v417
  %v1480 = vunpack.c.l.b16 %v418
  %v1481 = vunpack.c.l.b16 %v419
  %v1482 = vunpack.c.h.b16 %v419
  %v1483 = vunpack.c.l.b16 %v420
  %v1484 = vunpack.c.l.b16 %v421
  %v1485 = vunpack.c.h.b16 %v421
  %v1486 = vunpack.c.l.b16 %v422
  %v1487 = vunpack.c.l.b16 %v423
  %v1488 = vunpack.c.h.b16 %v423
  %v1489 = vunpack.c.l.b16 %v424
  %v1490 = vunpack.c.l.b16 %v425
  %v1491 = vunpack.c.h.b16 %v425
  %v1492 = vunpack.c.l.b16 %v426
  %v1493 = vunpack.c.l.b16 %v427
  %v1494 = vunpack.c.h.b16 %v427
  %v1495 = vunpack.c.l.b16 %v428
  %v1496 = vunpack.c.l.b16 %v429
  %v1497 = vunpack.c.h.b16 %v429
  %v1498 = vunpack.c.l.b16 %v430
  %v1499 = vunpack.c.l.b16 %v431
  %v1500 = vunpack.c.h.b16 %v431
  %v1501 = vunpack.c.l.b16 %v432
  %v1502 = vunpack.c.l.b16 %v433
  %v1503 = vunpack.c.h.b16 %v433
  %v1504 = vunpack.c.l.b16 %v434
  %v1505 = vunpack.c.l.b16 %v435
  %v1506 = vunpack.c.h.b16 %v435
  %v1507 = vunpack.c.l.b16 %v436
  %v1508 = vunpack.c.l.b16 %v437
  %v1509 = vunpack.c.h.b16 %v437
  %v1510 = vunpack.c.l.b16 %v438
  %v1511 = vunpack.c.l.b16 %v439
  %v1512 = vunpack.c.h.b16 %v439
  %v1513 = vunpack.c.l.b16 %v440
  %v1514 = vpack.c.b16 %v917, %v914
  %v1515 = vpack.c.b16 %v918, %v915
  %v1516 = vpack.c.b16 %v919, %v916
  %v1517 = vpack.c.b16 %v923, %v920
  %v1518 = vpack.c.b16 %v924, %v921
  %v1519 = vpack.c.b16 %v925, %v922
  %v1520 = vpack.c.b16 %v929, %v926
  %v1521 = vpack.c.b16 %v930, %v927
  %v1522 = vpack.c.b16 %v931, %v928
  %v1523 = vpack.c.b16 %v935, %v932
  %v1524 = vpack.c.b16 %v936, %v933
  %v1525 = vpack.c.b16 %v937, %v934
  %v1526 = vpack.c.b16 %v941, %v938
  %v1527 = vpack.c.b16 %v942, %v939
  %v1528 = vpack.c.b16 %v943, %v940
  %v1529 = vpack.c.b16 %v947, %v944
  %v1530 = vpack.c.b16 %v948, %v945
  %v1531 = vpack.c.b16 %v949, %v946
  %v1532 = vpack.c.b16 %v953, %v950
  %v1533 = vpack.c.b16 %v954, %v951
  %v1534 = vpack.c.b16 %v955, %v952
  %v1535 = vpack.c.b16 %v959, %v956
  %v1536 = vpack.c.b16 %v960, %v957
  %v1537 = vpack.c.b16 %v961, %v958
  %v1538 = vpack.c.b16 %v965, %v962
  %v1539 = vpack.c.b16 %v966, %v963
  %v1540 = vpack.c.b16 %v967, %v964
  %v1541 = vpack.c.b16 %v971, %v968
  %v1542 = vpack.c.b16 %v972, %v969
  %v1543 = vpack.c.b16 %v973, %v970
  %v1544 = vpack.c.b16 %v977, %v974
  %v1545 = vpack.c.b16 %v978, %v975
  %v1546 = vpack.c.b16 %v979, %v976
  %v1547 = vpack.c.b16 %v983, %v980
  %v1548 = vpack.c.b16 %v984, %v981
  %v1549 = vpack.c.b16 %v985, %v982
  %v1550 = vpack.c.b16 %v989, %v986
  %v1551 = vpack.c.b16 %v990, %v987
  %v1552 = vpack.c.b16 %v991, %v988
  %v1553 = vpack.c.b16 %v995, %v992
  %v1554 = vpack.c.b16 %v996, %v993
  %v1555 = vpack.c.b16 %v997, %v994
  %v1556 = vpack.c.b16 %v1001, %v998
  %v1557 = vpack.c.b16 %v1002, %v999
  %v1558 = vpack.c.b16 %v1003, %v1000
  %v1559 = vpack.c.b16 %v1007, %v1004
  %v1560 = vpack.c.b16 %v1008, %v1005
  %v1561 = vpack.c.b16 %v1009, %v1006
  %v1562 = vpack.c.b16 %v1013, %v1010
  %v1563 = vpack.c.b16 %v1014, %v1011
  %v1564 = vpack.c.b16 %v1015, %v1012
  %v1565 = vpack.c.b16 %v1019, %v1016
  %v1566 = vpack.c.b16 %v1020, %v1017
  %v1567 = vpack.c.b16 %v1021, %v1018
  %v1568 = vpack.c.b16 %v1025, %v1022
  %v1569 = vpack.c.b16 %v1026, %v1023
  %v1570 = vpack.c.b16 %v1027, %v1024
  %v1571 = vpack.c.b16 %v1031, %v1028
  %v1572 = vpack.c.b16 %v1032, %v1029
  %v1573 = vpack.c.b16 %v1033, %v1030
  %v1574 = vpack.c.b16 %v1037, %v1034
  %v1575 = vpack.c.b16 %v1038, %v1035
  %v1576 = vpack.c.b16 %v1039, %v1036
  %v1577 = vpack.c.b16 %v1043, %v1040
  %v1578 = vpack.c.b16 %v1044, %v1041
  %v1579 = vpack.c.b16 %v1045, %v1042
  %v1580 = vpack.c.b16 %v1049, %v1046
  %v1581 = vpack.c.b16 %v1050, %v1047
  %v1582 = vpack.c.b16 %v1051, %v1048
  %v1583 = vpack.c.b16 %v1055, %v1052
  %v1584 = vpack.c.b16 %v1056, %v1053
  %v1585 = vpack.c.b16 %v1057, %v1054
  %v1586 = vpack.c.b16 %v1061, %v1058
  %v1587 = vpack.c.b16 %v1062, %v1059
  %v1588 = vpack.c.b16 %v1063, %v1060
  %v1589 = vpack.c.b16 %v1067, %v1064
  %v1590 = vpack.c.b16 %v1068, %v1065
  %v1591 = vpack.c.b16 %v1069, %v1066
  %v1592 = vpack.c.b16 %v1073, %v1070
  %v1593 = vpack.c.b16 %v1074, %v1071
  %v1594 = vpack.c.b16 %v1075, %v1072
  %v1595 = vpack.c.b16 %v1079, %v1076
  %v1596 = vpack.c.b16 %v1080, %v1077
  %v1597 = vpack.c.b16 %v1081, %v1078
  %v1598 = vpack.c.b16 %v1085, %v1082
  %v1599 = vpack.c.b16 %v1086, %v1083
  %v1600 = vpack.c.b16 %v1087, %v1084
  %v1601 = vpack.c.b16 %v1091, %v1088
  %v1602 = vpack.c.b16 %v1092, %v1089
  %v1603 = vpack.c.b16 %v1093, %v1090
  %v1604 = vpack.c.b16 %v1097, %v1094
  %v1605 = vpack.c.b16 %v1098, %v1095
  %v1606 = vpack.c.b16 %v1099, %v1096
  %v1607 = vpack.c.b16 %v1103, %v1100
  %v1608 = vpack.c.b16 %v1104, %v1101
  %v1609 = vpack.c.b16 %v1105, %v1102
  %v1610 = vpack.c.b16 %v1109, %v1106
  %v1611 = vpack.c.b16 %v1110, %v1107
  %v1612 = vpack.c.b16 %v1111, %v1108
  %v1613 = vpack.c.b16 %v1115, %v1112
  %v1614 = vpack.c.b16 %v1116, %v1113
  %v1615 = vpack.c.b16 %v1117, %v1114
  %v1616 = vpack.c.b16 %v1121, %v1118
  %v1617 = vpack.c.b16 %v1122, %v1119
  %v1618 = vpack.c.b16 %v1123, %v1120
  %v1619 = vpack.c.b16 %v1127, %v1124
  %v1620 = vpack.c.b16 %v1128, %v1125
  %v1621 = vpack.c.b16 %v1129, %v1126
  %v1622 = vpack.c.b16 %v1133, %v1130
  %v1623 = vpack.c.b16 %v1134, %v1131
  %v1624 = vpack.c.b16 %v1135, %v1132
  %v1625 = vpack.c.b16 %v1139, %v1136
  %v1626 = vpack.c.b16 %v1140, %v1137
  %v1627 = vpack.c.b16 %v1141, %v1138
  %v1628 = vpack.c.b16 %v1145, %v1142
  %v1629 = vpack.c.b16 %v1146, %v1143
  %v1630 = vpack.c.b16 %v1147, %v1144
  %v1631 = vpack.c.b16 %v1151, %v1148
  %v1632 = vpack.c.b16 %v1152, %v1149
  %v1633 = vpack.c.b16 %v1153, %v1150
  %v1634 = vpack.c.b16 %v1157, %v1154
  %v1635 = vpack.c.b16 %v1158, %v1155
  %v1636 = vpack.c.b16 %v1159, %v1156
  %v1637 = vpack.c.b16 %v1163, %v1160
  %v1638 = vpack.c.b16 %v1164, %v1161
  %v1639 = vpack.c.b16 %v1165, %v1162
  %v1640 = vpack.c.b16 %v1169, %v1166
  %v1641 = vpack.c.b16 %v1170, %v1167
  %v1642 = vpack.c.b16 %v1171, %v1168
  %v1643 = vpack.c.b16 %v1175, %v1172
  %v1644 = vpack.c.b16 %v1176, %v1173
  %v1645 = vpack.c.b16 %v1177, %v1174
  %v1646 = vpack.c.b16 %v1181, %v1178
  %v1647 = vpack.c.b16 %v1182, %v1179
  %v1648 = vpack.c.b16 %v1183, %v1180
  %v1649 = vpack.c.b16 %v1187, %v1184
  %v1650 = vpack.c.b16 %v1188, %v1185
  %v1651 = vpack.c.b16 %v1189, %v1186
  %v1652 = vpack.c.b16 %v1193, %v1190
  %v1653 = vpack.c.b16 %v1194, %v1191
  %v1654 = vpack.c.b16 %v1195, %v1192
  %v1655 = vpack.c.b16 %v1199, %v1196
  %v1656 = vpack.c.b16 %v1200, %v1197
  %v1657 = vpack.c.b16 %v1201, %v1198
  %v1658 = vpack.c.b16 %v1205, %v1202
  %v1659 = vpack.c.b16 %v1206, %v1203
  %v1660 = vpack.c.b16 %v1207, %v1204
  %v1661 = vpack.c.b16 %v1211, %v1208
  %v1662 = vpack.c.b16 %v1212, %v1209
  %v1663 = vpack.c.b16 %v1213, %v1210
  %v1664 = vpack.c.b16 %v1217, %v1214
  %v1665 = vpack.c.b16 %v1218, %v1215
  %v1666 = vpack.c.b16 %v1219, %v1216
  %v1667 = vpack.c.b16 %v1223, %v1220
  %v1668 = vpack.c.b16 %v1224, %v1221
  %v1669 = vpack.c.b16 %v1225, %v1222
  %v1670 = vpack.c.b16 %v1229, %v1226
  %v1671 = vpack.c.b16 %v1230, %v1227
  %v1672 = vpack.c.b16 %v1231, %v1228
  %v1673 = vpack.c.b16 %v1235, %v1232
  %v1674 = vpack.c.b16 %v1236, %v1233
  %v1675 = vpack.c.b16 %v1237, %v1234
  %v1676 = vpack.c.b16 %v1241, %v1238
  %v1677 = vpack.c.b16 %v1242, %v1239
  %v1678 = vpack.c.b16 %v1243, %v1240
  %v1679 = vpack.c.b16 %v1247, %v1244
  %v1680 = vpack.c.b16 %v1248, %v1245
  %v1681 = vpack.c.b16 %v1249, %v1246
  %v1682 = vpack.c.b16 %v1253, %v1250
  %v1683 = vpack.c.b16 %v1254, %v1251
  %v1684 = vpack.c.b16 %v1255, %v1252
  %v1685 = vpack.c.b16 %v1259, %v1256
  %v1686 = vpack.c.b16 %v1260, %v1257
  %v1687 = vpack.c.b16 %v1261, %v1258
  %v1688 = vpack.c.b16 %v1265, %v1262
  %v1689 = vpack.c.b16 %v1266, %v1263
  %v1690 = vpack.c.b16 %v1267, %v1264
  %v1691 = vpack.c.b16 %v1271, %v1268
  %v1692 = vpack.c.b16 %v1272, %v1269
  %v1693 = vpack.c.b16 %v1273, %v1270
  %v1694 = vpack.c.b16 %v1277, %v1274
  %v1695 = vpack.c.b16 %v1278, %v1275
  %v1696 = vpack.c.b16 %v1279, %v1276
  %v1697 = vpack.c.b16 %v1283, %v1280
  %v1698 = vpack.c.b16 %v1284, %v1281
  %v1699 = vpack.c.b16 %v1285, %v1282
  %v1700 = vpack.c.b16 %v1289, %v1286
  %v1701 = vpack.c.b16 %v1290, %v1287
  %v1702 = vpack.c.b16 %v1291, %v1288
  %v1703 = vpack.c.b16 %v1295, %v1292
  %v1704 = vpack.c.b16 %v1296, %v1293
  %v1705 = vpack.c.b16 %v1297, %v1294
  %v1706 = vpack.c.b16 %v1301, %v1298
  %v1707 = vpack.c.b16 %v1302, %v1299
  %v1708 = vpack.c.b16 %v1303, %v1300
  %v1709 = vpack.c.b16 %v1307, %v1304
  %v1710 = vpack.c.b16 %v1308, %v1305
  %v1711 = vpack.c.b16 %v1309, %v1306
  %v1712 = vpack.c.b16 %v1313, %v1310
  %v1713 = vpack.c.b16 %v1314, %v1311
  %v1714 = vpack.c.b16 %v1315, %v1312
  %v1715 = vpack.c.b16 %v1319, %v1316
  %v1716 = vpack.c.b16 %v1320, %v1317
  %v1717 = vpack.c.b16 %v1321, %v1318
  %v1718 = vpack.c.b16 %v1325, %v1322
  %v1719 = vpack.c.b16 %v1326, %v1323
  %v1720 = vpack.c.b16 %v1327, %v1324
  %v1721 = vpack.c.b16 %v1331, %v1328
  %v1722 = vpack.c.b16 %v1332, %v1329
  %v1723 = vpack.c.b16 %v1333, %v1330
  %v1724 = vpack.c.b16 %v1337, %v1334
  %v1725 = vpack.c.b16 %v1338, %v1335
  %v1726 = vpack.c.b16 %v1339, %v1336
  %v1727 = vpack.c.b16 %v1343, %v1340
  %v1728 = vpack.c.b16 %v1344, %v1341
  %v1729 = vpack.c.b16 %v1345, %v1342
  %v1730 = vpack.c.b16 %v1349, %v1346
  %v1731 = vpack.c.b16 %v1350, %v1347
  %v1732 = vpack.c.b16 %v1351, %v1348
  %v1733 = vpack.c.b16 %v1355, %v1352
  %v1734 = vpack.c.b16 %v1356, %v1353
  %v1735 = vpack.c.b16 %v1357, %v1354
  %v1736 = vpack.c.b16 %v1361, %v1358
  %v1737 = vpack.c.b16 %v1362, %v1359
  %v1738 = vpack.c.b16 %v1363, %v1360
  %v1739 = vpack.c.b16 %v1367, %v1364
  %v1740 = vpack.c.b16 %v1368, %v1365
  %v1741 = vpack.c.b16 %v1369, %v1366
  %v1742 = vpack.c.b16 %v1373, %v1370
  %v1743 = vpack.c.b16 %v1374, %v1371
  %v1744 = vpack.c.b16 %v1375, %v1372
  %v1745 = vpack.c.b16 %v1379, %v1376
  %v1746 = vpack.c.b16 %v1380, %v1377
  %v1747 = vpack.c.b16 %v1381, %v1378
  %v1748 = vpack.c.b16 %v1385, %v1382
  %v1749 = vpack.c.b16 %v1386, %v1383
  %v1750 = vpack.c.b16 %v1387, %v1384
  %v1751 = vpack.c.b16 %v1391, %v1388
  %v1752 = vpack.c.b16 %v1392, %v1389
  %v1753 = vpack.c.b16 %v1393, %v1390
  %v1754 = vpack.c.b16 %v1397, %v1394
  %v1755 = vpack.c.b16 %v1398, %v1395
  %v1756 = vpack.c.b16 %v1399, %v1396
  %v1757 = vpack.c.b16 %v1403, %v1400
  %v1758 = vpack.c.b16 %v1404, %v1401
  %v1759 = vpack.c.b16 %v1405, %v1402
  %v1760 = vpack.c.b16 %v1409, %v1406
  %v1761 = vpack.c.b16 %v1410, %v1407
  %v1762 = vpack.c.b16 %v1411, %v1408
  %v1763 = vpack.c.b16 %v1415, %v1412
  %v1764 = vpack.c.b16 %v1416, %v1413
  %v1765 = vpack.c.b16 %v1417, %v1414
  %v1766 = vpack.c.b16 %v1421, %v1418
  %v1767 = vpack.c.b16 %v1422, %v1419
  %v1768 = vpack.c.b16 %v1423, %v1420
  %v1769 = vpack.c.b16 %v1427, %v1424
  %v1770 = vpack.c.b16 %v1428, %v1425
  %v1771 = vpack.c.b16 %v1429, %v1426
  %v1772 = vpack.c.b16 %v1433, %v1430
  %v1773 = vpack.c.b16 %v1434, %v1431
  %v1774 = vpack.c.b16 %v1435, %v1432
  %v1775 = vpack.c.b16 %v1439, %v1436
  %v1776 = vpack.c.b16 %v1440, %v1437
  %v1777 = vpack.c.b16 %v1441, %v1438
  %v1778 = vpack.c.b16 %v1445, %v1442
  %v1779 = vpack.c.b16 %v1446, %v1443
  %v1780 = vpack.c.b16 %v1447, %v1444
  %v1781 = vpack.c.b16 %v1451, %v1448
  %v1782 = vpack.c.b16 %v1452, %v1449
  %v1783 = vpack.c.b16 %v1453, %v1450
  %v1784 = vpack.c.b16 %v1457, %v1454
  %v1785 = vpack.c.b16 %v1458, %v1455
  %v1786 = vpack.c.b16 %v1459, %v1456
  %v1787 = vpack.c.b16 %v1463, %v1460
  %v1788 = vpack.c.b16 %v1464, %v1461
  %v1789 = vpack.c.b16 %v1465, %v1462
  %v1790 = vpack.c.b16 %v1469, %v1466
  %v1791 = vpack.c.b16 %v1470, %v1467
  %v1792 = vpack.c.b16 %v1471, %v1468
  %v1793 = vpack.c.b16 %v1475, %v1472
  %v1794 = vpack.c.b16 %v1476, %v1473
  %v1795 = vpack.c.b16 %v1477, %v1474
  %v1796 = vpack.c.b16 %v1481, %v1478
  %v1797 = vpack.c.b16 %v1482, %v1479
  %v1798 = vpack.c.b16 %v1483, %v1480
  %v1799 = vpack.c.b16 %v1487, %v1484
  %v1800 = vpack.c.b16 %v1488, %v1485
  %v1801 = vpack.c.b16 %v1489, %v1486
  %v1802 = vpack.c.b16 %v1493, %v1490
  %v1803 = vpack.c.b16 %v1494, %v1491
  %v1804 = vpack.c.b16 %v1495, %v1492
  %v1805 = vpack.c.b16 %v1499, %v1496
  %v1806 = vpack.c.b16 %v1500, %v1497
  %v1807 = vpack.c.b16 %v1501, %v1498
  %v1808 = vpack.c.b16 %v1505, %v1502
  %v1809 = vpack.c.b16 %v1506, %v1503
  %v1810 = vpack.c.b16 %v1507, %v1504
  %v1811 = vpack.c.b16 %v1511, %v1508
  %v1812 = vpack.c.b16 %v1512, %v1509
  %v1813 = vpack.c.b16 %v1513, %v1510
  %vm2114 = vcmask 523264
  %v2116 = vsel %vm2114, %v501, 0
  %2118 = vmatpush.bf16.msra.mxu0 %v1535
  %2119 = vmatpush.bf16.msra.mxu0 %v1532
  %2120 = vmatpush.bf16.msra.mxu0 %v1529
  %2121 = vmatpush.bf16.msra.mxu0 %v1526
  %2122 = vmatpush.bf16.msra.mxu0 %v1523
  %2123 = vmatpush.bf16.msra.mxu0 %v1520
  %2124 = vmatpush.bf16.msra.mxu0 %v1517
  %2125 = vmatpush.bf16.msra.mxu0 %v1514
  %2126 = vmatmul.bf16.gmra.mxu0 %v489
  %v2127 = vpop.f32.mrf.mxu0
  %v2128 = vadd.f32 %v443, %v2127
  %v2129 = vpop.f32.mrf.mxu0
  %v2130 = vadd.f32 %v443, %v2129
  %2131 = vdwg.mxu0
  %2132 = vmatpush.bf16.msra.mxu0 %v1559
  %2133 = vmatpush.bf16.msra.mxu0 %v1556
  %2134 = vmatpush.bf16.msra.mxu0 %v1553
  %2135 = vmatpush.bf16.msra.mxu0 %v1550
  %2136 = vmatpush.bf16.msra.mxu0 %v1547
  %2137 = vmatpush.bf16.msra.mxu0 %v1544
  %2138 = vmatpush.bf16.msra.mxu0 %v1541
  %2139 = vmatpush.bf16.msra.mxu0 %v1538
  %2140 = vmatmul.bf16.gmra.mxu0 %v490
  %v2141 = vpop.f32.mrf.mxu0
  %v2142 = vadd.f32 %v2128, %v2141
  %v2143 = vpop.f32.mrf.mxu0
  %v2144 = vadd.f32 %v2130, %v2143
  %2145 = vdwg.mxu0
  %2146 = vmatpush.bf16.msra.mxu0 %v1583
  %2147 = vmatpush.bf16.msra.mxu0 %v1580
  %2148 = vmatpush.bf16.msra.mxu0 %v1577
  %2149 = vmatpush.bf16.msra.mxu0 %v1574
  %2150 = vmatpush.bf16.msra.mxu0 %v1571
  %2151 = vmatpush.bf16.msra.mxu0 %v1568
  %2152 = vmatpush.bf16.msra.mxu0 %v1565
  %2153 = vmatpush.bf16.msra.mxu0 %v1562
  %2154 = vmatmul.bf16.gmra.mxu0 %v491
  %v2155 = vpop.f32.mrf.mxu0
  %v2156 = vadd.f32 %v2142, %v2155
  %v2157 = vpop.f32.mrf.mxu0
  %v2158 = vadd.f32 %v2144, %v2157
  %2159 = vdwg.mxu0
  %2160 = vmatpush.bf16.msra.mxu0 %v1607
  %2161 = vmatpush.bf16.msra.mxu0 %v1604
  %2162 = vmatpush.bf16.msra.mxu0 %v1601
  %2163 = vmatpush.bf16.msra.mxu0 %v1598
  %2164 = vmatpush.bf16.msra.mxu0 %v1595
  %2165 = vmatpush.bf16.msra.mxu0 %v1592
  %2166 = vmatpush.bf16.msra.mxu0 %v1589
  %2167 = vmatpush.bf16.msra.mxu0 %v1586
  %2168 = vmatmul.bf16.gmra.mxu0 %v492
  %v2169 = vpop.f32.mrf.mxu0
  %v2170 = vadd.f32 %v2156, %v2169
  %v2171 = vpop.f32.mrf.mxu0
  %v2172 = vadd.f32 %v2158, %v2171
  %2173 = vdwg.mxu0
  %2174 = vmatpush.bf16.msra.mxu0 %v1631
  %2175 = vmatpush.bf16.msra.mxu0 %v1628
  %2176 = vmatpush.bf16.msra.mxu0 %v1625
  %2177 = vmatpush.bf16.msra.mxu0 %v1622
  %2178 = vmatpush.bf16.msra.mxu0 %v1619
  %2179 = vmatpush.bf16.msra.mxu0 %v1616
  %2180 = vmatpush.bf16.msra.mxu0 %v1613
  %2181 = vmatpush.bf16.msra.mxu0 %v1610
  %2182 = vmatmul.bf16.gmra.mxu0 %v493
  %v2183 = vpop.f32.mrf.mxu0
  %v2184 = vadd.f32 %v2170, %v2183
  %v2185 = vpop.f32.mrf.mxu0
  %v2186 = vadd.f32 %v2172, %v2185
  %2187 = vdwg.mxu0
  %2188 = vmatpush.bf16.msra.mxu0 %v1655
  %2189 = vmatpush.bf16.msra.mxu0 %v1652
  %2190 = vmatpush.bf16.msra.mxu0 %v1649
  %2191 = vmatpush.bf16.msra.mxu0 %v1646
  %2192 = vmatpush.bf16.msra.mxu0 %v1643
  %2193 = vmatpush.bf16.msra.mxu0 %v1640
  %2194 = vmatpush.bf16.msra.mxu0 %v1637
  %2195 = vmatpush.bf16.msra.mxu0 %v1634
  %2196 = vmatmul.bf16.gmra.mxu0 %v494
  %v2197 = vpop.f32.mrf.mxu0
  %v2198 = vadd.f32 %v2184, %v2197
  %v2199 = vpop.f32.mrf.mxu0
  %v2200 = vadd.f32 %v2186, %v2199
  %2201 = vdwg.mxu0
  %2202 = vmatpush.bf16.msra.mxu0 %v1679
  %2203 = vmatpush.bf16.msra.mxu0 %v1676
  %2204 = vmatpush.bf16.msra.mxu0 %v1673
  %2205 = vmatpush.bf16.msra.mxu0 %v1670
  %2206 = vmatpush.bf16.msra.mxu0 %v1667
  %2207 = vmatpush.bf16.msra.mxu0 %v1664
  %2208 = vmatpush.bf16.msra.mxu0 %v1661
  %2209 = vmatpush.bf16.msra.mxu0 %v1658
  %2210 = vmatmul.bf16.gmra.mxu0 %v495
  %v2211 = vpop.f32.mrf.mxu0
  %v2212 = vadd.f32 %v2198, %v2211
  %v2213 = vpop.f32.mrf.mxu0
  %v2214 = vadd.f32 %v2200, %v2213
  %2215 = vdwg.mxu0
  %2216 = vmatpush.bf16.msra.mxu0 %v1703
  %2217 = vmatpush.bf16.msra.mxu0 %v1700
  %2218 = vmatpush.bf16.msra.mxu0 %v1697
  %2219 = vmatpush.bf16.msra.mxu0 %v1694
  %2220 = vmatpush.bf16.msra.mxu0 %v1691
  %2221 = vmatpush.bf16.msra.mxu0 %v1688
  %2222 = vmatpush.bf16.msra.mxu0 %v1685
  %2223 = vmatpush.bf16.msra.mxu0 %v1682
  %2224 = vmatmul.bf16.gmra.mxu0 %v496
  %v2225 = vpop.f32.mrf.mxu0
  %v2226 = vadd.f32 %v2212, %v2225
  %v2227 = vpop.f32.mrf.mxu0
  %v2228 = vadd.f32 %v2214, %v2227
  %2229 = vdwg.mxu0
  %2230 = vmatpush.bf16.msra.mxu0 %v1727
  %2231 = vmatpush.bf16.msra.mxu0 %v1724
  %2232 = vmatpush.bf16.msra.mxu0 %v1721
  %2233 = vmatpush.bf16.msra.mxu0 %v1718
  %2234 = vmatpush.bf16.msra.mxu0 %v1715
  %2235 = vmatpush.bf16.msra.mxu0 %v1712
  %2236 = vmatpush.bf16.msra.mxu0 %v1709
  %2237 = vmatpush.bf16.msra.mxu0 %v1706
  %2238 = vmatmul.bf16.gmra.mxu0 %v497
  %v2239 = vpop.f32.mrf.mxu0
  %v2240 = vadd.f32 %v2226, %v2239
  %v2241 = vpop.f32.mrf.mxu0
  %v2242 = vadd.f32 %v2228, %v2241
  %2243 = vdwg.mxu0
  %2244 = vmatpush.bf16.msra.mxu0 %v1751
  %2245 = vmatpush.bf16.msra.mxu0 %v1748
  %2246 = vmatpush.bf16.msra.mxu0 %v1745
  %2247 = vmatpush.bf16.msra.mxu0 %v1742
  %2248 = vmatpush.bf16.msra.mxu0 %v1739
  %2249 = vmatpush.bf16.msra.mxu0 %v1736
  %2250 = vmatpush.bf16.msra.mxu0 %v1733
  %2251 = vmatpush.bf16.msra.mxu0 %v1730
  %2252 = vmatmul.bf16.gmra.mxu0 %v498
  %v2253 = vpop.f32.mrf.mxu0
  %v2254 = vadd.f32 %v2240, %v2253
  %v2255 = vpop.f32.mrf.mxu0
  %v2256 = vadd.f32 %v2242, %v2255
  %2257 = vdwg.mxu0
  %2258 = vmatpush.bf16.msra.mxu0 %v1775
  %2259 = vmatpush.bf16.msra.mxu0 %v1772
  %2260 = vmatpush.bf16.msra.mxu0 %v1769
  %2261 = vmatpush.bf16.msra.mxu0 %v1766
  %2262 = vmatpush.bf16.msra.mxu0 %v1763
  %2263 = vmatpush.bf16.msra.mxu0 %v1760
  %2264 = vmatpush.bf16.msra.mxu0 %v1757
  %2265 = vmatpush.bf16.msra.mxu0 %v1754
  %2266 = vmatmul.bf16.gmra.mxu0 %v499
  %v2267 = vpop.f32.mrf.mxu0
  %v2268 = vadd.f32 %v2254, %v2267
  %v2269 = vpop.f32.mrf.mxu0
  %v2270 = vadd.f32 %v2256, %v2269
  %2271 = vdwg.mxu0
  %2272 = vmatpush.bf16.msra.mxu0 %v1799
  %2273 = vmatpush.bf16.msra.mxu0 %v1796
  %2274 = vmatpush.bf16.msra.mxu0 %v1793
  %2275 = vmatpush.bf16.msra.mxu0 %v1790
  %2276 = vmatpush.bf16.msra.mxu0 %v1787
  %2277 = vmatpush.bf16.msra.mxu0 %v1784
  %2278 = vmatpush.bf16.msra.mxu0 %v1781
  %2279 = vmatpush.bf16.msra.mxu0 %v1778
  %2280 = vmatmul.bf16.gmra.mxu0 %v500
  %v2281 = vpop.f32.mrf.mxu0
  %v2282 = vadd.f32 %v2268, %v2281
  %v2283 = vpop.f32.mrf.mxu0
  %v2284 = vadd.f32 %v2270, %v2283
  %2285 = vdwg.mxu0
  %2286 = vmatpush.bf16.msra.mxu0 0
  %2287 = vmatpush.bf16.msra.mxu0 0
  %2288 = vmatpush.bf16.msra.mxu0 0
  %2289 = vmatpush.bf16.msra.mxu0 0
  %2290 = vmatpush.bf16.msra.mxu0 %v1811
  %2291 = vmatpush.bf16.msra.mxu0 %v1808
  %2292 = vmatpush.bf16.msra.mxu0 %v1805
  %2293 = vmatpush.bf16.msra.mxu0 %v1802
  %2294 = vmatmul.bf16.gmra.mxu0 %v2116
  %v2295 = vpop.f32.mrf.mxu0
  %v2296 = vadd.f32 %v2282, %v2295
  %v2297 = vpop.f32.mrf.mxu0
  %v2298 = vadd.f32 %v2284, %v2297
  %2299 = vdwg.mxu0
  %2300 = vmatpush.bf16.msra.mxu0 %v1536
  %2301 = vmatpush.bf16.msra.mxu0 %v1533
  %2302 = vmatpush.bf16.msra.mxu0 %v1530
  %2303 = vmatpush.bf16.msra.mxu0 %v1527
  %2304 = vmatpush.bf16.msra.mxu0 %v1524
  %2305 = vmatpush.bf16.msra.mxu0 %v1521
  %2306 = vmatpush.bf16.msra.mxu0 %v1518
  %2307 = vmatpush.bf16.msra.mxu0 %v1515
  %2308 = vmatmul.bf16.gmra.mxu0 %v489
  %v2309 = vpop.f32.mrf.mxu0
  %v2310 = vadd.f32 %v444, %v2309
  %v2311 = vpop.f32.mrf.mxu0
  %v2312 = vadd.f32 %v444, %v2311
  %2313 = vdwg.mxu0
  %2314 = vmatpush.bf16.msra.mxu0 %v1560
  %2315 = vmatpush.bf16.msra.mxu0 %v1557
  %2316 = vmatpush.bf16.msra.mxu0 %v1554
  %2317 = vmatpush.bf16.msra.mxu0 %v1551
  %2318 = vmatpush.bf16.msra.mxu0 %v1548
  %2319 = vmatpush.bf16.msra.mxu0 %v1545
  %2320 = vmatpush.bf16.msra.mxu0 %v1542
  %2321 = vmatpush.bf16.msra.mxu0 %v1539
  %2322 = vmatmul.bf16.gmra.mxu0 %v490
  %v2323 = vpop.f32.mrf.mxu0
  %v2324 = vadd.f32 %v2310, %v2323
  %v2325 = vpop.f32.mrf.mxu0
  %v2326 = vadd.f32 %v2312, %v2325
  %2327 = vdwg.mxu0
  %2328 = vmatpush.bf16.msra.mxu0 %v1584
  %2329 = vmatpush.bf16.msra.mxu0 %v1581
  %2330 = vmatpush.bf16.msra.mxu0 %v1578
  %2331 = vmatpush.bf16.msra.mxu0 %v1575
  %2332 = vmatpush.bf16.msra.mxu0 %v1572
  %2333 = vmatpush.bf16.msra.mxu0 %v1569
  %2334 = vmatpush.bf16.msra.mxu0 %v1566
  %2335 = vmatpush.bf16.msra.mxu0 %v1563
  %2336 = vmatmul.bf16.gmra.mxu0 %v491
  %v2337 = vpop.f32.mrf.mxu0
  %v2338 = vadd.f32 %v2324, %v2337
  %v2339 = vpop.f32.mrf.mxu0
  %v2340 = vadd.f32 %v2326, %v2339
  %2341 = vdwg.mxu0
  %2342 = vmatpush.bf16.msra.mxu0 %v1608
  %2343 = vmatpush.bf16.msra.mxu0 %v1605
  %2344 = vmatpush.bf16.msra.mxu0 %v1602
  %2345 = vmatpush.bf16.msra.mxu0 %v1599
  %2346 = vmatpush.bf16.msra.mxu0 %v1596
  %2347 = vmatpush.bf16.msra.mxu0 %v1593
  %2348 = vmatpush.bf16.msra.mxu0 %v1590
  %2349 = vmatpush.bf16.msra.mxu0 %v1587
  %2350 = vmatmul.bf16.gmra.mxu0 %v492
  %v2351 = vpop.f32.mrf.mxu0
  %v2352 = vadd.f32 %v2338, %v2351
  %v2353 = vpop.f32.mrf.mxu0
  %v2354 = vadd.f32 %v2340, %v2353
  %2355 = vdwg.mxu0
  %2356 = vmatpush.bf16.msra.mxu0 %v1632
  %2357 = vmatpush.bf16.msra.mxu0 %v1629
  %2358 = vmatpush.bf16.msra.mxu0 %v1626
  %2359 = vmatpush.bf16.msra.mxu0 %v1623
  %2360 = vmatpush.bf16.msra.mxu0 %v1620
  %2361 = vmatpush.bf16.msra.mxu0 %v1617
  %2362 = vmatpush.bf16.msra.mxu0 %v1614
  %2363 = vmatpush.bf16.msra.mxu0 %v1611
  %2364 = vmatmul.bf16.gmra.mxu0 %v493
  %v2365 = vpop.f32.mrf.mxu0
  %v2366 = vadd.f32 %v2352, %v2365
  %v2367 = vpop.f32.mrf.mxu0
  %v2368 = vadd.f32 %v2354, %v2367
  %2369 = vdwg.mxu0
  %2370 = vmatpush.bf16.msra.mxu0 %v1656
  %2371 = vmatpush.bf16.msra.mxu0 %v1653
  %2372 = vmatpush.bf16.msra.mxu0 %v1650
  %2373 = vmatpush.bf16.msra.mxu0 %v1647
  %2374 = vmatpush.bf16.msra.mxu0 %v1644
  %2375 = vmatpush.bf16.msra.mxu0 %v1641
  %2376 = vmatpush.bf16.msra.mxu0 %v1638
  %2377 = vmatpush.bf16.msra.mxu0 %v1635
  %2378 = vmatmul.bf16.gmra.mxu0 %v494
  %v2379 = vpop.f32.mrf.mxu0
  %v2380 = vadd.f32 %v2366, %v2379
  %v2381 = vpop.f32.mrf.mxu0
  %v2382 = vadd.f32 %v2368, %v2381
  %2383 = vdwg.mxu0
  %2384 = vmatpush.bf16.msra.mxu0 %v1680
  %2385 = vmatpush.bf16.msra.mxu0 %v1677
  %2386 = vmatpush.bf16.msra.mxu0 %v1674
  %2387 = vmatpush.bf16.msra.mxu0 %v1671
  %2388 = vmatpush.bf16.msra.mxu0 %v1668
  %2389 = vmatpush.bf16.msra.mxu0 %v1665
  %2390 = vmatpush.bf16.msra.mxu0 %v1662
  %2391 = vmatpush.bf16.msra.mxu0 %v1659
  %2392 = vmatmul.bf16.gmra.mxu0 %v495
  %v2393 = vpop.f32.mrf.mxu0
  %v2394 = vadd.f32 %v2380, %v2393
  %v2395 = vpop.f32.mrf.mxu0
  %v2396 = vadd.f32 %v2382, %v2395
  %2397 = vdwg.mxu0
  %2398 = vmatpush.bf16.msra.mxu0 %v1704
  %2399 = vmatpush.bf16.msra.mxu0 %v1701
  %2400 = vmatpush.bf16.msra.mxu0 %v1698
  %2401 = vmatpush.bf16.msra.mxu0 %v1695
  %2402 = vmatpush.bf16.msra.mxu0 %v1692
  %2403 = vmatpush.bf16.msra.mxu0 %v1689
  %2404 = vmatpush.bf16.msra.mxu0 %v1686
  %2405 = vmatpush.bf16.msra.mxu0 %v1683
  %2406 = vmatmul.bf16.gmra.mxu0 %v496
  %v2407 = vpop.f32.mrf.mxu0
  %v2408 = vadd.f32 %v2394, %v2407
  %v2409 = vpop.f32.mrf.mxu0
  %v2410 = vadd.f32 %v2396, %v2409
  %2411 = vdwg.mxu0
  %2412 = vmatpush.bf16.msra.mxu0 %v1728
  %2413 = vmatpush.bf16.msra.mxu0 %v1725
  %2414 = vmatpush.bf16.msra.mxu0 %v1722
  %2415 = vmatpush.bf16.msra.mxu0 %v1719
  %2416 = vmatpush.bf16.msra.mxu0 %v1716
  %2417 = vmatpush.bf16.msra.mxu0 %v1713
  %2418 = vmatpush.bf16.msra.mxu0 %v1710
  %2419 = vmatpush.bf16.msra.mxu0 %v1707
  %2420 = vmatmul.bf16.gmra.mxu0 %v497
  %v2421 = vpop.f32.mrf.mxu0
  %v2422 = vadd.f32 %v2408, %v2421
  %v2423 = vpop.f32.mrf.mxu0
  %v2424 = vadd.f32 %v2410, %v2423
  %2425 = vdwg.mxu0
  %2426 = vmatpush.bf16.msra.mxu0 %v1752
  %2427 = vmatpush.bf16.msra.mxu0 %v1749
  %2428 = vmatpush.bf16.msra.mxu0 %v1746
  %2429 = vmatpush.bf16.msra.mxu0 %v1743
  %2430 = vmatpush.bf16.msra.mxu0 %v1740
  %2431 = vmatpush.bf16.msra.mxu0 %v1737
  %2432 = vmatpush.bf16.msra.mxu0 %v1734
  %2433 = vmatpush.bf16.msra.mxu0 %v1731
  %2434 = vmatmul.bf16.gmra.mxu0 %v498
  %v2435 = vpop.f32.mrf.mxu0
  %v2436 = vadd.f32 %v2422, %v2435
  %v2437 = vpop.f32.mrf.mxu0
  %v2438 = vadd.f32 %v2424, %v2437
  %2439 = vdwg.mxu0
  %2440 = vmatpush.bf16.msra.mxu0 %v1776
  %2441 = vmatpush.bf16.msra.mxu0 %v1773
  %2442 = vmatpush.bf16.msra.mxu0 %v1770
  %2443 = vmatpush.bf16.msra.mxu0 %v1767
  %2444 = vmatpush.bf16.msra.mxu0 %v1764
  %2445 = vmatpush.bf16.msra.mxu0 %v1761
  %2446 = vmatpush.bf16.msra.mxu0 %v1758
  %2447 = vmatpush.bf16.msra.mxu0 %v1755
  %2448 = vmatmul.bf16.gmra.mxu0 %v499
  %v2449 = vpop.f32.mrf.mxu0
  %v2450 = vadd.f32 %v2436, %v2449
  %v2451 = vpop.f32.mrf.mxu0
  %v2452 = vadd.f32 %v2438, %v2451
  %2453 = vdwg.mxu0
  %2454 = vmatpush.bf16.msra.mxu0 %v1800
  %2455 = vmatpush.bf16.msra.mxu0 %v1797
  %2456 = vmatpush.bf16.msra.mxu0 %v1794
  %2457 = vmatpush.bf16.msra.mxu0 %v1791
  %2458 = vmatpush.bf16.msra.mxu0 %v1788
  %2459 = vmatpush.bf16.msra.mxu0 %v1785
  %2460 = vmatpush.bf16.msra.mxu0 %v1782
  %2461 = vmatpush.bf16.msra.mxu0 %v1779
  %2462 = vmatmul.bf16.gmra.mxu0 %v500
  %v2463 = vpop.f32.mrf.mxu0
  %v2464 = vadd.f32 %v2450, %v2463
  %v2465 = vpop.f32.mrf.mxu0
  %v2466 = vadd.f32 %v2452, %v2465
  %2467 = vdwg.mxu0
  %2468 = vmatpush.bf16.msra.mxu0 0
  %2469 = vmatpush.bf16.msra.mxu0 0
  %2470 = vmatpush.bf16.msra.mxu0 0
  %2471 = vmatpush.bf16.msra.mxu0 0
  %2472 = vmatpush.bf16.msra.mxu0 %v1812
  %2473 = vmatpush.bf16.msra.mxu0 %v1809
  %2474 = vmatpush.bf16.msra.mxu0 %v1806
  %2475 = vmatpush.bf16.msra.mxu0 %v1803
  %2476 = vmatmul.bf16.gmra.mxu0 %v2116
  %v2477 = vpop.f32.mrf.mxu0
  %v2478 = vadd.f32 %v2464, %v2477
  %v2479 = vpop.f32.mrf.mxu0
  %v2480 = vadd.f32 %v2466, %v2479
  %2481 = vdwg.mxu0
  %2482 = vmatpush.bf16.msra.mxu0 %v1537
  %2483 = vmatpush.bf16.msra.mxu0 %v1534
  %2484 = vmatpush.bf16.msra.mxu0 %v1531
  %2485 = vmatpush.bf16.msra.mxu0 %v1528
  %2486 = vmatpush.bf16.msra.mxu0 %v1525
  %2487 = vmatpush.bf16.msra.mxu0 %v1522
  %2488 = vmatpush.bf16.msra.mxu0 %v1519
  %2489 = vmatpush.bf16.msra.mxu0 %v1516
  %2490 = vmatmul.bf16.gmra.mxu0 %v489
  %v2491 = vpop.f32.mrf.mxu0
  %v2492 = vadd.f32 %v445, %v2491
  %v2493 = vpop.f32.mrf.mxu0
  %v2494 = vadd.f32 %v445, %v2493
  %2495 = vdwg.mxu0
  %2496 = vmatpush.bf16.msra.mxu0 %v1561
  %2497 = vmatpush.bf16.msra.mxu0 %v1558
  %2498 = vmatpush.bf16.msra.mxu0 %v1555
  %2499 = vmatpush.bf16.msra.mxu0 %v1552
  %2500 = vmatpush.bf16.msra.mxu0 %v1549
  %2501 = vmatpush.bf16.msra.mxu0 %v1546
  %2502 = vmatpush.bf16.msra.mxu0 %v1543
  %2503 = vmatpush.bf16.msra.mxu0 %v1540
  %2504 = vmatmul.bf16.gmra.mxu0 %v490
  %v2505 = vpop.f32.mrf.mxu0
  %v2506 = vadd.f32 %v2492, %v2505
  %v2507 = vpop.f32.mrf.mxu0
  %v2508 = vadd.f32 %v2494, %v2507
  %2509 = vdwg.mxu0
  %2510 = vmatpush.bf16.msra.mxu0 %v1585
  %2511 = vmatpush.bf16.msra.mxu0 %v1582
  %2512 = vmatpush.bf16.msra.mxu0 %v1579
  %2513 = vmatpush.bf16.msra.mxu0 %v1576
  %2514 = vmatpush.bf16.msra.mxu0 %v1573
  %2515 = vmatpush.bf16.msra.mxu0 %v1570
  %2516 = vmatpush.bf16.msra.mxu0 %v1567
  %2517 = vmatpush.bf16.msra.mxu0 %v1564
  %2518 = vmatmul.bf16.gmra.mxu0 %v491
  %v2519 = vpop.f32.mrf.mxu0
  %v2520 = vadd.f32 %v2506, %v2519
  %v2521 = vpop.f32.mrf.mxu0
  %v2522 = vadd.f32 %v2508, %v2521
  %2523 = vdwg.mxu0
  %2524 = vmatpush.bf16.msra.mxu0 %v1609
  %2525 = vmatpush.bf16.msra.mxu0 %v1606
  %2526 = vmatpush.bf16.msra.mxu0 %v1603
  %2527 = vmatpush.bf16.msra.mxu0 %v1600
  %2528 = vmatpush.bf16.msra.mxu0 %v1597
  %2529 = vmatpush.bf16.msra.mxu0 %v1594
  %2530 = vmatpush.bf16.msra.mxu0 %v1591
  %2531 = vmatpush.bf16.msra.mxu0 %v1588
  %2532 = vmatmul.bf16.gmra.mxu0 %v492
  %v2533 = vpop.f32.mrf.mxu0
  %v2534 = vadd.f32 %v2520, %v2533
  %v2535 = vpop.f32.mrf.mxu0
  %v2536 = vadd.f32 %v2522, %v2535
  %2537 = vdwg.mxu0
  %2538 = vmatpush.bf16.msra.mxu0 %v1633
  %2539 = vmatpush.bf16.msra.mxu0 %v1630
  %2540 = vmatpush.bf16.msra.mxu0 %v1627
  %2541 = vmatpush.bf16.msra.mxu0 %v1624
  %2542 = vmatpush.bf16.msra.mxu0 %v1621
  %2543 = vmatpush.bf16.msra.mxu0 %v1618
  %2544 = vmatpush.bf16.msra.mxu0 %v1615
  %2545 = vmatpush.bf16.msra.mxu0 %v1612
  %2546 = vmatmul.bf16.gmra.mxu0 %v493
  %v2547 = vpop.f32.mrf.mxu0
  %v2548 = vadd.f32 %v2534, %v2547
  %v2549 = vpop.f32.mrf.mxu0
  %v2550 = vadd.f32 %v2536, %v2549
  %2551 = vdwg.mxu0
  %2552 = vmatpush.bf16.msra.mxu0 %v1657
  %2553 = vmatpush.bf16.msra.mxu0 %v1654
  %2554 = vmatpush.bf16.msra.mxu0 %v1651
  %2555 = vmatpush.bf16.msra.mxu0 %v1648
  %2556 = vmatpush.bf16.msra.mxu0 %v1645
  %2557 = vmatpush.bf16.msra.mxu0 %v1642
  %2558 = vmatpush.bf16.msra.mxu0 %v1639
  %2559 = vmatpush.bf16.msra.mxu0 %v1636
  %2560 = vmatmul.bf16.gmra.mxu0 %v494
  %v2561 = vpop.f32.mrf.mxu0
  %v2562 = vadd.f32 %v2548, %v2561
  %v2563 = vpop.f32.mrf.mxu0
  %v2564 = vadd.f32 %v2550, %v2563
  %2565 = vdwg.mxu0
  %2566 = vmatpush.bf16.msra.mxu0 %v1681
  %2567 = vmatpush.bf16.msra.mxu0 %v1678
  %2568 = vmatpush.bf16.msra.mxu0 %v1675
  %2569 = vmatpush.bf16.msra.mxu0 %v1672
  %2570 = vmatpush.bf16.msra.mxu0 %v1669
  %2571 = vmatpush.bf16.msra.mxu0 %v1666
  %2572 = vmatpush.bf16.msra.mxu0 %v1663
  %2573 = vmatpush.bf16.msra.mxu0 %v1660
  %2574 = vmatmul.bf16.gmra.mxu0 %v495
  %v2575 = vpop.f32.mrf.mxu0
  %v2576 = vadd.f32 %v2562, %v2575
  %v2577 = vpop.f32.mrf.mxu0
  %v2578 = vadd.f32 %v2564, %v2577
  %2579 = vdwg.mxu0
  %2580 = vmatpush.bf16.msra.mxu0 %v1705
  %2581 = vmatpush.bf16.msra.mxu0 %v1702
  %2582 = vmatpush.bf16.msra.mxu0 %v1699
  %2583 = vmatpush.bf16.msra.mxu0 %v1696
  %2584 = vmatpush.bf16.msra.mxu0 %v1693
  %2585 = vmatpush.bf16.msra.mxu0 %v1690
  %2586 = vmatpush.bf16.msra.mxu0 %v1687
  %2587 = vmatpush.bf16.msra.mxu0 %v1684
  %2588 = vmatmul.bf16.gmra.mxu0 %v496
  %v2589 = vpop.f32.mrf.mxu0
  %v2590 = vadd.f32 %v2576, %v2589
  %v2591 = vpop.f32.mrf.mxu0
  %v2592 = vadd.f32 %v2578, %v2591
  %2593 = vdwg.mxu0
  %2594 = vmatpush.bf16.msra.mxu0 %v1729
  %2595 = vmatpush.bf16.msra.mxu0 %v1726
  %2596 = vmatpush.bf16.msra.mxu0 %v1723
  %2597 = vmatpush.bf16.msra.mxu0 %v1720
  %2598 = vmatpush.bf16.msra.mxu0 %v1717
  %2599 = vmatpush.bf16.msra.mxu0 %v1714
  %2600 = vmatpush.bf16.msra.mxu0 %v1711
  %2601 = vmatpush.bf16.msra.mxu0 %v1708
  %2602 = vmatmul.bf16.gmra.mxu0 %v497
  %v2603 = vpop.f32.mrf.mxu0
  %v2604 = vadd.f32 %v2590, %v2603
  %v2605 = vpop.f32.mrf.mxu0
  %v2606 = vadd.f32 %v2592, %v2605
  %2607 = vdwg.mxu0
  %2608 = vmatpush.bf16.msra.mxu0 %v1753
  %2609 = vmatpush.bf16.msra.mxu0 %v1750
  %2610 = vmatpush.bf16.msra.mxu0 %v1747
  %2611 = vmatpush.bf16.msra.mxu0 %v1744
  %2612 = vmatpush.bf16.msra.mxu0 %v1741
  %2613 = vmatpush.bf16.msra.mxu0 %v1738
  %2614 = vmatpush.bf16.msra.mxu0 %v1735
  %2615 = vmatpush.bf16.msra.mxu0 %v1732
  %2616 = vmatmul.bf16.gmra.mxu0 %v498
  %v2617 = vpop.f32.mrf.mxu0
  %v2618 = vadd.f32 %v2604, %v2617
  %v2619 = vpop.f32.mrf.mxu0
  %v2620 = vadd.f32 %v2606, %v2619
  %2621 = vdwg.mxu0
  %2622 = vmatpush.bf16.msra.mxu0 %v1777
  %2623 = vmatpush.bf16.msra.mxu0 %v1774
  %2624 = vmatpush.bf16.msra.mxu0 %v1771
  %2625 = vmatpush.bf16.msra.mxu0 %v1768
  %2626 = vmatpush.bf16.msra.mxu0 %v1765
  %2627 = vmatpush.bf16.msra.mxu0 %v1762
  %2628 = vmatpush.bf16.msra.mxu0 %v1759
  %2629 = vmatpush.bf16.msra.mxu0 %v1756
  %2630 = vmatmul.bf16.gmra.mxu0 %v499
  %v2631 = vpop.f32.mrf.mxu0
  %v2632 = vadd.f32 %v2618, %v2631
  %v2633 = vpop.f32.mrf.mxu0
  %v2634 = vadd.f32 %v2620, %v2633
  %2635 = vdwg.mxu0
  %2636 = vmatpush.bf16.msra.mxu0 %v1801
  %2637 = vmatpush.bf16.msra.mxu0 %v1798
  %2638 = vmatpush.bf16.msra.mxu0 %v1795
  %2639 = vmatpush.bf16.msra.mxu0 %v1792
  %2640 = vmatpush.bf16.msra.mxu0 %v1789
  %2641 = vmatpush.bf16.msra.mxu0 %v1786
  %2642 = vmatpush.bf16.msra.mxu0 %v1783
  %2643 = vmatpush.bf16.msra.mxu0 %v1780
  %2644 = vmatmul.bf16.gmra.mxu0 %v500
  %v2645 = vpop.f32.mrf.mxu0
  %v2646 = vadd.f32 %v2632, %v2645
  %v2647 = vpop.f32.mrf.mxu0
  %v2648 = vadd.f32 %v2634, %v2647
  %2649 = vdwg.mxu0
  %2650 = vmatpush.bf16.msra.mxu0 0
  %2651 = vmatpush.bf16.msra.mxu0 0
  %2652 = vmatpush.bf16.msra.mxu0 0
  %2653 = vmatpush.bf16.msra.mxu0 0
  %2654 = vmatpush.bf16.msra.mxu0 %v1813
  %2655 = vmatpush.bf16.msra.mxu0 %v1810
  %2656 = vmatpush.bf16.msra.mxu0 %v1807
  %2657 = vmatpush.bf16.msra.mxu0 %v1804
  %2658 = vmatmul.bf16.gmra.mxu0 %v2116
  %v2659 = vpop.f32.mrf.mxu0
  %v2660 = vadd.f32 %v2646, %v2659
  %v2661 = vpop.f32.mrf.mxu0
  %v2662 = vadd.f32 %v2648, %v2661
  %2663 = vdwg.mxu0
  %v2664 = vmax.f32 %v2296, 0.0
  %v2665 = vmax.f32 %v2478, 0.0
  %v2666 = vmax.f32 %v2660, 0.0
  %v2667 = vmax.f32 %v2298, 0.0
  %v2668 = vmax.f32 %v2480, 0.0
  %v2669 = vmax.f32 %v2662, 0.0
  %v2670 = vpack.c.bf16 %v2667, %v2664
  %v2671 = vpack.c.bf16 %v2668, %v2665
  %v2672 = vpack.c.bf16 %v2669, %v2666
  %v2673 = vld [vmem:[%s3] sm:$0xff]
  %v2674 = vld [vmem:[%s3 + $0x8] sm:$0xff]
  %v2675 = vld [vmem:[%s3 + $0x10] sm:$0xff]
  %v2676 = vld [vmem:[%s3 + $0x18] sm:$0xff]
  %v2677 = vld [vmem:[%s3 + $0x20] sm:$0xff]
  %v2678 = vld [vmem:[%s3 + $0x28] sm:$0xff]
  %v2679 = vld [vmem:[%s3 + $0x30] sm:$0xff]
  %v2680 = vld [vmem:[%s3 + $0x38] sm:$0xff]
  %v2681 = vld [vmem:[%s3 + $0x40] sm:$0xff]
  %v2682 = vld [vmem:[%s3 + $0x48] sm:$0xff]
  %v2683 = vld [vmem:[%s3 + $0x50] sm:$0xff]
  %v2684 = vld [vmem:[%s3 + $0x58] sm:$0xff]
  %v2685 = vld [vmem:[%s3 + $0x60] sm:$0xff]
  %v2686 = vld [vmem:[%s3 + $0x68] sm:$0xff]
  %v2687 = vld [vmem:[%s3 + $0x70] sm:$0xff]
  %v2688 = vld [vmem:[%s3 + $0x78] sm:$0xff]
  %v2689 = vld [vmem:[%s3 + $0x80] sm:$0xff]
  %v2690 = vld [vmem:[%s3 + $0x88] sm:$0xff]
  %v2691 = vld [vmem:[%s3 + $0x90] sm:$0xff]
  %v2692 = vld [vmem:[%s3 + $0x98] sm:$0xff]
  %v2693 = vld [vmem:[%s3 + $0xa0] sm:$0xff]
  %v2694 = vld [vmem:[%s3 + $0xa8] sm:$0xff]
  %v2695 = vld [vmem:[%s3 + $0xb0] sm:$0xff]
  %v2696 = vld [vmem:[%s3 + $0xb8] sm:$0xff]
  %v2697 = vld [vmem:[%s3 + $0xc0] sm:$0xff]
  %v2698 = vld [vmem:[%s3 + $0xc8] sm:$0xff]
  %v2699 = vld [vmem:[%s3 + $0xd0] sm:$0xff]
  %v2700 = vld [vmem:[%s3 + $0xd8] sm:$0xff]
  %v2701 = vld [vmem:[%s3 + $0xe0] sm:$0xff]
  %v2702 = vld [vmem:[%s3 + $0xe8] sm:$0xff]
  %v2703 = vld [vmem:[%s3 + $0xf0] sm:$0xff]
  %v2704 = vld [vmem:[%s3 + $0xf8] sm:$0xff]
  %v2705 = vld [vmem:[%s3 + $0x100] sm:$0xff]
  %v2706 = vld [vmem:[%s3 + $0x108] sm:$0xff]
  %v2707 = vld [vmem:[%s3 + $0x110] sm:$0xff]
  %v2708 = vld [vmem:[%s3 + $0x118] sm:$0xff]
  %v2709 = vld [vmem:[%s3 + $0x120] sm:$0xff]
  %v2710 = vld [vmem:[%s3 + $0x128] sm:$0xff]
  %v2711 = vld [vmem:[%s3 + $0x130] sm:$0xff]
  %v2712 = vld [vmem:[%s3 + $0x138] sm:$0xff]
  %v2713 = vld [vmem:[%s3 + $0x140] sm:$0xff]
  %v2714 = vld [vmem:[%s3 + $0x148] sm:$0xff]
  %v2715 = vld [vmem:[%s3 + $0x150] sm:$0xff]
  %v2716 = vld [vmem:[%s3 + $0x158] sm:$0xff]
  %v2717 = vld [vmem:[%s3 + $0x160] sm:$0xff]
  %v2718 = vld [vmem:[%s3 + $0x168] sm:$0xff]
  %v2719 = vld [vmem:[%s3 + $0x170] sm:$0xff]
  %v2720 = vld [vmem:[%s3 + $0x178] sm:$0xff]
  %v2721 = vld [vmem:[%s4] sm:$0x3]
  %v2723 = vperm.slane %v2721, 0
  %v2724 = vperm.slane %v2721, 1
  %v2775 = vunpack.c.l.b16 %v2673
  %v2776 = vunpack.c.h.b16 %v2673
  %v2777 = vunpack.c.l.b16 %v2674
  %v2778 = vunpack.c.h.b16 %v2674
  %v2779 = vunpack.c.l.b16 %v2675
  %v2780 = vunpack.c.h.b16 %v2675
  %v2781 = vunpack.c.l.b16 %v2676
  %v2782 = vunpack.c.h.b16 %v2676
  %v2783 = vunpack.c.l.b16 %v2677
  %v2784 = vunpack.c.h.b16 %v2677
  %v2785 = vunpack.c.l.b16 %v2678
  %v2786 = vunpack.c.h.b16 %v2678
  %v2787 = vunpack.c.l.b16 %v2679
  %v2788 = vunpack.c.h.b16 %v2679
  %v2789 = vunpack.c.l.b16 %v2680
  %v2790 = vunpack.c.h.b16 %v2680
  %v2791 = vunpack.c.l.b16 %v2681
  %v2792 = vunpack.c.h.b16 %v2681
  %v2793 = vunpack.c.l.b16 %v2682
  %v2794 = vunpack.c.h.b16 %v2682
  %v2795 = vunpack.c.l.b16 %v2683
  %v2796 = vunpack.c.h.b16 %v2683
  %v2797 = vunpack.c.l.b16 %v2684
  %v2798 = vunpack.c.h.b16 %v2684
  %v2799 = vunpack.c.l.b16 %v2685
  %v2800 = vunpack.c.h.b16 %v2685
  %v2801 = vunpack.c.l.b16 %v2686
  %v2802 = vunpack.c.h.b16 %v2686
  %v2803 = vunpack.c.l.b16 %v2687
  %v2804 = vunpack.c.h.b16 %v2687
  %v2805 = vunpack.c.l.b16 %v2688
  %v2806 = vunpack.c.h.b16 %v2688
  %v2807 = vunpack.c.l.b16 %v2689
  %v2808 = vunpack.c.h.b16 %v2689
  %v2809 = vunpack.c.l.b16 %v2690
  %v2810 = vunpack.c.h.b16 %v2690
  %v2811 = vunpack.c.l.b16 %v2691
  %v2812 = vunpack.c.h.b16 %v2691
  %v2813 = vunpack.c.l.b16 %v2692
  %v2814 = vunpack.c.h.b16 %v2692
  %v2815 = vunpack.c.l.b16 %v2693
  %v2816 = vunpack.c.h.b16 %v2693
  %v2817 = vunpack.c.l.b16 %v2694
  %v2818 = vunpack.c.h.b16 %v2694
  %v2819 = vunpack.c.l.b16 %v2695
  %v2820 = vunpack.c.h.b16 %v2695
  %v2821 = vunpack.c.l.b16 %v2696
  %v2822 = vunpack.c.h.b16 %v2696
  %v2823 = vunpack.c.l.b16 %v2697
  %v2824 = vunpack.c.h.b16 %v2697
  %v2825 = vunpack.c.l.b16 %v2698
  %v2826 = vunpack.c.h.b16 %v2698
  %v2827 = vunpack.c.l.b16 %v2699
  %v2828 = vunpack.c.h.b16 %v2699
  %v2829 = vunpack.c.l.b16 %v2700
  %v2830 = vunpack.c.h.b16 %v2700
  %v2831 = vunpack.c.l.b16 %v2701
  %v2832 = vunpack.c.h.b16 %v2701
  %v2833 = vunpack.c.l.b16 %v2702
  %v2834 = vunpack.c.h.b16 %v2702
  %v2835 = vunpack.c.l.b16 %v2703
  %v2836 = vunpack.c.h.b16 %v2703
  %v2837 = vunpack.c.l.b16 %v2704
  %v2838 = vunpack.c.h.b16 %v2704
  %v2839 = vunpack.c.l.b16 %v2705
  %v2840 = vunpack.c.h.b16 %v2705
  %v2841 = vunpack.c.l.b16 %v2706
  %v2842 = vunpack.c.h.b16 %v2706
  %v2843 = vunpack.c.l.b16 %v2707
  %v2844 = vunpack.c.h.b16 %v2707
  %v2845 = vunpack.c.l.b16 %v2708
  %v2846 = vunpack.c.h.b16 %v2708
  %v2847 = vunpack.c.l.b16 %v2709
  %v2848 = vunpack.c.h.b16 %v2709
  %v2849 = vunpack.c.l.b16 %v2710
  %v2850 = vunpack.c.h.b16 %v2710
  %v2851 = vunpack.c.l.b16 %v2711
  %v2852 = vunpack.c.h.b16 %v2711
  %v2853 = vunpack.c.l.b16 %v2712
  %v2854 = vunpack.c.h.b16 %v2712
  %v2855 = vunpack.c.l.b16 %v2713
  %v2856 = vunpack.c.h.b16 %v2713
  %v2857 = vunpack.c.l.b16 %v2714
  %v2858 = vunpack.c.h.b16 %v2714
  %v2859 = vunpack.c.l.b16 %v2715
  %v2860 = vunpack.c.h.b16 %v2715
  %v2861 = vunpack.c.l.b16 %v2716
  %v2862 = vunpack.c.h.b16 %v2716
  %v2863 = vunpack.c.l.b16 %v2717
  %v2864 = vunpack.c.h.b16 %v2717
  %v2865 = vunpack.c.l.b16 %v2718
  %v2866 = vunpack.c.h.b16 %v2718
  %v2867 = vunpack.c.l.b16 %v2719
  %v2868 = vunpack.c.h.b16 %v2719
  %v2869 = vunpack.c.l.b16 %v2720
  %v2870 = vunpack.c.h.b16 %v2720
  %v2871 = vpack.c.b16 %v2777, %v2775
  %v2872 = vpack.c.b16 %v2778, %v2776
  %v2873 = vpack.c.b16 %v2781, %v2779
  %v2874 = vpack.c.b16 %v2782, %v2780
  %v2875 = vpack.c.b16 %v2785, %v2783
  %v2876 = vpack.c.b16 %v2786, %v2784
  %v2877 = vpack.c.b16 %v2789, %v2787
  %v2878 = vpack.c.b16 %v2790, %v2788
  %v2879 = vpack.c.b16 %v2793, %v2791
  %v2880 = vpack.c.b16 %v2794, %v2792
  %v2881 = vpack.c.b16 %v2797, %v2795
  %v2882 = vpack.c.b16 %v2798, %v2796
  %v2883 = vpack.c.b16 %v2801, %v2799
  %v2884 = vpack.c.b16 %v2802, %v2800
  %v2885 = vpack.c.b16 %v2805, %v2803
  %v2886 = vpack.c.b16 %v2806, %v2804
  %v2887 = vpack.c.b16 %v2809, %v2807
  %v2888 = vpack.c.b16 %v2810, %v2808
  %v2889 = vpack.c.b16 %v2813, %v2811
  %v2890 = vpack.c.b16 %v2814, %v2812
  %v2891 = vpack.c.b16 %v2817, %v2815
  %v2892 = vpack.c.b16 %v2818, %v2816
  %v2893 = vpack.c.b16 %v2821, %v2819
  %v2894 = vpack.c.b16 %v2822, %v2820
  %v2895 = vpack.c.b16 %v2825, %v2823
  %v2896 = vpack.c.b16 %v2826, %v2824
  %v2897 = vpack.c.b16 %v2829, %v2827
  %v2898 = vpack.c.b16 %v2830, %v2828
  %v2899 = vpack.c.b16 %v2833, %v2831
  %v2900 = vpack.c.b16 %v2834, %v2832
  %v2901 = vpack.c.b16 %v2837, %v2835
  %v2902 = vpack.c.b16 %v2838, %v2836
  %v2903 = vpack.c.b16 %v2841, %v2839
  %v2904 = vpack.c.b16 %v2842, %v2840
  %v2905 = vpack.c.b16 %v2845, %v2843
  %v2906 = vpack.c.b16 %v2846, %v2844
  %v2907 = vpack.c.b16 %v2849, %v2847
  %v2908 = vpack.c.b16 %v2850, %v2848
  %v2909 = vpack.c.b16 %v2853, %v2851
  %v2910 = vpack.c.b16 %v2854, %v2852
  %v2911 = vpack.c.b16 %v2857, %v2855
  %v2912 = vpack.c.b16 %v2858, %v2856
  %v2913 = vpack.c.b16 %v2861, %v2859
  %v2914 = vpack.c.b16 %v2862, %v2860
  %v2915 = vpack.c.b16 %v2865, %v2863
  %v2916 = vpack.c.b16 %v2866, %v2864
  %v2917 = vpack.c.b16 %v2869, %v2867
  %v2918 = vpack.c.b16 %v2870, %v2868
  %2967 = vmatpush.bf16.msra.mxu0 %v2885
  %2968 = vmatpush.bf16.msra.mxu0 %v2883
  %2969 = vmatpush.bf16.msra.mxu0 %v2881
  %2970 = vmatpush.bf16.msra.mxu0 %v2879
  %2971 = vmatpush.bf16.msra.mxu0 %v2877
  %2972 = vmatpush.bf16.msra.mxu0 %v2875
  %2973 = vmatpush.bf16.msra.mxu0 %v2873
  %2974 = vmatpush.bf16.msra.mxu0 %v2871
  %2975 = vmatmul.bf16.gmra.mxu0 %v2670
  %v2976 = vpop.f32.mrf.mxu0
  %v2977 = vadd.f32 %v2723, %v2976
  %v2978 = vpop.f32.mrf.mxu0
  %v2979 = vadd.f32 %v2723, %v2978
  %2980 = vdwg.mxu0
  %2981 = vmatpush.bf16.msra.mxu0 %v2901
  %2982 = vmatpush.bf16.msra.mxu0 %v2899
  %2983 = vmatpush.bf16.msra.mxu0 %v2897
  %2984 = vmatpush.bf16.msra.mxu0 %v2895
  %2985 = vmatpush.bf16.msra.mxu0 %v2893
  %2986 = vmatpush.bf16.msra.mxu0 %v2891
  %2987 = vmatpush.bf16.msra.mxu0 %v2889
  %2988 = vmatpush.bf16.msra.mxu0 %v2887
  %2989 = vmatmul.bf16.gmra.mxu0 %v2671
  %v2990 = vpop.f32.mrf.mxu0
  %v2991 = vadd.f32 %v2977, %v2990
  %v2992 = vpop.f32.mrf.mxu0
  %v2993 = vadd.f32 %v2979, %v2992
  %2994 = vdwg.mxu0
  %2995 = vmatpush.bf16.msra.mxu0 %v2917
  %2996 = vmatpush.bf16.msra.mxu0 %v2915
  %2997 = vmatpush.bf16.msra.mxu0 %v2913
  %2998 = vmatpush.bf16.msra.mxu0 %v2911
  %2999 = vmatpush.bf16.msra.mxu0 %v2909
  %3000 = vmatpush.bf16.msra.mxu0 %v2907
  %3001 = vmatpush.bf16.msra.mxu0 %v2905
  %3002 = vmatpush.bf16.msra.mxu0 %v2903
  %3003 = vmatmul.bf16.gmra.mxu0 %v2672
  %v3004 = vpop.f32.mrf.mxu0
  %v3005 = vadd.f32 %v2991, %v3004
  %v3006 = vpop.f32.mrf.mxu0
  %v3007 = vadd.f32 %v2993, %v3006
  %3008 = vdwg.mxu0
  %3009 = vmatpush.bf16.msra.mxu0 %v2886
  %3010 = vmatpush.bf16.msra.mxu0 %v2884
  %3011 = vmatpush.bf16.msra.mxu0 %v2882
  %3012 = vmatpush.bf16.msra.mxu0 %v2880
  %3013 = vmatpush.bf16.msra.mxu0 %v2878
  %3014 = vmatpush.bf16.msra.mxu0 %v2876
  %3015 = vmatpush.bf16.msra.mxu0 %v2874
  %3016 = vmatpush.bf16.msra.mxu0 %v2872
  %3017 = vmatmul.bf16.gmra.mxu0 %v2670
  %v3018 = vpop.f32.mrf.mxu0
  %v3019 = vadd.f32 %v2724, %v3018
  %v3020 = vpop.f32.mrf.mxu0
  %v3021 = vadd.f32 %v2724, %v3020
  %3022 = vdwg.mxu0
  %3023 = vmatpush.bf16.msra.mxu0 %v2902
  %3024 = vmatpush.bf16.msra.mxu0 %v2900
  %3025 = vmatpush.bf16.msra.mxu0 %v2898
  %3026 = vmatpush.bf16.msra.mxu0 %v2896
  %3027 = vmatpush.bf16.msra.mxu0 %v2894
  %3028 = vmatpush.bf16.msra.mxu0 %v2892
  %3029 = vmatpush.bf16.msra.mxu0 %v2890
  %3030 = vmatpush.bf16.msra.mxu0 %v2888
  %3031 = vmatmul.bf16.gmra.mxu0 %v2671
  %v3032 = vpop.f32.mrf.mxu0
  %v3033 = vadd.f32 %v3019, %v3032
  %v3034 = vpop.f32.mrf.mxu0
  %v3035 = vadd.f32 %v3021, %v3034
  %3036 = vdwg.mxu0
  %3037 = vmatpush.bf16.msra.mxu0 %v2918
  %3038 = vmatpush.bf16.msra.mxu0 %v2916
  %3039 = vmatpush.bf16.msra.mxu0 %v2914
  %3040 = vmatpush.bf16.msra.mxu0 %v2912
  %3041 = vmatpush.bf16.msra.mxu0 %v2910
  %3042 = vmatpush.bf16.msra.mxu0 %v2908
  %3043 = vmatpush.bf16.msra.mxu0 %v2906
  %3044 = vmatpush.bf16.msra.mxu0 %v2904
  %3045 = vmatmul.bf16.gmra.mxu0 %v2672
  %v3046 = vpop.f32.mrf.mxu0
  %v3047 = vadd.f32 %v3033, %v3046
  %v3048 = vpop.f32.mrf.mxu0
  %v3049 = vadd.f32 %v3035, %v3048
  %3050 = vdwg.mxu0
  %v3051 = vmax.f32 %v3005, 0.0
  %v3052 = vmax.f32 %v3047, 0.0
  %v3053 = vmax.f32 %v3007, 0.0
  %v3054 = vmax.f32 %v3049, 0.0
  %v3055 = vpack.c.bf16 %v3053, %v3051
  %v3056 = vpack.c.bf16 %v3054, %v3052
  %v3057 = vld [vmem:[%s5] sm:$0xf]
  %v3058 = vld [vmem:[%s5 + $0x4] sm:$0xf]
  %v3059 = vld [vmem:[%s5 + $0x8] sm:$0xf]
  %v3060 = vld [vmem:[%s5 + $0xc] sm:$0xf]
  %v3061 = vld [vmem:[%s5 + $0x10] sm:$0xf]
  %v3062 = vld [vmem:[%s5 + $0x14] sm:$0xf]
  %v3063 = vld [vmem:[%s5 + $0x18] sm:$0xf]
  %v3064 = vld [vmem:[%s5 + $0x1c] sm:$0xf]
  %v3065 = vld [vmem:[%s5 + $0x20] sm:$0xf]
  %v3066 = vld [vmem:[%s5 + $0x24] sm:$0xf]
  %v3067 = vld [vmem:[%s5 + $0x28] sm:$0xf]
  %v3068 = vld [vmem:[%s5 + $0x2c] sm:$0xf]
  %v3069 = vld [vmem:[%s5 + $0x30] sm:$0xf]
  %v3070 = vld [vmem:[%s5 + $0x34] sm:$0xf]
  %v3071 = vld [vmem:[%s5 + $0x38] sm:$0xf]
  %v3072 = vld [vmem:[%s5 + $0x3c] sm:$0xf]
  %v3073 = vld [vmem:[%s5 + $0x40] sm:$0xf]
  %v3074 = vld [vmem:[%s5 + $0x44] sm:$0xf]
  %v3075 = vld [vmem:[%s5 + $0x48] sm:$0xf]
  %v3076 = vld [vmem:[%s5 + $0x4c] sm:$0xf]
  %v3077 = vld [vmem:[%s5 + $0x50] sm:$0xf]
  %v3078 = vld [vmem:[%s5 + $0x54] sm:$0xf]
  %v3079 = vld [vmem:[%s5 + $0x58] sm:$0xf]
  %v3080 = vld [vmem:[%s5 + $0x5c] sm:$0xf]
  %v3081 = vld [vmem:[%s6] sm:$0x1]
  %v3083 = vperm.slane %v3081, 0
  %v3109 = vunpack.c.l.b16 %v3057
  %v3110 = vunpack.c.l.b16 %v3058
  %v3111 = vunpack.c.l.b16 %v3059
  %v3112 = vunpack.c.l.b16 %v3060
  %v3113 = vunpack.c.l.b16 %v3061
  %v3114 = vunpack.c.l.b16 %v3062
  %v3115 = vunpack.c.l.b16 %v3063
  %v3116 = vunpack.c.l.b16 %v3064
  %v3117 = vunpack.c.l.b16 %v3065
  %v3118 = vunpack.c.l.b16 %v3066
  %v3119 = vunpack.c.l.b16 %v3067
  %v3120 = vunpack.c.l.b16 %v3068
  %v3121 = vunpack.c.l.b16 %v3069
  %v3122 = vunpack.c.l.b16 %v3070
  %v3123 = vunpack.c.l.b16 %v3071
  %v3124 = vunpack.c.l.b16 %v3072
  %v3125 = vunpack.c.l.b16 %v3073
  %v3126 = vunpack.c.l.b16 %v3074
  %v3127 = vunpack.c.l.b16 %v3075
  %v3128 = vunpack.c.l.b16 %v3076
  %v3129 = vunpack.c.l.b16 %v3077
  %v3130 = vunpack.c.l.b16 %v3078
  %v3131 = vunpack.c.l.b16 %v3079
  %v3132 = vunpack.c.l.b16 %v3080
  %v3133 = vpack.c.b16 %v3110, %v3109
  %v3134 = vpack.c.b16 %v3112, %v3111
  %v3135 = vpack.c.b16 %v3114, %v3113
  %v3136 = vpack.c.b16 %v3116, %v3115
  %v3137 = vpack.c.b16 %v3118, %v3117
  %v3138 = vpack.c.b16 %v3120, %v3119
  %v3139 = vpack.c.b16 %v3122, %v3121
  %v3140 = vpack.c.b16 %v3124, %v3123
  %v3141 = vpack.c.b16 %v3126, %v3125
  %v3142 = vpack.c.b16 %v3128, %v3127
  %v3143 = vpack.c.b16 %v3130, %v3129
  %v3144 = vpack.c.b16 %v3132, %v3131
  %v3158 = vsel %vm2114, %v3056, 0
  %3160 = vmatpush.bf16.msra.mxu0 %v3140
  %3161 = vmatpush.bf16.msra.mxu0 %v3139
  %3162 = vmatpush.bf16.msra.mxu0 %v3138
  %3163 = vmatpush.bf16.msra.mxu0 %v3137
  %3164 = vmatpush.bf16.msra.mxu0 %v3136
  %3165 = vmatpush.bf16.msra.mxu0 %v3135
  %3166 = vmatpush.bf16.msra.mxu0 %v3134
  %3167 = vmatpush.bf16.msra.mxu0 %v3133
  %3168 = vmatmul.bf16.gmra.mxu0 %v3055
  %v3169 = vpop.f32.mrf.mxu0
  %v3170 = vadd.f32 %v3083, %v3169
  %v3171 = vpop.f32.mrf.mxu0
  %v3172 = vadd.f32 %v3083, %v3171
  %3173 = vdwg.mxu0
  %3174 = vmatpush.bf16.msra.mxu0 0
  %3175 = vmatpush.bf16.msra.mxu0 0
  %3176 = vmatpush.bf16.msra.mxu0 0
  %3177 = vmatpush.bf16.msra.mxu0 0
  %3178 = vmatpush.bf16.msra.mxu0 %v3144
  %3179 = vmatpush.bf16.msra.mxu0 %v3143
  %3180 = vmatpush.bf16.msra.mxu0 %v3142
  %3181 = vmatpush.bf16.msra.mxu0 %v3141
  %3182 = vmatmul.bf16.gmra.mxu0 %v3158
  %v3183 = vpop.f32.mrf.mxu0
  %v3184 = vadd.f32 %v3170, %v3183
  %v3185 = vpop.f32.mrf.mxu0
  %v3186 = vadd.f32 %v3172, %v3185
  %3187 = vdwg.mxu0
  %vm3188 = vcmask 818176
  %3189 = vst.msk [vmem:[%s7] sm:$0xff] %vm3188, %v3184
  %3190 = vst.msk [vmem:[%s7 + $0x8] sm:$0xff] %vm3188, %v3186
  // Predicated region
  $region30: #{cnn_forward.5} parent=0 // pred_check
    _
  $region31: #{cnn_forward.5} parent=0 // pred_check_branch
    %3192 = sbr.rel (0) target = $region33
  $region32: #{cnn_forward.5} parent=0 // pred_region
    _
  $region33: #{cnn_forward.5} parent=0 // pred_fallthru
    _
  // Predicated region
  $region34: #{cnn_forward.5} parent=0 // pred_check
    _
  $region35: #{cnn_forward.5} parent=0 // pred_check_branch
    %3194 = sbr.rel (0) target = $region37
  $region36: #{cnn_forward.5} parent=0 // pred_region
    _
  $region37: #{cnn_forward.5} parent=0 // pred_fallthru
    _

</llo_original>
